<compile_context>
chip_gen: v7x
topology: tpu7x:2x2x1
jax: 0.10.0
libtpu: 0.0.40
codegen_flags: <defaults>
</compile_context>

<pallas_src>
import functools

import jax
import jax.numpy as jnp
from jax import lax
from jax.experimental import pallas as pl
from jax.experimental.pallas import tpu as pltpu

# ---------------- config (small demo shapes) ----------------
VOCAB = 50
EMBED_DIM = 128          # stand-in for BERT hidden size
FILTERS = 64             # IDCNN filters (feeds LSTM input size 64)
HIDDEN = 32              # LSTM hidden_dim
RNN_LAYERS = 1
TAGSET = 5
NTAGS = TAGSET + 2       # + START + STOP (CRF convention)
K_PAD = 8                # tag dim padded so the last dim tiles cleanly
START = NTAGS - 2        # 5
STOP = NTAGS - 1         # 6
NEG = -10000.0

VMEM_LIMIT = 32 * 1024 * 1024   # explicit scoped-VMEM budget (safe on v5e/v6e/v7x)


# ---------------- Pallas matmul (+bias), tiled & pipelined over rows ----------------
def _matmul_bias_kernel(x_ref, w_ref, b_ref, o_ref):
    o_ref[...] = (jnp.dot(x_ref[...], w_ref[...], preferred_element_type=jnp.float32)
                  + b_ref[...]).astype(o_ref.dtype)


def matmul_bias(x, w, b, tile_m=256):
    # x: (M, K)  w: (K, N)  b: (N,) -> (M, N); grid over M rows, double-buffered.
    M, K = x.shape
    N = w.shape[1]
    tm = M if M <= tile_m else tile_m
    return pl.pallas_call(
        _matmul_bias_kernel,
        out_shape=jax.ShapeDtypeStruct((M, N), jnp.float32),
        grid=(pl.cdiv(M, tm),),
        in_specs=[pl.BlockSpec((tm, K), lambda i: (i, 0)),
                  pl.BlockSpec((K, N), lambda i: (0, 0)),
                  pl.BlockSpec((1, N), lambda i: (0, 0))],
        out_specs=pl.BlockSpec((tm, N), lambda i: (i, 0)),
        compiler_params=pltpu.CompilerParams(
            dimension_semantics=("parallel",),
            vmem_limit_bytes=VMEM_LIMIT),
    )(x, w, b.reshape(1, N))


# ---------------- fused IDCNN (4 conv layers, kernel=3, 'same', dilated) ----------------
def _shift_matrices(T, d):
    # down @ h -> h[t-d]  (zero where out of range);  up @ h -> h[t+d]
    r = lax.broadcasted_iota(jnp.int32, (T, T), 0)
    c = lax.broadcasted_iota(jnp.int32, (T, T), 1)
    down = (r - c == d).astype(jnp.float32)
    up = (c - r == d).astype(jnp.float32)
    return down, up


def _conv3(h, w_ref, b_ref, down, up):
    # h: (T, Cin); w_ref: (3*Cin, Cout) = [w_prev ; w_center ; w_next]; b_ref: (1, Cout)
    cin = h.shape[-1]
    prev = jnp.dot(down, h, preferred_element_type=jnp.float32)
    nxt = jnp.dot(up, h, preferred_element_type=jnp.float32)
    acc = jnp.dot(prev, w_ref[0:cin, :], preferred_element_type=jnp.float32)
    acc = acc + jnp.dot(h, w_ref[cin:2 * cin, :], preferred_element_type=jnp.float32)
    acc = acc + jnp.dot(nxt, w_ref[2 * cin:3 * cin, :], preferred_element_type=jnp.float32)
    return jnp.maximum(acc + b_ref[...], 0.0)


def _idcnn_kernel(x_ref, w0_ref, b0_ref, w1_ref, b1_ref, w2_ref, b2_ref,
                  w3_ref, b3_ref, o_ref, *, T):
    d1_down, d1_up = _shift_matrices(T, 1)
    d2_down, d2_up = _shift_matrices(T, 2)
    h = x_ref[...]                                   # (T, E) resident in VMEM
    h = _conv3(h, w0_ref, b0_ref, d1_down, d1_up)    # initial conv E -> 64
    h = _conv3(h, w1_ref, b1_ref, d1_down, d1_up)    # dilation 1
    h = _conv3(h, w2_ref, b2_ref, d1_down, d1_up)    # dilation 1
    h = _conv3(h, w3_ref, b3_ref, d2_down, d2_up)    # dilation 2
    o_ref[...] = h                                   # only the last layer hits HBM


def idcnn_forward(embeds, params):
    B, T, E = embeds.shape
    w0, b0 = params["idcnn_w0"], params["idcnn_b0"]
    (w1, b1), (w2, b2), (w3, b3) = params["idcnn_blocks"]

    def full(shape):
        return pl.BlockSpec(shape, lambda b: (0,) * len(shape))

    return pl.pallas_call(
        functools.partial(_idcnn_kernel, T=T),
        out_shape=jax.ShapeDtypeStruct((B, T, FILTERS), jnp.float32),
        grid=(B,),
        in_specs=[pl.BlockSpec((None, T, E), lambda b: (b, 0, 0)),
                  full(w0.shape), full((1, FILTERS)),
                  full(w1.shape), full((1, FILTERS)),
                  full(w2.shape), full((1, FILTERS)),
                  full(w3.shape), full((1, FILTERS))],
        out_specs=pl.BlockSpec((None, T, FILTERS), lambda b: (b, 0, 0)),
        compiler_params=pltpu.CompilerParams(
            dimension_semantics=("parallel",),
            vmem_limit_bytes=VMEM_LIMIT),
    )(embeds, w0, b0.reshape(1, -1), w1, b1.reshape(1, -1),
      w2, b2.reshape(1, -1), w3, b3.reshape(1, -1))


# ---------------- bidirectional LSTM: one grid step per direction, full T in-kernel ----------------
def _bilstm_kernel(gx_ref, whh_ref, h0_ref, c0_ref, out_ref, *, T, H):
    rev = pl.program_id(0) == 1          # direction 1 walks time backwards
    whh = whh_ref[...]                   # (H, 4H), gate columns [i | f | o | g]
    h = h0_ref[...]                      # (B, H)
    c = c0_ref[...]
    for t in range(T):                   # static unroll; T is small here
        tt = jnp.where(rev, T - 1 - t, t)
        g_x = gx_ref[pl.ds(tt, 1)][0]    # (B, 4H) precomputed x @ W_ih + b
        gates = g_x + jnp.dot(h, whh, preferred_element_type=jnp.float32)
        ifo = jax.nn.sigmoid(gates[:, :3 * H])      # one EUP launch for i, f, o
        g_new = jnp.tanh(gates[:, 3 * H:])          # one EUP launch for g
        i = ifo[:, 0:H]
        f = ifo[:, H:2 * H]
        o = ifo[:, 2 * H:3 * H]
        c = f * c + i * g_new
        h = o * jnp.tanh(c)
        out_ref[pl.ds(tt, 1)] = h[None, :, :]       # write in forward time order
    # TODO(synk): for long sequences switch the static unroll to lax.fori_loop.


def bilstm(gx, w_hh, h0, c0):
    # gx: (2, T, B, 4H) time-major gate pre-activations; w_hh: (2, H, 4H)
    D, T, B, G = gx.shape
    H = G // 4
    return pl.pallas_call(
        functools.partial(_bilstm_kernel, T=T, H=H),
        out_shape=jax.ShapeDtypeStruct((D, T, B, H), jnp.float32),
        grid=(D,),
        in_specs=[pl.BlockSpec((None, T, B, G), lambda d: (d, 0, 0, 0)),
                  pl.BlockSpec((None, H, G), lambda d: (d, 0, 0)),
                  pl.BlockSpec((None, B, H), lambda d: (d, 0, 0)),
                  pl.BlockSpec((None, B, H), lambda d: (d, 0, 0))],
        out_specs=pl.BlockSpec((None, T, B, H), lambda d: (d, 0, 0, 0)),
        compiler_params=pltpu.CompilerParams(
            dimension_semantics=("parallel",),   # directions independent (megacore on v7x)
            vmem_limit_bytes=VMEM_LIMIT),
    )(gx, w_hh, h0, c0)


# ---------------- fused final projection + CRF Viterbi forward recursion ----------------
def _proj_viterbi_kernel(lstm_ref, w_ref, b_ref, trans_t_ref, init_ref, mask_ref,
                         bp_ref, final_ref, *, T, H, KP):
    wf = w_ref[0:H, :]                   # (H, KP) projection rows for forward dir
    wb = w_ref[H:2 * H, :]               # (H, KP) projection rows for backward dir
    bias = b_ref[...]                    # (1, KP)
    trans_t = trans_t_ref[...]           # (KP, KP); trans_t[k, j] = trans[j, k]
    mval = mask_ref[...]                 # (T, B, 1) float {0, 1}
    hf = lstm_ref[0]                     # (T, B, H)
    hb = lstm_ref[1]
    B = hf.shape[1]

    def emit(t):                         # emission scores at timestep t: (B, KP)
        return (jnp.dot(hf[t], wf, preferred_element_type=jnp.float32)
                + jnp.dot(hb[t], wb, preferred_element_type=jnp.float32) + bias)

    lane = lax.broadcasted_iota(jnp.int32, (B, KP), 1)
    score = init_ref[...] + emit(0)      # trans[START, :] + emission
    bp_ref[0] = jnp.full((B, KP), START, dtype=jnp.int32)

    for t in range(1, T):
        # vectorized transition step: sk[b, k, j] = score[b, j] + trans[j, k]
        sk = score[:, None, :] + trans_t[None, :, :]               # (B, KP, KP)
        best = jnp.max(sk, axis=-1)                                # (B, KP)
        j_idx = lax.broadcasted_iota(jnp.int32, (B, KP, KP), 2)
        bp_t = jnp.min(jnp.where(sk >= best[:, :, None], j_idx, KP), axis=-1)
        new_score = best + emit(t)
        keep = mval[t] > 0.5                                       # (B, 1)
        score = jnp.where(keep, new_score, score)
        bp_ref[t] = jnp.where(keep, bp_t, lane)                    # identity bp on pad

    final_ref[...] = score + trans_t[STOP:STOP + 1, :]             # + trans[:, STOP]


def proj_viterbi(lstm_out, w_pad, b_pad, trans_t_pad, init_row, masks):
    D, T, B, H = lstm_out.shape
    KP = trans_t_pad.shape[0]
    mask_t = jnp.transpose(masks, (1, 0)).reshape(T, B, 1).astype(jnp.float32)
    bp, final = pl.pallas_call(
        functools.partial(_proj_viterbi_kernel, T=T, H=H, KP=KP),
        out_shape=(jax.ShapeDtypeStruct((T, B, KP), jnp.int32),
                   jax.ShapeDtypeStruct((B, KP), jnp.float32)),
        grid=(1,),
        in_specs=[pl.BlockSpec((D, T, B, H), lambda i: (0, 0, 0, 0)),
                  pl.BlockSpec((2 * H, KP), lambda i: (0, 0)),
                  pl.BlockSpec((1, KP), lambda i: (0, 0)),
                  pl.BlockSpec((KP, KP), lambda i: (0, 0)),
                  pl.BlockSpec((1, KP), lambda i: (0, 0)),
                  pl.BlockSpec((T, B, 1), lambda i: (0, 0, 0))],
        out_specs=(pl.BlockSpec((T, B, KP), lambda i: (0, 0, 0)),
                   pl.BlockSpec((B, KP), lambda i: (0, 0))),
        compiler_params=pltpu.CompilerParams(
            dimension_semantics=("arbitrary",),
            vmem_limit_bytes=VMEM_LIMIT),
    )(lstm_out, w_pad, b_pad.reshape(1, KP), trans_t_pad, init_row, mask_t)
    return bp, final


# ---------------- full forward (matches BERT_LSTM_CRF.forward semantics) ----------------
def forward(params, sentence, masks):
    B, T = sentence.shape
    # TODO(synk): full pretrained BERT encoder not reproducible without a checkpoint;
    #             a deterministic token-embedding table stands in for BertModel output.
    embeds = jnp.take(params["embed"], sentence, axis=0)            # (B, T, E)

    # IDCNN: 4 fused conv layers (ReLU), im2col done in-register.
    h = idcnn_forward(embeds, params)                               # (B, T, 64)

    # rand_init_hidden -> deterministic randn here
    hk = jax.random.PRNGKey(42)
    h0 = jax.random.normal(jax.random.fold_in(hk, 0), (2 * RNN_LAYERS, B, HIDDEN), jnp.float32)
    c0 = jax.random.normal(jax.random.fold_in(hk, 1), (2 * RNN_LAYERS, B, HIDDEN), jnp.float32)

    # Both directions' input projections in one (B*T, 64) @ (64, 256) matmul.
    gx = matmul_bias(h.reshape(B * T, FILTERS), params["w_ih_all"], params["b_all"])
    gx = gx.reshape(B, T, 2, 4 * HIDDEN).transpose(2, 1, 0, 3)      # (2, T, B, 4H)

    lstm_out = bilstm(gx, params["w_hh"], h0, c0)                   # (2, T, B, H)

    # dropout1 is identity at inference; projection to NTAGS (padded) + Viterbi fused.
    bp, final = proj_viterbi(lstm_out, params["liner_w_pad"], params["liner_b_pad"],
                             params["trans_t_pad"], params["init_row"], masks)

    # backtrack (small, data-dependent gather -> plain JAX glue)
    best_last = jnp.argmax(final, axis=-1).astype(jnp.int32)        # (B,)

    def back_step(cur, bp_t):
        prev = jnp.take_along_axis(bp_t, cur[:, None], axis=1)[:, 0]
        return prev, prev

    if T > 1:
        _, prevs = lax.scan(back_step, best_last, bp[1:][::-1])     # (T-1, B)
        tags = jnp.concatenate([prevs[::-1], best_last[None, :]], axis=0)  # (T, B)
    else:
        tags = best_last[None, :]
    tag_seq = jnp.transpose(tags, (1, 0))                           # (B, T)
    return (tag_seq * masks.astype(jnp.int32)).astype(jnp.int32)


# ---------------- deterministic parameter init ----------------
def init_params(key):
    def nrm(k, shape, scale=0.1):
        return jax.random.normal(k, shape, jnp.float32) * scale

    ks = iter(jax.random.split(key, 32))
    params = {}
    params["embed"] = nrm(next(ks), (VOCAB, EMBED_DIM), 1.0)

    # Conv weights stored as (3*Cin, Cout): rows [w_prev ; w_center ; w_next].
    params["idcnn_w0"] = nrm(next(ks), (3 * EMBED_DIM, FILTERS))
    params["idcnn_b0"] = nrm(next(ks), (FILTERS,))
    params["idcnn_blocks"] = [(nrm(next(ks), (3 * FILTERS, FILTERS)),
                               nrm(next(ks), (FILTERS,))) for _ in range(3)]

    # BiLSTM: both directions' input weights fused into one (64, 256) matrix.
    # Gate column order is [i | f | o | g] (one sigmoid block, one tanh block).
    w_ih, b_all, w_hh = [], [], []
    for _ in range(2):                                              # fwd / bwd direction
        w_ih.append(nrm(next(ks), (FILTERS, 4 * HIDDEN)))
        w_hh.append(nrm(next(ks), (HIDDEN, 4 * HIDDEN)))
        b_all.append(nrm(next(ks), (4 * HIDDEN,)) + nrm(next(ks), (4 * HIDDEN,)))
    params["w_ih_all"] = jnp.concatenate(w_ih, axis=1)              # (64, 256)
    params["b_all"] = jnp.concatenate(b_all)                        # (256,)
    params["w_hh"] = jnp.stack(w_hh)                                # (2, 32, 128)

    # Final projection padded to K_PAD lanes; padded tag gets -1e4 emission.
    w_liner = nrm(next(ks), (2 * HIDDEN, NTAGS))
    b_liner = nrm(next(ks), (NTAGS,))
    params["liner_w_pad"] = jnp.concatenate(
        [w_liner, jnp.zeros((2 * HIDDEN, K_PAD - NTAGS), jnp.float32)], axis=1)
    params["liner_b_pad"] = jnp.concatenate(
        [b_liner, jnp.full((K_PAD - NTAGS,), NEG, jnp.float32)])

    # CRF transitions padded to (K_PAD, K_PAD); padded rows/cols blocked with -1e4.
    trans = jnp.full((K_PAD, K_PAD), NEG, jnp.float32)
    trans = trans.at[:NTAGS, :NTAGS].set(nrm(next(ks), (NTAGS, NTAGS), 1.0))
    trans = trans.at[:, START].set(NEG).at[STOP, :].set(NEG)
    params["trans_t_pad"] = trans.T                                 # trans_t[k, j] = trans[j, k]
    params["init_row"] = trans[START, :].reshape(1, K_PAD)
    # NOTE: self.linear (64->256) in the reference module is never used in forward(); omitted.
    return params


if __name__ == "__main__":
    B, T = 2, 8
    key = jax.random.PRNGKey(0)
    pkey, skey = jax.random.split(key)
    params = init_params(pkey)
    sentence = jax.random.randint(skey, (B, T), 0, VOCAB, dtype=jnp.int32)
    masks = jnp.array([[1] * T, [1] * (T - 2) + [0] * 2], dtype=jnp.int32)

    tag_seq = jax.jit(forward)(params, sentence, masks)
    tag_seq = jax.block_until_ready(tag_seq)
    assert tag_seq.shape == (B, T)
    assert tag_seq.dtype == jnp.int32
    print("KERNEL_OK")
</pallas_src>

<mosaic_0001>
module attributes {stable_mosaic.version = 11 : i64} {
  func.func @_matmul_bias_kernel(%arg0: i32, %arg1: memref<16x64xf32, #tpu.memory_space<vmem>>, %arg2: memref<64x256xf32, #tpu.memory_space<vmem>>, %arg3: memref<1x256xf32, #tpu.memory_space<vmem>>, %arg4: memref<16x256xf32, #tpu.memory_space<vmem>>) attributes {dimension_semantics = [#tpu.dimension_semantics<parallel>], iteration_bounds = array<i64: 1>, scalar_prefetch = 0 : i64, scratch_operands = 0 : i64, tpu.core_type = #tpu.core_type<tc>, window_params = [{transform_indices = @transform_0, window_bounds = array<i64: 16, 64>}, {pipeline_mode = #tpu.pipeline_mode<synchronous>, transform_indices = @transform_1, window_bounds = array<i64: 64, 256>}, {pipeline_mode = #tpu.pipeline_mode<synchronous>, transform_indices = @transform_2, window_bounds = array<i64: 1, 256>}, {transform_indices = @transform_3, window_bounds = array<i64: 16, 256>}]} {
    %c0 = arith.constant 0 : index
    %c0_0 = arith.constant 0 : index
    %0 = vector.load %arg1[%c0, %c0_0] : memref<16x64xf32, #tpu.memory_space<vmem>>, vector<16x64xf32>
    %c0_1 = arith.constant 0 : index
    %c0_2 = arith.constant 0 : index
    %1 = vector.load %arg2[%c0_1, %c0_2] : memref<64x256xf32, #tpu.memory_space<vmem>>, vector<64x256xf32>
    %cst = arith.constant dense<0.000000e+00> : vector<16x256xf32>
    %2 = tpu.matmul %0, %1, %cst {dimension_numbers = #tpu.dot_dimension_numbers<[1], [0], [0], [1], [0, 0, 1, 1], [], []>} : vector<16x64xf32>, vector<64x256xf32>, vector<16x256xf32> -> vector<16x256xf32>
    %c0_3 = arith.constant 0 : index
    %c0_4 = arith.constant 0 : index
    %3 = vector.load %arg3[%c0_3, %c0_4] : memref<1x256xf32, #tpu.memory_space<vmem>>, vector<1x256xf32>
    %4 = vector.broadcast %3 : vector<1x256xf32> to vector<16x256xf32>
    %5 = arith.addf %2, %4 : vector<16x256xf32>
    %c0_5 = arith.constant 0 : index
    %c0_6 = arith.constant 0 : index
    %6 = vector.load %arg4[%c0_5, %c0_6] : memref<16x256xf32, #tpu.memory_space<vmem>>, vector<16x256xf32>
    tpu.vector_store %arg4[%c0_5, %c0_6], %5 {strides = array<i32>} : memref<16x256xf32, #tpu.memory_space<vmem>>, vector<16x256xf32>,
    return
  }
  func.func @transform_0(%arg0: i32) -> (i32, i32) {
    %c0_i32 = arith.constant 0 : i32
    %c0_i32_0 = arith.constant 0 : i32
    return %arg0, %c0_i32 : i32, i32
  }
  func.func @transform_1(%arg0: i32) -> (i32, i32) {
    %c0_i32 = arith.constant 0 : i32
    %c0_i32_0 = arith.constant 0 : i32
    %c0_i32_1 = arith.constant 0 : i32
    return %c0_i32, %c0_i32_0 : i32, i32
  }
  func.func @transform_2(%arg0: i32) -> (i32, i32) {
    %c0_i32 = arith.constant 0 : i32
    %c0_i32_0 = arith.constant 0 : i32
    %c0_i32_1 = arith.constant 0 : i32
    return %c0_i32, %c0_i32_0 : i32, i32
  }
  func.func @transform_3(%arg0: i32) -> (i32, i32) {
    %c0_i32 = arith.constant 0 : i32
    %c0_i32_0 = arith.constant 0 : i32
    return %arg0, %c0_i32 : i32, i32
  }
}

module attributes {stable_mosaic.version = 11 : i64} {
  func.func @_idcnn_kernel(%arg0: i32, %arg1: memref<1x8x128xf32, #tpu.memory_space<vmem>>, %arg2: memref<384x64xf32, #tpu.memory_space<vmem>>, %arg3: memref<1x64xf32, #tpu.memory_space<vmem>>, %arg4: memref<192x64xf32, #tpu.memory_space<vmem>>, %arg5: memref<1x64xf32, #tpu.memory_space<vmem>>, %arg6: memref<192x64xf32, #tpu.memory_space<vmem>>, %arg7: memref<1x64xf32, #tpu.memory_space<vmem>>, %arg8: memref<192x64xf32, #tpu.memory_space<vmem>>, %arg9: memref<1x64xf32, #tpu.memory_space<vmem>>, %arg10: memref<1x8x64xf32, #tpu.memory_space<vmem>>) attributes {dimension_semantics = [#tpu.dimension_semantics<parallel>], iteration_bounds = array<i64: 2>, scalar_prefetch = 0 : i64, scratch_operands = 0 : i64, tpu.core_type = #tpu.core_type<tc>, window_params = [{transform_indices = @transform_0, window_bounds = array<i64: 1, 8, 128>}, {pipeline_mode = #tpu.pipeline_mode<synchronous>, transform_indices = @transform_1, window_bounds = array<i64: 384, 64>}, {pipeline_mode = #tpu.pipeline_mode<synchronous>, transform_indices = @transform_2, window_bounds = array<i64: 1, 64>}, {pipeline_mode = #tpu.pipeline_mode<synchronous>, transform_indices = @transform_3, window_bounds = array<i64: 192, 64>}, {pipeline_mode = #tpu.pipeline_mode<synchronous>, transform_indices = @transform_4, window_bounds = array<i64: 1, 64>}, {pipeline_mode = #tpu.pipeline_mode<synchronous>, transform_indices = @transform_5, window_bounds = array<i64: 192, 64>}, {pipeline_mode = #tpu.pipeline_mode<synchronous>, transform_indices = @transform_6, window_bounds = array<i64: 1, 64>}, {pipeline_mode = #tpu.pipeline_mode<synchronous>, transform_indices = @transform_7, window_bounds = array<i64: 192, 64>}, {pipeline_mode = #tpu.pipeline_mode<synchronous>, transform_indices = @transform_8, window_bounds = array<i64: 1, 64>}, {transform_indices = @transform_9, window_bounds = array<i64: 1, 8, 64>}]} {
    %0 = tpu.iota {dimensions = array<i32: 0>} : vector<8x8xi32>
    %1 = tpu.iota {dimensions = array<i32: 1>} : vector<8x8xi32>
    %2 = arith.subi %0, %1 : vector<8x8xi32>
    %c1_i32 = arith.constant 1 : i32
    %3 = vector.broadcast %c1_i32 : i32 to vector<8x8xi32>
    %4 = arith.cmpi eq, %2, %3 : vector<8x8xi32>
    %5 = arith.extui %4 : vector<8x8xi1> to vector<8x8xi32>
    %6 = arith.sitofp %5 : vector<8x8xi32> to vector<8x8xf32>
    %7 = arith.subi %1, %0 : vector<8x8xi32>
    %c1_i32_0 = arith.constant 1 : i32
    %8 = vector.broadcast %c1_i32_0 : i32 to vector<8x8xi32>
    %9 = arith.cmpi eq, %7, %8 : vector<8x8xi32>
    %10 = arith.extui %9 : vector<8x8xi1> to vector<8x8xi32>
    %11 = arith.sitofp %10 : vector<8x8xi32> to vector<8x8xf32>
    %12 = tpu.iota {dimensions = array<i32: 0>} : vector<8x8xi32>
    %13 = tpu.iota {dimensions = array<i32: 1>} : vector<8x8xi32>
    %14 = arith.subi %12, %13 : vector<8x8xi32>
    %c2_i32 = arith.constant 2 : i32
    %15 = vector.broadcast %c2_i32 : i32 to vector<8x8xi32>
    %16 = arith.cmpi eq, %14, %15 : vector<8x8xi32>
    %17 = arith.extui %16 : vector<8x8xi1> to vector<8x8xi32>
    %18 = arith.sitofp %17 : vector<8x8xi32> to vector<8x8xf32>
    %19 = arith.subi %13, %12 : vector<8x8xi32>
    %c2_i32_1 = arith.constant 2 : i32
    %20 = vector.broadcast %c2_i32_1 : i32 to vector<8x8xi32>
    %21 = arith.cmpi eq, %19, %20 : vector<8x8xi32>
    %22 = arith.extui %21 : vector<8x8xi1> to vector<8x8xi32>
    %23 = arith.sitofp %22 : vector<8x8xi32> to vector<8x8xf32>
    %c0 = arith.constant 0 : index
    %c0_2 = arith.constant 0 : index
    %c0_3 = arith.constant 0 : index
    %24 = vector.load %arg1[%c0, %c0_2, %c0_3] : memref<1x8x128xf32, #tpu.memory_space<vmem>>, vector<1x8x128xf32>
    %25 = vector.shape_cast %24 : vector<1x8x128xf32> to vector<8x128xf32>
    %cst = arith.constant dense<0.000000e+00> : vector<8x128xf32>
    %26 = tpu.matmul %6, %25, %cst {dimension_numbers = #tpu.dot_dimension_numbers<[1], [0], [0], [1], [0, 0, 1, 1], [], []>} : vector<8x8xf32>, vector<8x128xf32>, vector<8x128xf32> -> vector<8x128xf32>
    %cst_4 = arith.constant dense<0.000000e+00> : vector<8x128xf32>
    %27 = tpu.matmul %11, %25, %cst_4 {dimension_numbers = #tpu.dot_dimension_numbers<[1], [0], [0], [1], [0, 0, 1, 1], [], []>} : vector<8x8xf32>, vector<8x128xf32>, vector<8x128xf32> -> vector<8x128xf32>
    %c0_5 = arith.constant 0 : index
    %c0_6 = arith.constant 0 : index
    %28 = vector.load %arg2[%c0_5, %c0_6] : memref<384x64xf32, #tpu.memory_space<vmem>>, vector<128x64xf32>
    %cst_7 = arith.constant dense<0.000000e+00> : vector<8x64xf32>
    %29 = tpu.matmul %26, %28, %cst_7 {dimension_numbers = #tpu.dot_dimension_numbers<[1], [0], [0], [1], [0, 0, 1, 1], [], []>} : vector<8x128xf32>, vector<128x64xf32>, vector<8x64xf32> -> vector<8x64xf32>
    %c128 = arith.constant 128 : index
    %c0_8 = arith.constant 0 : index
    %30 = vector.load %arg2[%c128, %c0_8] : memref<384x64xf32, #tpu.memory_space<vmem>>, vector<128x64xf32>
    %cst_9 = arith.constant dense<0.000000e+00> : vector<8x64xf32>
    %31 = tpu.matmul %25, %30, %cst_9 {dimension_numbers = #tpu.dot_dimension_numbers<[1], [0], [0], [1], [0, 0, 1, 1], [], []>} : vector<8x128xf32>, vector<128x64xf32>, vector<8x64xf32> -> vector<8x64xf32>
    %32 = arith.addf %29, %31 : vector<8x64xf32>
    %c256 = arith.constant 256 : index
    %c0_10 = arith.constant 0 : index
    %33 = vector.load %arg2[%c256, %c0_10] : memref<384x64xf32, #tpu.memory_space<vmem>>, vector<128x64xf32>
    %cst_11 = arith.constant dense<0.000000e+00> : vector<8x64xf32>
    %34 = tpu.matmul %27, %33, %cst_11 {dimension_numbers = #tpu.dot_dimension_numbers<[1], [0], [0], [1], [0, 0, 1, 1], [], []>} : vector<8x128xf32>, vector<128x64xf32>, vector<8x64xf32> -> vector<8x64xf32>
    %35 = arith.addf %32, %34 : vector<8x64xf32>
    %c0_12 = arith.constant 0 : index
    %c0_13 = arith.constant 0 : index
    %36 = vector.load %arg3[%c0_12, %c0_13] : memref<1x64xf32, #tpu.memory_space<vmem>>, vector<1x64xf32>
    %37 = vector.broadcast %36 : vector<1x64xf32> to vector<8x64xf32>
    %38 = arith.addf %35, %37 : vector<8x64xf32>
    %cst_14 = arith.constant 0.000000e+00 : f32
    %39 = vector.broadcast %cst_14 : f32 to vector<8x64xf32>
    %40 = arith.maximumf %38, %39 : vector<8x64xf32>
    %cst_15 = arith.constant dense<0.000000e+00> : vector<8x64xf32>
    %41 = tpu.matmul %6, %40, %cst_15 {dimension_numbers = #tpu.dot_dimension_numbers<[1], [0], [0], [1], [0, 0, 1, 1], [], []>} : vector<8x8xf32>, vector<8x64xf32>, vector<8x64xf32> -> vector<8x64xf32>
    %cst_16 = arith.constant dense<0.000000e+00> : vector<8x64xf32>
    %42 = tpu.matmul %11, %40, %cst_16 {dimension_numbers = #tpu.dot_dimension_numbers<[1], [0], [0], [1], [0, 0, 1, 1], [], []>} : vector<8x8xf32>, vector<8x64xf32>, vector<8x64xf32> -> vector<8x64xf32>
    %c0_17 = arith.constant 0 : index
    %c0_18 = arith.constant 0 : index
    %43 = vector.load %arg4[%c0_17, %c0_18] : memref<192x64xf32, #tpu.memory_space<vmem>>, vector<64x64xf32>
    %cst_19 = arith.constant dense<0.000000e+00> : vector<8x64xf32>
    %44 = tpu.matmul %41, %43, %cst_19 {dimension_numbers = #tpu.dot_dimension_numbers<[1], [0], [0], [1], [0, 0, 1, 1], [], []>} : vector<8x64xf32>, vector<64x64xf32>, vector<8x64xf32> -> vector<8x64xf32>
    %c64 = arith.constant 64 : index
    %c0_20 = arith.constant 0 : index
    %45 = vector.load %arg4[%c64, %c0_20] : memref<192x64xf32, #tpu.memory_space<vmem>>, vector<64x64xf32>
    %cst_21 = arith.constant dense<0.000000e+00> : vector<8x64xf32>
    %46 = tpu.matmul %40, %45, %cst_21 {dimension_numbers = #tpu.dot_dimension_numbers<[1], [0], [0], [1], [0, 0, 1, 1], [], []>} : vector<8x64xf32>, vector<64x64xf32>, vector<8x64xf32> -> vector<8x64xf32>
    %47 = arith.addf %44, %46 : vector<8x64xf32>
    %c128_22 = arith.constant 128 : index
    %c0_23 = arith.constant 0 : index
    %48 = vector.load %arg4[%c128_22, %c0_23] : memref<192x64xf32, #tpu.memory_space<vmem>>, vector<64x64xf32>
    %cst_24 = arith.constant dense<0.000000e+00> : vector<8x64xf32>
    %49 = tpu.matmul %42, %48, %cst_24 {dimension_numbers = #tpu.dot_dimension_numbers<[1], [0], [0], [1], [0, 0, 1, 1], [], []>} : vector<8x64xf32>, vector<64x64xf32>, vector<8x64xf32> -> vector<8x64xf32>
    %50 = arith.addf %47, %49 : vector<8x64xf32>
    %c0_25 = arith.constant 0 : index
    %c0_26 = arith.constant 0 : index
    %51 = vector.load %arg5[%c0_25, %c0_26] : memref<1x64xf32, #tpu.memory_space<vmem>>, vector<1x64xf32>
    %52 = vector.broadcast %51 : vector<1x64xf32> to vector<8x64xf32>
    %53 = arith.addf %50, %52 : vector<8x64xf32>
    %cst_27 = arith.constant 0.000000e+00 : f32
    %54 = vector.broadcast %cst_27 : f32 to vector<8x64xf32>
    %55 = arith.maximumf %53, %54 : vector<8x64xf32>
    %cst_28 = arith.constant dense<0.000000e+00> : vector<8x64xf32>
    %56 = tpu.matmul %6, %55, %cst_28 {dimension_numbers = #tpu.dot_dimension_numbers<[1], [0], [0], [1], [0, 0, 1, 1], [], []>} : vector<8x8xf32>, vector<8x64xf32>, vector<8x64xf32> -> vector<8x64xf32>
    %cst_29 = arith.constant dense<0.000000e+00> : vector<8x64xf32>
    %57 = tpu.matmul %11, %55, %cst_29 {dimension_numbers = #tpu.dot_dimension_numbers<[1], [0], [0], [1], [0, 0, 1, 1], [], []>} : vector<8x8xf32>, vector<8x64xf32>, vector<8x64xf32> -> vector<8x64xf32>
    %c0_30 = arith.constant 0 : index
    %c0_31 = arith.constant 0 : index
    %58 = vector.load %arg6[%c0_30, %c0_31] : memref<192x64xf32, #tpu.memory_space<vmem>>, vector<64x64xf32>
    %cst_32 = arith.constant dense<0.000000e+00> : vector<8x64xf32>
    %59 = tpu.matmul %56, %58, %cst_32 {dimension_numbers = #tpu.dot_dimension_numbers<[1], [0], [0], [1], [0, 0, 1, 1], [], []>} : vector<8x64xf32>, vector<64x64xf32>, vector<8x64xf32> -> vector<8x64xf32>
    %c64_33 = arith.constant 64 : index
    %c0_34 = arith.constant 0 : index
    %60 = vector.load %arg6[%c64_33, %c0_34] : memref<192x64xf32, #tpu.memory_space<vmem>>, vector<64x64xf32>
    %cst_35 = arith.constant dense<0.000000e+00> : vector<8x64xf32>
    %61 = tpu.matmul %55, %60, %cst_35 {dimension_numbers = #tpu.dot_dimension_numbers<[1], [0], [0], [1], [0, 0, 1, 1], [], []>} : vector<8x64xf32>, vector<64x64xf32>, vector<8x64xf32> -> vector<8x64xf32>
    %62 = arith.addf %59, %61 : vector<8x64xf32>
    %c128_36 = arith.constant 128 : index
    %c0_37 = arith.constant 0 : index
    %63 = vector.load %arg6[%c128_36, %c0_37] : memref<192x64xf32, #tpu.memory_space<vmem>>, vector<64x64xf32>
    %cst_38 = arith.constant dense<0.000000e+00> : vector<8x64xf32>
    %64 = tpu.matmul %57, %63, %cst_38 {dimension_numbers = #tpu.dot_dimension_numbers<[1], [0], [0], [1], [0, 0, 1, 1], [], []>} : vector<8x64xf32>, vector<64x64xf32>, vector<8x64xf32> -> vector<8x64xf32>
    %65 = arith.addf %62, %64 : vector<8x64xf32>
    %c0_39 = arith.constant 0 : index
    %c0_40 = arith.constant 0 : index
    %66 = vector.load %arg7[%c0_39, %c0_40] : memref<1x64xf32, #tpu.memory_space<vmem>>, vector<1x64xf32>
    %67 = vector.broadcast %66 : vector<1x64xf32> to vector<8x64xf32>
    %68 = arith.addf %65, %67 : vector<8x64xf32>
    %cst_41 = arith.constant 0.000000e+00 : f32
    %69 = vector.broadcast %cst_41 : f32 to vector<8x64xf32>
    %70 = arith.maximumf %68, %69 : vector<8x64xf32>
    %cst_42 = arith.constant dense<0.000000e+00> : vector<8x64xf32>
    %71 = tpu.matmul %18, %70, %cst_42 {dimension_numbers = #tpu.dot_dimension_numbers<[1], [0], [0], [1], [0, 0, 1, 1], [], []>} : vector<8x8xf32>, vector<8x64xf32>, vector<8x64xf32> -> vector<8x64xf32>
    %cst_43 = arith.constant dense<0.000000e+00> : vector<8x64xf32>
    %72 = tpu.matmul %23, %70, %cst_43 {dimension_numbers = #tpu.dot_dimension_numbers<[1], [0], [0], [1], [0, 0, 1, 1], [], []>} : vector<8x8xf32>, vector<8x64xf32>, vector<8x64xf32> -> vector<8x64xf32>
    %c0_44 = arith.constant 0 : index
    %c0_45 = arith.constant 0 : index
    %73 = vector.load %arg8[%c0_44, %c0_45] : memref<192x64xf32, #tpu.memory_space<vmem>>, vector<64x64xf32>
    %cst_46 = arith.constant dense<0.000000e+00> : vector<8x64xf32>
    %74 = tpu.matmul %71, %73, %cst_46 {dimension_numbers = #tpu.dot_dimension_numbers<[1], [0], [0], [1], [0, 0, 1, 1], [], []>} : vector<8x64xf32>, vector<64x64xf32>, vector<8x64xf32> -> vector<8x64xf32>
    %c64_47 = arith.constant 64 : index
    %c0_48 = arith.constant 0 : index
    %75 = vector.load %arg8[%c64_47, %c0_48] : memref<192x64xf32, #tpu.memory_space<vmem>>, vector<64x64xf32>
    %cst_49 = arith.constant dense<0.000000e+00> : vector<8x64xf32>
    %76 = tpu.matmul %70, %75, %cst_49 {dimension_numbers = #tpu.dot_dimension_numbers<[1], [0], [0], [1], [0, 0, 1, 1], [], []>} : vector<8x64xf32>, vector<64x64xf32>, vector<8x64xf32> -> vector<8x64xf32>
    %77 = arith.addf %74, %76 : vector<8x64xf32>
    %c128_50 = arith.constant 128 : index
    %c0_51 = arith.constant 0 : index
    %78 = vector.load %arg8[%c128_50, %c0_51] : memref<192x64xf32, #tpu.memory_space<vmem>>, vector<64x64xf32>
    %cst_52 = arith.constant dense<0.000000e+00> : vector<8x64xf32>
    %79 = tpu.matmul %72, %78, %cst_52 {dimension_numbers = #tpu.dot_dimension_numbers<[1], [0], [0], [1], [0, 0, 1, 1], [], []>} : vector<8x64xf32>, vector<64x64xf32>, vector<8x64xf32> -> vector<8x64xf32>
    %80 = arith.addf %77, %79 : vector<8x64xf32>
    %c0_53 = arith.constant 0 : index
    %c0_54 = arith.constant 0 : index
    %81 = vector.load %arg9[%c0_53, %c0_54] : memref<1x64xf32, #tpu.memory_space<vmem>>, vector<1x64xf32>
    %82 = vector.broadcast %81 : vector<1x64xf32> to vector<8x64xf32>
    %83 = arith.addf %80, %82 : vector<8x64xf32>
    %cst_55 = arith.constant 0.000000e+00 : f32
    %84 = vector.broadcast %cst_55 : f32 to vector<8x64xf32>
    %85 = arith.maximumf %83, %84 : vector<8x64xf32>
    %c0_56 = arith.constant 0 : index
    %c0_57 = arith.constant 0 : index
    %c0_58 = arith.constant 0 : index
    %86 = vector.load %arg10[%c0_56, %c0_57, %c0_58] : memref<1x8x64xf32, #tpu.memory_space<vmem>>, vector<1x8x64xf32>
    %87 = vector.shape_cast %86 : vector<1x8x64xf32> to vector<8x64xf32>
    %88 = vector.shape_cast %85 : vector<8x64xf32> to vector<1x8x64xf32>
    tpu.vector_store %arg10[%c0_56, %c0_57, %c0_58], %88 {strides = array<i32>} : memref<1x8x64xf32, #tpu.memory_space<vmem>>, vector<1x8x64xf32>,
    return
  }
  func.func @transform_0(%arg0: i32) -> (i32, i32, i32) {
    %c0_i32 = arith.constant 0 : i32
    %c0_i32_0 = arith.constant 0 : i32
    %c0_i32_1 = arith.constant 0 : i32
    return %arg0, %c0_i32, %c0_i32_0 : i32, i32, i32
  }
  func.func @transform_1(%arg0: i32) -> (i32, i32) {
    %c0_i32 = arith.constant 0 : i32
    %c0_i32_0 = arith.constant 0 : i32
    %c0_i32_1 = arith.constant 0 : i32
    return %c0_i32, %c0_i32_0 : i32, i32
  }
  func.func @transform_2(%arg0: i32) -> (i32, i32) {
    %c0_i32 = arith.constant 0 : i32
    %c0_i32_0 = arith.constant 0 : i32
    %c0_i32_1 = arith.constant 0 : i32
    return %c0_i32, %c0_i32_0 : i32, i32
  }
  func.func @transform_3(%arg0: i32) -> (i32, i32) {
    %c0_i32 = arith.constant 0 : i32
    %c0_i32_0 = arith.constant 0 : i32
    %c0_i32_1 = arith.constant 0 : i32
    return %c0_i32, %c0_i32_0 : i32, i32
  }
  func.func @transform_4(%arg0: i32) -> (i32, i32) {
    %c0_i32 = arith.constant 0 : i32
    %c0_i32_0 = arith.constant 0 : i32
    %c0_i32_1 = arith.constant 0 : i32
    return %c0_i32, %c0_i32_0 : i32, i32
  }
  func.func @transform_5(%arg0: i32) -> (i32, i32) {
    %c0_i32 = arith.constant 0 : i32
    %c0_i32_0 = arith.constant 0 : i32
    %c0_i32_1 = arith.constant 0 : i32
    return %c0_i32, %c0_i32_0 : i32, i32
  }
  func.func @transform_6(%arg0: i32) -> (i32, i32) {
    %c0_i32 = arith.constant 0 : i32
    %c0_i32_0 = arith.constant 0 : i32
    %c0_i32_1 = arith.constant 0 : i32
    return %c0_i32, %c0_i32_0 : i32, i32
  }
  func.func @transform_7(%arg0: i32) -> (i32, i32) {
    %c0_i32 = arith.constant 0 : i32
    %c0_i32_0 = arith.constant 0 : i32
    %c0_i32_1 = arith.constant 0 : i32
    return %c0_i32, %c0_i32_0 : i32, i32
  }
  func.func @transform_8(%arg0: i32) -> (i32, i32) {
    %c0_i32 = arith.constant 0 : i32
    %c0_i32_0 = arith.constant 0 : i32
    %c0_i32_1 = arith.constant 0 : i32
    return %c0_i32, %c0_i32_0 : i32, i32
  }
  func.func @transform_9(%arg0: i32) -> (i32, i32, i32) {
    %c0_i32 = arith.constant 0 : i32
    %c0_i32_0 = arith.constant 0 : i32
    %c0_i32_1 = arith.constant 0 : i32
    return %arg0, %c0_i32, %c0_i32_0 : i32, i32, i32
  }
}

module attributes {stable_mosaic.version = 11 : i64} {
  func.func @_proj_viterbi_kernel(%arg0: i32, %arg1: memref<2x8x2x32xf32, #tpu.memory_space<vmem>>, %arg2: memref<64x8xf32, #tpu.memory_space<vmem>>, %arg3: memref<1x8xf32, #tpu.memory_space<vmem>>, %arg4: memref<8x8xf32, #tpu.memory_space<vmem>>, %arg5: memref<1x8xf32, #tpu.memory_space<vmem>>, %arg6: memref<8x2x1xf32, #tpu.memory_space<vmem>>, %arg7: memref<8x2x8xi32, #tpu.memory_space<vmem>>, %arg8: memref<2x8xf32, #tpu.memory_space<vmem>>) attributes {dimension_semantics = [#tpu.dimension_semantics<arbitrary>], iteration_bounds = array<i64: 1>, scalar_prefetch = 0 : i64, scratch_operands = 0 : i64, tpu.core_type = #tpu.core_type<tc>, window_params = [{pipeline_mode = #tpu.pipeline_mode<synchronous>, transform_indices = @transform_0, window_bounds = array<i64: 2, 8, 2, 32>}, {pipeline_mode = #tpu.pipeline_mode<synchronous>, transform_indices = @transform_1, window_bounds = array<i64: 64, 8>}, {pipeline_mode = #tpu.pipeline_mode<synchronous>, transform_indices = @transform_2, window_bounds = array<i64: 1, 8>}, {pipeline_mode = #tpu.pipeline_mode<synchronous>, transform_indices = @transform_3, window_bounds = array<i64: 8, 8>}, {pipeline_mode = #tpu.pipeline_mode<synchronous>, transform_indices = @transform_4, window_bounds = array<i64: 1, 8>}, {pipeline_mode = #tpu.pipeline_mode<synchronous>, transform_indices = @transform_5, window_bounds = array<i64: 8, 2, 1>}, {pipeline_mode = #tpu.pipeline_mode<synchronous>, transform_indices = @transform_6, window_bounds = array<i64: 8, 2, 8>}, {pipeline_mode = #tpu.pipeline_mode<synchronous>, transform_indices = @transform_7, window_bounds = array<i64: 2, 8>}]} {
    %c0 = arith.constant 0 : index
    %c0_0 = arith.constant 0 : index
    %0 = vector.load %arg2[%c0, %c0_0] : memref<64x8xf32, #tpu.memory_space<vmem>>, vector<32x8xf32>
    %c32 = arith.constant 32 : index
    %c0_1 = arith.constant 0 : index
    %1 = vector.load %arg2[%c32, %c0_1] : memref<64x8xf32, #tpu.memory_space<vmem>>, vector<32x8xf32>
    %c0_2 = arith.constant 0 : index
    %c0_3 = arith.constant 0 : index
    %2 = vector.load %arg3[%c0_2, %c0_3] : memref<1x8xf32, #tpu.memory_space<vmem>>, vector<1x8xf32>
    %c0_4 = arith.constant 0 : index
    %c0_5 = arith.constant 0 : index
    %3 = vector.load %arg4[%c0_4, %c0_5] : memref<8x8xf32, #tpu.memory_space<vmem>>, vector<8x8xf32>
    %c0_6 = arith.constant 0 : index
    %c0_7 = arith.constant 0 : index
    %c0_8 = arith.constant 0 : index
    %4 = vector.load %arg6[%c0_6, %c0_7, %c0_8] : memref<8x2x1xf32, #tpu.memory_space<vmem>>, vector<8x2x1xf32>
    %c0_9 = arith.constant 0 : index
    %c0_10 = arith.constant 0 : index
    %c0_11 = arith.constant 0 : index
    %c0_12 = arith.constant 0 : index
    %5 = vector.load %arg1[%c0_9, %c0_10, %c0_11, %c0_12] : memref<2x8x2x32xf32, #tpu.memory_space<vmem>>, vector<1x8x2x32xf32>
    %6 = vector.shape_cast %5 : vector<1x8x2x32xf32> to vector<8x2x32xf32>
    %c1 = arith.constant 1 : index
    %c0_13 = arith.constant 0 : index
    %c0_14 = arith.constant 0 : index
    %c0_15 = arith.constant 0 : index
    %7 = vector.load %arg1[%c1, %c0_13, %c0_14, %c0_15] : memref<2x8x2x32xf32, #tpu.memory_space<vmem>>, vector<1x8x2x32xf32>
    %8 = vector.shape_cast %7 : vector<1x8x2x32xf32> to vector<8x2x32xf32>
    %9 = tpu.iota {dimensions = array<i32: 1>} : vector<2x8xi32>
    %c0_16 = arith.constant 0 : index
    %c0_17 = arith.constant 0 : index
    %10 = vector.load %arg5[%c0_16, %c0_17] : memref<1x8xf32, #tpu.memory_space<vmem>>, vector<1x8xf32>
    %11 = vector.extract_strided_slice %6 {offsets = [0, 0, 0], sizes = [1, 2, 32], strides = [1, 1, 1]} : vector<8x2x32xf32> to vector<1x2x32xf32>
    %12 = vector.shape_cast %11 : vector<1x2x32xf32> to vector<2x32xf32>
    %cst = arith.constant dense<0.000000e+00> : vector<2x8xf32>
    %13 = tpu.matmul %12, %0, %cst {dimension_numbers = #tpu.dot_dimension_numbers<[1], [0], [0], [1], [0, 0, 1, 1], [], []>} : vector<2x32xf32>, vector<32x8xf32>, vector<2x8xf32> -> vector<2x8xf32>
    %14 = vector.extract_strided_slice %8 {offsets = [0, 0, 0], sizes = [1, 2, 32], strides = [1, 1, 1]} : vector<8x2x32xf32> to vector<1x2x32xf32>
    %15 = vector.shape_cast %14 : vector<1x2x32xf32> to vector<2x32xf32>
    %cst_18 = arith.constant dense<0.000000e+00> : vector<2x8xf32>
    %16 = tpu.matmul %15, %1, %cst_18 {dimension_numbers = #tpu.dot_dimension_numbers<[1], [0], [0], [1], [0, 0, 1, 1], [], []>} : vector<2x32xf32>, vector<32x8xf32>, vector<2x8xf32> -> vector<2x8xf32>
    %17 = arith.addf %13, %16 : vector<2x8xf32>
    %18 = vector.broadcast %2 : vector<1x8xf32> to vector<2x8xf32>
    %19 = arith.addf %17, %18 : vector<2x8xf32>
    %20 = vector.broadcast %10 : vector<1x8xf32> to vector<2x8xf32>
    %21 = arith.addf %20, %19 : vector<2x8xf32>
    %c5_i32 = arith.constant 5 : i32
    %22 = vector.broadcast %c5_i32 : i32 to vector<2x8xi32>
    %c0_19 = arith.constant 0 : index
    %c0_20 = arith.constant 0 : index
    %c0_21 = arith.constant 0 : index
    %23 = vector.load %arg7[%c0_19, %c0_20, %c0_21] : memref<8x2x8xi32, #tpu.memory_space<vmem>>, vector<1x2x8xi32>
    %24 = vector.shape_cast %23 : vector<1x2x8xi32> to vector<2x8xi32>
    %25 = vector.shape_cast %22 : vector<2x8xi32> to vector<1x2x8xi32>
    tpu.vector_store %arg7[%c0_19, %c0_20, %c0_21], %25 {strides = array<i32>} : memref<8x2x8xi32, #tpu.memory_space<vmem>>, vector<1x2x8xi32>,
    %26 = vector.shape_cast %21 : vector<2x8xf32> to vector<2x1x8xf32>
    %27 = vector.shape_cast %3 : vector<8x8xf32> to vector<1x8x8xf32>
    %28 = vector.broadcast %26 : vector<2x1x8xf32> to vector<2x8x8xf32>
    %29 = vector.broadcast %27 : vector<1x8x8xf32> to vector<2x8x8xf32>
    %30 = arith.addf %28, %29 : vector<2x8x8xf32>
    %cst_22 = arith.constant dense<0xFF800000> : vector<2x8xf32>
    %31 = vector.multi_reduction <maximumf>, %30, %cst_22 [2] : vector<2x8x8xf32> to vector<2x8xf32>
    %32 = tpu.iota {dimensions = array<i32: 2>} : vector<2x8x8xi32>
    %33 = vector.shape_cast %31 : vector<2x8xf32> to vector<2x8x1xf32>
    %34 = vector.broadcast %33 : vector<2x8x1xf32> to vector<2x8x8xf32>
    %35 = arith.cmpf oge, %30, %34 : vector<2x8x8xf32>
    %c8_i32 = arith.constant 8 : i32
    %36 = vector.broadcast %c8_i32 : i32 to vector<2x8x8xi32>
    %37 = arith.select %35, %32, %36 : vector<2x8x8xi1>, vector<2x8x8xi32>
    %cst_23 = arith.constant dense<2147483647> : vector<2x8xi32>
    %38 = vector.multi_reduction <minsi>, %37, %cst_23 [2] : vector<2x8x8xi32> to vector<2x8xi32>
    %39 = vector.extract_strided_slice %6 {offsets = [1, 0, 0], sizes = [1, 2, 32], strides = [1, 1, 1]} : vector<8x2x32xf32> to vector<1x2x32xf32>
    %40 = vector.shape_cast %39 : vector<1x2x32xf32> to vector<2x32xf32>
    %cst_24 = arith.constant dense<0.000000e+00> : vector<2x8xf32>
    %41 = tpu.matmul %40, %0, %cst_24 {dimension_numbers = #tpu.dot_dimension_numbers<[1], [0], [0], [1], [0, 0, 1, 1], [], []>} : vector<2x32xf32>, vector<32x8xf32>, vector<2x8xf32> -> vector<2x8xf32>
    %42 = vector.extract_strided_slice %8 {offsets = [1, 0, 0], sizes = [1, 2, 32], strides = [1, 1, 1]} : vector<8x2x32xf32> to vector<1x2x32xf32>
    %43 = vector.shape_cast %42 : vector<1x2x32xf32> to vector<2x32xf32>
    %cst_25 = arith.constant dense<0.000000e+00> : vector<2x8xf32>
    %44 = tpu.matmul %43, %1, %cst_25 {dimension_numbers = #tpu.dot_dimension_numbers<[1], [0], [0], [1], [0, 0, 1, 1], [], []>} : vector<2x32xf32>, vector<32x8xf32>, vector<2x8xf32> -> vector<2x8xf32>
    %45 = arith.addf %41, %44 : vector<2x8xf32>
    %46 = vector.broadcast %2 : vector<1x8xf32> to vector<2x8xf32>
    %47 = arith.addf %45, %46 : vector<2x8xf32>
    %48 = arith.addf %31, %47 : vector<2x8xf32>
    %49 = vector.extract_strided_slice %4 {offsets = [1, 0, 0], sizes = [1, 2, 1], strides = [1, 1, 1]} : vector<8x2x1xf32> to vector<1x2x1xf32>
    %50 = vector.shape_cast %49 : vector<1x2x1xf32> to vector<2x1xf32>
    %cst_26 = arith.constant 5.000000e-01 : f32
    %51 = vector.broadcast %cst_26 : f32 to vector<2x1xf32>
    %52 = arith.cmpf ogt, %50, %51 : vector<2x1xf32>
    %53 = vector.shape_cast %52 : vector<2x1xi1> to vector<2x1xi1>
    %54 = vector.broadcast %53 : vector<2x1xi1> to vector<2x8xi1>
    %55 = arith.select %54, %48, %21 : vector<2x8xi1>, vector<2x8xf32>
    %56 = vector.shape_cast %52 : vector<2x1xi1> to vector<2x1xi1>
    %57 = vector.broadcast %56 : vector<2x1xi1> to vector<2x8xi1>
    %58 = arith.select %57, %38, %9 : vector<2x8xi1>, vector<2x8xi32>
    %c1_27 = arith.constant 1 : index
    %c0_28 = arith.constant 0 : index
    %c0_29 = arith.constant 0 : index
    %59 = vector.load %arg7[%c1_27, %c0_28, %c0_29] : memref<8x2x8xi32, #tpu.memory_space<vmem>>, vector<1x2x8xi32>
    %60 = vector.shape_cast %59 : vector<1x2x8xi32> to vector<2x8xi32>
    %61 = vector.shape_cast %58 : vector<2x8xi32> to vector<1x2x8xi32>
    tpu.vector_store %arg7[%c1_27, %c0_28, %c0_29], %61 {strides = array<i32>} : memref<8x2x8xi32, #tpu.memory_space<vmem>>, vector<1x2x8xi32>,
    %62 = vector.shape_cast %55 : vector<2x8xf32> to vector<2x1x8xf32>
    %63 = vector.shape_cast %3 : vector<8x8xf32> to vector<1x8x8xf32>
    %64 = vector.broadcast %62 : vector<2x1x8xf32> to vector<2x8x8xf32>
    %65 = vector.broadcast %63 : vector<1x8x8xf32> to vector<2x8x8xf32>
    %66 = arith.addf %64, %65 : vector<2x8x8xf32>
    %cst_30 = arith.constant dense<0xFF800000> : vector<2x8xf32>
    %67 = vector.multi_reduction <maximumf>, %66, %cst_30 [2] : vector<2x8x8xf32> to vector<2x8xf32>
    %68 = tpu.iota {dimensions = array<i32: 2>} : vector<2x8x8xi32>
    %69 = vector.shape_cast %67 : vector<2x8xf32> to vector<2x8x1xf32>
    %70 = vector.broadcast %69 : vector<2x8x1xf32> to vector<2x8x8xf32>
    %71 = arith.cmpf oge, %66, %70 : vector<2x8x8xf32>
    %c8_i32_31 = arith.constant 8 : i32
    %72 = vector.broadcast %c8_i32_31 : i32 to vector<2x8x8xi32>
    %73 = arith.select %71, %68, %72 : vector<2x8x8xi1>, vector<2x8x8xi32>
    %cst_32 = arith.constant dense<2147483647> : vector<2x8xi32>
    %74 = vector.multi_reduction <minsi>, %73, %cst_32 [2] : vector<2x8x8xi32> to vector<2x8xi32>
    %75 = vector.extract_strided_slice %6 {offsets = [2, 0, 0], sizes = [1, 2, 32], strides = [1, 1, 1]} : vector<8x2x32xf32> to vector<1x2x32xf32>
    %76 = vector.shape_cast %75 : vector<1x2x32xf32> to vector<2x32xf32>
    %cst_33 = arith.constant dense<0.000000e+00> : vector<2x8xf32>
    %77 = tpu.matmul %76, %0, %cst_33 {dimension_numbers = #tpu.dot_dimension_numbers<[1], [0], [0], [1], [0, 0, 1, 1], [], []>} : vector<2x32xf32>, vector<32x8xf32>, vector<2x8xf32> -> vector<2x8xf32>
    %78 = vector.extract_strided_slice %8 {offsets = [2, 0, 0], sizes = [1, 2, 32], strides = [1, 1, 1]} : vector<8x2x32xf32> to vector<1x2x32xf32>
    %79 = vector.shape_cast %78 : vector<1x2x32xf32> to vector<2x32xf32>
    %cst_34 = arith.constant dense<0.000000e+00> : vector<2x8xf32>
    %80 = tpu.matmul %79, %1, %cst_34 {dimension_numbers = #tpu.dot_dimension_numbers<[1], [0], [0], [1], [0, 0, 1, 1], [], []>} : vector<2x32xf32>, vector<32x8xf32>, vector<2x8xf32> -> vector<2x8xf32>
    %81 = arith.addf %77, %80 : vector<2x8xf32>
    %82 = vector.broadcast %2 : vector<1x8xf32> to vector<2x8xf32>
    %83 = arith.addf %81, %82 : vector<2x8xf32>
    %84 = arith.addf %67, %83 : vector<2x8xf32>
    %85 = vector.extract_strided_slice %4 {offsets = [2, 0, 0], sizes = [1, 2, 1], strides = [1, 1, 1]} : vector<8x2x1xf32> to vector<1x2x1xf32>
    %86 = vector.shape_cast %85 : vector<1x2x1xf32> to vector<2x1xf32>
    %cst_35 = arith.constant 5.000000e-01 : f32
    %87 = vector.broadcast %cst_35 : f32 to vector<2x1xf32>
    %88 = arith.cmpf ogt, %86, %87 : vector<2x1xf32>
    %89 = vector.shape_cast %88 : vector<2x1xi1> to vector<2x1xi1>
    %90 = vector.broadcast %89 : vector<2x1xi1> to vector<2x8xi1>
    %91 = arith.select %90, %84, %55 : vector<2x8xi1>, vector<2x8xf32>
    %92 = vector.shape_cast %88 : vector<2x1xi1> to vector<2x1xi1>
    %93 = vector.broadcast %92 : vector<2x1xi1> to vector<2x8xi1>
    %94 = arith.select %93, %74, %9 : vector<2x8xi1>, vector<2x8xi32>
    %c2 = arith.constant 2 : index
    %c0_36 = arith.constant 0 : index
    %c0_37 = arith.constant 0 : index
    %95 = vector.load %arg7[%c2, %c0_36, %c0_37] : memref<8x2x8xi32, #tpu.memory_space<vmem>>, vector<1x2x8xi32>
    %96 = vector.shape_cast %95 : vector<1x2x8xi32> to vector<2x8xi32>
    %97 = vector.shape_cast %94 : vector<2x8xi32> to vector<1x2x8xi32>
    tpu.vector_store %arg7[%c2, %c0_36, %c0_37], %97 {strides = array<i32>} : memref<8x2x8xi32, #tpu.memory_space<vmem>>, vector<1x2x8xi32>,
    %98 = vector.shape_cast %91 : vector<2x8xf32> to vector<2x1x8xf32>
    %99 = vector.shape_cast %3 : vector<8x8xf32> to vector<1x8x8xf32>
    %100 = vector.broadcast %98 : vector<2x1x8xf32> to vector<2x8x8xf32>
    %101 = vector.broadcast %99 : vector<1x8x8xf32> to vector<2x8x8xf32>
    %102 = arith.addf %100, %101 : vector<2x8x8xf32>
    %cst_38 = arith.constant dense<0xFF800000> : vector<2x8xf32>
    %103 = vector.multi_reduction <maximumf>, %102, %cst_38 [2] : vector<2x8x8xf32> to vector<2x8xf32>
    %104 = tpu.iota {dimensions = array<i32: 2>} : vector<2x8x8xi32>
    %105 = vector.shape_cast %103 : vector<2x8xf32> to vector<2x8x1xf32>
    %106 = vector.broadcast %105 : vector<2x8x1xf32> to vector<2x8x8xf32>
    %107 = arith.cmpf oge, %102, %106 : vector<2x8x8xf32>
    %c8_i32_39 = arith.constant 8 : i32
    %108 = vector.broadcast %c8_i32_39 : i32 to vector<2x8x8xi32>
    %109 = arith.select %107, %104, %108 : vector<2x8x8xi1>, vector<2x8x8xi32>
    %cst_40 = arith.constant dense<2147483647> : vector<2x8xi32>
    %110 = vector.multi_reduction <minsi>, %109, %cst_40 [2] : vector<2x8x8xi32> to vector<2x8xi32>
    %111 = vector.extract_strided_slice %6 {offsets = [3, 0, 0], sizes = [1, 2, 32], strides = [1, 1, 1]} : vector<8x2x32xf32> to vector<1x2x32xf32>
    %112 = vector.shape_cast %111 : vector<1x2x32xf32> to vector<2x32xf32>
    %cst_41 = arith.constant dense<0.000000e+00> : vector<2x8xf32>
    %113 = tpu.matmul %112, %0, %cst_41 {dimension_numbers = #tpu.dot_dimension_numbers<[1], [0], [0], [1], [0, 0, 1, 1], [], []>} : vector<2x32xf32>, vector<32x8xf32>, vector<2x8xf32> -> vector<2x8xf32>
    %114 = vector.extract_strided_slice %8 {offsets = [3, 0, 0], sizes = [1, 2, 32], strides = [1, 1, 1]} : vector<8x2x32xf32> to vector<1x2x32xf32>
    %115 = vector.shape_cast %114 : vector<1x2x32xf32> to vector<2x32xf32>
    %cst_42 = arith.constant dense<0.000000e+00> : vector<2x8xf32>
    %116 = tpu.matmul %115, %1, %cst_42 {dimension_numbers = #tpu.dot_dimension_numbers<[1], [0], [0], [1], [0, 0, 1, 1], [], []>} : vector<2x32xf32>, vector<32x8xf32>, vector<2x8xf32> -> vector<2x8xf32>
    %117 = arith.addf %113, %116 : vector<2x8xf32>
    %118 = vector.broadcast %2 : vector<1x8xf32> to vector<2x8xf32>
    %119 = arith.addf %117, %118 : vector<2x8xf32>
    %120 = arith.addf %103, %119 : vector<2x8xf32>
    %121 = vector.extract_strided_slice %4 {offsets = [3, 0, 0], sizes = [1, 2, 1], strides = [1, 1, 1]} : vector<8x2x1xf32> to vector<1x2x1xf32>
    %122 = vector.shape_cast %121 : vector<1x2x1xf32> to vector<2x1xf32>
    %cst_43 = arith.constant 5.000000e-01 : f32
    %123 = vector.broadcast %cst_43 : f32 to vector<2x1xf32>
    %124 = arith.cmpf ogt, %122, %123 : vector<2x1xf32>
    %125 = vector.shape_cast %124 : vector<2x1xi1> to vector<2x1xi1>
    %126 = vector.broadcast %125 : vector<2x1xi1> to vector<2x8xi1>
    %127 = arith.select %126, %120, %91 : vector<2x8xi1>, vector<2x8xf32>
    %128 = vector.shape_cast %124 : vector<2x1xi1> to vector<2x1xi1>
    %129 = vector.broadcast %128 : vector<2x1xi1> to vector<2x8xi1>
    %130 = arith.select %129, %110, %9 : vector<2x8xi1>, vector<2x8xi32>
    %c3 = arith.constant 3 : index
    %c0_44 = arith.constant 0 : index
    %c0_45 = arith.constant 0 : index
    %131 = vector.load %arg7[%c3, %c0_44, %c0_45] : memref<8x2x8xi32, #tpu.memory_space<vmem>>, vector<1x2x8xi32>
    %132 = vector.shape_cast %131 : vector<1x2x8xi32> to vector<2x8xi32>
    %133 = vector.shape_cast %130 : vector<2x8xi32> to vector<1x2x8xi32>
    tpu.vector_store %arg7[%c3, %c0_44, %c0_45], %133 {strides = array<i32>} : memref<8x2x8xi32, #tpu.memory_space<vmem>>, vector<1x2x8xi32>,
    %134 = vector.shape_cast %127 : vector<2x8xf32> to vector<2x1x8xf32>
    %135 = vector.shape_cast %3 : vector<8x8xf32> to vector<1x8x8xf32>
    %136 = vector.broadcast %134 : vector<2x1x8xf32> to vector<2x8x8xf32>
    %137 = vector.broadcast %135 : vector<1x8x8xf32> to vector<2x8x8xf32>
    %138 = arith.addf %136, %137 : vector<2x8x8xf32>
    %cst_46 = arith.constant dense<0xFF800000> : vector<2x8xf32>
    %139 = vector.multi_reduction <maximumf>, %138, %cst_46 [2] : vector<2x8x8xf32> to vector<2x8xf32>
    %140 = tpu.iota {dimensions = array<i32: 2>} : vector<2x8x8xi32>
    %141 = vector.shape_cast %139 : vector<2x8xf32> to vector<2x8x1xf32>
    %142 = vector.broadcast %141 : vector<2x8x1xf32> to vector<2x8x8xf32>
    %143 = arith.cmpf oge, %138, %142 : vector<2x8x8xf32>
    %c8_i32_47 = arith.constant 8 : i32
    %144 = vector.broadcast %c8_i32_47 : i32 to vector<2x8x8xi32>
    %145 = arith.select %143, %140, %144 : vector<2x8x8xi1>, vector<2x8x8xi32>
    %cst_48 = arith.constant dense<2147483647> : vector<2x8xi32>
    %146 = vector.multi_reduction <minsi>, %145, %cst_48 [2] : vector<2x8x8xi32> to vector<2x8xi32>
    %147 = vector.extract_strided_slice %6 {offsets = [4, 0, 0], sizes = [1, 2, 32], strides = [1, 1, 1]} : vector<8x2x32xf32> to vector<1x2x32xf32>
    %148 = vector.shape_cast %147 : vector<1x2x32xf32> to vector<2x32xf32>
    %cst_49 = arith.constant dense<0.000000e+00> : vector<2x8xf32>
    %149 = tpu.matmul %148, %0, %cst_49 {dimension_numbers = #tpu.dot_dimension_numbers<[1], [0], [0], [1], [0, 0, 1, 1], [], []>} : vector<2x32xf32>, vector<32x8xf32>, vector<2x8xf32> -> vector<2x8xf32>
    %150 = vector.extract_strided_slice %8 {offsets = [4, 0, 0], sizes = [1, 2, 32], strides = [1, 1, 1]} : vector<8x2x32xf32> to vector<1x2x32xf32>
    %151 = vector.shape_cast %150 : vector<1x2x32xf32> to vector<2x32xf32>
    %cst_50 = arith.constant dense<0.000000e+00> : vector<2x8xf32>
    %152 = tpu.matmul %151, %1, %cst_50 {dimension_numbers = #tpu.dot_dimension_numbers<[1], [0], [0], [1], [0, 0, 1, 1], [], []>} : vector<2x32xf32>, vector<32x8xf32>, vector<2x8xf32> -> vector<2x8xf32>
    %153 = arith.addf %149, %152 : vector<2x8xf32>
    %154 = vector.broadcast %2 : vector<1x8xf32> to vector<2x8xf32>
    %155 = arith.addf %153, %154 : vector<2x8xf32>
    %156 = arith.addf %139, %155 : vector<2x8xf32>
    %157 = vector.extract_strided_slice %4 {offsets = [4, 0, 0], sizes = [1, 2, 1], strides = [1, 1, 1]} : vector<8x2x1xf32> to vector<1x2x1xf32>
    %158 = vector.shape_cast %157 : vector<1x2x1xf32> to vector<2x1xf32>
    %cst_51 = arith.constant 5.000000e-01 : f32
    %159 = vector.broadcast %cst_51 : f32 to vector<2x1xf32>
    %160 = arith.cmpf ogt, %158, %159 : vector<2x1xf32>
    %161 = vector.shape_cast %160 : vector<2x1xi1> to vector<2x1xi1>
    %162 = vector.broadcast %161 : vector<2x1xi1> to vector<2x8xi1>
    %163 = arith.select %162, %156, %127 : vector<2x8xi1>, vector<2x8xf32>
    %164 = vector.shape_cast %160 : vector<2x1xi1> to vector<2x1xi1>
    %165 = vector.broadcast %164 : vector<2x1xi1> to vector<2x8xi1>
    %166 = arith.select %165, %146, %9 : vector<2x8xi1>, vector<2x8xi32>
    %c4 = arith.constant 4 : index
    %c0_52 = arith.constant 0 : index
    %c0_53 = arith.constant 0 : index
    %167 = vector.load %arg7[%c4, %c0_52, %c0_53] : memref<8x2x8xi32, #tpu.memory_space<vmem>>, vector<1x2x8xi32>
    %168 = vector.shape_cast %167 : vector<1x2x8xi32> to vector<2x8xi32>
    %169 = vector.shape_cast %166 : vector<2x8xi32> to vector<1x2x8xi32>
    tpu.vector_store %arg7[%c4, %c0_52, %c0_53], %169 {strides = array<i32>} : memref<8x2x8xi32, #tpu.memory_space<vmem>>, vector<1x2x8xi32>,
    %170 = vector.shape_cast %163 : vector<2x8xf32> to vector<2x1x8xf32>
    %171 = vector.shape_cast %3 : vector<8x8xf32> to vector<1x8x8xf32>
    %172 = vector.broadcast %170 : vector<2x1x8xf32> to vector<2x8x8xf32>
    %173 = vector.broadcast %171 : vector<1x8x8xf32> to vector<2x8x8xf32>
    %174 = arith.addf %172, %173 : vector<2x8x8xf32>
    %cst_54 = arith.constant dense<0xFF800000> : vector<2x8xf32>
    %175 = vector.multi_reduction <maximumf>, %174, %cst_54 [2] : vector<2x8x8xf32> to vector<2x8xf32>
    %176 = tpu.iota {dimensions = array<i32: 2>} : vector<2x8x8xi32>
    %177 = vector.shape_cast %175 : vector<2x8xf32> to vector<2x8x1xf32>
    %178 = vector.broadcast %177 : vector<2x8x1xf32> to vector<2x8x8xf32>
    %179 = arith.cmpf oge, %174, %178 : vector<2x8x8xf32>
    %c8_i32_55 = arith.constant 8 : i32
    %180 = vector.broadcast %c8_i32_55 : i32 to vector<2x8x8xi32>
    %181 = arith.select %179, %176, %180 : vector<2x8x8xi1>, vector<2x8x8xi32>
    %cst_56 = arith.constant dense<2147483647> : vector<2x8xi32>
    %182 = vector.multi_reduction <minsi>, %181, %cst_56 [2] : vector<2x8x8xi32> to vector<2x8xi32>
    %183 = vector.extract_strided_slice %6 {offsets = [5, 0, 0], sizes = [1, 2, 32], strides = [1, 1, 1]} : vector<8x2x32xf32> to vector<1x2x32xf32>
    %184 = vector.shape_cast %183 : vector<1x2x32xf32> to vector<2x32xf32>
    %cst_57 = arith.constant dense<0.000000e+00> : vector<2x8xf32>
    %185 = tpu.matmul %184, %0, %cst_57 {dimension_numbers = #tpu.dot_dimension_numbers<[1], [0], [0], [1], [0, 0, 1, 1], [], []>} : vector<2x32xf32>, vector<32x8xf32>, vector<2x8xf32> -> vector<2x8xf32>
    %186 = vector.extract_strided_slice %8 {offsets = [5, 0, 0], sizes = [1, 2, 32], strides = [1, 1, 1]} : vector<8x2x32xf32> to vector<1x2x32xf32>
    %187 = vector.shape_cast %186 : vector<1x2x32xf32> to vector<2x32xf32>
    %cst_58 = arith.constant dense<0.000000e+00> : vector<2x8xf32>
    %188 = tpu.matmul %187, %1, %cst_58 {dimension_numbers = #tpu.dot_dimension_numbers<[1], [0], [0], [1], [0, 0, 1, 1], [], []>} : vector<2x32xf32>, vector<32x8xf32>, vector<2x8xf32> -> vector<2x8xf32>
    %189 = arith.addf %185, %188 : vector<2x8xf32>
    %190 = vector.broadcast %2 : vector<1x8xf32> to vector<2x8xf32>
    %191 = arith.addf %189, %190 : vector<2x8xf32>
    %192 = arith.addf %175, %191 : vector<2x8xf32>
    %193 = vector.extract_strided_slice %4 {offsets = [5, 0, 0], sizes = [1, 2, 1], strides = [1, 1, 1]} : vector<8x2x1xf32> to vector<1x2x1xf32>
    %194 = vector.shape_cast %193 : vector<1x2x1xf32> to vector<2x1xf32>
    %cst_59 = arith.constant 5.000000e-01 : f32
    %195 = vector.broadcast %cst_59 : f32 to vector<2x1xf32>
    %196 = arith.cmpf ogt, %194, %195 : vector<2x1xf32>
    %197 = vector.shape_cast %196 : vector<2x1xi1> to vector<2x1xi1>
    %198 = vector.broadcast %197 : vector<2x1xi1> to vector<2x8xi1>
    %199 = arith.select %198, %192, %163 : vector<2x8xi1>, vector<2x8xf32>
    %200 = vector.shape_cast %196 : vector<2x1xi1> to vector<2x1xi1>
    %201 = vector.broadcast %200 : vector<2x1xi1> to vector<2x8xi1>
    %202 = arith.select %201, %182, %9 : vector<2x8xi1>, vector<2x8xi32>
    %c5 = arith.constant 5 : index
    %c0_60 = arith.constant 0 : index
    %c0_61 = arith.constant 0 : index
    %203 = vector.load %arg7[%c5, %c0_60, %c0_61] : memref<8x2x8xi32, #tpu.memory_space<vmem>>, vector<1x2x8xi32>
    %204 = vector.shape_cast %203 : vector<1x2x8xi32> to vector<2x8xi32>
    %205 = vector.shape_cast %202 : vector<2x8xi32> to vector<1x2x8xi32>
    tpu.vector_store %arg7[%c5, %c0_60, %c0_61], %205 {strides = array<i32>} : memref<8x2x8xi32, #tpu.memory_space<vmem>>, vector<1x2x8xi32>,
    %206 = vector.shape_cast %199 : vector<2x8xf32> to vector<2x1x8xf32>
    %207 = vector.shape_cast %3 : vector<8x8xf32> to vector<1x8x8xf32>
    %208 = vector.broadcast %206 : vector<2x1x8xf32> to vector<2x8x8xf32>
    %209 = vector.broadcast %207 : vector<1x8x8xf32> to vector<2x8x8xf32>
    %210 = arith.addf %208, %209 : vector<2x8x8xf32>
    %cst_62 = arith.constant dense<0xFF800000> : vector<2x8xf32>
    %211 = vector.multi_reduction <maximumf>, %210, %cst_62 [2] : vector<2x8x8xf32> to vector<2x8xf32>
    %212 = tpu.iota {dimensions = array<i32: 2>} : vector<2x8x8xi32>
    %213 = vector.shape_cast %211 : vector<2x8xf32> to vector<2x8x1xf32>
    %214 = vector.broadcast %213 : vector<2x8x1xf32> to vector<2x8x8xf32>
    %215 = arith.cmpf oge, %210, %214 : vector<2x8x8xf32>
    %c8_i32_63 = arith.constant 8 : i32
    %216 = vector.broadcast %c8_i32_63 : i32 to vector<2x8x8xi32>
    %217 = arith.select %215, %212, %216 : vector<2x8x8xi1>, vector<2x8x8xi32>
    %cst_64 = arith.constant dense<2147483647> : vector<2x8xi32>
    %218 = vector.multi_reduction <minsi>, %217, %cst_64 [2] : vector<2x8x8xi32> to vector<2x8xi32>
    %219 = vector.extract_strided_slice %6 {offsets = [6, 0, 0], sizes = [1, 2, 32], strides = [1, 1, 1]} : vector<8x2x32xf32> to vector<1x2x32xf32>
    %220 = vector.shape_cast %219 : vector<1x2x32xf32> to vector<2x32xf32>
    %cst_65 = arith.constant dense<0.000000e+00> : vector<2x8xf32>
    %221 = tpu.matmul %220, %0, %cst_65 {dimension_numbers = #tpu.dot_dimension_numbers<[1], [0], [0], [1], [0, 0, 1, 1], [], []>} : vector<2x32xf32>, vector<32x8xf32>, vector<2x8xf32> -> vector<2x8xf32>
    %222 = vector.extract_strided_slice %8 {offsets = [6, 0, 0], sizes = [1, 2, 32], strides = [1, 1, 1]} : vector<8x2x32xf32> to vector<1x2x32xf32>
    %223 = vector.shape_cast %222 : vector<1x2x32xf32> to vector<2x32xf32>
    %cst_66 = arith.constant dense<0.000000e+00> : vector<2x8xf32>
    %224 = tpu.matmul %223, %1, %cst_66 {dimension_numbers = #tpu.dot_dimension_numbers<[1], [0], [0], [1], [0, 0, 1, 1], [], []>} : vector<2x32xf32>, vector<32x8xf32>, vector<2x8xf32> -> vector<2x8xf32>
    %225 = arith.addf %221, %224 : vector<2x8xf32>
    %226 = vector.broadcast %2 : vector<1x8xf32> to vector<2x8xf32>
    %227 = arith.addf %225, %226 : vector<2x8xf32>
    %228 = arith.addf %211, %227 : vector<2x8xf32>
    %229 = vector.extract_strided_slice %4 {offsets = [6, 0, 0], sizes = [1, 2, 1], strides = [1, 1, 1]} : vector<8x2x1xf32> to vector<1x2x1xf32>
    %230 = vector.shape_cast %229 : vector<1x2x1xf32> to vector<2x1xf32>
    %cst_67 = arith.constant 5.000000e-01 : f32
    %231 = vector.broadcast %cst_67 : f32 to vector<2x1xf32>
    %232 = arith.cmpf ogt, %230, %231 : vector<2x1xf32>
    %233 = vector.shape_cast %232 : vector<2x1xi1> to vector<2x1xi1>
    %234 = vector.broadcast %233 : vector<2x1xi1> to vector<2x8xi1>
    %235 = arith.select %234, %228, %199 : vector<2x8xi1>, vector<2x8xf32>
    %236 = vector.shape_cast %232 : vector<2x1xi1> to vector<2x1xi1>
    %237 = vector.broadcast %236 : vector<2x1xi1> to vector<2x8xi1>
    %238 = arith.select %237, %218, %9 : vector<2x8xi1>, vector<2x8xi32>
    %c6 = arith.constant 6 : index
    %c0_68 = arith.constant 0 : index
    %c0_69 = arith.constant 0 : index
    %239 = vector.load %arg7[%c6, %c0_68, %c0_69] : memref<8x2x8xi32, #tpu.memory_space<vmem>>, vector<1x2x8xi32>
    %240 = vector.shape_cast %239 : vector<1x2x8xi32> to vector<2x8xi32>
    %241 = vector.shape_cast %238 : vector<2x8xi32> to vector<1x2x8xi32>
    tpu.vector_store %arg7[%c6, %c0_68, %c0_69], %241 {strides = array<i32>} : memref<8x2x8xi32, #tpu.memory_space<vmem>>, vector<1x2x8xi32>,
    %242 = vector.shape_cast %235 : vector<2x8xf32> to vector<2x1x8xf32>
    %243 = vector.shape_cast %3 : vector<8x8xf32> to vector<1x8x8xf32>
    %244 = vector.broadcast %242 : vector<2x1x8xf32> to vector<2x8x8xf32>
    %245 = vector.broadcast %243 : vector<1x8x8xf32> to vector<2x8x8xf32>
    %246 = arith.addf %244, %245 : vector<2x8x8xf32>
    %cst_70 = arith.constant dense<0xFF800000> : vector<2x8xf32>
    %247 = vector.multi_reduction <maximumf>, %246, %cst_70 [2] : vector<2x8x8xf32> to vector<2x8xf32>
    %248 = tpu.iota {dimensions = array<i32: 2>} : vector<2x8x8xi32>
    %249 = vector.shape_cast %247 : vector<2x8xf32> to vector<2x8x1xf32>
    %250 = vector.broadcast %249 : vector<2x8x1xf32> to vector<2x8x8xf32>
    %251 = arith.cmpf oge, %246, %250 : vector<2x8x8xf32>
    %c8_i32_71 = arith.constant 8 : i32
    %252 = vector.broadcast %c8_i32_71 : i32 to vector<2x8x8xi32>
    %253 = arith.select %251, %248, %252 : vector<2x8x8xi1>, vector<2x8x8xi32>
    %cst_72 = arith.constant dense<2147483647> : vector<2x8xi32>
    %254 = vector.multi_reduction <minsi>, %253, %cst_72 [2] : vector<2x8x8xi32> to vector<2x8xi32>
    %255 = vector.extract_strided_slice %6 {offsets = [7, 0, 0], sizes = [1, 2, 32], strides = [1, 1, 1]} : vector<8x2x32xf32> to vector<1x2x32xf32>
    %256 = vector.shape_cast %255 : vector<1x2x32xf32> to vector<2x32xf32>
    %cst_73 = arith.constant dense<0.000000e+00> : vector<2x8xf32>
    %257 = tpu.matmul %256, %0, %cst_73 {dimension_numbers = #tpu.dot_dimension_numbers<[1], [0], [0], [1], [0, 0, 1, 1], [], []>} : vector<2x32xf32>, vector<32x8xf32>, vector<2x8xf32> -> vector<2x8xf32>
    %258 = vector.extract_strided_slice %8 {offsets = [7, 0, 0], sizes = [1, 2, 32], strides = [1, 1, 1]} : vector<8x2x32xf32> to vector<1x2x32xf32>
    %259 = vector.shape_cast %258 : vector<1x2x32xf32> to vector<2x32xf32>
    %cst_74 = arith.constant dense<0.000000e+00> : vector<2x8xf32>
    %260 = tpu.matmul %259, %1, %cst_74 {dimension_numbers = #tpu.dot_dimension_numbers<[1], [0], [0], [1], [0, 0, 1, 1], [], []>} : vector<2x32xf32>, vector<32x8xf32>, vector<2x8xf32> -> vector<2x8xf32>
    %261 = arith.addf %257, %260 : vector<2x8xf32>
    %262 = vector.broadcast %2 : vector<1x8xf32> to vector<2x8xf32>
    %263 = arith.addf %261, %262 : vector<2x8xf32>
    %264 = arith.addf %247, %263 : vector<2x8xf32>
    %265 = vector.extract_strided_slice %4 {offsets = [7, 0, 0], sizes = [1, 2, 1], strides = [1, 1, 1]} : vector<8x2x1xf32> to vector<1x2x1xf32>
    %266 = vector.shape_cast %265 : vector<1x2x1xf32> to vector<2x1xf32>
    %cst_75 = arith.constant 5.000000e-01 : f32
    %267 = vector.broadcast %cst_75 : f32 to vector<2x1xf32>
    %268 = arith.cmpf ogt, %266, %267 : vector<2x1xf32>
    %269 = vector.shape_cast %268 : vector<2x1xi1> to vector<2x1xi1>
    %270 = vector.broadcast %269 : vector<2x1xi1> to vector<2x8xi1>
    %271 = arith.select %270, %264, %235 : vector<2x8xi1>, vector<2x8xf32>
    %272 = vector.shape_cast %268 : vector<2x1xi1> to vector<2x1xi1>
    %273 = vector.broadcast %272 : vector<2x1xi1> to vector<2x8xi1>
    %274 = arith.select %273, %254, %9 : vector<2x8xi1>, vector<2x8xi32>
    %c7 = arith.constant 7 : index
    %c0_76 = arith.constant 0 : index
    %c0_77 = arith.constant 0 : index
    %275 = vector.load %arg7[%c7, %c0_76, %c0_77] : memref<8x2x8xi32, #tpu.memory_space<vmem>>, vector<1x2x8xi32>
    %276 = vector.shape_cast %275 : vector<1x2x8xi32> to vector<2x8xi32>
    %277 = vector.shape_cast %274 : vector<2x8xi32> to vector<1x2x8xi32>
    tpu.vector_store %arg7[%c7, %c0_76, %c0_77], %277 {strides = array<i32>} : memref<8x2x8xi32, #tpu.memory_space<vmem>>, vector<1x2x8xi32>,
    %278 = vector.extract_strided_slice %3 {offsets = [6, 0], sizes = [1, 8], strides = [1, 1]} : vector<8x8xf32> to vector<1x8xf32>
    %279 = vector.broadcast %278 : vector<1x8xf32> to vector<2x8xf32>
    %280 = arith.addf %271, %279 : vector<2x8xf32>
    %c0_78 = arith.constant 0 : index
    %c0_79 = arith.constant 0 : index
    %281 = vector.load %arg8[%c0_78, %c0_79] : memref<2x8xf32, #tpu.memory_space<vmem>>, vector<2x8xf32>
    tpu.vector_store %arg8[%c0_78, %c0_79], %280 {strides = array<i32>} : memref<2x8xf32, #tpu.memory_space<vmem>>, vector<2x8xf32>,
    return
  }
  func.func @transform_0(%arg0: i32) -> (i32, i32, i32, i32) {
    %c0_i32 = arith.constant 0 : i32
    %c0_i32_0 = arith.constant 0 : i32
    %c0_i32_1 = arith.constant 0 : i32
    %c0_i32_2 = arith.constant 0 : i32
    %c0_i32_3 = arith.constant 0 : i32
    return %c0_i32, %c0_i32_0, %c0_i32_1, %c0_i32_2 : i32, i32, i32, i32
  }
  func.func @transform_1(%arg0: i32) -> (i32, i32) {
    %c0_i32 = arith.constant 0 : i32
    %c0_i32_0 = arith.constant 0 : i32
    %c0_i32_1 = arith.constant 0 : i32
    return %c0_i32, %c0_i32_0 : i32, i32
  }
  func.func @transform_2(%arg0: i32) -> (i32, i32) {
    %c0_i32 = arith.constant 0 : i32
    %c0_i32_0 = arith.constant 0 : i32
    %c0_i32_1 = arith.constant 0 : i32
    return %c0_i32, %c0_i32_0 : i32, i32
  }
  func.func @transform_3(%arg0: i32) -> (i32, i32) {
    %c0_i32 = arith.constant 0 : i32
    %c0_i32_0 = arith.constant 0 : i32
    %c0_i32_1 = arith.constant 0 : i32
    return %c0_i32, %c0_i32_0 : i32, i32
  }
  func.func @transform_4(%arg0: i32) -> (i32, i32) {
    %c0_i32 = arith.constant 0 : i32
    %c0_i32_0 = arith.constant 0 : i32
    %c0_i32_1 = arith.constant 0 : i32
    return %c0_i32, %c0_i32_0 : i32, i32
  }
  func.func @transform_5(%arg0: i32) -> (i32, i32, i32) {
    %c0_i32 = arith.constant 0 : i32
    %c0_i32_0 = arith.constant 0 : i32
    %c0_i32_1 = arith.constant 0 : i32
    %c0_i32_2 = arith.constant 0 : i32
    return %c0_i32, %c0_i32_0, %c0_i32_1 : i32, i32, i32
  }
  func.func @transform_6(%arg0: i32) -> (i32, i32, i32) {
    %c0_i32 = arith.constant 0 : i32
    %c0_i32_0 = arith.constant 0 : i32
    %c0_i32_1 = arith.constant 0 : i32
    %c0_i32_2 = arith.constant 0 : i32
    return %c0_i32, %c0_i32_0, %c0_i32_1 : i32, i32, i32
  }
  func.func @transform_7(%arg0: i32) -> (i32, i32) {
    %c0_i32 = arith.constant 0 : i32
    %c0_i32_0 = arith.constant 0 : i32
    %c0_i32_1 = arith.constant 0 : i32
    return %c0_i32, %c0_i32_0 : i32, i32
  }
}

module attributes {stable_mosaic.version = 11 : i64} {
  func.func @_bilstm_kernel(%arg0: i32, %arg1: memref<1x8x2x128xf32, #tpu.memory_space<vmem>>, %arg2: memref<1x32x128xf32, #tpu.memory_space<vmem>>, %arg3: memref<1x2x32xf32, #tpu.memory_space<vmem>>, %arg4: memref<1x2x32xf32, #tpu.memory_space<vmem>>, %arg5: memref<1x8x2x32xf32, #tpu.memory_space<vmem>>) attributes {dimension_semantics = [#tpu.dimension_semantics<parallel>], iteration_bounds = array<i64: 2>, scalar_prefetch = 0 : i64, scratch_operands = 0 : i64, tpu.core_type = #tpu.core_type<tc>, window_params = [{transform_indices = @transform_0, window_bounds = array<i64: 1, 8, 2, 128>}, {transform_indices = @transform_1, window_bounds = array<i64: 1, 32, 128>}, {transform_indices = @transform_2, window_bounds = array<i64: 1, 2, 32>}, {transform_indices = @transform_3, window_bounds = array<i64: 1, 2, 32>}, {transform_indices = @transform_4, window_bounds = array<i64: 1, 8, 2, 32>}]} {
    %c1_i32 = arith.constant 1 : i32
    %0 = arith.cmpi eq, %arg0, %c1_i32 : i32
    %c0 = arith.constant 0 : index
    %c0_0 = arith.constant 0 : index
    %c0_1 = arith.constant 0 : index
    %1 = vector.load %arg2[%c0, %c0_0, %c0_1] : memref<1x32x128xf32, #tpu.memory_space<vmem>>, vector<1x32x128xf32>
    %2 = vector.shape_cast %1 : vector<1x32x128xf32> to vector<32x128xf32>
    %c0_2 = arith.constant 0 : index
    %c0_3 = arith.constant 0 : index
    %c0_4 = arith.constant 0 : index
    %3 = vector.load %arg3[%c0_2, %c0_3, %c0_4] : memref<1x2x32xf32, #tpu.memory_space<vmem>>, vector<1x2x32xf32>
    %4 = vector.shape_cast %3 : vector<1x2x32xf32> to vector<2x32xf32>
    %c0_5 = arith.constant 0 : index
    %c0_6 = arith.constant 0 : index
    %c0_7 = arith.constant 0 : index
    %5 = vector.load %arg4[%c0_5, %c0_6, %c0_7] : memref<1x2x32xf32, #tpu.memory_space<vmem>>, vector<1x2x32xf32>
    %6 = vector.shape_cast %5 : vector<1x2x32xf32> to vector<2x32xf32>
    %c7_i32 = arith.constant 7 : i32
    %c0_i32 = arith.constant 0 : i32
    %7 = arith.select %0, %c7_i32, %c0_i32 : i32
    %c0_8 = arith.constant 0 : index
    %8 = arith.index_cast %7 : i32 to index
    %c0_9 = arith.constant 0 : index
    %c0_10 = arith.constant 0 : index
    %9 = vector.load %arg1[%c0_8, %8, %c0_9, %c0_10] : memref<1x8x2x128xf32, #tpu.memory_space<vmem>>, vector<1x1x2x128xf32>
    %10 = vector.shape_cast %9 : vector<1x1x2x128xf32> to vector<1x2x128xf32>
    %11 = vector.shape_cast %10 : vector<1x2x128xf32> to vector<2x128xf32>
    %cst = arith.constant dense<0.000000e+00> : vector<2x128xf32>
    %12 = tpu.matmul %4, %2, %cst {dimension_numbers = #tpu.dot_dimension_numbers<[1], [0], [0], [1], [0, 0, 1, 1], [], []>} : vector<2x32xf32>, vector<32x128xf32>, vector<2x128xf32> -> vector<2x128xf32>
    %13 = arith.addf %11, %12 : vector<2x128xf32>
    %14 = vector.extract_strided_slice %13 {offsets = [0, 0], sizes = [2, 96], strides = [1, 1]} : vector<2x128xf32> to vector<2x96xf32>
    %15 = arith.negf %14 : vector<2x96xf32>
    %16 = math.exp %15 : vector<2x96xf32>
    %cst_11 = arith.constant 1.000000e+00 : f32
    %17 = vector.broadcast %cst_11 : f32 to vector<2x96xf32>
    %18 = arith.addf %17, %16 : vector<2x96xf32>
    %19 = arith.divf %17, %18 : vector<2x96xf32>
    %20 = vector.extract_strided_slice %13 {offsets = [0, 96], sizes = [2, 32], strides = [1, 1]} : vector<2x128xf32> to vector<2x32xf32>
    %21 = math.tanh %20 : vector<2x32xf32>
    %22 = vector.extract_strided_slice %19 {offsets = [0, 0], sizes = [2, 32], strides = [1, 1]} : vector<2x96xf32> to vector<2x32xf32>
    %23 = vector.extract_strided_slice %19 {offsets = [0, 32], sizes = [2, 32], strides = [1, 1]} : vector<2x96xf32> to vector<2x32xf32>
    %24 = vector.extract_strided_slice %19 {offsets = [0, 64], sizes = [2, 32], strides = [1, 1]} : vector<2x96xf32> to vector<2x32xf32>
    %25 = arith.mulf %23, %6 : vector<2x32xf32>
    %26 = arith.mulf %22, %21 : vector<2x32xf32>
    %27 = arith.addf %25, %26 : vector<2x32xf32>
    %28 = math.tanh %27 : vector<2x32xf32>
    %29 = arith.mulf %24, %28 : vector<2x32xf32>
    %30 = vector.shape_cast %29 : vector<2x32xf32> to vector<1x2x32xf32>
    %c0_12 = arith.constant 0 : index
    %31 = arith.index_cast %7 : i32 to index
    %c0_13 = arith.constant 0 : index
    %c0_14 = arith.constant 0 : index
    %32 = vector.load %arg5[%c0_12, %31, %c0_13, %c0_14] : memref<1x8x2x32xf32, #tpu.memory_space<vmem>>, vector<1x1x2x32xf32>
    %33 = vector.shape_cast %32 : vector<1x1x2x32xf32> to vector<1x2x32xf32>
    %34 = vector.shape_cast %30 : vector<1x2x32xf32> to vector<1x1x2x32xf32>
    tpu.vector_store %arg5[%c0_12, %31, %c0_13, %c0_14], %34 {strides = array<i32>} : memref<1x8x2x32xf32, #tpu.memory_space<vmem>>, vector<1x1x2x32xf32>,
    %c6_i32 = arith.constant 6 : i32
    %c1_i32_15 = arith.constant 1 : i32
    %35 = arith.select %0, %c6_i32, %c1_i32_15 : i32
    %c0_16 = arith.constant 0 : index
    %36 = arith.index_cast %35 : i32 to index
    %c0_17 = arith.constant 0 : index
    %c0_18 = arith.constant 0 : index
    %37 = vector.load %arg1[%c0_16, %36, %c0_17, %c0_18] : memref<1x8x2x128xf32, #tpu.memory_space<vmem>>, vector<1x1x2x128xf32>
    %38 = vector.shape_cast %37 : vector<1x1x2x128xf32> to vector<1x2x128xf32>
    %39 = vector.shape_cast %38 : vector<1x2x128xf32> to vector<2x128xf32>
    %cst_19 = arith.constant dense<0.000000e+00> : vector<2x128xf32>
    %40 = tpu.matmul %29, %2, %cst_19 {dimension_numbers = #tpu.dot_dimension_numbers<[1], [0], [0], [1], [0, 0, 1, 1], [], []>} : vector<2x32xf32>, vector<32x128xf32>, vector<2x128xf32> -> vector<2x128xf32>
    %41 = arith.addf %39, %40 : vector<2x128xf32>
    %42 = vector.extract_strided_slice %41 {offsets = [0, 0], sizes = [2, 96], strides = [1, 1]} : vector<2x128xf32> to vector<2x96xf32>
    %43 = arith.negf %42 : vector<2x96xf32>
    %44 = math.exp %43 : vector<2x96xf32>
    %cst_20 = arith.constant 1.000000e+00 : f32
    %45 = vector.broadcast %cst_20 : f32 to vector<2x96xf32>
    %46 = arith.addf %45, %44 : vector<2x96xf32>
    %47 = arith.divf %45, %46 : vector<2x96xf32>
    %48 = vector.extract_strided_slice %41 {offsets = [0, 96], sizes = [2, 32], strides = [1, 1]} : vector<2x128xf32> to vector<2x32xf32>
    %49 = math.tanh %48 : vector<2x32xf32>
    %50 = vector.extract_strided_slice %47 {offsets = [0, 0], sizes = [2, 32], strides = [1, 1]} : vector<2x96xf32> to vector<2x32xf32>
    %51 = vector.extract_strided_slice %47 {offsets = [0, 32], sizes = [2, 32], strides = [1, 1]} : vector<2x96xf32> to vector<2x32xf32>
    %52 = vector.extract_strided_slice %47 {offsets = [0, 64], sizes = [2, 32], strides = [1, 1]} : vector<2x96xf32> to vector<2x32xf32>
    %53 = arith.mulf %51, %27 : vector<2x32xf32>
    %54 = arith.mulf %50, %49 : vector<2x32xf32>
    %55 = arith.addf %53, %54 : vector<2x32xf32>
    %56 = math.tanh %55 : vector<2x32xf32>
    %57 = arith.mulf %52, %56 : vector<2x32xf32>
    %58 = vector.shape_cast %57 : vector<2x32xf32> to vector<1x2x32xf32>
    %c0_21 = arith.constant 0 : index
    %59 = arith.index_cast %35 : i32 to index
    %c0_22 = arith.constant 0 : index
    %c0_23 = arith.constant 0 : index
    %60 = vector.load %arg5[%c0_21, %59, %c0_22, %c0_23] : memref<1x8x2x32xf32, #tpu.memory_space<vmem>>, vector<1x1x2x32xf32>
    %61 = vector.shape_cast %60 : vector<1x1x2x32xf32> to vector<1x2x32xf32>
    %62 = vector.shape_cast %58 : vector<1x2x32xf32> to vector<1x1x2x32xf32>
    tpu.vector_store %arg5[%c0_21, %59, %c0_22, %c0_23], %62 {strides = array<i32>} : memref<1x8x2x32xf32, #tpu.memory_space<vmem>>, vector<1x1x2x32xf32>,
    %c5_i32 = arith.constant 5 : i32
    %c2_i32 = arith.constant 2 : i32
    %63 = arith.select %0, %c5_i32, %c2_i32 : i32
    %c0_24 = arith.constant 0 : index
    %64 = arith.index_cast %63 : i32 to index
    %c0_25 = arith.constant 0 : index
    %c0_26 = arith.constant 0 : index
    %65 = vector.load %arg1[%c0_24, %64, %c0_25, %c0_26] : memref<1x8x2x128xf32, #tpu.memory_space<vmem>>, vector<1x1x2x128xf32>
    %66 = vector.shape_cast %65 : vector<1x1x2x128xf32> to vector<1x2x128xf32>
    %67 = vector.shape_cast %66 : vector<1x2x128xf32> to vector<2x128xf32>
    %cst_27 = arith.constant dense<0.000000e+00> : vector<2x128xf32>
    %68 = tpu.matmul %57, %2, %cst_27 {dimension_numbers = #tpu.dot_dimension_numbers<[1], [0], [0], [1], [0, 0, 1, 1], [], []>} : vector<2x32xf32>, vector<32x128xf32>, vector<2x128xf32> -> vector<2x128xf32>
    %69 = arith.addf %67, %68 : vector<2x128xf32>
    %70 = vector.extract_strided_slice %69 {offsets = [0, 0], sizes = [2, 96], strides = [1, 1]} : vector<2x128xf32> to vector<2x96xf32>
    %71 = arith.negf %70 : vector<2x96xf32>
    %72 = math.exp %71 : vector<2x96xf32>
    %cst_28 = arith.constant 1.000000e+00 : f32
    %73 = vector.broadcast %cst_28 : f32 to vector<2x96xf32>
    %74 = arith.addf %73, %72 : vector<2x96xf32>
    %75 = arith.divf %73, %74 : vector<2x96xf32>
    %76 = vector.extract_strided_slice %69 {offsets = [0, 96], sizes = [2, 32], strides = [1, 1]} : vector<2x128xf32> to vector<2x32xf32>
    %77 = math.tanh %76 : vector<2x32xf32>
    %78 = vector.extract_strided_slice %75 {offsets = [0, 0], sizes = [2, 32], strides = [1, 1]} : vector<2x96xf32> to vector<2x32xf32>
    %79 = vector.extract_strided_slice %75 {offsets = [0, 32], sizes = [2, 32], strides = [1, 1]} : vector<2x96xf32> to vector<2x32xf32>
    %80 = vector.extract_strided_slice %75 {offsets = [0, 64], sizes = [2, 32], strides = [1, 1]} : vector<2x96xf32> to vector<2x32xf32>
    %81 = arith.mulf %79, %55 : vector<2x32xf32>
    %82 = arith.mulf %78, %77 : vector<2x32xf32>
    %83 = arith.addf %81, %82 : vector<2x32xf32>
    %84 = math.tanh %83 : vector<2x32xf32>
    %85 = arith.mulf %80, %84 : vector<2x32xf32>
    %86 = vector.shape_cast %85 : vector<2x32xf32> to vector<1x2x32xf32>
    %c0_29 = arith.constant 0 : index
    %87 = arith.index_cast %63 : i32 to index
    %c0_30 = arith.constant 0 : index
    %c0_31 = arith.constant 0 : index
    %88 = vector.load %arg5[%c0_29, %87, %c0_30, %c0_31] : memref<1x8x2x32xf32, #tpu.memory_space<vmem>>, vector<1x1x2x32xf32>
    %89 = vector.shape_cast %88 : vector<1x1x2x32xf32> to vector<1x2x32xf32>
    %90 = vector.shape_cast %86 : vector<1x2x32xf32> to vector<1x1x2x32xf32>
    tpu.vector_store %arg5[%c0_29, %87, %c0_30, %c0_31], %90 {strides = array<i32>} : memref<1x8x2x32xf32, #tpu.memory_space<vmem>>, vector<1x1x2x32xf32>,
    %c4_i32 = arith.constant 4 : i32
    %c3_i32 = arith.constant 3 : i32
    %91 = arith.select %0, %c4_i32, %c3_i32 : i32
    %c0_32 = arith.constant 0 : index
    %92 = arith.index_cast %91 : i32 to index
    %c0_33 = arith.constant 0 : index
    %c0_34 = arith.constant 0 : index
    %93 = vector.load %arg1[%c0_32, %92, %c0_33, %c0_34] : memref<1x8x2x128xf32, #tpu.memory_space<vmem>>, vector<1x1x2x128xf32>
    %94 = vector.shape_cast %93 : vector<1x1x2x128xf32> to vector<1x2x128xf32>
    %95 = vector.shape_cast %94 : vector<1x2x128xf32> to vector<2x128xf32>
    %cst_35 = arith.constant dense<0.000000e+00> : vector<2x128xf32>
    %96 = tpu.matmul %85, %2, %cst_35 {dimension_numbers = #tpu.dot_dimension_numbers<[1], [0], [0], [1], [0, 0, 1, 1], [], []>} : vector<2x32xf32>, vector<32x128xf32>, vector<2x128xf32> -> vector<2x128xf32>
    %97 = arith.addf %95, %96 : vector<2x128xf32>
    %98 = vector.extract_strided_slice %97 {offsets = [0, 0], sizes = [2, 96], strides = [1, 1]} : vector<2x128xf32> to vector<2x96xf32>
    %99 = arith.negf %98 : vector<2x96xf32>
    %100 = math.exp %99 : vector<2x96xf32>
    %cst_36 = arith.constant 1.000000e+00 : f32
    %101 = vector.broadcast %cst_36 : f32 to vector<2x96xf32>
    %102 = arith.addf %101, %100 : vector<2x96xf32>
    %103 = arith.divf %101, %102 : vector<2x96xf32>
    %104 = vector.extract_strided_slice %97 {offsets = [0, 96], sizes = [2, 32], strides = [1, 1]} : vector<2x128xf32> to vector<2x32xf32>
    %105 = math.tanh %104 : vector<2x32xf32>
    %106 = vector.extract_strided_slice %103 {offsets = [0, 0], sizes = [2, 32], strides = [1, 1]} : vector<2x96xf32> to vector<2x32xf32>
    %107 = vector.extract_strided_slice %103 {offsets = [0, 32], sizes = [2, 32], strides = [1, 1]} : vector<2x96xf32> to vector<2x32xf32>
    %108 = vector.extract_strided_slice %103 {offsets = [0, 64], sizes = [2, 32], strides = [1, 1]} : vector<2x96xf32> to vector<2x32xf32>
    %109 = arith.mulf %107, %83 : vector<2x32xf32>
    %110 = arith.mulf %106, %105 : vector<2x32xf32>
    %111 = arith.addf %109, %110 : vector<2x32xf32>
    %112 = math.tanh %111 : vector<2x32xf32>
    %113 = arith.mulf %108, %112 : vector<2x32xf32>
    %114 = vector.shape_cast %113 : vector<2x32xf32> to vector<1x2x32xf32>
    %c0_37 = arith.constant 0 : index
    %115 = arith.index_cast %91 : i32 to index
    %c0_38 = arith.constant 0 : index
    %c0_39 = arith.constant 0 : index
    %116 = vector.load %arg5[%c0_37, %115, %c0_38, %c0_39] : memref<1x8x2x32xf32, #tpu.memory_space<vmem>>, vector<1x1x2x32xf32>
    %117 = vector.shape_cast %116 : vector<1x1x2x32xf32> to vector<1x2x32xf32>
    %118 = vector.shape_cast %114 : vector<1x2x32xf32> to vector<1x1x2x32xf32>
    tpu.vector_store %arg5[%c0_37, %115, %c0_38, %c0_39], %118 {strides = array<i32>} : memref<1x8x2x32xf32, #tpu.memory_space<vmem>>, vector<1x1x2x32xf32>,
    %c3_i32_40 = arith.constant 3 : i32
    %c4_i32_41 = arith.constant 4 : i32
    %119 = arith.select %0, %c3_i32_40, %c4_i32_41 : i32
    %c0_42 = arith.constant 0 : index
    %120 = arith.index_cast %119 : i32 to index
    %c0_43 = arith.constant 0 : index
    %c0_44 = arith.constant 0 : index
    %121 = vector.load %arg1[%c0_42, %120, %c0_43, %c0_44] : memref<1x8x2x128xf32, #tpu.memory_space<vmem>>, vector<1x1x2x128xf32>
    %122 = vector.shape_cast %121 : vector<1x1x2x128xf32> to vector<1x2x128xf32>
    %123 = vector.shape_cast %122 : vector<1x2x128xf32> to vector<2x128xf32>
    %cst_45 = arith.constant dense<0.000000e+00> : vector<2x128xf32>
    %124 = tpu.matmul %113, %2, %cst_45 {dimension_numbers = #tpu.dot_dimension_numbers<[1], [0], [0], [1], [0, 0, 1, 1], [], []>} : vector<2x32xf32>, vector<32x128xf32>, vector<2x128xf32> -> vector<2x128xf32>
    %125 = arith.addf %123, %124 : vector<2x128xf32>
    %126 = vector.extract_strided_slice %125 {offsets = [0, 0], sizes = [2, 96], strides = [1, 1]} : vector<2x128xf32> to vector<2x96xf32>
    %127 = arith.negf %126 : vector<2x96xf32>
    %128 = math.exp %127 : vector<2x96xf32>
    %cst_46 = arith.constant 1.000000e+00 : f32
    %129 = vector.broadcast %cst_46 : f32 to vector<2x96xf32>
    %130 = arith.addf %129, %128 : vector<2x96xf32>
    %131 = arith.divf %129, %130 : vector<2x96xf32>
    %132 = vector.extract_strided_slice %125 {offsets = [0, 96], sizes = [2, 32], strides = [1, 1]} : vector<2x128xf32> to vector<2x32xf32>
    %133 = math.tanh %132 : vector<2x32xf32>
    %134 = vector.extract_strided_slice %131 {offsets = [0, 0], sizes = [2, 32], strides = [1, 1]} : vector<2x96xf32> to vector<2x32xf32>
    %135 = vector.extract_strided_slice %131 {offsets = [0, 32], sizes = [2, 32], strides = [1, 1]} : vector<2x96xf32> to vector<2x32xf32>
    %136 = vector.extract_strided_slice %131 {offsets = [0, 64], sizes = [2, 32], strides = [1, 1]} : vector<2x96xf32> to vector<2x32xf32>
    %137 = arith.mulf %135, %111 : vector<2x32xf32>
    %138 = arith.mulf %134, %133 : vector<2x32xf32>
    %139 = arith.addf %137, %138 : vector<2x32xf32>
    %140 = math.tanh %139 : vector<2x32xf32>
    %141 = arith.mulf %136, %140 : vector<2x32xf32>
    %142 = vector.shape_cast %141 : vector<2x32xf32> to vector<1x2x32xf32>
    %c0_47 = arith.constant 0 : index
    %143 = arith.index_cast %119 : i32 to index
    %c0_48 = arith.constant 0 : index
    %c0_49 = arith.constant 0 : index
    %144 = vector.load %arg5[%c0_47, %143, %c0_48, %c0_49] : memref<1x8x2x32xf32, #tpu.memory_space<vmem>>, vector<1x1x2x32xf32>
    %145 = vector.shape_cast %144 : vector<1x1x2x32xf32> to vector<1x2x32xf32>
    %146 = vector.shape_cast %142 : vector<1x2x32xf32> to vector<1x1x2x32xf32>
    tpu.vector_store %arg5[%c0_47, %143, %c0_48, %c0_49], %146 {strides = array<i32>} : memref<1x8x2x32xf32, #tpu.memory_space<vmem>>, vector<1x1x2x32xf32>,
    %c2_i32_50 = arith.constant 2 : i32
    %c5_i32_51 = arith.constant 5 : i32
    %147 = arith.select %0, %c2_i32_50, %c5_i32_51 : i32
    %c0_52 = arith.constant 0 : index
    %148 = arith.index_cast %147 : i32 to index
    %c0_53 = arith.constant 0 : index
    %c0_54 = arith.constant 0 : index
    %149 = vector.load %arg1[%c0_52, %148, %c0_53, %c0_54] : memref<1x8x2x128xf32, #tpu.memory_space<vmem>>, vector<1x1x2x128xf32>
    %150 = vector.shape_cast %149 : vector<1x1x2x128xf32> to vector<1x2x128xf32>
    %151 = vector.shape_cast %150 : vector<1x2x128xf32> to vector<2x128xf32>
    %cst_55 = arith.constant dense<0.000000e+00> : vector<2x128xf32>
    %152 = tpu.matmul %141, %2, %cst_55 {dimension_numbers = #tpu.dot_dimension_numbers<[1], [0], [0], [1], [0, 0, 1, 1], [], []>} : vector<2x32xf32>, vector<32x128xf32>, vector<2x128xf32> -> vector<2x128xf32>
    %153 = arith.addf %151, %152 : vector<2x128xf32>
    %154 = vector.extract_strided_slice %153 {offsets = [0, 0], sizes = [2, 96], strides = [1, 1]} : vector<2x128xf32> to vector<2x96xf32>
    %155 = arith.negf %154 : vector<2x96xf32>
    %156 = math.exp %155 : vector<2x96xf32>
    %cst_56 = arith.constant 1.000000e+00 : f32
    %157 = vector.broadcast %cst_56 : f32 to vector<2x96xf32>
    %158 = arith.addf %157, %156 : vector<2x96xf32>
    %159 = arith.divf %157, %158 : vector<2x96xf32>
    %160 = vector.extract_strided_slice %153 {offsets = [0, 96], sizes = [2, 32], strides = [1, 1]} : vector<2x128xf32> to vector<2x32xf32>
    %161 = math.tanh %160 : vector<2x32xf32>
    %162 = vector.extract_strided_slice %159 {offsets = [0, 0], sizes = [2, 32], strides = [1, 1]} : vector<2x96xf32> to vector<2x32xf32>
    %163 = vector.extract_strided_slice %159 {offsets = [0, 32], sizes = [2, 32], strides = [1, 1]} : vector<2x96xf32> to vector<2x32xf32>
    %164 = vector.extract_strided_slice %159 {offsets = [0, 64], sizes = [2, 32], strides = [1, 1]} : vector<2x96xf32> to vector<2x32xf32>
    %165 = arith.mulf %163, %139 : vector<2x32xf32>
    %166 = arith.mulf %162, %161 : vector<2x32xf32>
    %167 = arith.addf %165, %166 : vector<2x32xf32>
    %168 = math.tanh %167 : vector<2x32xf32>
    %169 = arith.mulf %164, %168 : vector<2x32xf32>
    %170 = vector.shape_cast %169 : vector<2x32xf32> to vector<1x2x32xf32>
    %c0_57 = arith.constant 0 : index
    %171 = arith.index_cast %147 : i32 to index
    %c0_58 = arith.constant 0 : index
    %c0_59 = arith.constant 0 : index
    %172 = vector.load %arg5[%c0_57, %171, %c0_58, %c0_59] : memref<1x8x2x32xf32, #tpu.memory_space<vmem>>, vector<1x1x2x32xf32>
    %173 = vector.shape_cast %172 : vector<1x1x2x32xf32> to vector<1x2x32xf32>
    %174 = vector.shape_cast %170 : vector<1x2x32xf32> to vector<1x1x2x32xf32>
    tpu.vector_store %arg5[%c0_57, %171, %c0_58, %c0_59], %174 {strides = array<i32>} : memref<1x8x2x32xf32, #tpu.memory_space<vmem>>, vector<1x1x2x32xf32>,
    %c1_i32_60 = arith.constant 1 : i32
    %c6_i32_61 = arith.constant 6 : i32
    %175 = arith.select %0, %c1_i32_60, %c6_i32_61 : i32
    %c0_62 = arith.constant 0 : index
    %176 = arith.index_cast %175 : i32 to index
    %c0_63 = arith.constant 0 : index
    %c0_64 = arith.constant 0 : index
    %177 = vector.load %arg1[%c0_62, %176, %c0_63, %c0_64] : memref<1x8x2x128xf32, #tpu.memory_space<vmem>>, vector<1x1x2x128xf32>
    %178 = vector.shape_cast %177 : vector<1x1x2x128xf32> to vector<1x2x128xf32>
    %179 = vector.shape_cast %178 : vector<1x2x128xf32> to vector<2x128xf32>
    %cst_65 = arith.constant dense<0.000000e+00> : vector<2x128xf32>
    %180 = tpu.matmul %169, %2, %cst_65 {dimension_numbers = #tpu.dot_dimension_numbers<[1], [0], [0], [1], [0, 0, 1, 1], [], []>} : vector<2x32xf32>, vector<32x128xf32>, vector<2x128xf32> -> vector<2x128xf32>
    %181 = arith.addf %179, %180 : vector<2x128xf32>
    %182 = vector.extract_strided_slice %181 {offsets = [0, 0], sizes = [2, 96], strides = [1, 1]} : vector<2x128xf32> to vector<2x96xf32>
    %183 = arith.negf %182 : vector<2x96xf32>
    %184 = math.exp %183 : vector<2x96xf32>
    %cst_66 = arith.constant 1.000000e+00 : f32
    %185 = vector.broadcast %cst_66 : f32 to vector<2x96xf32>
    %186 = arith.addf %185, %184 : vector<2x96xf32>
    %187 = arith.divf %185, %186 : vector<2x96xf32>
    %188 = vector.extract_strided_slice %181 {offsets = [0, 96], sizes = [2, 32], strides = [1, 1]} : vector<2x128xf32> to vector<2x32xf32>
    %189 = math.tanh %188 : vector<2x32xf32>
    %190 = vector.extract_strided_slice %187 {offsets = [0, 0], sizes = [2, 32], strides = [1, 1]} : vector<2x96xf32> to vector<2x32xf32>
    %191 = vector.extract_strided_slice %187 {offsets = [0, 32], sizes = [2, 32], strides = [1, 1]} : vector<2x96xf32> to vector<2x32xf32>
    %192 = vector.extract_strided_slice %187 {offsets = [0, 64], sizes = [2, 32], strides = [1, 1]} : vector<2x96xf32> to vector<2x32xf32>
    %193 = arith.mulf %191, %167 : vector<2x32xf32>
    %194 = arith.mulf %190, %189 : vector<2x32xf32>
    %195 = arith.addf %193, %194 : vector<2x32xf32>
    %196 = math.tanh %195 : vector<2x32xf32>
    %197 = arith.mulf %192, %196 : vector<2x32xf32>
    %198 = vector.shape_cast %197 : vector<2x32xf32> to vector<1x2x32xf32>
    %c0_67 = arith.constant 0 : index
    %199 = arith.index_cast %175 : i32 to index
    %c0_68 = arith.constant 0 : index
    %c0_69 = arith.constant 0 : index
    %200 = vector.load %arg5[%c0_67, %199, %c0_68, %c0_69] : memref<1x8x2x32xf32, #tpu.memory_space<vmem>>, vector<1x1x2x32xf32>
    %201 = vector.shape_cast %200 : vector<1x1x2x32xf32> to vector<1x2x32xf32>
    %202 = vector.shape_cast %198 : vector<1x2x32xf32> to vector<1x1x2x32xf32>
    tpu.vector_store %arg5[%c0_67, %199, %c0_68, %c0_69], %202 {strides = array<i32>} : memref<1x8x2x32xf32, #tpu.memory_space<vmem>>, vector<1x1x2x32xf32>,
    %c0_i32_70 = arith.constant 0 : i32
    %c7_i32_71 = arith.constant 7 : i32
    %203 = arith.select %0, %c0_i32_70, %c7_i32_71 : i32
    %c0_72 = arith.constant 0 : index
    %204 = arith.index_cast %203 : i32 to index
    %c0_73 = arith.constant 0 : index
    %c0_74 = arith.constant 0 : index
    %205 = vector.load %arg1[%c0_72, %204, %c0_73, %c0_74] : memref<1x8x2x128xf32, #tpu.memory_space<vmem>>, vector<1x1x2x128xf32>
    %206 = vector.shape_cast %205 : vector<1x1x2x128xf32> to vector<1x2x128xf32>
    %207 = vector.shape_cast %206 : vector<1x2x128xf32> to vector<2x128xf32>
    %cst_75 = arith.constant dense<0.000000e+00> : vector<2x128xf32>
    %208 = tpu.matmul %197, %2, %cst_75 {dimension_numbers = #tpu.dot_dimension_numbers<[1], [0], [0], [1], [0, 0, 1, 1], [], []>} : vector<2x32xf32>, vector<32x128xf32>, vector<2x128xf32> -> vector<2x128xf32>
    %209 = arith.addf %207, %208 : vector<2x128xf32>
    %210 = vector.extract_strided_slice %209 {offsets = [0, 0], sizes = [2, 96], strides = [1, 1]} : vector<2x128xf32> to vector<2x96xf32>
    %211 = arith.negf %210 : vector<2x96xf32>
    %212 = math.exp %211 : vector<2x96xf32>
    %cst_76 = arith.constant 1.000000e+00 : f32
    %213 = vector.broadcast %cst_76 : f32 to vector<2x96xf32>
    %214 = arith.addf %213, %212 : vector<2x96xf32>
    %215 = arith.divf %213, %214 : vector<2x96xf32>
    %216 = vector.extract_strided_slice %209 {offsets = [0, 96], sizes = [2, 32], strides = [1, 1]} : vector<2x128xf32> to vector<2x32xf32>
    %217 = math.tanh %216 : vector<2x32xf32>
    %218 = vector.extract_strided_slice %215 {offsets = [0, 0], sizes = [2, 32], strides = [1, 1]} : vector<2x96xf32> to vector<2x32xf32>
    %219 = vector.extract_strided_slice %215 {offsets = [0, 32], sizes = [2, 32], strides = [1, 1]} : vector<2x96xf32> to vector<2x32xf32>
    %220 = vector.extract_strided_slice %215 {offsets = [0, 64], sizes = [2, 32], strides = [1, 1]} : vector<2x96xf32> to vector<2x32xf32>
    %221 = arith.mulf %219, %195 : vector<2x32xf32>
    %222 = arith.mulf %218, %217 : vector<2x32xf32>
    %223 = arith.addf %221, %222 : vector<2x32xf32>
    %224 = math.tanh %223 : vector<2x32xf32>
    %225 = arith.mulf %220, %224 : vector<2x32xf32>
    %226 = vector.shape_cast %225 : vector<2x32xf32> to vector<1x2x32xf32>
    %c0_77 = arith.constant 0 : index
    %227 = arith.index_cast %203 : i32 to index
    %c0_78 = arith.constant 0 : index
    %c0_79 = arith.constant 0 : index
    %228 = vector.load %arg5[%c0_77, %227, %c0_78, %c0_79] : memref<1x8x2x32xf32, #tpu.memory_space<vmem>>, vector<1x1x2x32xf32>
    %229 = vector.shape_cast %228 : vector<1x1x2x32xf32> to vector<1x2x32xf32>
    %230 = vector.shape_cast %226 : vector<1x2x32xf32> to vector<1x1x2x32xf32>
    tpu.vector_store %arg5[%c0_77, %227, %c0_78, %c0_79], %230 {strides = array<i32>} : memref<1x8x2x32xf32, #tpu.memory_space<vmem>>, vector<1x1x2x32xf32>,
    return
  }
  func.func @transform_0(%arg0: i32) -> (i32, i32, i32, i32) {
    %c0_i32 = arith.constant 0 : i32
    %c0_i32_0 = arith.constant 0 : i32
    %c0_i32_1 = arith.constant 0 : i32
    %c0_i32_2 = arith.constant 0 : i32
    return %arg0, %c0_i32, %c0_i32_0, %c0_i32_1 : i32, i32, i32, i32
  }
  func.func @transform_1(%arg0: i32) -> (i32, i32, i32) {
    %c0_i32 = arith.constant 0 : i32
    %c0_i32_0 = arith.constant 0 : i32
    %c0_i32_1 = arith.constant 0 : i32
    return %arg0, %c0_i32, %c0_i32_0 : i32, i32, i32
  }
  func.func @transform_2(%arg0: i32) -> (i32, i32, i32) {
    %c0_i32 = arith.constant 0 : i32
    %c0_i32_0 = arith.constant 0 : i32
    %c0_i32_1 = arith.constant 0 : i32
    return %arg0, %c0_i32, %c0_i32_0 : i32, i32, i32
  }
  func.func @transform_3(%arg0: i32) -> (i32, i32, i32) {
    %c0_i32 = arith.constant 0 : i32
    %c0_i32_0 = arith.constant 0 : i32
    %c0_i32_1 = arith.constant 0 : i32
    return %arg0, %c0_i32, %c0_i32_0 : i32, i32, i32
  }
  func.func @transform_4(%arg0: i32) -> (i32, i32, i32, i32) {
    %c0_i32 = arith.constant 0 : i32
    %c0_i32_0 = arith.constant 0 : i32
    %c0_i32_1 = arith.constant 0 : i32
    %c0_i32_2 = arith.constant 0 : i32
    return %arg0, %c0_i32, %c0_i32_0, %c0_i32_1 : i32, i32, i32, i32
  }
}

</mosaic_0001>

<llo_original>
// kernel: forward.5
$region0: #{forward.5}
  #allocation0 [shape = 'u32[]', space=smem, size = 0x4, offset = 0x4, fixed_abs, tag = 'smem constant byte address 0x4 - core index']
  #allocation1 [shape = 'u32[144,128]{1,0:T(1,128)}', space=vmem, size = 0x12000, scoped, tag = 'internal scratch']
  %s0 = inlined_call_operand.vmem [shape: f32[16,64], index: 0, kind: input, shape index: {}]
  %s1 = inlined_call_operand.vmem [shape: f32[64,256], index: 1, kind: input, shape index: {}]
  %s2 = inlined_call_operand.vmem [shape: f32[1,256], index: 2, kind: input, shape index: {}]
  %s3 = inlined_call_operand.vmem [shape: f32[16,256], index: 3, kind: output, shape index: {}]
  %s4 = sld [smem:[#allocation0]]
  $region22: #{forward.5} parent=0
    _
  %s6 = ssub.s32 1, %s4
  %s7 = scalar_select 0, %s6, %s4
  // Predicated region
  $region2: #{forward.5} parent=0 // pred_check
    _
  $region3: #{forward.5} parent=0 // pred_check_branch
    %9 = sbr.rel (0) target = $region5
  $region4: #{forward.5} parent=0 // pred_region
    _
  $region5: #{forward.5} parent=0 // pred_fallthru
    _
  // Predicated region
  $region6: #{forward.5} parent=0 // pred_check
    _
  $region7: #{forward.5} parent=0 // pred_check_branch
    %11 = sbr.rel (0) target = $region9
  $region8: #{forward.5} parent=0 // pred_region
    _
  $region9: #{forward.5} parent=0 // pred_fallthru
    _
  // Predicated region
  $region10: #{forward.5} parent=0 // pred_check
    _
  $region11: #{forward.5} parent=0 // pred_check_branch
    %13 = sbr.rel (0) target = $region13
  $region12: #{forward.5} parent=0 // pred_region
    _
  $region13: #{forward.5} parent=0 // pred_fallthru
    _
  %v14 = vld [vmem:[%s0] sm:$0xff]
  %v15 = vld [vmem:[%s0 + $0x8] sm:$0xff]
  %v16 = vld [vmem:[%s1] sm:$0xff]
  %v17 = vld [vmem:[%s1 + $0x8] sm:$0xff]
  %v18 = vld [vmem:[%s1 + $0x10] sm:$0xff]
  %v19 = vld [vmem:[%s1 + $0x18] sm:$0xff]
  %v20 = vld [vmem:[%s1 + $0x20] sm:$0xff]
  %v21 = vld [vmem:[%s1 + $0x28] sm:$0xff]
  %v22 = vld [vmem:[%s1 + $0x30] sm:$0xff]
  %v23 = vld [vmem:[%s1 + $0x38] sm:$0xff]
  %v24 = vld [vmem:[%s1 + $0x40] sm:$0xff]
  %v25 = vld [vmem:[%s1 + $0x48] sm:$0xff]
  %v26 = vld [vmem:[%s1 + $0x50] sm:$0xff]
  %v27 = vld [vmem:[%s1 + $0x58] sm:$0xff]
  %v28 = vld [vmem:[%s1 + $0x60] sm:$0xff]
  %v29 = vld [vmem:[%s1 + $0x68] sm:$0xff]
  %v30 = vld [vmem:[%s1 + $0x70] sm:$0xff]
  %v31 = vld [vmem:[%s1 + $0x78] sm:$0xff]
  %v32 = vld [vmem:[%s2] sm:$0x3]
  %v34 = vlaneseq
  %v35 = vshrl.u32 %v34, 7
  %v36 = vsub.s32 0, %v35
  %v37 = vrot.slane %v32, %v36
  %v38 = vlaneseq
  %v39 = vshrl.u32 %v38, 7
  %v40 = vsub.s32 1, %v39
  %v41 = vrot.slane %v32, %v40
  %vm44 = vcmask 523264
  %v46 = vsel %vm44, %v14, 0
  %v49 = vsel %vm44, %v15, 0
  %51 = vmatprep.subr.mxu0 %v17
  %52 = vmatpush1.msra.mxu0 %v16
  %53 = vmatprep.subr.mxu0 %v19
  %54 = vmatpush1.msra.mxu0 %v18
  %55 = vmatprep.subr.mxu0 %v21
  %56 = vmatpush1.msra.mxu0 %v20
  %57 = vmatprep.subr.mxu0 %v23
  %58 = vmatpush1.msra.mxu0 %v22
  %59 = vmatprep.subr.mxu0 %v25
  %60 = vmatpush1.msra.mxu0 %v24
  %61 = vmatprep.subr.mxu0 %v27
  %62 = vmatpush1.msra.mxu0 %v26
  %63 = vmatprep.subr.mxu0 %v29
  %64 = vmatpush1.msra.mxu0 %v28
  %65 = vmatprep.subr.mxu0 %v31
  %66 = vmatpush1.msra.mxu0 %v30
  %67 = vmatprep.subr.mxu0 0.0
  %68 = vmatpush1.msra.mxu0 0.0
  %69 = vmatprep.subr.mxu0 0.0
  %70 = vmatpush1.msra.mxu0 0.0
  %71 = vmatprep.subr.mxu0 0.0
  %72 = vmatpush1.msra.mxu0 0.0
  %73 = vmatprep.subr.mxu0 0.0
  %74 = vmatpush1.msra.mxu0 0.0
  %75 = vmatprep.subr.mxu0 0.0
  %76 = vmatpush1.msra.mxu0 0.0
  %77 = vmatprep.subr.mxu0 0.0
  %78 = vmatpush1.msra.mxu0 0.0
  %79 = vmatprep.subr.mxu0 0.0
  %80 = vmatpush1.msra.mxu0 0.0
  %81 = vmatprep.subr.mxu0 0.0
  %82 = vmatpush1.msra.mxu0 0.0
  %83 = vmatprep.subr.mxu0 0.0
  %84 = vmatpush1.msra.mxu0 0.0
  %85 = vmatprep.subr.mxu0 0.0
  %86 = vmatpush1.msra.mxu0 0.0
  %87 = vmatprep.subr.mxu0 0.0
  %88 = vmatpush1.msra.mxu0 0.0
  %89 = vmatprep.subr.mxu0 0.0
  %90 = vmatpush1.msra.mxu0 0.0
  %91 = vmatprep.subr.mxu0 0.0
  %92 = vmatpush1.msra.mxu0 0.0
  %93 = vmatprep.subr.mxu0 0.0
  %94 = vmatpush1.msra.mxu0 0.0
  %95 = vmatprep.subr.mxu0 0.0
  %96 = vmatpush1.msra.mxu0 0.0
  %97 = vmatprep.subr.mxu0 0.0
  %98 = vmatpush1.msra.mxu0 0.0
  %99 = vmatprep.subr.mxu0 0.0
  %100 = vmatpush1.msra.mxu0 0.0
  %101 = vmatprep.subr.mxu0 0.0
  %102 = vmatpush1.msra.mxu0 0.0
  %103 = vmatprep.subr.mxu0 0.0
  %104 = vmatpush1.msra.mxu0 0.0
  %105 = vmatprep.subr.mxu0 0.0
  %106 = vmatpush1.msra.mxu0 0.0
  %107 = vmatprep.subr.mxu0 0.0
  %108 = vmatpush1.msra.mxu0 0.0
  %109 = vmatprep.subr.mxu0 0.0
  %110 = vmatpush1.msra.mxu0 0.0
  %111 = vmatprep.subr.mxu0 0.0
  %112 = vmatpush1.msra.mxu0 0.0
  %113 = vmatprep.subr.mxu0 0.0
  %114 = vmatpush1.msra.mxu0 0.0
  %115 = vmatprep.mubr.f32.mxu0 0.0
  %116 = vmatmul.mubr.f32.gmra.mrb[0].mxu0 %v46
  %v117 = vpop.f32.mrb[0].mxu0
  %v118 = vadd.f32 %v37, %v117
  %v119 = vpop.f32.mrb[0].mxu0
  %v120 = vadd.f32 %v41, %v119
  %121 = vmatprep.mubr.f32.mxu0 0.0
  %122 = vmatmul.mubr.f32.gmra.mrb[0].mxu0 %v49
  %v123 = vpop.f32.mrb[0].mxu0
  %v124 = vadd.f32 %v37, %v123
  %v125 = vpop.f32.mrb[0].mxu0
  %v126 = vadd.f32 %v41, %v125
  %127 = vdwg.mxu0
  %128 = vst [vmem:[%s3] sm:$0xff] %v118
  %129 = vst [vmem:[%s3 + $0x8] sm:$0xff] %v120
  %130 = vst [vmem:[%s3 + $0x10] sm:$0xff] %v124
  %131 = vst [vmem:[%s3 + $0x18] sm:$0xff] %v126
  // Predicated region
  $region14: #{forward.5} parent=0 // pred_check
    _
  $region15: #{forward.5} parent=0 // pred_check_branch
    %133 = sbr.rel (0) target = $region17
  $region16: #{forward.5} parent=0 // pred_region
    _
  $region17: #{forward.5} parent=0 // pred_fallthru
    _
  // Predicated region
  $region18: #{forward.5} parent=0 // pred_check
    _
  $region19: #{forward.5} parent=0 // pred_check_branch
    %135 = sbr.rel (0) target = $region21
  $region20: #{forward.5} parent=0 // pred_region
    _
  $region21: #{forward.5} parent=0 // pred_fallthru
    _

// kernel: custom-call.4
$region0: #{custom-call.4}
  %s0 = inlined_call_operand.vmem [shape: s32[7,2], index: 0, kind: output, shape index: {}]

// kernel: forward.4
$region0: #{forward.4}
  #allocation0 [shape = 'u32[]', space=smem, size = 0x4, offset = 0x4, fixed_abs, tag = 'smem constant byte address 0x4 - core index']
  #allocation1 [shape = 'u32[144,128]{1,0:T(1,128)}', space=vmem, size = 0x12000, scoped, tag = 'internal scratch']
  %s0 = inlined_call_operand.vmem [shape: f32[2,8,128], index: 0, kind: input, shape index: {}]
  %s1 = inlined_call_operand.vmem [shape: f32[384,64], index: 1, kind: input, shape index: {}]
  %s2 = inlined_call_operand.vmem [shape: f32[1,64], index: 2, kind: input, shape index: {}]
  %s3 = inlined_call_operand.vmem [shape: f32[192,64], index: 3, kind: input, shape index: {}]
  %s4 = inlined_call_operand.vmem [shape: f32[1,64], index: 4, kind: input, shape index: {}]
  %s5 = inlined_call_operand.vmem [shape: f32[192,64], index: 5, kind: input, shape index: {}]
  %s6 = inlined_call_operand.vmem [shape: f32[1,64], index: 6, kind: input, shape index: {}]
  %s7 = inlined_call_operand.vmem [shape: f32[192,64], index: 7, kind: input, shape index: {}]
  %s8 = inlined_call_operand.vmem [shape: f32[1,64], index: 8, kind: input, shape index: {}]
  %s9 = inlined_call_operand.vmem [shape: f32[2,8,64], index: 9, kind: output, shape index: {}]
  %s10 = sld [smem:[#allocation0]]
  $region69: #{forward.4} parent=0
    _
  %s12 = ssub.s32 1, %s10
  %s13 = scalar_select 0, %s12, %s10
  loop: start=0, step=1, limit=4
  $region2: #{forward.4} parent=0 // loop_pre_header
    _
  $region3: #{forward.4} parent=0 // loop_header
    %s15 = sphi 0, %s19
    %p16 = scmp.ge.s32.totalorder %s15, 4
    %s25 = sphi 0, %s27
    %s28 = sphi 0, %s25
    %s29 = sphi 0, %s28
    %s45 = sphi 0, %s29
    %s49 = sphi 0, %s49
    %s51 = sphi 0, %s49
    %s52 = sphi 0, %s51
    %s66 = sphi 0, %s52
    %s70 = sphi 0, %s70
    %s72 = sphi 0, %s70
    %s73 = sphi 0, %s72
    %s87 = sphi 0, %s73
    %s91 = sphi 0, %s91
    %s93 = sphi 0, %s91
    %s94 = sphi 0, %s93
    %s108 = sphi 0, %s94
    %s112 = sphi 0, %s112
    %s114 = sphi 0, %s112
    %s115 = sphi 0, %s114
    %s129 = sphi 0, %s115
    %s133 = sphi 0, %s133
    %s135 = sphi 0, %s133
    %s136 = sphi 0, %s135
    %s150 = sphi 0, %s136
    %s154 = sphi 0, %s154
    %s156 = sphi 0, %s154
    %s157 = sphi 0, %s156
    %s171 = sphi 0, %s157
    %s175 = sphi 0, %s175
    %s177 = sphi 0, %s175
    %s178 = sphi 0, %s177
    %s192 = sphi 0, %s178
    %s196 = sphi 0, %s196
    %s198 = sphi 0, %s196
    %s199 = sphi 0, %s198
    %s213 = sphi 0, %s199
    %s219 = sphi 0, %s221
    %s222 = sphi 0, %s219
    %s223 = sphi 0, %s222
    %s239 = sphi 0, %s223
  $region4: #{forward.4} parent=0 // loop_header_branch
    %18 = sbr.rel (%p16) target = $region8
  $region5: #{forward.4} parent=0 // loop_body
    %s20 = ssub.s32 %s15, 1
    %s21 = ssub.s32 %s15, 2
    %s22 = sadd.s32 %s15, 1
    %s23 = ssub.s32 %s15, %s22
    %p24 = scmp.eq.s32.totalorder %s23, 0
    %s26 = sadd.s32 %s25, 1
    %s27 = scalar_select %p24, %s25, %s26
    %p30 = pneg %p24
    %p31 = scmp.eq.s32.totalorder %s15, 1
    %p32 = por %p30, %p31
    %p33 = scmp.ne.s32.totalorder %s25, %s28
    %p34 = scmp.eq.s32.totalorder %s15, 0
    %p35 = por %p33, %p34
    %p36 = scmp.ne.s32.totalorder %s25, %s28
    %p37 = scmp.eq.s32.totalorder %s20, 1
    %p38 = por %p36, %p37
    %p39 = scmp.ne.s32.totalorder %s28, %s29
    %p40 = scmp.eq.s32.totalorder %s20, 0
    %p41 = por %p39, %p40
    %p42 = scmp.ne.s32.totalorder %s28, %s29
    %p43 = scmp.eq.s32.totalorder %s21, 1
    %p44 = por %p42, %p43
    %p46 = scmp.ne.s32.totalorder %s29, %s45
    %p47 = scmp.eq.s32.totalorder %s21, 0
    %p48 = por %p46, %p47
    %s50 = sadd.s32 %s49, 1
    %p53 = scmp.eq.s32.totalorder %s15, 1
    %p54 = scmp.ne.s32.totalorder %s49, %s51
    %p55 = scmp.eq.s32.totalorder %s15, 0
    %p56 = por %p54, %p55
    %p57 = scmp.ne.s32.totalorder %s49, %s51
    %p58 = scmp.eq.s32.totalorder %s20, 1
    %p59 = por %p57, %p58
    %p60 = scmp.ne.s32.totalorder %s51, %s52
    %p61 = scmp.eq.s32.totalorder %s20, 0
    %p62 = por %p60, %p61
    %p63 = scmp.ne.s32.totalorder %s51, %s52
    %p64 = scmp.eq.s32.totalorder %s21, 1
    %p65 = por %p63, %p64
    %p67 = scmp.ne.s32.totalorder %s52, %s66
    %p68 = scmp.eq.s32.totalorder %s21, 0
    %p69 = por %p67, %p68
    %s71 = sadd.s32 %s70, 1
    %p74 = scmp.eq.s32.totalorder %s15, 1
    %p75 = scmp.ne.s32.totalorder %s70, %s72
    %p76 = scmp.eq.s32.totalorder %s15, 0
    %p77 = por %p75, %p76
    %p78 = scmp.ne.s32.totalorder %s70, %s72
    %p79 = scmp.eq.s32.totalorder %s20, 1
    %p80 = por %p78, %p79
    %p81 = scmp.ne.s32.totalorder %s72, %s73
    %p82 = scmp.eq.s32.totalorder %s20, 0
    %p83 = por %p81, %p82
    %p84 = scmp.ne.s32.totalorder %s72, %s73
    %p85 = scmp.eq.s32.totalorder %s21, 1
    %p86 = por %p84, %p85
    %p88 = scmp.ne.s32.totalorder %s73, %s87
    %p89 = scmp.eq.s32.totalorder %s21, 0
    %p90 = por %p88, %p89
    %s92 = sadd.s32 %s91, 1
    %p95 = scmp.eq.s32.totalorder %s15, 1
    %p96 = scmp.ne.s32.totalorder %s91, %s93
    %p97 = scmp.eq.s32.totalorder %s15, 0
    %p98 = por %p96, %p97
    %p99 = scmp.ne.s32.totalorder %s91, %s93
    %p100 = scmp.eq.s32.totalorder %s20, 1
    %p101 = por %p99, %p100
    %p102 = scmp.ne.s32.totalorder %s93, %s94
    %p103 = scmp.eq.s32.totalorder %s20, 0
    %p104 = por %p102, %p103
    %p105 = scmp.ne.s32.totalorder %s93, %s94
    %p106 = scmp.eq.s32.totalorder %s21, 1
    %p107 = por %p105, %p106
    %p109 = scmp.ne.s32.totalorder %s94, %s108
    %p110 = scmp.eq.s32.totalorder %s21, 0
    %p111 = por %p109, %p110
    %s113 = sadd.s32 %s112, 1
    %p116 = scmp.eq.s32.totalorder %s15, 1
    %p117 = scmp.ne.s32.totalorder %s112, %s114
    %p118 = scmp.eq.s32.totalorder %s15, 0
    %p119 = por %p117, %p118
    %p120 = scmp.ne.s32.totalorder %s112, %s114
    %p121 = scmp.eq.s32.totalorder %s20, 1
    %p122 = por %p120, %p121
    %p123 = scmp.ne.s32.totalorder %s114, %s115
    %p124 = scmp.eq.s32.totalorder %s20, 0
    %p125 = por %p123, %p124
    %p126 = scmp.ne.s32.totalorder %s114, %s115
    %p127 = scmp.eq.s32.totalorder %s21, 1
    %p128 = por %p126, %p127
    %p130 = scmp.ne.s32.totalorder %s115, %s129
    %p131 = scmp.eq.s32.totalorder %s21, 0
    %p132 = por %p130, %p131
    %s134 = sadd.s32 %s133, 1
    %p137 = scmp.eq.s32.totalorder %s15, 1
    %p138 = scmp.ne.s32.totalorder %s133, %s135
    %p139 = scmp.eq.s32.totalorder %s15, 0
    %p140 = por %p138, %p139
    %p141 = scmp.ne.s32.totalorder %s133, %s135
    %p142 = scmp.eq.s32.totalorder %s20, 1
    %p143 = por %p141, %p142
    %p144 = scmp.ne.s32.totalorder %s135, %s136
    %p145 = scmp.eq.s32.totalorder %s20, 0
    %p146 = por %p144, %p145
    %p147 = scmp.ne.s32.totalorder %s135, %s136
    %p148 = scmp.eq.s32.totalorder %s21, 1
    %p149 = por %p147, %p148
    %p151 = scmp.ne.s32.totalorder %s136, %s150
    %p152 = scmp.eq.s32.totalorder %s21, 0
    %p153 = por %p151, %p152
    %s155 = sadd.s32 %s154, 1
    %p158 = scmp.eq.s32.totalorder %s15, 1
    %p159 = scmp.ne.s32.totalorder %s154, %s156
    %p160 = scmp.eq.s32.totalorder %s15, 0
    %p161 = por %p159, %p160
    %p162 = scmp.ne.s32.totalorder %s154, %s156
    %p163 = scmp.eq.s32.totalorder %s20, 1
    %p164 = por %p162, %p163
    %p165 = scmp.ne.s32.totalorder %s156, %s157
    %p166 = scmp.eq.s32.totalorder %s20, 0
    %p167 = por %p165, %p166
    %p168 = scmp.ne.s32.totalorder %s156, %s157
    %p169 = scmp.eq.s32.totalorder %s21, 1
    %p170 = por %p168, %p169
    %p172 = scmp.ne.s32.totalorder %s157, %s171
    %p173 = scmp.eq.s32.totalorder %s21, 0
    %p174 = por %p172, %p173
    %s176 = sadd.s32 %s175, 1
    %p179 = scmp.eq.s32.totalorder %s15, 1
    %p180 = scmp.ne.s32.totalorder %s175, %s177
    %p181 = scmp.eq.s32.totalorder %s15, 0
    %p182 = por %p180, %p181
    %p183 = scmp.ne.s32.totalorder %s175, %s177
    %p184 = scmp.eq.s32.totalorder %s20, 1
    %p185 = por %p183, %p184
    %p186 = scmp.ne.s32.totalorder %s177, %s178
    %p187 = scmp.eq.s32.totalorder %s20, 0
    %p188 = por %p186, %p187
    %p189 = scmp.ne.s32.totalorder %s177, %s178
    %p190 = scmp.eq.s32.totalorder %s21, 1
    %p191 = por %p189, %p190
    %p193 = scmp.ne.s32.totalorder %s178, %s192
    %p194 = scmp.eq.s32.totalorder %s21, 0
    %p195 = por %p193, %p194
    %s197 = sadd.s32 %s196, 1
    %p200 = scmp.eq.s32.totalorder %s15, 1
    %p201 = scmp.ne.s32.totalorder %s196, %s198
    %p202 = scmp.eq.s32.totalorder %s15, 0
    %p203 = por %p201, %p202
    %p204 = scmp.ne.s32.totalorder %s196, %s198
    %p205 = scmp.eq.s32.totalorder %s20, 1
    %p206 = por %p204, %p205
    %p207 = scmp.ne.s32.totalorder %s198, %s199
    %p208 = scmp.eq.s32.totalorder %s20, 0
    %p209 = por %p207, %p208
    %p210 = scmp.ne.s32.totalorder %s198, %s199
    %p211 = scmp.eq.s32.totalorder %s21, 1
    %p212 = por %p210, %p211
    %p214 = scmp.ne.s32.totalorder %s199, %s213
    %p215 = scmp.eq.s32.totalorder %s21, 0
    %p216 = por %p214, %p215
    %s217 = ssub.s32 %s15, %s22
    %p218 = scmp.eq.s32.totalorder %s217, 0
    %s220 = sadd.s32 %s219, 1
    %s221 = scalar_select %p218, %s219, %s220
    %p224 = pneg %p218
    %p225 = scmp.eq.s32.totalorder %s15, 1
    %p226 = por %p224, %p225
    %p227 = scmp.ne.s32.totalorder %s219, %s222
    %p228 = scmp.eq.s32.totalorder %s15, 0
    %p229 = por %p227, %p228
    %p230 = scmp.ne.s32.totalorder %s219, %s222
    %p231 = scmp.eq.s32.totalorder %s20, 1
    %p232 = por %p230, %p231
    %p233 = scmp.ne.s32.totalorder %s222, %s223
    %p234 = scmp.eq.s32.totalorder %s20, 0
    %p235 = por %p233, %p234
    %p236 = scmp.ne.s32.totalorder %s222, %s223
    %p237 = scmp.eq.s32.totalorder %s21, 1
    %p238 = por %p236, %p237
    %p240 = scmp.ne.s32.totalorder %s223, %s239
    %p241 = scmp.eq.s32.totalorder %s21, 0
    %p242 = por %p240, %p241
    %p243 = scmp.le.s32.totalorder 1, %s15
    %p244 = scmp.lt.s32.totalorder %s15, 3
    %p245 = pnand %p243, %p244
    %p246 = pneg %p245
    // Predicated region
    $region9: #{forward.4} parent=5 // pred_check
      _
    $region10: #{forward.4} parent=5 // pred_check_branch
      %248 = sbr.rel (%p245) target = $region12
    $region11: #{forward.4} parent=5 // pred_region
      %s249 = ssub.s32 %s15, 1
      // Predicated region
      $region13: #{forward.4} parent=11 // pred_check
        %p250 = pneg %p62
      $region14: #{forward.4} parent=11 // pred_check_branch
        %252 = sbr.rel (%p250) target = $region16
      $region15: #{forward.4} parent=11 // pred_region
        _
      $region16: #{forward.4} parent=11 // pred_fallthru
        _
      // Predicated region
      $region17: #{forward.4} parent=11 // pred_check
        %p253 = pneg %p83
      $region18: #{forward.4} parent=11 // pred_check_branch
        %255 = sbr.rel (%p253) target = $region20
      $region19: #{forward.4} parent=11 // pred_region
        _
      $region20: #{forward.4} parent=11 // pred_fallthru
        _
      // Predicated region
      $region21: #{forward.4} parent=11 // pred_check
        %p256 = pneg %p104
      $region22: #{forward.4} parent=11 // pred_check_branch
        %258 = sbr.rel (%p256) target = $region24
      $region23: #{forward.4} parent=11 // pred_region
        _
      $region24: #{forward.4} parent=11 // pred_fallthru
        _
      // Predicated region
      $region25: #{forward.4} parent=11 // pred_check
        %p259 = pneg %p125
      $region26: #{forward.4} parent=11 // pred_check_branch
        %261 = sbr.rel (%p259) target = $region28
      $region27: #{forward.4} parent=11 // pred_region
        _
      $region28: #{forward.4} parent=11 // pred_fallthru
        _
      // Predicated region
      $region29: #{forward.4} parent=11 // pred_check
        %p262 = pneg %p146
      $region30: #{forward.4} parent=11 // pred_check_branch
        %264 = sbr.rel (%p262) target = $region32
      $region31: #{forward.4} parent=11 // pred_region
        _
      $region32: #{forward.4} parent=11 // pred_fallthru
        _
      // Predicated region
      $region33: #{forward.4} parent=11 // pred_check
        %p265 = pneg %p167
      $region34: #{forward.4} parent=11 // pred_check_branch
        %267 = sbr.rel (%p265) target = $region36
      $region35: #{forward.4} parent=11 // pred_region
        _
      $region36: #{forward.4} parent=11 // pred_fallthru
        _
      // Predicated region
      $region37: #{forward.4} parent=11 // pred_check
        %p268 = pneg %p188
      $region38: #{forward.4} parent=11 // pred_check_branch
        %270 = sbr.rel (%p268) target = $region40
      $region39: #{forward.4} parent=11 // pred_region
        _
      $region40: #{forward.4} parent=11 // pred_fallthru
        _
      // Predicated region
      $region41: #{forward.4} parent=11 // pred_check
        %p271 = pneg %p209
      $region42: #{forward.4} parent=11 // pred_check_branch
        %273 = sbr.rel (%p271) target = $region44
      $region43: #{forward.4} parent=11 // pred_region
        _
      $region44: #{forward.4} parent=11 // pred_fallthru
        _
    $region12: #{forward.4} parent=5 // pred_fallthru
      _
    %p274 = scmp.lt.s32.totalorder %s15, 2
    // Predicated region
    $region45: #{forward.4} parent=5 // pred_check
      %p275 = pneg %p274
    $region46: #{forward.4} parent=5 // pred_check_branch
      %277 = sbr.rel (%p275) target = $region48
    $region47: #{forward.4} parent=5 // pred_region
      // Predicated region
      $region49: #{forward.4} parent=47 // pred_check
        %p278 = pneg %p35
      $region50: #{forward.4} parent=47 // pred_check_branch
        %280 = sbr.rel (%p278) target = $region52
      $region51: #{forward.4} parent=47 // pred_region
        %p281 = scmp.lt.s32.totalorder %s15, 1
        %s282 = scalar_select %p281, %s15, 1
        %s283 = smul.addr %s282, 8
        %s284 = scalar_lea.vmem %s0, %s283
      $region52: #{forward.4} parent=47 // pred_fallthru
        _
    $region48: #{forward.4} parent=5 // pred_fallthru
      _
    %p285 = scmp.le.s32.totalorder 1, %s15
    %p286 = scmp.lt.s32.totalorder %s15, 3
    %p287 = pnand %p285, %p286
    %p288 = pneg %p287
    // Predicated region
    $region53: #{forward.4} parent=5 // pred_check
      _
    $region54: #{forward.4} parent=5 // pred_check_branch
      %290 = sbr.rel (%p287) target = $region56
    $region55: #{forward.4} parent=5 // pred_region
      %s291 = ssub.s32 %s15, 1
      %p292 = scmp.lt.s32.totalorder %s20, 1
      %s293 = scalar_select %p292, %s20, 1
      %s294 = smul.addr %s293, 8
      %s295 = scalar_lea.vmem %s0, %s294
      %p296 = pneg %p41
      %p297 = pneg %p38
      %p298 = pneg %p62
      %p299 = pneg %p59
      %p300 = pneg %p83
      %p301 = pneg %p80
      %p302 = pneg %p104
      %p303 = pneg %p101
      %p304 = pneg %p125
      %p305 = pneg %p122
      %p306 = pneg %p146
      %p307 = pneg %p143
      %p308 = pneg %p167
      %p309 = pneg %p164
      %p310 = pneg %p188
      %p311 = pneg %p185
      %p312 = pneg %p209
      %p313 = pneg %p206
      %p314 = pneg %p235
      %p315 = pneg %p232
      %p316 = scmp.lt.s32.totalorder %s20, 1
      %s317 = scalar_select %p316, %s20, 1
      %s318 = smul.addr %s317, 8
      %s319 = scalar_lea.vmem %s9, %s318
      %p320 = scmp.lt.s32.totalorder %s20, 1
      %s321 = scalar_select %p320, %s20, 1
      %s322 = smul.addr %s321, 8
      %s323 = scalar_lea.vmem %s0, %s322
      %p324 = scmp.lt.s32.totalorder %s20, 1
      %s325 = scalar_select %p324, %s20, 1
      %s326 = smul.addr %s325, 8
      %s327 = scalar_lea.vmem %s9, %s326
      %v328 = vlaneseq
      %v329 = vshrl.u32 %v328, 7
      %v330 = vlaneseq
      %v331 = vand.u32 %v330, 127
      %v332 = vsub.s32 %v329, %v331
      %vm333 = vcmp.eq.s32.totalorder %v332, 1
      %v334 = vsel %vm333, 1, 0
      %v335 = vcvt.s32.f32 %v334
      %v336 = vsub.s32 %v331, %v329
      %vm337 = vcmp.eq.s32.totalorder %v336, 1
      %v338 = vsel %vm337, 1, 0
      %v339 = vcvt.s32.f32 %v338
      %vm340 = vcmp.eq.s32.totalorder %v332, 2
      %v341 = vsel %vm340, 1, 0
      %v342 = vcvt.s32.f32 %v341
      %vm343 = vcmp.eq.s32.totalorder %v336, 2
      %v344 = vsel %vm343, 1, 0
      %v345 = vcvt.s32.f32 %v344
      %v346 = vld [vmem:[%s323] sm:$0xff]
      %vm347 = vcmask 64512
      %v349 = vsel %vm347, %v335, 0
      %351 = vmatprep.subr.mxu0 0.0
      %352 = vmatpush1.msra.mxu0 %v346
      %353 = vmatprep.subr.mxu0 0.0
      %354 = vmatpush1.msra.mxu0 0.0
      %355 = vmatprep.subr.mxu0 0.0
      %356 = vmatpush1.msra.mxu0 0.0
      %357 = vmatprep.subr.mxu0 0.0
      %358 = vmatpush1.msra.mxu0 0.0
      %359 = vmatprep.subr.mxu0 0.0
      %360 = vmatpush1.msra.mxu0 0.0
      %361 = vmatprep.subr.mxu0 0.0
      %362 = vmatpush1.msra.mxu0 0.0
      %363 = vmatprep.subr.mxu0 0.0
      %364 = vmatpush1.msra.mxu0 0.0
      %365 = vmatprep.subr.mxu0 0.0
      %366 = vmatpush1.msra.mxu0 0.0
      %367 = vmatprep.subr.mxu0 0.0
      %368 = vmatpush1.msra.mxu0 0.0
      %369 = vmatprep.subr.mxu0 0.0
      %370 = vmatpush1.msra.mxu0 0.0
      %371 = vmatprep.subr.mxu0 0.0
      %372 = vmatpush1.msra.mxu0 0.0
      %373 = vmatprep.subr.mxu0 0.0
      %374 = vmatpush1.msra.mxu0 0.0
      %375 = vmatprep.subr.mxu0 0.0
      %376 = vmatpush1.msra.mxu0 0.0
      %377 = vmatprep.subr.mxu0 0.0
      %378 = vmatpush1.msra.mxu0 0.0
      %379 = vmatprep.subr.mxu0 0.0
      %380 = vmatpush1.msra.mxu0 0.0
      %381 = vmatprep.subr.mxu0 0.0
      %382 = vmatpush1.msra.mxu0 0.0
      %383 = vmatprep.subr.mxu0 0.0
      %384 = vmatpush1.msra.mxu0 0.0
      %385 = vmatprep.subr.mxu0 0.0
      %386 = vmatpush1.msra.mxu0 0.0
      %387 = vmatprep.subr.mxu0 0.0
      %388 = vmatpush1.msra.mxu0 0.0
      %389 = vmatprep.subr.mxu0 0.0
      %390 = vmatpush1.msra.mxu0 0.0
      %391 = vmatprep.subr.mxu0 0.0
      %392 = vmatpush1.msra.mxu0 0.0
      %393 = vmatprep.subr.mxu0 0.0
      %394 = vmatpush1.msra.mxu0 0.0
      %395 = vmatprep.subr.mxu0 0.0
      %396 = vmatpush1.msra.mxu0 0.0
      %397 = vmatprep.subr.mxu0 0.0
      %398 = vmatpush1.msra.mxu0 0.0
      %399 = vmatprep.subr.mxu0 0.0
      %400 = vmatpush1.msra.mxu0 0.0
      %401 = vmatprep.subr.mxu0 0.0
      %402 = vmatpush1.msra.mxu0 0.0
      %403 = vmatprep.subr.mxu0 0.0
      %404 = vmatpush1.msra.mxu0 0.0
      %405 = vmatprep.subr.mxu0 0.0
      %406 = vmatpush1.msra.mxu0 0.0
      %407 = vmatprep.subr.mxu0 0.0
      %408 = vmatpush1.msra.mxu0 0.0
      %409 = vmatprep.subr.mxu0 0.0
      %410 = vmatpush1.msra.mxu0 0.0
      %411 = vmatprep.subr.mxu0 0.0
      %412 = vmatpush1.msra.mxu0 0.0
      %413 = vmatprep.subr.mxu0 0.0
      %414 = vmatpush1.msra.mxu0 0.0
      %415 = vmatprep.mubr.f32.mxu0 0.0
      %416 = vmatmul.mubr.f32.gmra.mrb[0].mxu0 %v349
      %v417 = vpop.f32.mrb[0].mxu0
      %v418 = vadd.f32 0.0, %v417
      %v419 = vpop.f32.mrb[0].mxu0
      %420 = vdwg.mxu0
      %v422 = vsel %vm347, %v339, 0
      %424 = vmatprep.subr.mxu0 0.0
      %425 = vmatpush1.msra.mxu0 %v346
      %426 = vmatprep.subr.mxu0 0.0
      %427 = vmatpush1.msra.mxu0 0.0
      %428 = vmatprep.subr.mxu0 0.0
      %429 = vmatpush1.msra.mxu0 0.0
      %430 = vmatprep.subr.mxu0 0.0
      %431 = vmatpush1.msra.mxu0 0.0
      %432 = vmatprep.subr.mxu0 0.0
      %433 = vmatpush1.msra.mxu0 0.0
      %434 = vmatprep.subr.mxu0 0.0
      %435 = vmatpush1.msra.mxu0 0.0
      %436 = vmatprep.subr.mxu0 0.0
      %437 = vmatpush1.msra.mxu0 0.0
      %438 = vmatprep.subr.mxu0 0.0
      %439 = vmatpush1.msra.mxu0 0.0
      %440 = vmatprep.subr.mxu0 0.0
      %441 = vmatpush1.msra.mxu0 0.0
      %442 = vmatprep.subr.mxu0 0.0
      %443 = vmatpush1.msra.mxu0 0.0
      %444 = vmatprep.subr.mxu0 0.0
      %445 = vmatpush1.msra.mxu0 0.0
      %446 = vmatprep.subr.mxu0 0.0
      %447 = vmatpush1.msra.mxu0 0.0
      %448 = vmatprep.subr.mxu0 0.0
      %449 = vmatpush1.msra.mxu0 0.0
      %450 = vmatprep.subr.mxu0 0.0
      %451 = vmatpush1.msra.mxu0 0.0
      %452 = vmatprep.subr.mxu0 0.0
      %453 = vmatpush1.msra.mxu0 0.0
      %454 = vmatprep.subr.mxu0 0.0
      %455 = vmatpush1.msra.mxu0 0.0
      %456 = vmatprep.subr.mxu0 0.0
      %457 = vmatpush1.msra.mxu0 0.0
      %458 = vmatprep.subr.mxu0 0.0
      %459 = vmatpush1.msra.mxu0 0.0
      %460 = vmatprep.subr.mxu0 0.0
      %461 = vmatpush1.msra.mxu0 0.0
      %462 = vmatprep.subr.mxu0 0.0
      %463 = vmatpush1.msra.mxu0 0.0
      %464 = vmatprep.subr.mxu0 0.0
      %465 = vmatpush1.msra.mxu0 0.0
      %466 = vmatprep.subr.mxu0 0.0
      %467 = vmatpush1.msra.mxu0 0.0
      %468 = vmatprep.subr.mxu0 0.0
      %469 = vmatpush1.msra.mxu0 0.0
      %470 = vmatprep.subr.mxu0 0.0
      %471 = vmatpush1.msra.mxu0 0.0
      %472 = vmatprep.subr.mxu0 0.0
      %473 = vmatpush1.msra.mxu0 0.0
      %474 = vmatprep.subr.mxu0 0.0
      %475 = vmatpush1.msra.mxu0 0.0
      %476 = vmatprep.subr.mxu0 0.0
      %477 = vmatpush1.msra.mxu0 0.0
      %478 = vmatprep.subr.mxu0 0.0
      %479 = vmatpush1.msra.mxu0 0.0
      %480 = vmatprep.subr.mxu0 0.0
      %481 = vmatpush1.msra.mxu0 0.0
      %482 = vmatprep.subr.mxu0 0.0
      %483 = vmatpush1.msra.mxu0 0.0
      %484 = vmatprep.subr.mxu0 0.0
      %485 = vmatpush1.msra.mxu0 0.0
      %486 = vmatprep.subr.mxu0 0.0
      %487 = vmatpush1.msra.mxu0 0.0
      %488 = vmatprep.mubr.f32.mxu0 0.0
      %489 = vmatmul.mubr.f32.gmra.mrb[0].mxu0 %v422
      %v490 = vpop.f32.mrb[0].mxu0
      %v491 = vadd.f32 0.0, %v490
      %v492 = vpop.f32.mrb[0].mxu0
      %493 = vdwg.mxu0
      %v494 = vld [vmem:[%s1] sm:$0xff]
      %v495 = vld [vmem:[%s1 + $0x8] sm:$0xff]
      %v496 = vld [vmem:[%s1 + $0x10] sm:$0xff]
      %v497 = vld [vmem:[%s1 + $0x18] sm:$0xff]
      %v498 = vld [vmem:[%s1 + $0x20] sm:$0xff]
      %v499 = vld [vmem:[%s1 + $0x28] sm:$0xff]
      %v500 = vld [vmem:[%s1 + $0x30] sm:$0xff]
      %v501 = vld [vmem:[%s1 + $0x38] sm:$0xff]
      %v502 = vld [vmem:[%s1 + $0x40] sm:$0xff]
      %v503 = vld [vmem:[%s1 + $0x48] sm:$0xff]
      %v504 = vld [vmem:[%s1 + $0x50] sm:$0xff]
      %v505 = vld [vmem:[%s1 + $0x58] sm:$0xff]
      %v506 = vld [vmem:[%s1 + $0x60] sm:$0xff]
      %v507 = vld [vmem:[%s1 + $0x68] sm:$0xff]
      %v508 = vld [vmem:[%s1 + $0x70] sm:$0xff]
      %v509 = vld [vmem:[%s1 + $0x78] sm:$0xff]
      %v510 = vld [vmem:[%s1 + $0x80] sm:$0xff]
      %v511 = vld [vmem:[%s1 + $0x88] sm:$0xff]
      %v512 = vld [vmem:[%s1 + $0x90] sm:$0xff]
      %v513 = vld [vmem:[%s1 + $0x98] sm:$0xff]
      %v514 = vld [vmem:[%s1 + $0xa0] sm:$0xff]
      %v515 = vld [vmem:[%s1 + $0xa8] sm:$0xff]
      %v516 = vld [vmem:[%s1 + $0xb0] sm:$0xff]
      %v517 = vld [vmem:[%s1 + $0xb8] sm:$0xff]
      %v518 = vld [vmem:[%s1 + $0xc0] sm:$0xff]
      %v519 = vld [vmem:[%s1 + $0xc8] sm:$0xff]
      %v520 = vld [vmem:[%s1 + $0xd0] sm:$0xff]
      %v521 = vld [vmem:[%s1 + $0xd8] sm:$0xff]
      %v522 = vld [vmem:[%s1 + $0xe0] sm:$0xff]
      %v523 = vld [vmem:[%s1 + $0xe8] sm:$0xff]
      %v524 = vld [vmem:[%s1 + $0xf0] sm:$0xff]
      %v525 = vld [vmem:[%s1 + $0xf8] sm:$0xff]
      %526 = vmatprep.subr.mxu0 0.0
      %527 = vmatpush1.msra.mxu0 %v510
      %528 = vmatprep.subr.mxu0 0.0
      %529 = vmatpush1.msra.mxu0 %v511
      %530 = vmatprep.subr.mxu0 0.0
      %531 = vmatpush1.msra.mxu0 %v512
      %532 = vmatprep.subr.mxu0 0.0
      %533 = vmatpush1.msra.mxu0 %v513
      %534 = vmatprep.subr.mxu0 0.0
      %535 = vmatpush1.msra.mxu0 %v514
      %536 = vmatprep.subr.mxu0 0.0
      %537 = vmatpush1.msra.mxu0 %v515
      %538 = vmatprep.subr.mxu0 0.0
      %539 = vmatpush1.msra.mxu0 %v516
      %540 = vmatprep.subr.mxu0 0.0
      %541 = vmatpush1.msra.mxu0 %v517
      %542 = vmatprep.subr.mxu0 0.0
      %543 = vmatpush1.msra.mxu0 %v518
      %544 = vmatprep.subr.mxu0 0.0
      %545 = vmatpush1.msra.mxu0 %v519
      %546 = vmatprep.subr.mxu0 0.0
      %547 = vmatpush1.msra.mxu0 %v520
      %548 = vmatprep.subr.mxu0 0.0
      %549 = vmatpush1.msra.mxu0 %v521
      %550 = vmatprep.subr.mxu0 0.0
      %551 = vmatpush1.msra.mxu0 %v522
      %552 = vmatprep.subr.mxu0 0.0
      %553 = vmatpush1.msra.mxu0 %v523
      %554 = vmatprep.subr.mxu0 0.0
      %555 = vmatpush1.msra.mxu0 %v524
      %556 = vmatprep.subr.mxu0 0.0
      %557 = vmatpush1.msra.mxu0 %v525
      %558 = vmatprep.subr.mxu0 0.0
      %559 = vmatpush1.msra.mxu0 0.0
      %560 = vmatprep.subr.mxu0 0.0
      %561 = vmatpush1.msra.mxu0 0.0
      %562 = vmatprep.subr.mxu0 0.0
      %563 = vmatpush1.msra.mxu0 0.0
      %564 = vmatprep.subr.mxu0 0.0
      %565 = vmatpush1.msra.mxu0 0.0
      %566 = vmatprep.subr.mxu0 0.0
      %567 = vmatpush1.msra.mxu0 0.0
      %568 = vmatprep.subr.mxu0 0.0
      %569 = vmatpush1.msra.mxu0 0.0
      %570 = vmatprep.subr.mxu0 0.0
      %571 = vmatpush1.msra.mxu0 0.0
      %572 = vmatprep.subr.mxu0 0.0
      %573 = vmatpush1.msra.mxu0 0.0
      %574 = vmatprep.subr.mxu0 0.0
      %575 = vmatpush1.msra.mxu0 0.0
      %576 = vmatprep.subr.mxu0 0.0
      %577 = vmatpush1.msra.mxu0 0.0
      %578 = vmatprep.subr.mxu0 0.0
      %579 = vmatpush1.msra.mxu0 0.0
      %580 = vmatprep.subr.mxu0 0.0
      %581 = vmatpush1.msra.mxu0 0.0
      %582 = vmatprep.subr.mxu0 0.0
      %583 = vmatpush1.msra.mxu0 0.0
      %584 = vmatprep.subr.mxu0 0.0
      %585 = vmatpush1.msra.mxu0 0.0
      %586 = vmatprep.subr.mxu0 0.0
      %587 = vmatpush1.msra.mxu0 0.0
      %588 = vmatprep.subr.mxu0 0.0
      %589 = vmatpush1.msra.mxu0 0.0
      %590 = vmatprep.mubr.f32.mxu0 0.0
      %591 = vmatmul.mubr.f32.gmra.mrb[0].mxu0 %v346
      %v592 = vpop.f32.mrb[0].mxu0
      %v593 = vadd.f32 0.0, %v592
      %v594 = vpop.f32.mrb[0].mxu0
      %595 = vdwg.mxu0
      %596 = vmatprep.subr.mxu0 0.0
      %597 = vmatpush1.msra.mxu0 %v494
      %598 = vmatprep.subr.mxu0 0.0
      %599 = vmatpush1.msra.mxu0 %v495
      %600 = vmatprep.subr.mxu0 0.0
      %601 = vmatpush1.msra.mxu0 %v496
      %602 = vmatprep.subr.mxu0 0.0
      %603 = vmatpush1.msra.mxu0 %v497
      %604 = vmatprep.subr.mxu0 0.0
      %605 = vmatpush1.msra.mxu0 %v498
      %606 = vmatprep.subr.mxu0 0.0
      %607 = vmatpush1.msra.mxu0 %v499
      %608 = vmatprep.subr.mxu0 0.0
      %609 = vmatpush1.msra.mxu0 %v500
      %610 = vmatprep.subr.mxu0 0.0
      %611 = vmatpush1.msra.mxu0 %v501
      %612 = vmatprep.subr.mxu0 0.0
      %613 = vmatpush1.msra.mxu0 %v502
      %614 = vmatprep.subr.mxu0 0.0
      %615 = vmatpush1.msra.mxu0 %v503
      %616 = vmatprep.subr.mxu0 0.0
      %617 = vmatpush1.msra.mxu0 %v504
      %618 = vmatprep.subr.mxu0 0.0
      %619 = vmatpush1.msra.mxu0 %v505
      %620 = vmatprep.subr.mxu0 0.0
      %621 = vmatpush1.msra.mxu0 %v506
      %622 = vmatprep.subr.mxu0 0.0
      %623 = vmatpush1.msra.mxu0 %v507
      %624 = vmatprep.subr.mxu0 0.0
      %625 = vmatpush1.msra.mxu0 %v508
      %626 = vmatprep.subr.mxu0 0.0
      %627 = vmatpush1.msra.mxu0 %v509
      %628 = vmatprep.subr.mxu0 0.0
      %629 = vmatpush1.msra.mxu0 0.0
      %630 = vmatprep.subr.mxu0 0.0
      %631 = vmatpush1.msra.mxu0 0.0
      %632 = vmatprep.subr.mxu0 0.0
      %633 = vmatpush1.msra.mxu0 0.0
      %634 = vmatprep.subr.mxu0 0.0
      %635 = vmatpush1.msra.mxu0 0.0
      %636 = vmatprep.subr.mxu0 0.0
      %637 = vmatpush1.msra.mxu0 0.0
      %638 = vmatprep.subr.mxu0 0.0
      %639 = vmatpush1.msra.mxu0 0.0
      %640 = vmatprep.subr.mxu0 0.0
      %641 = vmatpush1.msra.mxu0 0.0
      %642 = vmatprep.subr.mxu0 0.0
      %643 = vmatpush1.msra.mxu0 0.0
      %644 = vmatprep.subr.mxu0 0.0
      %645 = vmatpush1.msra.mxu0 0.0
      %646 = vmatprep.subr.mxu0 0.0
      %647 = vmatpush1.msra.mxu0 0.0
      %648 = vmatprep.subr.mxu0 0.0
      %649 = vmatpush1.msra.mxu0 0.0
      %650 = vmatprep.subr.mxu0 0.0
      %651 = vmatpush1.msra.mxu0 0.0
      %652 = vmatprep.subr.mxu0 0.0
      %653 = vmatpush1.msra.mxu0 0.0
      %654 = vmatprep.subr.mxu0 0.0
      %655 = vmatpush1.msra.mxu0 0.0
      %656 = vmatprep.subr.mxu0 0.0
      %657 = vmatpush1.msra.mxu0 0.0
      %658 = vmatprep.subr.mxu0 0.0
      %659 = vmatpush1.msra.mxu0 0.0
      %660 = vmatprep.mubr.f32.mxu0 0.0
      %661 = vmatmul.mubr.f32.gmra.mrb[0].mxu0 %v418
      %v662 = vpop.f32.mrb[0].mxu0
      %v663 = vadd.f32 %v593, %v662
      %v664 = vpop.f32.mrb[0].mxu0
      %665 = vdwg.mxu0
      %v666 = vld [vmem:[%s1 + $0x100] sm:$0xff]
      %v667 = vld [vmem:[%s1 + $0x108] sm:$0xff]
      %v668 = vld [vmem:[%s1 + $0x110] sm:$0xff]
      %v669 = vld [vmem:[%s1 + $0x118] sm:$0xff]
      %v670 = vld [vmem:[%s1 + $0x120] sm:$0xff]
      %v671 = vld [vmem:[%s1 + $0x128] sm:$0xff]
      %v672 = vld [vmem:[%s1 + $0x130] sm:$0xff]
      %v673 = vld [vmem:[%s1 + $0x138] sm:$0xff]
      %v674 = vld [vmem:[%s1 + $0x140] sm:$0xff]
      %v675 = vld [vmem:[%s1 + $0x148] sm:$0xff]
      %v676 = vld [vmem:[%s1 + $0x150] sm:$0xff]
      %v677 = vld [vmem:[%s1 + $0x158] sm:$0xff]
      %v678 = vld [vmem:[%s1 + $0x160] sm:$0xff]
      %v679 = vld [vmem:[%s1 + $0x168] sm:$0xff]
      %v680 = vld [vmem:[%s1 + $0x170] sm:$0xff]
      %v681 = vld [vmem:[%s1 + $0x178] sm:$0xff]
      %682 = vmatprep.subr.mxu0 0.0
      %683 = vmatpush1.msra.mxu0 %v666
      %684 = vmatprep.subr.mxu0 0.0
      %685 = vmatpush1.msra.mxu0 %v667
      %686 = vmatprep.subr.mxu0 0.0
      %687 = vmatpush1.msra.mxu0 %v668
      %688 = vmatprep.subr.mxu0 0.0
      %689 = vmatpush1.msra.mxu0 %v669
      %690 = vmatprep.subr.mxu0 0.0
      %691 = vmatpush1.msra.mxu0 %v670
      %692 = vmatprep.subr.mxu0 0.0
      %693 = vmatpush1.msra.mxu0 %v671
      %694 = vmatprep.subr.mxu0 0.0
      %695 = vmatpush1.msra.mxu0 %v672
      %696 = vmatprep.subr.mxu0 0.0
      %697 = vmatpush1.msra.mxu0 %v673
      %698 = vmatprep.subr.mxu0 0.0
      %699 = vmatpush1.msra.mxu0 %v674
      %700 = vmatprep.subr.mxu0 0.0
      %701 = vmatpush1.msra.mxu0 %v675
      %702 = vmatprep.subr.mxu0 0.0
      %703 = vmatpush1.msra.mxu0 %v676
      %704 = vmatprep.subr.mxu0 0.0
      %705 = vmatpush1.msra.mxu0 %v677
      %706 = vmatprep.subr.mxu0 0.0
      %707 = vmatpush1.msra.mxu0 %v678
      %708 = vmatprep.subr.mxu0 0.0
      %709 = vmatpush1.msra.mxu0 %v679
      %710 = vmatprep.subr.mxu0 0.0
      %711 = vmatpush1.msra.mxu0 %v680
      %712 = vmatprep.subr.mxu0 0.0
      %713 = vmatpush1.msra.mxu0 %v681
      %714 = vmatprep.subr.mxu0 0.0
      %715 = vmatpush1.msra.mxu0 0.0
      %716 = vmatprep.subr.mxu0 0.0
      %717 = vmatpush1.msra.mxu0 0.0
      %718 = vmatprep.subr.mxu0 0.0
      %719 = vmatpush1.msra.mxu0 0.0
      %720 = vmatprep.subr.mxu0 0.0
      %721 = vmatpush1.msra.mxu0 0.0
      %722 = vmatprep.subr.mxu0 0.0
      %723 = vmatpush1.msra.mxu0 0.0
      %724 = vmatprep.subr.mxu0 0.0
      %725 = vmatpush1.msra.mxu0 0.0
      %726 = vmatprep.subr.mxu0 0.0
      %727 = vmatpush1.msra.mxu0 0.0
      %728 = vmatprep.subr.mxu0 0.0
      %729 = vmatpush1.msra.mxu0 0.0
      %730 = vmatprep.subr.mxu0 0.0
      %731 = vmatpush1.msra.mxu0 0.0
      %732 = vmatprep.subr.mxu0 0.0
      %733 = vmatpush1.msra.mxu0 0.0
      %734 = vmatprep.subr.mxu0 0.0
      %735 = vmatpush1.msra.mxu0 0.0
      %736 = vmatprep.subr.mxu0 0.0
      %737 = vmatpush1.msra.mxu0 0.0
      %738 = vmatprep.subr.mxu0 0.0
      %739 = vmatpush1.msra.mxu0 0.0
      %740 = vmatprep.subr.mxu0 0.0
      %741 = vmatpush1.msra.mxu0 0.0
      %742 = vmatprep.subr.mxu0 0.0
      %743 = vmatpush1.msra.mxu0 0.0
      %744 = vmatprep.subr.mxu0 0.0
      %745 = vmatpush1.msra.mxu0 0.0
      %746 = vmatprep.mubr.f32.mxu0 0.0
      %747 = vmatmul.mubr.f32.gmra.mrb[0].mxu0 %v491
      %v748 = vpop.f32.mrb[0].mxu0
      %v749 = vadd.f32 0.0, %v748
      %v750 = vpop.f32.mrb[0].mxu0
      %751 = vdwg.mxu0
      %v752 = vadd.f32 %v663, %v749
      %v753 = vld [vmem:[%s2] sm:$0x1]
      %v755 = vlaneseq
      %v756 = vshrl.u32 %v755, 7
      %v757 = vsub.s32 0, %v756
      %v758 = vrot.slane %v753, %v757
      %v760 = vadd.f32 %v752, %v758
      %v761 = vmax.f32 %v760, 0.0
      %762 = vmatprep.subr.mxu0 0.0
      %763 = vmatpush1.msra.mxu0 %v761
      %764 = vmatprep.subr.mxu0 0.0
      %765 = vmatpush1.msra.mxu0 0.0
      %766 = vmatprep.subr.mxu0 0.0
      %767 = vmatpush1.msra.mxu0 0.0
      %768 = vmatprep.subr.mxu0 0.0
      %769 = vmatpush1.msra.mxu0 0.0
      %770 = vmatprep.subr.mxu0 0.0
      %771 = vmatpush1.msra.mxu0 0.0
      %772 = vmatprep.subr.mxu0 0.0
      %773 = vmatpush1.msra.mxu0 0.0
      %774 = vmatprep.subr.mxu0 0.0
      %775 = vmatpush1.msra.mxu0 0.0
      %776 = vmatprep.subr.mxu0 0.0
      %777 = vmatpush1.msra.mxu0 0.0
      %778 = vmatprep.subr.mxu0 0.0
      %779 = vmatpush1.msra.mxu0 0.0
      %780 = vmatprep.subr.mxu0 0.0
      %781 = vmatpush1.msra.mxu0 0.0
      %782 = vmatprep.subr.mxu0 0.0
      %783 = vmatpush1.msra.mxu0 0.0
      %784 = vmatprep.subr.mxu0 0.0
      %785 = vmatpush1.msra.mxu0 0.0
      %786 = vmatprep.subr.mxu0 0.0
      %787 = vmatpush1.msra.mxu0 0.0
      %788 = vmatprep.subr.mxu0 0.0
      %789 = vmatpush1.msra.mxu0 0.0
      %790 = vmatprep.subr.mxu0 0.0
      %791 = vmatpush1.msra.mxu0 0.0
      %792 = vmatprep.subr.mxu0 0.0
      %793 = vmatpush1.msra.mxu0 0.0
      %794 = vmatprep.subr.mxu0 0.0
      %795 = vmatpush1.msra.mxu0 0.0
      %796 = vmatprep.subr.mxu0 0.0
      %797 = vmatpush1.msra.mxu0 0.0
      %798 = vmatprep.subr.mxu0 0.0
      %799 = vmatpush1.msra.mxu0 0.0
      %800 = vmatprep.subr.mxu0 0.0
      %801 = vmatpush1.msra.mxu0 0.0
      %802 = vmatprep.subr.mxu0 0.0
      %803 = vmatpush1.msra.mxu0 0.0
      %804 = vmatprep.subr.mxu0 0.0
      %805 = vmatpush1.msra.mxu0 0.0
      %806 = vmatprep.subr.mxu0 0.0
      %807 = vmatpush1.msra.mxu0 0.0
      %808 = vmatprep.subr.mxu0 0.0
      %809 = vmatpush1.msra.mxu0 0.0
      %810 = vmatprep.subr.mxu0 0.0
      %811 = vmatpush1.msra.mxu0 0.0
      %812 = vmatprep.subr.mxu0 0.0
      %813 = vmatpush1.msra.mxu0 0.0
      %814 = vmatprep.subr.mxu0 0.0
      %815 = vmatpush1.msra.mxu0 0.0
      %816 = vmatprep.subr.mxu0 0.0
      %817 = vmatpush1.msra.mxu0 0.0
      %818 = vmatprep.subr.mxu0 0.0
      %819 = vmatpush1.msra.mxu0 0.0
      %820 = vmatprep.subr.mxu0 0.0
      %821 = vmatpush1.msra.mxu0 0.0
      %822 = vmatprep.subr.mxu0 0.0
      %823 = vmatpush1.msra.mxu0 0.0
      %824 = vmatprep.subr.mxu0 0.0
      %825 = vmatpush1.msra.mxu0 0.0
      %826 = vmatprep.mubr.f32.mxu0 0.0
      %827 = vmatmul.mubr.f32.gmra.mrb[0].mxu0 %v349
      %v828 = vpop.f32.mrb[0].mxu0
      %v829 = vadd.f32 0.0, %v828
      %v830 = vpop.f32.mrb[0].mxu0
      %831 = vdwg.mxu0
      %832 = vmatprep.subr.mxu0 0.0
      %833 = vmatpush1.msra.mxu0 %v761
      %834 = vmatprep.subr.mxu0 0.0
      %835 = vmatpush1.msra.mxu0 0.0
      %836 = vmatprep.subr.mxu0 0.0
      %837 = vmatpush1.msra.mxu0 0.0
      %838 = vmatprep.subr.mxu0 0.0
      %839 = vmatpush1.msra.mxu0 0.0
      %840 = vmatprep.subr.mxu0 0.0
      %841 = vmatpush1.msra.mxu0 0.0
      %842 = vmatprep.subr.mxu0 0.0
      %843 = vmatpush1.msra.mxu0 0.0
      %844 = vmatprep.subr.mxu0 0.0
      %845 = vmatpush1.msra.mxu0 0.0
      %846 = vmatprep.subr.mxu0 0.0
      %847 = vmatpush1.msra.mxu0 0.0
      %848 = vmatprep.subr.mxu0 0.0
      %849 = vmatpush1.msra.mxu0 0.0
      %850 = vmatprep.subr.mxu0 0.0
      %851 = vmatpush1.msra.mxu0 0.0
      %852 = vmatprep.subr.mxu0 0.0
      %853 = vmatpush1.msra.mxu0 0.0
      %854 = vmatprep.subr.mxu0 0.0
      %855 = vmatpush1.msra.mxu0 0.0
      %856 = vmatprep.subr.mxu0 0.0
      %857 = vmatpush1.msra.mxu0 0.0
      %858 = vmatprep.subr.mxu0 0.0
      %859 = vmatpush1.msra.mxu0 0.0
      %860 = vmatprep.subr.mxu0 0.0
      %861 = vmatpush1.msra.mxu0 0.0
      %862 = vmatprep.subr.mxu0 0.0
      %863 = vmatpush1.msra.mxu0 0.0
      %864 = vmatprep.subr.mxu0 0.0
      %865 = vmatpush1.msra.mxu0 0.0
      %866 = vmatprep.subr.mxu0 0.0
      %867 = vmatpush1.msra.mxu0 0.0
      %868 = vmatprep.subr.mxu0 0.0
      %869 = vmatpush1.msra.mxu0 0.0
      %870 = vmatprep.subr.mxu0 0.0
      %871 = vmatpush1.msra.mxu0 0.0
      %872 = vmatprep.subr.mxu0 0.0
      %873 = vmatpush1.msra.mxu0 0.0
      %874 = vmatprep.subr.mxu0 0.0
      %875 = vmatpush1.msra.mxu0 0.0
      %876 = vmatprep.subr.mxu0 0.0
      %877 = vmatpush1.msra.mxu0 0.0
      %878 = vmatprep.subr.mxu0 0.0
      %879 = vmatpush1.msra.mxu0 0.0
      %880 = vmatprep.subr.mxu0 0.0
      %881 = vmatpush1.msra.mxu0 0.0
      %882 = vmatprep.subr.mxu0 0.0
      %883 = vmatpush1.msra.mxu0 0.0
      %884 = vmatprep.subr.mxu0 0.0
      %885 = vmatpush1.msra.mxu0 0.0
      %886 = vmatprep.subr.mxu0 0.0
      %887 = vmatpush1.msra.mxu0 0.0
      %888 = vmatprep.subr.mxu0 0.0
      %889 = vmatpush1.msra.mxu0 0.0
      %890 = vmatprep.subr.mxu0 0.0
      %891 = vmatpush1.msra.mxu0 0.0
      %892 = vmatprep.subr.mxu0 0.0
      %893 = vmatpush1.msra.mxu0 0.0
      %894 = vmatprep.subr.mxu0 0.0
      %895 = vmatpush1.msra.mxu0 0.0
      %896 = vmatprep.mubr.f32.mxu0 0.0
      %897 = vmatmul.mubr.f32.gmra.mrb[0].mxu0 %v422
      %v898 = vpop.f32.mrb[0].mxu0
      %v899 = vadd.f32 0.0, %v898
      %v900 = vpop.f32.mrb[0].mxu0
      %901 = vdwg.mxu0
      %v902 = vld [vmem:[%s3] sm:$0xff]
      %v903 = vld [vmem:[%s3 + $0x8] sm:$0xff]
      %v904 = vld [vmem:[%s3 + $0x10] sm:$0xff]
      %v905 = vld [vmem:[%s3 + $0x18] sm:$0xff]
      %v906 = vld [vmem:[%s3 + $0x20] sm:$0xff]
      %v907 = vld [vmem:[%s3 + $0x28] sm:$0xff]
      %v908 = vld [vmem:[%s3 + $0x30] sm:$0xff]
      %v909 = vld [vmem:[%s3 + $0x38] sm:$0xff]
      %v910 = vld [vmem:[%s3 + $0x40] sm:$0xff]
      %v911 = vld [vmem:[%s3 + $0x48] sm:$0xff]
      %v912 = vld [vmem:[%s3 + $0x50] sm:$0xff]
      %v913 = vld [vmem:[%s3 + $0x58] sm:$0xff]
      %v914 = vld [vmem:[%s3 + $0x60] sm:$0xff]
      %v915 = vld [vmem:[%s3 + $0x68] sm:$0xff]
      %v916 = vld [vmem:[%s3 + $0x70] sm:$0xff]
      %v917 = vld [vmem:[%s3 + $0x78] sm:$0xff]
      %vm918 = vcmask 523264
      %v920 = vsel %vm918, %v761, 0
      %922 = vmatprep.subr.mxu0 0.0
      %923 = vmatpush1.msra.mxu0 %v910
      %924 = vmatprep.subr.mxu0 0.0
      %925 = vmatpush1.msra.mxu0 %v911
      %926 = vmatprep.subr.mxu0 0.0
      %927 = vmatpush1.msra.mxu0 %v912
      %928 = vmatprep.subr.mxu0 0.0
      %929 = vmatpush1.msra.mxu0 %v913
      %930 = vmatprep.subr.mxu0 0.0
      %931 = vmatpush1.msra.mxu0 %v914
      %932 = vmatprep.subr.mxu0 0.0
      %933 = vmatpush1.msra.mxu0 %v915
      %934 = vmatprep.subr.mxu0 0.0
      %935 = vmatpush1.msra.mxu0 %v916
      %936 = vmatprep.subr.mxu0 0.0
      %937 = vmatpush1.msra.mxu0 %v917
      %938 = vmatprep.subr.mxu0 0.0
      %939 = vmatpush1.msra.mxu0 0.0
      %940 = vmatprep.subr.mxu0 0.0
      %941 = vmatpush1.msra.mxu0 0.0
      %942 = vmatprep.subr.mxu0 0.0
      %943 = vmatpush1.msra.mxu0 0.0
      %944 = vmatprep.subr.mxu0 0.0
      %945 = vmatpush1.msra.mxu0 0.0
      %946 = vmatprep.subr.mxu0 0.0
      %947 = vmatpush1.msra.mxu0 0.0
      %948 = vmatprep.subr.mxu0 0.0
      %949 = vmatpush1.msra.mxu0 0.0
      %950 = vmatprep.subr.mxu0 0.0
      %951 = vmatpush1.msra.mxu0 0.0
      %952 = vmatprep.subr.mxu0 0.0
      %953 = vmatpush1.msra.mxu0 0.0
      %954 = vmatprep.subr.mxu0 0.0
      %955 = vmatpush1.msra.mxu0 0.0
      %956 = vmatprep.subr.mxu0 0.0
      %957 = vmatpush1.msra.mxu0 0.0
      %958 = vmatprep.subr.mxu0 0.0
      %959 = vmatpush1.msra.mxu0 0.0
      %960 = vmatprep.subr.mxu0 0.0
      %961 = vmatpush1.msra.mxu0 0.0
      %962 = vmatprep.subr.mxu0 0.0
      %963 = vmatpush1.msra.mxu0 0.0
      %964 = vmatprep.subr.mxu0 0.0
      %965 = vmatpush1.msra.mxu0 0.0
      %966 = vmatprep.subr.mxu0 0.0
      %967 = vmatpush1.msra.mxu0 0.0
      %968 = vmatprep.subr.mxu0 0.0
      %969 = vmatpush1.msra.mxu0 0.0
      %970 = vmatprep.subr.mxu0 0.0
      %971 = vmatpush1.msra.mxu0 0.0
      %972 = vmatprep.subr.mxu0 0.0
      %973 = vmatpush1.msra.mxu0 0.0
      %974 = vmatprep.subr.mxu0 0.0
      %975 = vmatpush1.msra.mxu0 0.0
      %976 = vmatprep.subr.mxu0 0.0
      %977 = vmatpush1.msra.mxu0 0.0
      %978 = vmatprep.subr.mxu0 0.0
      %979 = vmatpush1.msra.mxu0 0.0
      %980 = vmatprep.subr.mxu0 0.0
      %981 = vmatpush1.msra.mxu0 0.0
      %982 = vmatprep.subr.mxu0 0.0
      %983 = vmatpush1.msra.mxu0 0.0
      %984 = vmatprep.subr.mxu0 0.0
      %985 = vmatpush1.msra.mxu0 0.0
      %986 = vmatprep.mubr.f32.mxu0 0.0
      %987 = vmatmul.mubr.f32.gmra.mrb[0].mxu0 %v920
      %v988 = vpop.f32.mrb[0].mxu0
      %v989 = vadd.f32 0.0, %v988
      %v990 = vpop.f32.mrb[0].mxu0
      %991 = vdwg.mxu0
      %v993 = vsel %vm918, %v829, 0
      %995 = vmatprep.subr.mxu0 0.0
      %996 = vmatpush1.msra.mxu0 %v902
      %997 = vmatprep.subr.mxu0 0.0
      %998 = vmatpush1.msra.mxu0 %v903
      %999 = vmatprep.subr.mxu0 0.0
      %1000 = vmatpush1.msra.mxu0 %v904
      %1001 = vmatprep.subr.mxu0 0.0
      %1002 = vmatpush1.msra.mxu0 %v905
      %1003 = vmatprep.subr.mxu0 0.0
      %1004 = vmatpush1.msra.mxu0 %v906
      %1005 = vmatprep.subr.mxu0 0.0
      %1006 = vmatpush1.msra.mxu0 %v907
      %1007 = vmatprep.subr.mxu0 0.0
      %1008 = vmatpush1.msra.mxu0 %v908
      %1009 = vmatprep.subr.mxu0 0.0
      %1010 = vmatpush1.msra.mxu0 %v909
      %1011 = vmatprep.subr.mxu0 0.0
      %1012 = vmatpush1.msra.mxu0 0.0
      %1013 = vmatprep.subr.mxu0 0.0
      %1014 = vmatpush1.msra.mxu0 0.0
      %1015 = vmatprep.subr.mxu0 0.0
      %1016 = vmatpush1.msra.mxu0 0.0
      %1017 = vmatprep.subr.mxu0 0.0
      %1018 = vmatpush1.msra.mxu0 0.0
      %1019 = vmatprep.subr.mxu0 0.0
      %1020 = vmatpush1.msra.mxu0 0.0
      %1021 = vmatprep.subr.mxu0 0.0
      %1022 = vmatpush1.msra.mxu0 0.0
      %1023 = vmatprep.subr.mxu0 0.0
      %1024 = vmatpush1.msra.mxu0 0.0
      %1025 = vmatprep.subr.mxu0 0.0
      %1026 = vmatpush1.msra.mxu0 0.0
      %1027 = vmatprep.subr.mxu0 0.0
      %1028 = vmatpush1.msra.mxu0 0.0
      %1029 = vmatprep.subr.mxu0 0.0
      %1030 = vmatpush1.msra.mxu0 0.0
      %1031 = vmatprep.subr.mxu0 0.0
      %1032 = vmatpush1.msra.mxu0 0.0
      %1033 = vmatprep.subr.mxu0 0.0
      %1034 = vmatpush1.msra.mxu0 0.0
      %1035 = vmatprep.subr.mxu0 0.0
      %1036 = vmatpush1.msra.mxu0 0.0
      %1037 = vmatprep.subr.mxu0 0.0
      %1038 = vmatpush1.msra.mxu0 0.0
      %1039 = vmatprep.subr.mxu0 0.0
      %1040 = vmatpush1.msra.mxu0 0.0
      %1041 = vmatprep.subr.mxu0 0.0
      %1042 = vmatpush1.msra.mxu0 0.0
      %1043 = vmatprep.subr.mxu0 0.0
      %1044 = vmatpush1.msra.mxu0 0.0
      %1045 = vmatprep.subr.mxu0 0.0
      %1046 = vmatpush1.msra.mxu0 0.0
      %1047 = vmatprep.subr.mxu0 0.0
      %1048 = vmatpush1.msra.mxu0 0.0
      %1049 = vmatprep.subr.mxu0 0.0
      %1050 = vmatpush1.msra.mxu0 0.0
      %1051 = vmatprep.subr.mxu0 0.0
      %1052 = vmatpush1.msra.mxu0 0.0
      %1053 = vmatprep.subr.mxu0 0.0
      %1054 = vmatpush1.msra.mxu0 0.0
      %1055 = vmatprep.subr.mxu0 0.0
      %1056 = vmatpush1.msra.mxu0 0.0
      %1057 = vmatprep.subr.mxu0 0.0
      %1058 = vmatpush1.msra.mxu0 0.0
      %1059 = vmatprep.mubr.f32.mxu0 0.0
      %1060 = vmatmul.mubr.f32.gmra.mrb[0].mxu0 %v993
      %v1061 = vpop.f32.mrb[0].mxu0
      %v1062 = vadd.f32 %v989, %v1061
      %v1063 = vpop.f32.mrb[0].mxu0
      %1064 = vdwg.mxu0
      %v1065 = vld [vmem:[%s3 + $0x80] sm:$0xff]
      %v1066 = vld [vmem:[%s3 + $0x88] sm:$0xff]
      %v1067 = vld [vmem:[%s3 + $0x90] sm:$0xff]
      %v1068 = vld [vmem:[%s3 + $0x98] sm:$0xff]
      %v1069 = vld [vmem:[%s3 + $0xa0] sm:$0xff]
      %v1070 = vld [vmem:[%s3 + $0xa8] sm:$0xff]
      %v1071 = vld [vmem:[%s3 + $0xb0] sm:$0xff]
      %v1072 = vld [vmem:[%s3 + $0xb8] sm:$0xff]
      %v1074 = vsel %vm918, %v899, 0
      %1076 = vmatprep.subr.mxu0 0.0
      %1077 = vmatpush1.msra.mxu0 %v1065
      %1078 = vmatprep.subr.mxu0 0.0
      %1079 = vmatpush1.msra.mxu0 %v1066
      %1080 = vmatprep.subr.mxu0 0.0
      %1081 = vmatpush1.msra.mxu0 %v1067
      %1082 = vmatprep.subr.mxu0 0.0
      %1083 = vmatpush1.msra.mxu0 %v1068
      %1084 = vmatprep.subr.mxu0 0.0
      %1085 = vmatpush1.msra.mxu0 %v1069
      %1086 = vmatprep.subr.mxu0 0.0
      %1087 = vmatpush1.msra.mxu0 %v1070
      %1088 = vmatprep.subr.mxu0 0.0
      %1089 = vmatpush1.msra.mxu0 %v1071
      %1090 = vmatprep.subr.mxu0 0.0
      %1091 = vmatpush1.msra.mxu0 %v1072
      %1092 = vmatprep.subr.mxu0 0.0
      %1093 = vmatpush1.msra.mxu0 0.0
      %1094 = vmatprep.subr.mxu0 0.0
      %1095 = vmatpush1.msra.mxu0 0.0
      %1096 = vmatprep.subr.mxu0 0.0
      %1097 = vmatpush1.msra.mxu0 0.0
      %1098 = vmatprep.subr.mxu0 0.0
      %1099 = vmatpush1.msra.mxu0 0.0
      %1100 = vmatprep.subr.mxu0 0.0
      %1101 = vmatpush1.msra.mxu0 0.0
      %1102 = vmatprep.subr.mxu0 0.0
      %1103 = vmatpush1.msra.mxu0 0.0
      %1104 = vmatprep.subr.mxu0 0.0
      %1105 = vmatpush1.msra.mxu0 0.0
      %1106 = vmatprep.subr.mxu0 0.0
      %1107 = vmatpush1.msra.mxu0 0.0
      %1108 = vmatprep.subr.mxu0 0.0
      %1109 = vmatpush1.msra.mxu0 0.0
      %1110 = vmatprep.subr.mxu0 0.0
      %1111 = vmatpush1.msra.mxu0 0.0
      %1112 = vmatprep.subr.mxu0 0.0
      %1113 = vmatpush1.msra.mxu0 0.0
      %1114 = vmatprep.subr.mxu0 0.0
      %1115 = vmatpush1.msra.mxu0 0.0
      %1116 = vmatprep.subr.mxu0 0.0
      %1117 = vmatpush1.msra.mxu0 0.0
      %1118 = vmatprep.subr.mxu0 0.0
      %1119 = vmatpush1.msra.mxu0 0.0
      %1120 = vmatprep.subr.mxu0 0.0
      %1121 = vmatpush1.msra.mxu0 0.0
      %1122 = vmatprep.subr.mxu0 0.0
      %1123 = vmatpush1.msra.mxu0 0.0
      %1124 = vmatprep.subr.mxu0 0.0
      %1125 = vmatpush1.msra.mxu0 0.0
      %1126 = vmatprep.subr.mxu0 0.0
      %1127 = vmatpush1.msra.mxu0 0.0
      %1128 = vmatprep.subr.mxu0 0.0
      %1129 = vmatpush1.msra.mxu0 0.0
      %1130 = vmatprep.subr.mxu0 0.0
      %1131 = vmatpush1.msra.mxu0 0.0
      %1132 = vmatprep.subr.mxu0 0.0
      %1133 = vmatpush1.msra.mxu0 0.0
      %1134 = vmatprep.subr.mxu0 0.0
      %1135 = vmatpush1.msra.mxu0 0.0
      %1136 = vmatprep.subr.mxu0 0.0
      %1137 = vmatpush1.msra.mxu0 0.0
      %1138 = vmatprep.subr.mxu0 0.0
      %1139 = vmatpush1.msra.mxu0 0.0
      %1140 = vmatprep.mubr.f32.mxu0 0.0
      %1141 = vmatmul.mubr.f32.gmra.mrb[0].mxu0 %v1074
      %v1142 = vpop.f32.mrb[0].mxu0
      %v1143 = vadd.f32 0.0, %v1142
      %v1144 = vpop.f32.mrb[0].mxu0
      %1145 = vdwg.mxu0
      %v1146 = vadd.f32 %v1062, %v1143
      %v1147 = vld [vmem:[%s4] sm:$0x1]
      %v1149 = vlaneseq
      %v1150 = vshrl.u32 %v1149, 7
      %v1151 = vsub.s32 0, %v1150
      %v1152 = vrot.slane %v1147, %v1151
      %v1154 = vadd.f32 %v1146, %v1152
      %v1155 = vmax.f32 %v1154, 0.0
      %1156 = vmatprep.subr.mxu0 0.0
      %1157 = vmatpush1.msra.mxu0 %v1155
      %1158 = vmatprep.subr.mxu0 0.0
      %1159 = vmatpush1.msra.mxu0 0.0
      %1160 = vmatprep.subr.mxu0 0.0
      %1161 = vmatpush1.msra.mxu0 0.0
      %1162 = vmatprep.subr.mxu0 0.0
      %1163 = vmatpush1.msra.mxu0 0.0
      %1164 = vmatprep.subr.mxu0 0.0
      %1165 = vmatpush1.msra.mxu0 0.0
      %1166 = vmatprep.subr.mxu0 0.0
      %1167 = vmatpush1.msra.mxu0 0.0
      %1168 = vmatprep.subr.mxu0 0.0
      %1169 = vmatpush1.msra.mxu0 0.0
      %1170 = vmatprep.subr.mxu0 0.0
      %1171 = vmatpush1.msra.mxu0 0.0
      %1172 = vmatprep.subr.mxu0 0.0
      %1173 = vmatpush1.msra.mxu0 0.0
      %1174 = vmatprep.subr.mxu0 0.0
      %1175 = vmatpush1.msra.mxu0 0.0
      %1176 = vmatprep.subr.mxu0 0.0
      %1177 = vmatpush1.msra.mxu0 0.0
      %1178 = vmatprep.subr.mxu0 0.0
      %1179 = vmatpush1.msra.mxu0 0.0
      %1180 = vmatprep.subr.mxu0 0.0
      %1181 = vmatpush1.msra.mxu0 0.0
      %1182 = vmatprep.subr.mxu0 0.0
      %1183 = vmatpush1.msra.mxu0 0.0
      %1184 = vmatprep.subr.mxu0 0.0
      %1185 = vmatpush1.msra.mxu0 0.0
      %1186 = vmatprep.subr.mxu0 0.0
      %1187 = vmatpush1.msra.mxu0 0.0
      %1188 = vmatprep.subr.mxu0 0.0
      %1189 = vmatpush1.msra.mxu0 0.0
      %1190 = vmatprep.subr.mxu0 0.0
      %1191 = vmatpush1.msra.mxu0 0.0
      %1192 = vmatprep.subr.mxu0 0.0
      %1193 = vmatpush1.msra.mxu0 0.0
      %1194 = vmatprep.subr.mxu0 0.0
      %1195 = vmatpush1.msra.mxu0 0.0
      %1196 = vmatprep.subr.mxu0 0.0
      %1197 = vmatpush1.msra.mxu0 0.0
      %1198 = vmatprep.subr.mxu0 0.0
      %1199 = vmatpush1.msra.mxu0 0.0
      %1200 = vmatprep.subr.mxu0 0.0
      %1201 = vmatpush1.msra.mxu0 0.0
      %1202 = vmatprep.subr.mxu0 0.0
      %1203 = vmatpush1.msra.mxu0 0.0
      %1204 = vmatprep.subr.mxu0 0.0
      %1205 = vmatpush1.msra.mxu0 0.0
      %1206 = vmatprep.subr.mxu0 0.0
      %1207 = vmatpush1.msra.mxu0 0.0
      %1208 = vmatprep.subr.mxu0 0.0
      %1209 = vmatpush1.msra.mxu0 0.0
      %1210 = vmatprep.subr.mxu0 0.0
      %1211 = vmatpush1.msra.mxu0 0.0
      %1212 = vmatprep.subr.mxu0 0.0
      %1213 = vmatpush1.msra.mxu0 0.0
      %1214 = vmatprep.subr.mxu0 0.0
      %1215 = vmatpush1.msra.mxu0 0.0
      %1216 = vmatprep.subr.mxu0 0.0
      %1217 = vmatpush1.msra.mxu0 0.0
      %1218 = vmatprep.subr.mxu0 0.0
      %1219 = vmatpush1.msra.mxu0 0.0
      %1220 = vmatprep.mubr.f32.mxu0 0.0
      %1221 = vmatmul.mubr.f32.gmra.mrb[0].mxu0 %v349
      %v1222 = vpop.f32.mrb[0].mxu0
      %v1223 = vadd.f32 0.0, %v1222
      %v1224 = vpop.f32.mrb[0].mxu0
      %1225 = vdwg.mxu0
      %1226 = vmatprep.subr.mxu0 0.0
      %1227 = vmatpush1.msra.mxu0 %v1155
      %1228 = vmatprep.subr.mxu0 0.0
      %1229 = vmatpush1.msra.mxu0 0.0
      %1230 = vmatprep.subr.mxu0 0.0
      %1231 = vmatpush1.msra.mxu0 0.0
      %1232 = vmatprep.subr.mxu0 0.0
      %1233 = vmatpush1.msra.mxu0 0.0
      %1234 = vmatprep.subr.mxu0 0.0
      %1235 = vmatpush1.msra.mxu0 0.0
      %1236 = vmatprep.subr.mxu0 0.0
      %1237 = vmatpush1.msra.mxu0 0.0
      %1238 = vmatprep.subr.mxu0 0.0
      %1239 = vmatpush1.msra.mxu0 0.0
      %1240 = vmatprep.subr.mxu0 0.0
      %1241 = vmatpush1.msra.mxu0 0.0
      %1242 = vmatprep.subr.mxu0 0.0
      %1243 = vmatpush1.msra.mxu0 0.0
      %1244 = vmatprep.subr.mxu0 0.0
      %1245 = vmatpush1.msra.mxu0 0.0
      %1246 = vmatprep.subr.mxu0 0.0
      %1247 = vmatpush1.msra.mxu0 0.0
      %1248 = vmatprep.subr.mxu0 0.0
      %1249 = vmatpush1.msra.mxu0 0.0
      %1250 = vmatprep.subr.mxu0 0.0
      %1251 = vmatpush1.msra.mxu0 0.0
      %1252 = vmatprep.subr.mxu0 0.0
      %1253 = vmatpush1.msra.mxu0 0.0
      %1254 = vmatprep.subr.mxu0 0.0
      %1255 = vmatpush1.msra.mxu0 0.0
      %1256 = vmatprep.subr.mxu0 0.0
      %1257 = vmatpush1.msra.mxu0 0.0
      %1258 = vmatprep.subr.mxu0 0.0
      %1259 = vmatpush1.msra.mxu0 0.0
      %1260 = vmatprep.subr.mxu0 0.0
      %1261 = vmatpush1.msra.mxu0 0.0
      %1262 = vmatprep.subr.mxu0 0.0
      %1263 = vmatpush1.msra.mxu0 0.0
      %1264 = vmatprep.subr.mxu0 0.0
      %1265 = vmatpush1.msra.mxu0 0.0
      %1266 = vmatprep.subr.mxu0 0.0
      %1267 = vmatpush1.msra.mxu0 0.0
      %1268 = vmatprep.subr.mxu0 0.0
      %1269 = vmatpush1.msra.mxu0 0.0
      %1270 = vmatprep.subr.mxu0 0.0
      %1271 = vmatpush1.msra.mxu0 0.0
      %1272 = vmatprep.subr.mxu0 0.0
      %1273 = vmatpush1.msra.mxu0 0.0
      %1274 = vmatprep.subr.mxu0 0.0
      %1275 = vmatpush1.msra.mxu0 0.0
      %1276 = vmatprep.subr.mxu0 0.0
      %1277 = vmatpush1.msra.mxu0 0.0
      %1278 = vmatprep.subr.mxu0 0.0
      %1279 = vmatpush1.msra.mxu0 0.0
      %1280 = vmatprep.subr.mxu0 0.0
      %1281 = vmatpush1.msra.mxu0 0.0
      %1282 = vmatprep.subr.mxu0 0.0
      %1283 = vmatpush1.msra.mxu0 0.0
      %1284 = vmatprep.subr.mxu0 0.0
      %1285 = vmatpush1.msra.mxu0 0.0
      %1286 = vmatprep.subr.mxu0 0.0
      %1287 = vmatpush1.msra.mxu0 0.0
      %1288 = vmatprep.subr.mxu0 0.0
      %1289 = vmatpush1.msra.mxu0 0.0
      %1290 = vmatprep.mubr.f32.mxu0 0.0
      %1291 = vmatmul.mubr.f32.gmra.mrb[0].mxu0 %v422
      %v1292 = vpop.f32.mrb[0].mxu0
      %v1293 = vadd.f32 0.0, %v1292
      %v1294 = vpop.f32.mrb[0].mxu0
      %1295 = vdwg.mxu0
      %v1296 = vld [vmem:[%s5] sm:$0xff]
      %v1297 = vld [vmem:[%s5 + $0x8] sm:$0xff]
      %v1298 = vld [vmem:[%s5 + $0x10] sm:$0xff]
      %v1299 = vld [vmem:[%s5 + $0x18] sm:$0xff]
      %v1300 = vld [vmem:[%s5 + $0x20] sm:$0xff]
      %v1301 = vld [vmem:[%s5 + $0x28] sm:$0xff]
      %v1302 = vld [vmem:[%s5 + $0x30] sm:$0xff]
      %v1303 = vld [vmem:[%s5 + $0x38] sm:$0xff]
      %v1304 = vld [vmem:[%s5 + $0x40] sm:$0xff]
      %v1305 = vld [vmem:[%s5 + $0x48] sm:$0xff]
      %v1306 = vld [vmem:[%s5 + $0x50] sm:$0xff]
      %v1307 = vld [vmem:[%s5 + $0x58] sm:$0xff]
      %v1308 = vld [vmem:[%s5 + $0x60] sm:$0xff]
      %v1309 = vld [vmem:[%s5 + $0x68] sm:$0xff]
      %v1310 = vld [vmem:[%s5 + $0x70] sm:$0xff]
      %v1311 = vld [vmem:[%s5 + $0x78] sm:$0xff]
      %v1313 = vsel %vm918, %v1155, 0
      %1315 = vmatprep.subr.mxu0 0.0
      %1316 = vmatpush1.msra.mxu0 %v1304
      %1317 = vmatprep.subr.mxu0 0.0
      %1318 = vmatpush1.msra.mxu0 %v1305
      %1319 = vmatprep.subr.mxu0 0.0
      %1320 = vmatpush1.msra.mxu0 %v1306
      %1321 = vmatprep.subr.mxu0 0.0
      %1322 = vmatpush1.msra.mxu0 %v1307
      %1323 = vmatprep.subr.mxu0 0.0
      %1324 = vmatpush1.msra.mxu0 %v1308
      %1325 = vmatprep.subr.mxu0 0.0
      %1326 = vmatpush1.msra.mxu0 %v1309
      %1327 = vmatprep.subr.mxu0 0.0
      %1328 = vmatpush1.msra.mxu0 %v1310
      %1329 = vmatprep.subr.mxu0 0.0
      %1330 = vmatpush1.msra.mxu0 %v1311
      %1331 = vmatprep.subr.mxu0 0.0
      %1332 = vmatpush1.msra.mxu0 0.0
      %1333 = vmatprep.subr.mxu0 0.0
      %1334 = vmatpush1.msra.mxu0 0.0
      %1335 = vmatprep.subr.mxu0 0.0
      %1336 = vmatpush1.msra.mxu0 0.0
      %1337 = vmatprep.subr.mxu0 0.0
      %1338 = vmatpush1.msra.mxu0 0.0
      %1339 = vmatprep.subr.mxu0 0.0
      %1340 = vmatpush1.msra.mxu0 0.0
      %1341 = vmatprep.subr.mxu0 0.0
      %1342 = vmatpush1.msra.mxu0 0.0
      %1343 = vmatprep.subr.mxu0 0.0
      %1344 = vmatpush1.msra.mxu0 0.0
      %1345 = vmatprep.subr.mxu0 0.0
      %1346 = vmatpush1.msra.mxu0 0.0
      %1347 = vmatprep.subr.mxu0 0.0
      %1348 = vmatpush1.msra.mxu0 0.0
      %1349 = vmatprep.subr.mxu0 0.0
      %1350 = vmatpush1.msra.mxu0 0.0
      %1351 = vmatprep.subr.mxu0 0.0
      %1352 = vmatpush1.msra.mxu0 0.0
      %1353 = vmatprep.subr.mxu0 0.0
      %1354 = vmatpush1.msra.mxu0 0.0
      %1355 = vmatprep.subr.mxu0 0.0
      %1356 = vmatpush1.msra.mxu0 0.0
      %1357 = vmatprep.subr.mxu0 0.0
      %1358 = vmatpush1.msra.mxu0 0.0
      %1359 = vmatprep.subr.mxu0 0.0
      %1360 = vmatpush1.msra.mxu0 0.0
      %1361 = vmatprep.subr.mxu0 0.0
      %1362 = vmatpush1.msra.mxu0 0.0
      %1363 = vmatprep.subr.mxu0 0.0
      %1364 = vmatpush1.msra.mxu0 0.0
      %1365 = vmatprep.subr.mxu0 0.0
      %1366 = vmatpush1.msra.mxu0 0.0
      %1367 = vmatprep.subr.mxu0 0.0
      %1368 = vmatpush1.msra.mxu0 0.0
      %1369 = vmatprep.subr.mxu0 0.0
      %1370 = vmatpush1.msra.mxu0 0.0
      %1371 = vmatprep.subr.mxu0 0.0
      %1372 = vmatpush1.msra.mxu0 0.0
      %1373 = vmatprep.subr.mxu0 0.0
      %1374 = vmatpush1.msra.mxu0 0.0
      %1375 = vmatprep.subr.mxu0 0.0
      %1376 = vmatpush1.msra.mxu0 0.0
      %1377 = vmatprep.subr.mxu0 0.0
      %1378 = vmatpush1.msra.mxu0 0.0
      %1379 = vmatprep.mubr.f32.mxu0 0.0
      %1380 = vmatmul.mubr.f32.gmra.mrb[0].mxu0 %v1313
      %v1381 = vpop.f32.mrb[0].mxu0
      %v1382 = vadd.f32 0.0, %v1381
      %v1383 = vpop.f32.mrb[0].mxu0
      %1384 = vdwg.mxu0
      %v1386 = vsel %vm918, %v1223, 0
      %1388 = vmatprep.subr.mxu0 0.0
      %1389 = vmatpush1.msra.mxu0 %v1296
      %1390 = vmatprep.subr.mxu0 0.0
      %1391 = vmatpush1.msra.mxu0 %v1297
      %1392 = vmatprep.subr.mxu0 0.0
      %1393 = vmatpush1.msra.mxu0 %v1298
      %1394 = vmatprep.subr.mxu0 0.0
      %1395 = vmatpush1.msra.mxu0 %v1299
      %1396 = vmatprep.subr.mxu0 0.0
      %1397 = vmatpush1.msra.mxu0 %v1300
      %1398 = vmatprep.subr.mxu0 0.0
      %1399 = vmatpush1.msra.mxu0 %v1301
      %1400 = vmatprep.subr.mxu0 0.0
      %1401 = vmatpush1.msra.mxu0 %v1302
      %1402 = vmatprep.subr.mxu0 0.0
      %1403 = vmatpush1.msra.mxu0 %v1303
      %1404 = vmatprep.subr.mxu0 0.0
      %1405 = vmatpush1.msra.mxu0 0.0
      %1406 = vmatprep.subr.mxu0 0.0
      %1407 = vmatpush1.msra.mxu0 0.0
      %1408 = vmatprep.subr.mxu0 0.0
      %1409 = vmatpush1.msra.mxu0 0.0
      %1410 = vmatprep.subr.mxu0 0.0
      %1411 = vmatpush1.msra.mxu0 0.0
      %1412 = vmatprep.subr.mxu0 0.0
      %1413 = vmatpush1.msra.mxu0 0.0
      %1414 = vmatprep.subr.mxu0 0.0
      %1415 = vmatpush1.msra.mxu0 0.0
      %1416 = vmatprep.subr.mxu0 0.0
      %1417 = vmatpush1.msra.mxu0 0.0
      %1418 = vmatprep.subr.mxu0 0.0
      %1419 = vmatpush1.msra.mxu0 0.0
      %1420 = vmatprep.subr.mxu0 0.0
      %1421 = vmatpush1.msra.mxu0 0.0
      %1422 = vmatprep.subr.mxu0 0.0
      %1423 = vmatpush1.msra.mxu0 0.0
      %1424 = vmatprep.subr.mxu0 0.0
      %1425 = vmatpush1.msra.mxu0 0.0
      %1426 = vmatprep.subr.mxu0 0.0
      %1427 = vmatpush1.msra.mxu0 0.0
      %1428 = vmatprep.subr.mxu0 0.0
      %1429 = vmatpush1.msra.mxu0 0.0
      %1430 = vmatprep.subr.mxu0 0.0
      %1431 = vmatpush1.msra.mxu0 0.0
      %1432 = vmatprep.subr.mxu0 0.0
      %1433 = vmatpush1.msra.mxu0 0.0
      %1434 = vmatprep.subr.mxu0 0.0
      %1435 = vmatpush1.msra.mxu0 0.0
      %1436 = vmatprep.subr.mxu0 0.0
      %1437 = vmatpush1.msra.mxu0 0.0
      %1438 = vmatprep.subr.mxu0 0.0
      %1439 = vmatpush1.msra.mxu0 0.0
      %1440 = vmatprep.subr.mxu0 0.0
      %1441 = vmatpush1.msra.mxu0 0.0
      %1442 = vmatprep.subr.mxu0 0.0
      %1443 = vmatpush1.msra.mxu0 0.0
      %1444 = vmatprep.subr.mxu0 0.0
      %1445 = vmatpush1.msra.mxu0 0.0
      %1446 = vmatprep.subr.mxu0 0.0
      %1447 = vmatpush1.msra.mxu0 0.0
      %1448 = vmatprep.subr.mxu0 0.0
      %1449 = vmatpush1.msra.mxu0 0.0
      %1450 = vmatprep.subr.mxu0 0.0
      %1451 = vmatpush1.msra.mxu0 0.0
      %1452 = vmatprep.mubr.f32.mxu0 0.0
      %1453 = vmatmul.mubr.f32.gmra.mrb[0].mxu0 %v1386
      %v1454 = vpop.f32.mrb[0].mxu0
      %v1455 = vadd.f32 %v1382, %v1454
      %v1456 = vpop.f32.mrb[0].mxu0
      %1457 = vdwg.mxu0
      %v1458 = vld [vmem:[%s5 + $0x80] sm:$0xff]
      %v1459 = vld [vmem:[%s5 + $0x88] sm:$0xff]
      %v1460 = vld [vmem:[%s5 + $0x90] sm:$0xff]
      %v1461 = vld [vmem:[%s5 + $0x98] sm:$0xff]
      %v1462 = vld [vmem:[%s5 + $0xa0] sm:$0xff]
      %v1463 = vld [vmem:[%s5 + $0xa8] sm:$0xff]
      %v1464 = vld [vmem:[%s5 + $0xb0] sm:$0xff]
      %v1465 = vld [vmem:[%s5 + $0xb8] sm:$0xff]
      %v1467 = vsel %vm918, %v1293, 0
      %1469 = vmatprep.subr.mxu0 0.0
      %1470 = vmatpush1.msra.mxu0 %v1458
      %1471 = vmatprep.subr.mxu0 0.0
      %1472 = vmatpush1.msra.mxu0 %v1459
      %1473 = vmatprep.subr.mxu0 0.0
      %1474 = vmatpush1.msra.mxu0 %v1460
      %1475 = vmatprep.subr.mxu0 0.0
      %1476 = vmatpush1.msra.mxu0 %v1461
      %1477 = vmatprep.subr.mxu0 0.0
      %1478 = vmatpush1.msra.mxu0 %v1462
      %1479 = vmatprep.subr.mxu0 0.0
      %1480 = vmatpush1.msra.mxu0 %v1463
      %1481 = vmatprep.subr.mxu0 0.0
      %1482 = vmatpush1.msra.mxu0 %v1464
      %1483 = vmatprep.subr.mxu0 0.0
      %1484 = vmatpush1.msra.mxu0 %v1465
      %1485 = vmatprep.subr.mxu0 0.0
      %1486 = vmatpush1.msra.mxu0 0.0
      %1487 = vmatprep.subr.mxu0 0.0
      %1488 = vmatpush1.msra.mxu0 0.0
      %1489 = vmatprep.subr.mxu0 0.0
      %1490 = vmatpush1.msra.mxu0 0.0
      %1491 = vmatprep.subr.mxu0 0.0
      %1492 = vmatpush1.msra.mxu0 0.0
      %1493 = vmatprep.subr.mxu0 0.0
      %1494 = vmatpush1.msra.mxu0 0.0
      %1495 = vmatprep.subr.mxu0 0.0
      %1496 = vmatpush1.msra.mxu0 0.0
      %1497 = vmatprep.subr.mxu0 0.0
      %1498 = vmatpush1.msra.mxu0 0.0
      %1499 = vmatprep.subr.mxu0 0.0
      %1500 = vmatpush1.msra.mxu0 0.0
      %1501 = vmatprep.subr.mxu0 0.0
      %1502 = vmatpush1.msra.mxu0 0.0
      %1503 = vmatprep.subr.mxu0 0.0
      %1504 = vmatpush1.msra.mxu0 0.0
      %1505 = vmatprep.subr.mxu0 0.0
      %1506 = vmatpush1.msra.mxu0 0.0
      %1507 = vmatprep.subr.mxu0 0.0
      %1508 = vmatpush1.msra.mxu0 0.0
      %1509 = vmatprep.subr.mxu0 0.0
      %1510 = vmatpush1.msra.mxu0 0.0
      %1511 = vmatprep.subr.mxu0 0.0
      %1512 = vmatpush1.msra.mxu0 0.0
      %1513 = vmatprep.subr.mxu0 0.0
      %1514 = vmatpush1.msra.mxu0 0.0
      %1515 = vmatprep.subr.mxu0 0.0
      %1516 = vmatpush1.msra.mxu0 0.0
      %1517 = vmatprep.subr.mxu0 0.0
      %1518 = vmatpush1.msra.mxu0 0.0
      %1519 = vmatprep.subr.mxu0 0.0
      %1520 = vmatpush1.msra.mxu0 0.0
      %1521 = vmatprep.subr.mxu0 0.0
      %1522 = vmatpush1.msra.mxu0 0.0
      %1523 = vmatprep.subr.mxu0 0.0
      %1524 = vmatpush1.msra.mxu0 0.0
      %1525 = vmatprep.subr.mxu0 0.0
      %1526 = vmatpush1.msra.mxu0 0.0
      %1527 = vmatprep.subr.mxu0 0.0
      %1528 = vmatpush1.msra.mxu0 0.0
      %1529 = vmatprep.subr.mxu0 0.0
      %1530 = vmatpush1.msra.mxu0 0.0
      %1531 = vmatprep.subr.mxu0 0.0
      %1532 = vmatpush1.msra.mxu0 0.0
      %1533 = vmatprep.mubr.f32.mxu0 0.0
      %1534 = vmatmul.mubr.f32.gmra.mrb[0].mxu0 %v1467
      %v1535 = vpop.f32.mrb[0].mxu0
      %v1536 = vadd.f32 0.0, %v1535
      %v1537 = vpop.f32.mrb[0].mxu0
      %1538 = vdwg.mxu0
      %v1539 = vadd.f32 %v1455, %v1536
      %v1540 = vld [vmem:[%s6] sm:$0x1]
      %v1542 = vlaneseq
      %v1543 = vshrl.u32 %v1542, 7
      %v1544 = vsub.s32 0, %v1543
      %v1545 = vrot.slane %v1540, %v1544
      %v1547 = vadd.f32 %v1539, %v1545
      %v1548 = vmax.f32 %v1547, 0.0
      %v1550 = vsel %vm347, %v342, 0
      %1552 = vmatprep.subr.mxu0 0.0
      %1553 = vmatpush1.msra.mxu0 %v1548
      %1554 = vmatprep.subr.mxu0 0.0
      %1555 = vmatpush1.msra.mxu0 0.0
      %1556 = vmatprep.subr.mxu0 0.0
      %1557 = vmatpush1.msra.mxu0 0.0
      %1558 = vmatprep.subr.mxu0 0.0
      %1559 = vmatpush1.msra.mxu0 0.0
      %1560 = vmatprep.subr.mxu0 0.0
      %1561 = vmatpush1.msra.mxu0 0.0
      %1562 = vmatprep.subr.mxu0 0.0
      %1563 = vmatpush1.msra.mxu0 0.0
      %1564 = vmatprep.subr.mxu0 0.0
      %1565 = vmatpush1.msra.mxu0 0.0
      %1566 = vmatprep.subr.mxu0 0.0
      %1567 = vmatpush1.msra.mxu0 0.0
      %1568 = vmatprep.subr.mxu0 0.0
      %1569 = vmatpush1.msra.mxu0 0.0
      %1570 = vmatprep.subr.mxu0 0.0
      %1571 = vmatpush1.msra.mxu0 0.0
      %1572 = vmatprep.subr.mxu0 0.0
      %1573 = vmatpush1.msra.mxu0 0.0
      %1574 = vmatprep.subr.mxu0 0.0
      %1575 = vmatpush1.msra.mxu0 0.0
      %1576 = vmatprep.subr.mxu0 0.0
      %1577 = vmatpush1.msra.mxu0 0.0
      %1578 = vmatprep.subr.mxu0 0.0
      %1579 = vmatpush1.msra.mxu0 0.0
      %1580 = vmatprep.subr.mxu0 0.0
      %1581 = vmatpush1.msra.mxu0 0.0
      %1582 = vmatprep.subr.mxu0 0.0
      %1583 = vmatpush1.msra.mxu0 0.0
      %1584 = vmatprep.subr.mxu0 0.0
      %1585 = vmatpush1.msra.mxu0 0.0
      %1586 = vmatprep.subr.mxu0 0.0
      %1587 = vmatpush1.msra.mxu0 0.0
      %1588 = vmatprep.subr.mxu0 0.0
      %1589 = vmatpush1.msra.mxu0 0.0
      %1590 = vmatprep.subr.mxu0 0.0
      %1591 = vmatpush1.msra.mxu0 0.0
      %1592 = vmatprep.subr.mxu0 0.0
      %1593 = vmatpush1.msra.mxu0 0.0
      %1594 = vmatprep.subr.mxu0 0.0
      %1595 = vmatpush1.msra.mxu0 0.0
      %1596 = vmatprep.subr.mxu0 0.0
      %1597 = vmatpush1.msra.mxu0 0.0
      %1598 = vmatprep.subr.mxu0 0.0
      %1599 = vmatpush1.msra.mxu0 0.0
      %1600 = vmatprep.subr.mxu0 0.0
      %1601 = vmatpush1.msra.mxu0 0.0
      %1602 = vmatprep.subr.mxu0 0.0
      %1603 = vmatpush1.msra.mxu0 0.0
      %1604 = vmatprep.subr.mxu0 0.0
      %1605 = vmatpush1.msra.mxu0 0.0
      %1606 = vmatprep.subr.mxu0 0.0
      %1607 = vmatpush1.msra.mxu0 0.0
      %1608 = vmatprep.subr.mxu0 0.0
      %1609 = vmatpush1.msra.mxu0 0.0
      %1610 = vmatprep.subr.mxu0 0.0
      %1611 = vmatpush1.msra.mxu0 0.0
      %1612 = vmatprep.subr.mxu0 0.0
      %1613 = vmatpush1.msra.mxu0 0.0
      %1614 = vmatprep.subr.mxu0 0.0
      %1615 = vmatpush1.msra.mxu0 0.0
      %1616 = vmatprep.mubr.f32.mxu0 0.0
      %1617 = vmatmul.mubr.f32.gmra.mrb[0].mxu0 %v1550
      %v1618 = vpop.f32.mrb[0].mxu0
      %v1619 = vadd.f32 0.0, %v1618
      %v1620 = vpop.f32.mrb[0].mxu0
      %1621 = vdwg.mxu0
      %v1623 = vsel %vm347, %v345, 0
      %1625 = vmatprep.subr.mxu0 0.0
      %1626 = vmatpush1.msra.mxu0 %v1548
      %1627 = vmatprep.subr.mxu0 0.0
      %1628 = vmatpush1.msra.mxu0 0.0
      %1629 = vmatprep.subr.mxu0 0.0
      %1630 = vmatpush1.msra.mxu0 0.0
      %1631 = vmatprep.subr.mxu0 0.0
      %1632 = vmatpush1.msra.mxu0 0.0
      %1633 = vmatprep.subr.mxu0 0.0
      %1634 = vmatpush1.msra.mxu0 0.0
      %1635 = vmatprep.subr.mxu0 0.0
      %1636 = vmatpush1.msra.mxu0 0.0
      %1637 = vmatprep.subr.mxu0 0.0
      %1638 = vmatpush1.msra.mxu0 0.0
      %1639 = vmatprep.subr.mxu0 0.0
      %1640 = vmatpush1.msra.mxu0 0.0
      %1641 = vmatprep.subr.mxu0 0.0
      %1642 = vmatpush1.msra.mxu0 0.0
      %1643 = vmatprep.subr.mxu0 0.0
      %1644 = vmatpush1.msra.mxu0 0.0
      %1645 = vmatprep.subr.mxu0 0.0
      %1646 = vmatpush1.msra.mxu0 0.0
      %1647 = vmatprep.subr.mxu0 0.0
      %1648 = vmatpush1.msra.mxu0 0.0
      %1649 = vmatprep.subr.mxu0 0.0
      %1650 = vmatpush1.msra.mxu0 0.0
      %1651 = vmatprep.subr.mxu0 0.0
      %1652 = vmatpush1.msra.mxu0 0.0
      %1653 = vmatprep.subr.mxu0 0.0
      %1654 = vmatpush1.msra.mxu0 0.0
      %1655 = vmatprep.subr.mxu0 0.0
      %1656 = vmatpush1.msra.mxu0 0.0
      %1657 = vmatprep.subr.mxu0 0.0
      %1658 = vmatpush1.msra.mxu0 0.0
      %1659 = vmatprep.subr.mxu0 0.0
      %1660 = vmatpush1.msra.mxu0 0.0
      %1661 = vmatprep.subr.mxu0 0.0
      %1662 = vmatpush1.msra.mxu0 0.0
      %1663 = vmatprep.subr.mxu0 0.0
      %1664 = vmatpush1.msra.mxu0 0.0
      %1665 = vmatprep.subr.mxu0 0.0
      %1666 = vmatpush1.msra.mxu0 0.0
      %1667 = vmatprep.subr.mxu0 0.0
      %1668 = vmatpush1.msra.mxu0 0.0
      %1669 = vmatprep.subr.mxu0 0.0
      %1670 = vmatpush1.msra.mxu0 0.0
      %1671 = vmatprep.subr.mxu0 0.0
      %1672 = vmatpush1.msra.mxu0 0.0
      %1673 = vmatprep.subr.mxu0 0.0
      %1674 = vmatpush1.msra.mxu0 0.0
      %1675 = vmatprep.subr.mxu0 0.0
      %1676 = vmatpush1.msra.mxu0 0.0
      %1677 = vmatprep.subr.mxu0 0.0
      %1678 = vmatpush1.msra.mxu0 0.0
      %1679 = vmatprep.subr.mxu0 0.0
      %1680 = vmatpush1.msra.mxu0 0.0
      %1681 = vmatprep.subr.mxu0 0.0
      %1682 = vmatpush1.msra.mxu0 0.0
      %1683 = vmatprep.subr.mxu0 0.0
      %1684 = vmatpush1.msra.mxu0 0.0
      %1685 = vmatprep.subr.mxu0 0.0
      %1686 = vmatpush1.msra.mxu0 0.0
      %1687 = vmatprep.subr.mxu0 0.0
      %1688 = vmatpush1.msra.mxu0 0.0
      %1689 = vmatprep.mubr.f32.mxu0 0.0
      %1690 = vmatmul.mubr.f32.gmra.mrb[0].mxu0 %v1623
      %v1691 = vpop.f32.mrb[0].mxu0
      %v1692 = vadd.f32 0.0, %v1691
      %v1693 = vpop.f32.mrb[0].mxu0
      %1694 = vdwg.mxu0
      %v1695 = vld [vmem:[%s7] sm:$0xff]
      %v1696 = vld [vmem:[%s7 + $0x8] sm:$0xff]
      %v1697 = vld [vmem:[%s7 + $0x10] sm:$0xff]
      %v1698 = vld [vmem:[%s7 + $0x18] sm:$0xff]
      %v1699 = vld [vmem:[%s7 + $0x20] sm:$0xff]
      %v1700 = vld [vmem:[%s7 + $0x28] sm:$0xff]
      %v1701 = vld [vmem:[%s7 + $0x30] sm:$0xff]
      %v1702 = vld [vmem:[%s7 + $0x38] sm:$0xff]
      %v1703 = vld [vmem:[%s7 + $0x40] sm:$0xff]
      %v1704 = vld [vmem:[%s7 + $0x48] sm:$0xff]
      %v1705 = vld [vmem:[%s7 + $0x50] sm:$0xff]
      %v1706 = vld [vmem:[%s7 + $0x58] sm:$0xff]
      %v1707 = vld [vmem:[%s7 + $0x60] sm:$0xff]
      %v1708 = vld [vmem:[%s7 + $0x68] sm:$0xff]
      %v1709 = vld [vmem:[%s7 + $0x70] sm:$0xff]
      %v1710 = vld [vmem:[%s7 + $0x78] sm:$0xff]
      %v1712 = vsel %vm918, %v1548, 0
      %1714 = vmatprep.subr.mxu0 0.0
      %1715 = vmatpush1.msra.mxu0 %v1703
      %1716 = vmatprep.subr.mxu0 0.0
      %1717 = vmatpush1.msra.mxu0 %v1704
      %1718 = vmatprep.subr.mxu0 0.0
      %1719 = vmatpush1.msra.mxu0 %v1705
      %1720 = vmatprep.subr.mxu0 0.0
      %1721 = vmatpush1.msra.mxu0 %v1706
      %1722 = vmatprep.subr.mxu0 0.0
      %1723 = vmatpush1.msra.mxu0 %v1707
      %1724 = vmatprep.subr.mxu0 0.0
      %1725 = vmatpush1.msra.mxu0 %v1708
      %1726 = vmatprep.subr.mxu0 0.0
      %1727 = vmatpush1.msra.mxu0 %v1709
      %1728 = vmatprep.subr.mxu0 0.0
      %1729 = vmatpush1.msra.mxu0 %v1710
      %1730 = vmatprep.subr.mxu0 0.0
      %1731 = vmatpush1.msra.mxu0 0.0
      %1732 = vmatprep.subr.mxu0 0.0
      %1733 = vmatpush1.msra.mxu0 0.0
      %1734 = vmatprep.subr.mxu0 0.0
      %1735 = vmatpush1.msra.mxu0 0.0
      %1736 = vmatprep.subr.mxu0 0.0
      %1737 = vmatpush1.msra.mxu0 0.0
      %1738 = vmatprep.subr.mxu0 0.0
      %1739 = vmatpush1.msra.mxu0 0.0
      %1740 = vmatprep.subr.mxu0 0.0
      %1741 = vmatpush1.msra.mxu0 0.0
      %1742 = vmatprep.subr.mxu0 0.0
      %1743 = vmatpush1.msra.mxu0 0.0
      %1744 = vmatprep.subr.mxu0 0.0
      %1745 = vmatpush1.msra.mxu0 0.0
      %1746 = vmatprep.subr.mxu0 0.0
      %1747 = vmatpush1.msra.mxu0 0.0
      %1748 = vmatprep.subr.mxu0 0.0
      %1749 = vmatpush1.msra.mxu0 0.0
      %1750 = vmatprep.subr.mxu0 0.0
      %1751 = vmatpush1.msra.mxu0 0.0
      %1752 = vmatprep.subr.mxu0 0.0
      %1753 = vmatpush1.msra.mxu0 0.0
      %1754 = vmatprep.subr.mxu0 0.0
      %1755 = vmatpush1.msra.mxu0 0.0
      %1756 = vmatprep.subr.mxu0 0.0
      %1757 = vmatpush1.msra.mxu0 0.0
      %1758 = vmatprep.subr.mxu0 0.0
      %1759 = vmatpush1.msra.mxu0 0.0
      %1760 = vmatprep.subr.mxu0 0.0
      %1761 = vmatpush1.msra.mxu0 0.0
      %1762 = vmatprep.subr.mxu0 0.0
      %1763 = vmatpush1.msra.mxu0 0.0
      %1764 = vmatprep.subr.mxu0 0.0
      %1765 = vmatpush1.msra.mxu0 0.0
      %1766 = vmatprep.subr.mxu0 0.0
      %1767 = vmatpush1.msra.mxu0 0.0
      %1768 = vmatprep.subr.mxu0 0.0
      %1769 = vmatpush1.msra.mxu0 0.0
      %1770 = vmatprep.subr.mxu0 0.0
      %1771 = vmatpush1.msra.mxu0 0.0
      %1772 = vmatprep.subr.mxu0 0.0
      %1773 = vmatpush1.msra.mxu0 0.0
      %1774 = vmatprep.subr.mxu0 0.0
      %1775 = vmatpush1.msra.mxu0 0.0
      %1776 = vmatprep.subr.mxu0 0.0
      %1777 = vmatpush1.msra.mxu0 0.0
      %1778 = vmatprep.mubr.f32.mxu0 0.0
      %1779 = vmatmul.mubr.f32.gmra.mrb[0].mxu0 %v1712
      %v1780 = vpop.f32.mrb[0].mxu0
      %v1781 = vadd.f32 0.0, %v1780
      %v1782 = vpop.f32.mrb[0].mxu0
      %1783 = vdwg.mxu0
      %v1785 = vsel %vm918, %v1619, 0
      %1787 = vmatprep.subr.mxu0 0.0
      %1788 = vmatpush1.msra.mxu0 %v1695
      %1789 = vmatprep.subr.mxu0 0.0
      %1790 = vmatpush1.msra.mxu0 %v1696
      %1791 = vmatprep.subr.mxu0 0.0
      %1792 = vmatpush1.msra.mxu0 %v1697
      %1793 = vmatprep.subr.mxu0 0.0
      %1794 = vmatpush1.msra.mxu0 %v1698
      %1795 = vmatprep.subr.mxu0 0.0
      %1796 = vmatpush1.msra.mxu0 %v1699
      %1797 = vmatprep.subr.mxu0 0.0
      %1798 = vmatpush1.msra.mxu0 %v1700
      %1799 = vmatprep.subr.mxu0 0.0
      %1800 = vmatpush1.msra.mxu0 %v1701
      %1801 = vmatprep.subr.mxu0 0.0
      %1802 = vmatpush1.msra.mxu0 %v1702
      %1803 = vmatprep.subr.mxu0 0.0
      %1804 = vmatpush1.msra.mxu0 0.0
      %1805 = vmatprep.subr.mxu0 0.0
      %1806 = vmatpush1.msra.mxu0 0.0
      %1807 = vmatprep.subr.mxu0 0.0
      %1808 = vmatpush1.msra.mxu0 0.0
      %1809 = vmatprep.subr.mxu0 0.0
      %1810 = vmatpush1.msra.mxu0 0.0
      %1811 = vmatprep.subr.mxu0 0.0
      %1812 = vmatpush1.msra.mxu0 0.0
      %1813 = vmatprep.subr.mxu0 0.0
      %1814 = vmatpush1.msra.mxu0 0.0
      %1815 = vmatprep.subr.mxu0 0.0
      %1816 = vmatpush1.msra.mxu0 0.0
      %1817 = vmatprep.subr.mxu0 0.0
      %1818 = vmatpush1.msra.mxu0 0.0
      %1819 = vmatprep.subr.mxu0 0.0
      %1820 = vmatpush1.msra.mxu0 0.0
      %1821 = vmatprep.subr.mxu0 0.0
      %1822 = vmatpush1.msra.mxu0 0.0
      %1823 = vmatprep.subr.mxu0 0.0
      %1824 = vmatpush1.msra.mxu0 0.0
      %1825 = vmatprep.subr.mxu0 0.0
      %1826 = vmatpush1.msra.mxu0 0.0
      %1827 = vmatprep.subr.mxu0 0.0
      %1828 = vmatpush1.msra.mxu0 0.0
      %1829 = vmatprep.subr.mxu0 0.0
      %1830 = vmatpush1.msra.mxu0 0.0
      %1831 = vmatprep.subr.mxu0 0.0
      %1832 = vmatpush1.msra.mxu0 0.0
      %1833 = vmatprep.subr.mxu0 0.0
      %1834 = vmatpush1.msra.mxu0 0.0
      %1835 = vmatprep.subr.mxu0 0.0
      %1836 = vmatpush1.msra.mxu0 0.0
      %1837 = vmatprep.subr.mxu0 0.0
      %1838 = vmatpush1.msra.mxu0 0.0
      %1839 = vmatprep.subr.mxu0 0.0
      %1840 = vmatpush1.msra.mxu0 0.0
      %1841 = vmatprep.subr.mxu0 0.0
      %1842 = vmatpush1.msra.mxu0 0.0
      %1843 = vmatprep.subr.mxu0 0.0
      %1844 = vmatpush1.msra.mxu0 0.0
      %1845 = vmatprep.subr.mxu0 0.0
      %1846 = vmatpush1.msra.mxu0 0.0
      %1847 = vmatprep.subr.mxu0 0.0
      %1848 = vmatpush1.msra.mxu0 0.0
      %1849 = vmatprep.subr.mxu0 0.0
      %1850 = vmatpush1.msra.mxu0 0.0
      %1851 = vmatprep.mubr.f32.mxu0 0.0
      %1852 = vmatmul.mubr.f32.gmra.mrb[0].mxu0 %v1785
      %v1853 = vpop.f32.mrb[0].mxu0
      %v1854 = vadd.f32 %v1781, %v1853
      %v1855 = vpop.f32.mrb[0].mxu0
      %1856 = vdwg.mxu0
      %v1857 = vld [vmem:[%s7 + $0x80] sm:$0xff]
      %v1858 = vld [vmem:[%s7 + $0x88] sm:$0xff]
      %v1859 = vld [vmem:[%s7 + $0x90] sm:$0xff]
      %v1860 = vld [vmem:[%s7 + $0x98] sm:$0xff]
      %v1861 = vld [vmem:[%s7 + $0xa0] sm:$0xff]
      %v1862 = vld [vmem:[%s7 + $0xa8] sm:$0xff]
      %v1863 = vld [vmem:[%s7 + $0xb0] sm:$0xff]
      %v1864 = vld [vmem:[%s7 + $0xb8] sm:$0xff]
      %v1866 = vsel %vm918, %v1692, 0
      %1868 = vmatprep.subr.mxu0 0.0
      %1869 = vmatpush1.msra.mxu0 %v1857
      %1870 = vmatprep.subr.mxu0 0.0
      %1871 = vmatpush1.msra.mxu0 %v1858
      %1872 = vmatprep.subr.mxu0 0.0
      %1873 = vmatpush1.msra.mxu0 %v1859
      %1874 = vmatprep.subr.mxu0 0.0
      %1875 = vmatpush1.msra.mxu0 %v1860
      %1876 = vmatprep.subr.mxu0 0.0
      %1877 = vmatpush1.msra.mxu0 %v1861
      %1878 = vmatprep.subr.mxu0 0.0
      %1879 = vmatpush1.msra.mxu0 %v1862
      %1880 = vmatprep.subr.mxu0 0.0
      %1881 = vmatpush1.msra.mxu0 %v1863
      %1882 = vmatprep.subr.mxu0 0.0
      %1883 = vmatpush1.msra.mxu0 %v1864
      %1884 = vmatprep.subr.mxu0 0.0
      %1885 = vmatpush1.msra.mxu0 0.0
      %1886 = vmatprep.subr.mxu0 0.0
      %1887 = vmatpush1.msra.mxu0 0.0
      %1888 = vmatprep.subr.mxu0 0.0
      %1889 = vmatpush1.msra.mxu0 0.0
      %1890 = vmatprep.subr.mxu0 0.0
      %1891 = vmatpush1.msra.mxu0 0.0
      %1892 = vmatprep.subr.mxu0 0.0
      %1893 = vmatpush1.msra.mxu0 0.0
      %1894 = vmatprep.subr.mxu0 0.0
      %1895 = vmatpush1.msra.mxu0 0.0
      %1896 = vmatprep.subr.mxu0 0.0
      %1897 = vmatpush1.msra.mxu0 0.0
      %1898 = vmatprep.subr.mxu0 0.0
      %1899 = vmatpush1.msra.mxu0 0.0
      %1900 = vmatprep.subr.mxu0 0.0
      %1901 = vmatpush1.msra.mxu0 0.0
      %1902 = vmatprep.subr.mxu0 0.0
      %1903 = vmatpush1.msra.mxu0 0.0
      %1904 = vmatprep.subr.mxu0 0.0
      %1905 = vmatpush1.msra.mxu0 0.0
      %1906 = vmatprep.subr.mxu0 0.0
      %1907 = vmatpush1.msra.mxu0 0.0
      %1908 = vmatprep.subr.mxu0 0.0
      %1909 = vmatpush1.msra.mxu0 0.0
      %1910 = vmatprep.subr.mxu0 0.0
      %1911 = vmatpush1.msra.mxu0 0.0
      %1912 = vmatprep.subr.mxu0 0.0
      %1913 = vmatpush1.msra.mxu0 0.0
      %1914 = vmatprep.subr.mxu0 0.0
      %1915 = vmatpush1.msra.mxu0 0.0
      %1916 = vmatprep.subr.mxu0 0.0
      %1917 = vmatpush1.msra.mxu0 0.0
      %1918 = vmatprep.subr.mxu0 0.0
      %1919 = vmatpush1.msra.mxu0 0.0
      %1920 = vmatprep.subr.mxu0 0.0
      %1921 = vmatpush1.msra.mxu0 0.0
      %1922 = vmatprep.subr.mxu0 0.0
      %1923 = vmatpush1.msra.mxu0 0.0
      %1924 = vmatprep.subr.mxu0 0.0
      %1925 = vmatpush1.msra.mxu0 0.0
      %1926 = vmatprep.subr.mxu0 0.0
      %1927 = vmatpush1.msra.mxu0 0.0
      %1928 = vmatprep.subr.mxu0 0.0
      %1929 = vmatpush1.msra.mxu0 0.0
      %1930 = vmatprep.subr.mxu0 0.0
      %1931 = vmatpush1.msra.mxu0 0.0
      %1932 = vmatprep.mubr.f32.mxu0 0.0
      %1933 = vmatmul.mubr.f32.gmra.mrb[0].mxu0 %v1866
      %v1934 = vpop.f32.mrb[0].mxu0
      %v1935 = vadd.f32 0.0, %v1934
      %v1936 = vpop.f32.mrb[0].mxu0
      %1937 = vdwg.mxu0
      %v1938 = vadd.f32 %v1854, %v1935
      %v1939 = vld [vmem:[%s8] sm:$0x1]
      %v1941 = vlaneseq
      %v1942 = vshrl.u32 %v1941, 7
      %v1943 = vsub.s32 0, %v1942
      %v1944 = vrot.slane %v1939, %v1943
      %v1946 = vadd.f32 %v1938, %v1944
      %v1947 = vmax.f32 %v1946, 0.0
      %1948 = vst.msk [vmem:[%s327] sm:$0xff] %vm918, %v1947
      %p1949 = scmp.lt.s32.totalorder %s20, 1
      %s1950 = scalar_select %p1949, %s20, 1
      %s1951 = smul.addr %s1950, 8
      %s1952 = scalar_lea.vmem %s9, %s1951
      // Predicated region
      $region57: #{forward.4} parent=55 // pred_check
        %p1953 = pneg %p232
      $region58: #{forward.4} parent=55 // pred_check_branch
        %1955 = sbr.rel (%p1953) target = $region60
      $region59: #{forward.4} parent=55 // pred_region
        _
      $region60: #{forward.4} parent=55 // pred_fallthru
        _
    $region56: #{forward.4} parent=5 // pred_fallthru
      _
    %p1956 = scmp.le.s32.totalorder 2, %s15
    // Predicated region
    $region61: #{forward.4} parent=5 // pred_check
      %p1957 = pneg %p1956
    $region62: #{forward.4} parent=5 // pred_check_branch
      %1959 = sbr.rel (%p1957) target = $region64
    $region63: #{forward.4} parent=5 // pred_region
      %s1960 = ssub.s32 %s15, 2
      // Predicated region
      $region65: #{forward.4} parent=63 // pred_check
        %p1961 = pneg %p238
      $region66: #{forward.4} parent=63 // pred_check_branch
        %1963 = sbr.rel (%p1961) target = $region68
      $region67: #{forward.4} parent=63 // pred_region
        %p1964 = scmp.lt.s32.totalorder %s21, 1
        %s1965 = scalar_select %p1964, %s21, 1
        %s1966 = smul.addr %s1965, 8
        %s1967 = scalar_lea.vmem %s9, %s1966
      $region68: #{forward.4} parent=63 // pred_fallthru
        _
    $region64: #{forward.4} parent=5 // pred_fallthru
      _
  $region6: #{forward.4} parent=0 // loop_footer
    %s19 = sadd.s32 1, %s15
  $region7: #{forward.4} parent=0 // loop_footer_branch
    %14 = sbr.rel target = $region3
  $region8: #{forward.4} parent=0 // loop_exit
    _

// kernel: forward.6
$region0: #{forward.6}
  #allocation0 [shape = 'u32[]', space=smem, size = 0x4, offset = 0x4, fixed_abs, tag = 'smem constant byte address 0x4 - core index']
  #allocation1 [shape = 'u32[144,128]{1,0:T(1,128)}', space=vmem, size = 0x12000, scoped, tag = 'internal scratch']
  %s0 = inlined_call_operand.vmem [shape: f32[2,8,2,128], index: 0, kind: input, shape index: {}]
  %s1 = inlined_call_operand.vmem [shape: f32[2,32,128], index: 1, kind: input, shape index: {}]
  %s2 = inlined_call_operand.vmem [shape: f32[2,2,32], index: 2, kind: input, shape index: {}]
  %s3 = inlined_call_operand.vmem [shape: f32[2,2,32], index: 3, kind: input, shape index: {}]
  %s4 = inlined_call_operand.vmem [shape: f32[2,8,2,32], index: 4, kind: output, shape index: {}]
  %s5 = sld [smem:[#allocation0]]
  $region49: #{forward.6} parent=0
    _
  %s7 = ssub.s32 1, %s5
  %s8 = scalar_select 0, %s7, %s5
  loop: start=0, step=1, limit=4
  $region2: #{forward.6} parent=0 // loop_pre_header
    _
  $region3: #{forward.6} parent=0 // loop_header
    %s10 = sphi 0, %s14
    %p11 = scmp.ge.s32.totalorder %s10, 4
    %s20 = sphi 0, %s22
    %s23 = sphi 0, %s20
    %s24 = sphi 0, %s23
    %s40 = sphi 0, %s24
    %s46 = sphi 0, %s48
    %s49 = sphi 0, %s46
    %s50 = sphi 0, %s49
    %s66 = sphi 0, %s50
    %s72 = sphi 0, %s74
    %s75 = sphi 0, %s72
    %s76 = sphi 0, %s75
    %s92 = sphi 0, %s76
    %s98 = sphi 0, %s100
    %s101 = sphi 0, %s98
    %s102 = sphi 0, %s101
    %s118 = sphi 0, %s102
    %s124 = sphi 0, %s126
    %s127 = sphi 0, %s124
    %s128 = sphi 0, %s127
    %s144 = sphi 0, %s128
  $region4: #{forward.6} parent=0 // loop_header_branch
    %13 = sbr.rel (%p11) target = $region8
  $region5: #{forward.6} parent=0 // loop_body
    %s15 = ssub.s32 %s10, 1
    %s16 = ssub.s32 %s10, 2
    %s17 = sadd.s32 %s10, 1
    %s18 = ssub.s32 %s10, %s17
    %p19 = scmp.eq.s32.totalorder %s18, 0
    %s21 = sadd.s32 %s20, 1
    %s22 = scalar_select %p19, %s20, %s21
    %p25 = pneg %p19
    %p26 = scmp.eq.s32.totalorder %s10, 1
    %p27 = por %p25, %p26
    %p28 = scmp.ne.s32.totalorder %s20, %s23
    %p29 = scmp.eq.s32.totalorder %s10, 0
    %p30 = por %p28, %p29
    %p31 = scmp.ne.s32.totalorder %s20, %s23
    %p32 = scmp.eq.s32.totalorder %s15, 1
    %p33 = por %p31, %p32
    %p34 = scmp.ne.s32.totalorder %s23, %s24
    %p35 = scmp.eq.s32.totalorder %s15, 0
    %p36 = por %p34, %p35
    %p37 = scmp.ne.s32.totalorder %s23, %s24
    %p38 = scmp.eq.s32.totalorder %s16, 1
    %p39 = por %p37, %p38
    %p41 = scmp.ne.s32.totalorder %s24, %s40
    %p42 = scmp.eq.s32.totalorder %s16, 0
    %p43 = por %p41, %p42
    %s44 = ssub.s32 %s10, %s17
    %p45 = scmp.eq.s32.totalorder %s44, 0
    %s47 = sadd.s32 %s46, 1
    %s48 = scalar_select %p45, %s46, %s47
    %p51 = pneg %p45
    %p52 = scmp.eq.s32.totalorder %s10, 1
    %p53 = por %p51, %p52
    %p54 = scmp.ne.s32.totalorder %s46, %s49
    %p55 = scmp.eq.s32.totalorder %s10, 0
    %p56 = por %p54, %p55
    %p57 = scmp.ne.s32.totalorder %s46, %s49
    %p58 = scmp.eq.s32.totalorder %s15, 1
    %p59 = por %p57, %p58
    %p60 = scmp.ne.s32.totalorder %s49, %s50
    %p61 = scmp.eq.s32.totalorder %s15, 0
    %p62 = por %p60, %p61
    %p63 = scmp.ne.s32.totalorder %s49, %s50
    %p64 = scmp.eq.s32.totalorder %s16, 1
    %p65 = por %p63, %p64
    %p67 = scmp.ne.s32.totalorder %s50, %s66
    %p68 = scmp.eq.s32.totalorder %s16, 0
    %p69 = por %p67, %p68
    %s70 = ssub.s32 %s10, %s17
    %p71 = scmp.eq.s32.totalorder %s70, 0
    %s73 = sadd.s32 %s72, 1
    %s74 = scalar_select %p71, %s72, %s73
    %p77 = pneg %p71
    %p78 = scmp.eq.s32.totalorder %s10, 1
    %p79 = por %p77, %p78
    %p80 = scmp.ne.s32.totalorder %s72, %s75
    %p81 = scmp.eq.s32.totalorder %s10, 0
    %p82 = por %p80, %p81
    %p83 = scmp.ne.s32.totalorder %s72, %s75
    %p84 = scmp.eq.s32.totalorder %s15, 1
    %p85 = por %p83, %p84
    %p86 = scmp.ne.s32.totalorder %s75, %s76
    %p87 = scmp.eq.s32.totalorder %s15, 0
    %p88 = por %p86, %p87
    %p89 = scmp.ne.s32.totalorder %s75, %s76
    %p90 = scmp.eq.s32.totalorder %s16, 1
    %p91 = por %p89, %p90
    %p93 = scmp.ne.s32.totalorder %s76, %s92
    %p94 = scmp.eq.s32.totalorder %s16, 0
    %p95 = por %p93, %p94
    %s96 = ssub.s32 %s10, %s17
    %p97 = scmp.eq.s32.totalorder %s96, 0
    %s99 = sadd.s32 %s98, 1
    %s100 = scalar_select %p97, %s98, %s99
    %p103 = pneg %p97
    %p104 = scmp.eq.s32.totalorder %s10, 1
    %p105 = por %p103, %p104
    %p106 = scmp.ne.s32.totalorder %s98, %s101
    %p107 = scmp.eq.s32.totalorder %s10, 0
    %p108 = por %p106, %p107
    %p109 = scmp.ne.s32.totalorder %s98, %s101
    %p110 = scmp.eq.s32.totalorder %s15, 1
    %p111 = por %p109, %p110
    %p112 = scmp.ne.s32.totalorder %s101, %s102
    %p113 = scmp.eq.s32.totalorder %s15, 0
    %p114 = por %p112, %p113
    %p115 = scmp.ne.s32.totalorder %s101, %s102
    %p116 = scmp.eq.s32.totalorder %s16, 1
    %p117 = por %p115, %p116
    %p119 = scmp.ne.s32.totalorder %s102, %s118
    %p120 = scmp.eq.s32.totalorder %s16, 0
    %p121 = por %p119, %p120
    %s122 = ssub.s32 %s10, %s17
    %p123 = scmp.eq.s32.totalorder %s122, 0
    %s125 = sadd.s32 %s124, 1
    %s126 = scalar_select %p123, %s124, %s125
    %p129 = pneg %p123
    %p130 = scmp.eq.s32.totalorder %s10, 1
    %p131 = por %p129, %p130
    %p132 = scmp.ne.s32.totalorder %s124, %s127
    %p133 = scmp.eq.s32.totalorder %s10, 0
    %p134 = por %p132, %p133
    %p135 = scmp.ne.s32.totalorder %s124, %s127
    %p136 = scmp.eq.s32.totalorder %s15, 1
    %p137 = por %p135, %p136
    %p138 = scmp.ne.s32.totalorder %s127, %s128
    %p139 = scmp.eq.s32.totalorder %s15, 0
    %p140 = por %p138, %p139
    %p141 = scmp.ne.s32.totalorder %s127, %s128
    %p142 = scmp.eq.s32.totalorder %s16, 1
    %p143 = por %p141, %p142
    %p145 = scmp.ne.s32.totalorder %s128, %s144
    %p146 = scmp.eq.s32.totalorder %s16, 0
    %p147 = por %p145, %p146
    %p148 = scmp.le.s32.totalorder 1, %s10
    %p149 = scmp.lt.s32.totalorder %s10, 3
    %p150 = pnand %p148, %p149
    %p151 = pneg %p150
    // Predicated region
    $region9: #{forward.6} parent=5 // pred_check
      _
    $region10: #{forward.6} parent=5 // pred_check_branch
      %153 = sbr.rel (%p150) target = $region12
    $region11: #{forward.6} parent=5 // pred_region
      %s154 = ssub.s32 %s10, 1
    $region12: #{forward.6} parent=5 // pred_fallthru
      _
    %p155 = scmp.lt.s32.totalorder %s10, 2
    // Predicated region
    $region13: #{forward.6} parent=5 // pred_check
      %p156 = pneg %p155
    $region14: #{forward.6} parent=5 // pred_check_branch
      %158 = sbr.rel (%p156) target = $region16
    $region15: #{forward.6} parent=5 // pred_region
      // Predicated region
      $region17: #{forward.6} parent=15 // pred_check
        %p159 = pneg %p30
      $region18: #{forward.6} parent=15 // pred_check_branch
        %161 = sbr.rel (%p159) target = $region20
      $region19: #{forward.6} parent=15 // pred_region
        %p162 = scmp.lt.s32.totalorder %s10, 1
        %s163 = scalar_select %p162, %s10, 1
        %s164 = smul.addr %s163, 8
        %s165 = smul.addr %s164, 2
        %s166 = scalar_lea.vmem %s0, %s165
      $region20: #{forward.6} parent=15 // pred_fallthru
        _
      // Predicated region
      $region21: #{forward.6} parent=15 // pred_check
        %p167 = pneg %p56
      $region22: #{forward.6} parent=15 // pred_check_branch
        %169 = sbr.rel (%p167) target = $region24
      $region23: #{forward.6} parent=15 // pred_region
        %p170 = scmp.lt.s32.totalorder %s10, 1
        %s171 = scalar_select %p170, %s10, 1
        %s172 = smul.addr %s171, 4
        %s173 = smul.addr %s172, 8
        %s174 = scalar_lea.vmem %s1, %s173
      $region24: #{forward.6} parent=15 // pred_fallthru
        _
      // Predicated region
      $region25: #{forward.6} parent=15 // pred_check
        %p175 = pneg %p82
      $region26: #{forward.6} parent=15 // pred_check_branch
        %177 = sbr.rel (%p175) target = $region28
      $region27: #{forward.6} parent=15 // pred_region
        %p178 = scmp.lt.s32.totalorder %s10, 1
        %s179 = scalar_select %p178, %s10, 1
        %s180 = smul.addr %s179, 2
        %s181 = scalar_lea.vmem %s2, %s180
      $region28: #{forward.6} parent=15 // pred_fallthru
        _
      // Predicated region
      $region29: #{forward.6} parent=15 // pred_check
        %p182 = pneg %p108
      $region30: #{forward.6} parent=15 // pred_check_branch
        %184 = sbr.rel (%p182) target = $region32
      $region31: #{forward.6} parent=15 // pred_region
        %p185 = scmp.lt.s32.totalorder %s10, 1
        %s186 = scalar_select %p185, %s10, 1
        %s187 = smul.addr %s186, 2
        %s188 = scalar_lea.vmem %s3, %s187
      $region32: #{forward.6} parent=15 // pred_fallthru
        _
    $region16: #{forward.6} parent=5 // pred_fallthru
      _
    %p189 = scmp.le.s32.totalorder 1, %s10
    %p190 = scmp.lt.s32.totalorder %s10, 3
    %p191 = pnand %p189, %p190
    %p192 = pneg %p191
    // Predicated region
    $region33: #{forward.6} parent=5 // pred_check
      _
    $region34: #{forward.6} parent=5 // pred_check_branch
      %194 = sbr.rel (%p191) target = $region36
    $region35: #{forward.6} parent=5 // pred_region
      %s195 = ssub.s32 %s10, 1
      %p196 = scmp.lt.s32.totalorder %s15, 1
      %s197 = scalar_select %p196, %s15, 1
      %s198 = smul.addr %s197, 8
      %s199 = smul.addr %s198, 2
      %s200 = scalar_lea.vmem %s0, %s199
      %p201 = pneg %p36
      %p202 = pneg %p33
      %p203 = scmp.lt.s32.totalorder %s15, 1
      %s204 = scalar_select %p203, %s15, 1
      %s205 = smul.addr %s204, 4
      %s206 = smul.addr %s205, 8
      %s207 = scalar_lea.vmem %s1, %s206
      %p208 = pneg %p62
      %p209 = pneg %p59
      %p210 = scmp.lt.s32.totalorder %s15, 1
      %s211 = scalar_select %p210, %s15, 1
      %s212 = smul.addr %s211, 2
      %s213 = scalar_lea.vmem %s2, %s212
      %p214 = pneg %p88
      %p215 = pneg %p85
      %p216 = scmp.lt.s32.totalorder %s15, 1
      %s217 = scalar_select %p216, %s15, 1
      %s218 = smul.addr %s217, 2
      %s219 = scalar_lea.vmem %s3, %s218
      %p220 = pneg %p114
      %p221 = pneg %p111
      %p222 = pneg %p140
      %p223 = pneg %p137
      %p224 = scmp.lt.s32.totalorder %s15, 1
      %s225 = scalar_select %p224, %s15, 1
      %s226 = smul.addr %s225, 8
      %s227 = smul.addr %s226, 2
      %s228 = scalar_lea.vmem %s4, %s227
      %p229 = scmp.lt.s32.totalorder %s15, 1
      %s230 = scalar_select %p229, %s15, 1
      %s231 = smul.addr %s230, 8
      %s232 = smul.addr %s231, 2
      %s233 = scalar_lea.vmem %s0, %s232
      %p234 = scmp.lt.s32.totalorder %s15, 1
      %s235 = scalar_select %p234, %s15, 1
      %s236 = smul.addr %s235, 4
      %s237 = smul.addr %s236, 8
      %s238 = scalar_lea.vmem %s1, %s237
      %p239 = scmp.lt.s32.totalorder %s15, 1
      %s240 = scalar_select %p239, %s15, 1
      %s241 = smul.addr %s240, 2
      %s242 = scalar_lea.vmem %s2, %s241
      %p243 = scmp.lt.s32.totalorder %s15, 1
      %s244 = scalar_select %p243, %s15, 1
      %s245 = smul.addr %s244, 2
      %s246 = scalar_lea.vmem %s3, %s245
      %p247 = scmp.lt.s32.totalorder %s15, 1
      %s248 = scalar_select %p247, %s15, 1
      %s249 = smul.addr %s248, 8
      %s250 = smul.addr %s249, 2
      %s251 = scalar_lea.vmem %s4, %s250
      %p252 = scmp.eq.s32.totalorder %s15, 1
      %v253 = vld [vmem:[%s238] sm:$0xff]
      %v254 = vld [vmem:[%s238 + $0x8] sm:$0xff]
      %v255 = vld [vmem:[%s238 + $0x10] sm:$0xff]
      %v256 = vld [vmem:[%s238 + $0x18] sm:$0xff]
      %v257 = vld [vmem:[%s242] sm:$0x3]
      %v258 = vld [vmem:[%s246] sm:$0x3]
      %s259 = scalar_select %p252, 7, 0
      %s260 = smul.u32 %s259, 2
      %s261 = scalar_lea.vmem %s233, %s260
      %v262 = vld [vmem:[%s261] sm:$0x3]
      %vm263 = vcmask 261120
      %v265 = vsel %vm263, %v257, 0
      %267 = vmatprep.subr.mxu0 0.0
      %268 = vmatpush1.msra.mxu0 %v253
      %269 = vmatprep.subr.mxu0 0.0
      %270 = vmatpush1.msra.mxu0 %v254
      %271 = vmatprep.subr.mxu0 0.0
      %272 = vmatpush1.msra.mxu0 %v255
      %273 = vmatprep.subr.mxu0 0.0
      %274 = vmatpush1.msra.mxu0 %v256
      %275 = vmatprep.subr.mxu0 0.0
      %276 = vmatpush1.msra.mxu0 0.0
      %277 = vmatprep.subr.mxu0 0.0
      %278 = vmatpush1.msra.mxu0 0.0
      %279 = vmatprep.subr.mxu0 0.0
      %280 = vmatpush1.msra.mxu0 0.0
      %281 = vmatprep.subr.mxu0 0.0
      %282 = vmatpush1.msra.mxu0 0.0
      %283 = vmatprep.subr.mxu0 0.0
      %284 = vmatpush1.msra.mxu0 0.0
      %285 = vmatprep.subr.mxu0 0.0
      %286 = vmatpush1.msra.mxu0 0.0
      %287 = vmatprep.subr.mxu0 0.0
      %288 = vmatpush1.msra.mxu0 0.0
      %289 = vmatprep.subr.mxu0 0.0
      %290 = vmatpush1.msra.mxu0 0.0
      %291 = vmatprep.subr.mxu0 0.0
      %292 = vmatpush1.msra.mxu0 0.0
      %293 = vmatprep.subr.mxu0 0.0
      %294 = vmatpush1.msra.mxu0 0.0
      %295 = vmatprep.subr.mxu0 0.0
      %296 = vmatpush1.msra.mxu0 0.0
      %297 = vmatprep.subr.mxu0 0.0
      %298 = vmatpush1.msra.mxu0 0.0
      %299 = vmatprep.subr.mxu0 0.0
      %300 = vmatpush1.msra.mxu0 0.0
      %301 = vmatprep.subr.mxu0 0.0
      %302 = vmatpush1.msra.mxu0 0.0
      %303 = vmatprep.subr.mxu0 0.0
      %304 = vmatpush1.msra.mxu0 0.0
      %305 = vmatprep.subr.mxu0 0.0
      %306 = vmatpush1.msra.mxu0 0.0
      %307 = vmatprep.subr.mxu0 0.0
      %308 = vmatpush1.msra.mxu0 0.0
      %309 = vmatprep.subr.mxu0 0.0
      %310 = vmatpush1.msra.mxu0 0.0
      %311 = vmatprep.subr.mxu0 0.0
      %312 = vmatpush1.msra.mxu0 0.0
      %313 = vmatprep.subr.mxu0 0.0
      %314 = vmatpush1.msra.mxu0 0.0
      %315 = vmatprep.subr.mxu0 0.0
      %316 = vmatpush1.msra.mxu0 0.0
      %317 = vmatprep.subr.mxu0 0.0
      %318 = vmatpush1.msra.mxu0 0.0
      %319 = vmatprep.subr.mxu0 0.0
      %320 = vmatpush1.msra.mxu0 0.0
      %321 = vmatprep.subr.mxu0 0.0
      %322 = vmatpush1.msra.mxu0 0.0
      %323 = vmatprep.subr.mxu0 0.0
      %324 = vmatpush1.msra.mxu0 0.0
      %325 = vmatprep.subr.mxu0 0.0
      %326 = vmatpush1.msra.mxu0 0.0
      %327 = vmatprep.subr.mxu0 0.0
      %328 = vmatpush1.msra.mxu0 0.0
      %329 = vmatprep.subr.mxu0 0.0
      %330 = vmatpush1.msra.mxu0 0.0
      %331 = vmatprep.mubr.f32.mxu0 0.0
      %332 = vmatmul.mubr.f32.gmra.mrb[0].mxu0 %v265
      %v333 = vpop.f32.mrb[0].mxu0
      %v334 = vadd.f32 0.0, %v333
      %v335 = vpop.f32.mrb[0].mxu0
      %336 = vdwg.mxu0
      %v337 = vadd.f32 %v262, %v334
      %v338 = vxor.u32 %v337, 2147483648
      %v339 = vmul.f32 %v338, 1.442695
      %v340 = vpow.pop %v339
      %v341 = vadd.f32 %v340, 1.0
      %v342 = vrcp.pop %v341
      %v343 = vmul.f32 1.0, %v342
      %v344 = vtanh.pop %v337
      %346 = vrot.lane.b32.xlu0 %v258, 32
      %v347 = vpop.permute.xlu0 %346
      %v349 = vmul.f32 %v343, %v347
      %351 = vrot.lane.b32.xlu0 %v344, 32
      %v352 = vpop.permute.xlu0 %351
      %v354 = vmul.f32 %v343, %v352
      %356 = vrot.lane.b32.xlu0 %v354, 32
      %v357 = vpop.permute.xlu0 %356
      %v359 = vadd.f32 %v349, %v357
      %v360 = vtanh.pop %v359
      %362 = vrot.lane.b32.xlu0 %v360, 32
      %v363 = vpop.permute.xlu0 %362
      %v365 = vmul.f32 %v343, %v363
      %367 = vrot.lane.b32.xlu0 %v365, 64
      %v368 = vpop.permute.xlu0 %367
      %s370 = scalar_lea.vmem %s251, %s260
      %vm371 = vcmask 254976
      %372 = vst.msk [vmem:[%s370] sm:$0x3] %vm371, %v368
      %s373 = scalar_select %p252, 6, 1
      %s374 = smul.u32 %s373, 2
      %s375 = scalar_lea.vmem %s233, %s374
      %v376 = vld [vmem:[%s375] sm:$0x3]
      %v377 = vsel %vm263, %v368, 0
      %379 = vmatprep.subr.mxu0 0.0
      %380 = vmatpush1.msra.mxu0 %v253
      %381 = vmatprep.subr.mxu0 0.0
      %382 = vmatpush1.msra.mxu0 %v254
      %383 = vmatprep.subr.mxu0 0.0
      %384 = vmatpush1.msra.mxu0 %v255
      %385 = vmatprep.subr.mxu0 0.0
      %386 = vmatpush1.msra.mxu0 %v256
      %387 = vmatprep.subr.mxu0 0.0
      %388 = vmatpush1.msra.mxu0 0.0
      %389 = vmatprep.subr.mxu0 0.0
      %390 = vmatpush1.msra.mxu0 0.0
      %391 = vmatprep.subr.mxu0 0.0
      %392 = vmatpush1.msra.mxu0 0.0
      %393 = vmatprep.subr.mxu0 0.0
      %394 = vmatpush1.msra.mxu0 0.0
      %395 = vmatprep.subr.mxu0 0.0
      %396 = vmatpush1.msra.mxu0 0.0
      %397 = vmatprep.subr.mxu0 0.0
      %398 = vmatpush1.msra.mxu0 0.0
      %399 = vmatprep.subr.mxu0 0.0
      %400 = vmatpush1.msra.mxu0 0.0
      %401 = vmatprep.subr.mxu0 0.0
      %402 = vmatpush1.msra.mxu0 0.0
      %403 = vmatprep.subr.mxu0 0.0
      %404 = vmatpush1.msra.mxu0 0.0
      %405 = vmatprep.subr.mxu0 0.0
      %406 = vmatpush1.msra.mxu0 0.0
      %407 = vmatprep.subr.mxu0 0.0
      %408 = vmatpush1.msra.mxu0 0.0
      %409 = vmatprep.subr.mxu0 0.0
      %410 = vmatpush1.msra.mxu0 0.0
      %411 = vmatprep.subr.mxu0 0.0
      %412 = vmatpush1.msra.mxu0 0.0
      %413 = vmatprep.subr.mxu0 0.0
      %414 = vmatpush1.msra.mxu0 0.0
      %415 = vmatprep.subr.mxu0 0.0
      %416 = vmatpush1.msra.mxu0 0.0
      %417 = vmatprep.subr.mxu0 0.0
      %418 = vmatpush1.msra.mxu0 0.0
      %419 = vmatprep.subr.mxu0 0.0
      %420 = vmatpush1.msra.mxu0 0.0
      %421 = vmatprep.subr.mxu0 0.0
      %422 = vmatpush1.msra.mxu0 0.0
      %423 = vmatprep.subr.mxu0 0.0
      %424 = vmatpush1.msra.mxu0 0.0
      %425 = vmatprep.subr.mxu0 0.0
      %426 = vmatpush1.msra.mxu0 0.0
      %427 = vmatprep.subr.mxu0 0.0
      %428 = vmatpush1.msra.mxu0 0.0
      %429 = vmatprep.subr.mxu0 0.0
      %430 = vmatpush1.msra.mxu0 0.0
      %431 = vmatprep.subr.mxu0 0.0
      %432 = vmatpush1.msra.mxu0 0.0
      %433 = vmatprep.subr.mxu0 0.0
      %434 = vmatpush1.msra.mxu0 0.0
      %435 = vmatprep.subr.mxu0 0.0
      %436 = vmatpush1.msra.mxu0 0.0
      %437 = vmatprep.subr.mxu0 0.0
      %438 = vmatpush1.msra.mxu0 0.0
      %439 = vmatprep.subr.mxu0 0.0
      %440 = vmatpush1.msra.mxu0 0.0
      %441 = vmatprep.subr.mxu0 0.0
      %442 = vmatpush1.msra.mxu0 0.0
      %443 = vmatprep.mubr.f32.mxu0 0.0
      %444 = vmatmul.mubr.f32.gmra.mrb[0].mxu0 %v377
      %v445 = vpop.f32.mrb[0].mxu0
      %v446 = vadd.f32 0.0, %v445
      %v447 = vpop.f32.mrb[0].mxu0
      %448 = vdwg.mxu0
      %v449 = vadd.f32 %v376, %v446
      %v450 = vxor.u32 %v449, 2147483648
      %v451 = vmul.f32 %v450, 1.442695
      %v452 = vpow.pop %v451
      %v453 = vadd.f32 %v452, 1.0
      %v454 = vrcp.pop %v453
      %v455 = vmul.f32 1.0, %v454
      %v456 = vtanh.pop %v449
      %v457 = vmul.f32 %v455, %v359
      %459 = vrot.lane.b32.xlu0 %v456, 32
      %v460 = vpop.permute.xlu0 %459
      %v462 = vmul.f32 %v455, %v460
      %464 = vrot.lane.b32.xlu0 %v462, 32
      %v465 = vpop.permute.xlu0 %464
      %v467 = vadd.f32 %v457, %v465
      %v468 = vtanh.pop %v467
      %470 = vrot.lane.b32.xlu0 %v468, 32
      %v471 = vpop.permute.xlu0 %470
      %v473 = vmul.f32 %v455, %v471
      %475 = vrot.lane.b32.xlu0 %v473, 64
      %v476 = vpop.permute.xlu0 %475
      %s478 = scalar_lea.vmem %s251, %s374
      %479 = vst.msk [vmem:[%s478] sm:$0x3] %vm371, %v476
      %s480 = scalar_select %p252, 5, 2
      %s481 = smul.u32 %s480, 2
      %s482 = scalar_lea.vmem %s233, %s481
      %v483 = vld [vmem:[%s482] sm:$0x3]
      %v484 = vsel %vm263, %v476, 0
      %486 = vmatprep.subr.mxu0 0.0
      %487 = vmatpush1.msra.mxu0 %v253
      %488 = vmatprep.subr.mxu0 0.0
      %489 = vmatpush1.msra.mxu0 %v254
      %490 = vmatprep.subr.mxu0 0.0
      %491 = vmatpush1.msra.mxu0 %v255
      %492 = vmatprep.subr.mxu0 0.0
      %493 = vmatpush1.msra.mxu0 %v256
      %494 = vmatprep.subr.mxu0 0.0
      %495 = vmatpush1.msra.mxu0 0.0
      %496 = vmatprep.subr.mxu0 0.0
      %497 = vmatpush1.msra.mxu0 0.0
      %498 = vmatprep.subr.mxu0 0.0
      %499 = vmatpush1.msra.mxu0 0.0
      %500 = vmatprep.subr.mxu0 0.0
      %501 = vmatpush1.msra.mxu0 0.0
      %502 = vmatprep.subr.mxu0 0.0
      %503 = vmatpush1.msra.mxu0 0.0
      %504 = vmatprep.subr.mxu0 0.0
      %505 = vmatpush1.msra.mxu0 0.0
      %506 = vmatprep.subr.mxu0 0.0
      %507 = vmatpush1.msra.mxu0 0.0
      %508 = vmatprep.subr.mxu0 0.0
      %509 = vmatpush1.msra.mxu0 0.0
      %510 = vmatprep.subr.mxu0 0.0
      %511 = vmatpush1.msra.mxu0 0.0
      %512 = vmatprep.subr.mxu0 0.0
      %513 = vmatpush1.msra.mxu0 0.0
      %514 = vmatprep.subr.mxu0 0.0
      %515 = vmatpush1.msra.mxu0 0.0
      %516 = vmatprep.subr.mxu0 0.0
      %517 = vmatpush1.msra.mxu0 0.0
      %518 = vmatprep.subr.mxu0 0.0
      %519 = vmatpush1.msra.mxu0 0.0
      %520 = vmatprep.subr.mxu0 0.0
      %521 = vmatpush1.msra.mxu0 0.0
      %522 = vmatprep.subr.mxu0 0.0
      %523 = vmatpush1.msra.mxu0 0.0
      %524 = vmatprep.subr.mxu0 0.0
      %525 = vmatpush1.msra.mxu0 0.0
      %526 = vmatprep.subr.mxu0 0.0
      %527 = vmatpush1.msra.mxu0 0.0
      %528 = vmatprep.subr.mxu0 0.0
      %529 = vmatpush1.msra.mxu0 0.0
      %530 = vmatprep.subr.mxu0 0.0
      %531 = vmatpush1.msra.mxu0 0.0
      %532 = vmatprep.subr.mxu0 0.0
      %533 = vmatpush1.msra.mxu0 0.0
      %534 = vmatprep.subr.mxu0 0.0
      %535 = vmatpush1.msra.mxu0 0.0
      %536 = vmatprep.subr.mxu0 0.0
      %537 = vmatpush1.msra.mxu0 0.0
      %538 = vmatprep.subr.mxu0 0.0
      %539 = vmatpush1.msra.mxu0 0.0
      %540 = vmatprep.subr.mxu0 0.0
      %541 = vmatpush1.msra.mxu0 0.0
      %542 = vmatprep.subr.mxu0 0.0
      %543 = vmatpush1.msra.mxu0 0.0
      %544 = vmatprep.subr.mxu0 0.0
      %545 = vmatpush1.msra.mxu0 0.0
      %546 = vmatprep.subr.mxu0 0.0
      %547 = vmatpush1.msra.mxu0 0.0
      %548 = vmatprep.subr.mxu0 0.0
      %549 = vmatpush1.msra.mxu0 0.0
      %550 = vmatprep.mubr.f32.mxu0 0.0
      %551 = vmatmul.mubr.f32.gmra.mrb[0].mxu0 %v484
      %v552 = vpop.f32.mrb[0].mxu0
      %v553 = vadd.f32 0.0, %v552
      %v554 = vpop.f32.mrb[0].mxu0
      %555 = vdwg.mxu0
      %v556 = vadd.f32 %v483, %v553
      %v557 = vxor.u32 %v556, 2147483648
      %v558 = vmul.f32 %v557, 1.442695
      %v559 = vpow.pop %v558
      %v560 = vadd.f32 %v559, 1.0
      %v561 = vrcp.pop %v560
      %v562 = vmul.f32 1.0, %v561
      %v563 = vtanh.pop %v556
      %v564 = vmul.f32 %v562, %v467
      %566 = vrot.lane.b32.xlu0 %v563, 32
      %v567 = vpop.permute.xlu0 %566
      %v569 = vmul.f32 %v562, %v567
      %571 = vrot.lane.b32.xlu0 %v569, 32
      %v572 = vpop.permute.xlu0 %571
      %v574 = vadd.f32 %v564, %v572
      %v575 = vtanh.pop %v574
      %577 = vrot.lane.b32.xlu0 %v575, 32
      %v578 = vpop.permute.xlu0 %577
      %v580 = vmul.f32 %v562, %v578
      %582 = vrot.lane.b32.xlu0 %v580, 64
      %v583 = vpop.permute.xlu0 %582
      %s585 = scalar_lea.vmem %s251, %s481
      %586 = vst.msk [vmem:[%s585] sm:$0x3] %vm371, %v583
      %s587 = scalar_select %p252, 4, 3
      %s588 = smul.u32 %s587, 2
      %s589 = scalar_lea.vmem %s233, %s588
      %v590 = vld [vmem:[%s589] sm:$0x3]
      %v591 = vsel %vm263, %v583, 0
      %593 = vmatprep.subr.mxu0 0.0
      %594 = vmatpush1.msra.mxu0 %v253
      %595 = vmatprep.subr.mxu0 0.0
      %596 = vmatpush1.msra.mxu0 %v254
      %597 = vmatprep.subr.mxu0 0.0
      %598 = vmatpush1.msra.mxu0 %v255
      %599 = vmatprep.subr.mxu0 0.0
      %600 = vmatpush1.msra.mxu0 %v256
      %601 = vmatprep.subr.mxu0 0.0
      %602 = vmatpush1.msra.mxu0 0.0
      %603 = vmatprep.subr.mxu0 0.0
      %604 = vmatpush1.msra.mxu0 0.0
      %605 = vmatprep.subr.mxu0 0.0
      %606 = vmatpush1.msra.mxu0 0.0
      %607 = vmatprep.subr.mxu0 0.0
      %608 = vmatpush1.msra.mxu0 0.0
      %609 = vmatprep.subr.mxu0 0.0
      %610 = vmatpush1.msra.mxu0 0.0
      %611 = vmatprep.subr.mxu0 0.0
      %612 = vmatpush1.msra.mxu0 0.0
      %613 = vmatprep.subr.mxu0 0.0
      %614 = vmatpush1.msra.mxu0 0.0
      %615 = vmatprep.subr.mxu0 0.0
      %616 = vmatpush1.msra.mxu0 0.0
      %617 = vmatprep.subr.mxu0 0.0
      %618 = vmatpush1.msra.mxu0 0.0
      %619 = vmatprep.subr.mxu0 0.0
      %620 = vmatpush1.msra.mxu0 0.0
      %621 = vmatprep.subr.mxu0 0.0
      %622 = vmatpush1.msra.mxu0 0.0
      %623 = vmatprep.subr.mxu0 0.0
      %624 = vmatpush1.msra.mxu0 0.0
      %625 = vmatprep.subr.mxu0 0.0
      %626 = vmatpush1.msra.mxu0 0.0
      %627 = vmatprep.subr.mxu0 0.0
      %628 = vmatpush1.msra.mxu0 0.0
      %629 = vmatprep.subr.mxu0 0.0
      %630 = vmatpush1.msra.mxu0 0.0
      %631 = vmatprep.subr.mxu0 0.0
      %632 = vmatpush1.msra.mxu0 0.0
      %633 = vmatprep.subr.mxu0 0.0
      %634 = vmatpush1.msra.mxu0 0.0
      %635 = vmatprep.subr.mxu0 0.0
      %636 = vmatpush1.msra.mxu0 0.0
      %637 = vmatprep.subr.mxu0 0.0
      %638 = vmatpush1.msra.mxu0 0.0
      %639 = vmatprep.subr.mxu0 0.0
      %640 = vmatpush1.msra.mxu0 0.0
      %641 = vmatprep.subr.mxu0 0.0
      %642 = vmatpush1.msra.mxu0 0.0
      %643 = vmatprep.subr.mxu0 0.0
      %644 = vmatpush1.msra.mxu0 0.0
      %645 = vmatprep.subr.mxu0 0.0
      %646 = vmatpush1.msra.mxu0 0.0
      %647 = vmatprep.subr.mxu0 0.0
      %648 = vmatpush1.msra.mxu0 0.0
      %649 = vmatprep.subr.mxu0 0.0
      %650 = vmatpush1.msra.mxu0 0.0
      %651 = vmatprep.subr.mxu0 0.0
      %652 = vmatpush1.msra.mxu0 0.0
      %653 = vmatprep.subr.mxu0 0.0
      %654 = vmatpush1.msra.mxu0 0.0
      %655 = vmatprep.subr.mxu0 0.0
      %656 = vmatpush1.msra.mxu0 0.0
      %657 = vmatprep.mubr.f32.mxu0 0.0
      %658 = vmatmul.mubr.f32.gmra.mrb[0].mxu0 %v591
      %v659 = vpop.f32.mrb[0].mxu0
      %v660 = vadd.f32 0.0, %v659
      %v661 = vpop.f32.mrb[0].mxu0
      %662 = vdwg.mxu0
      %v663 = vadd.f32 %v590, %v660
      %v664 = vxor.u32 %v663, 2147483648
      %v665 = vmul.f32 %v664, 1.442695
      %v666 = vpow.pop %v665
      %v667 = vadd.f32 %v666, 1.0
      %v668 = vrcp.pop %v667
      %v669 = vmul.f32 1.0, %v668
      %v670 = vtanh.pop %v663
      %v671 = vmul.f32 %v669, %v574
      %673 = vrot.lane.b32.xlu0 %v670, 32
      %v674 = vpop.permute.xlu0 %673
      %v676 = vmul.f32 %v669, %v674
      %678 = vrot.lane.b32.xlu0 %v676, 32
      %v679 = vpop.permute.xlu0 %678
      %v681 = vadd.f32 %v671, %v679
      %v682 = vtanh.pop %v681
      %684 = vrot.lane.b32.xlu0 %v682, 32
      %v685 = vpop.permute.xlu0 %684
      %v687 = vmul.f32 %v669, %v685
      %689 = vrot.lane.b32.xlu0 %v687, 64
      %v690 = vpop.permute.xlu0 %689
      %s692 = scalar_lea.vmem %s251, %s588
      %693 = vst.msk [vmem:[%s692] sm:$0x3] %vm371, %v690
      %s694 = scalar_select %p252, 3, 4
      %s695 = smul.u32 %s694, 2
      %s696 = scalar_lea.vmem %s233, %s695
      %v697 = vld [vmem:[%s696] sm:$0x3]
      %v698 = vsel %vm263, %v690, 0
      %700 = vmatprep.subr.mxu0 0.0
      %701 = vmatpush1.msra.mxu0 %v253
      %702 = vmatprep.subr.mxu0 0.0
      %703 = vmatpush1.msra.mxu0 %v254
      %704 = vmatprep.subr.mxu0 0.0
      %705 = vmatpush1.msra.mxu0 %v255
      %706 = vmatprep.subr.mxu0 0.0
      %707 = vmatpush1.msra.mxu0 %v256
      %708 = vmatprep.subr.mxu0 0.0
      %709 = vmatpush1.msra.mxu0 0.0
      %710 = vmatprep.subr.mxu0 0.0
      %711 = vmatpush1.msra.mxu0 0.0
      %712 = vmatprep.subr.mxu0 0.0
      %713 = vmatpush1.msra.mxu0 0.0
      %714 = vmatprep.subr.mxu0 0.0
      %715 = vmatpush1.msra.mxu0 0.0
      %716 = vmatprep.subr.mxu0 0.0
      %717 = vmatpush1.msra.mxu0 0.0
      %718 = vmatprep.subr.mxu0 0.0
      %719 = vmatpush1.msra.mxu0 0.0
      %720 = vmatprep.subr.mxu0 0.0
      %721 = vmatpush1.msra.mxu0 0.0
      %722 = vmatprep.subr.mxu0 0.0
      %723 = vmatpush1.msra.mxu0 0.0
      %724 = vmatprep.subr.mxu0 0.0
      %725 = vmatpush1.msra.mxu0 0.0
      %726 = vmatprep.subr.mxu0 0.0
      %727 = vmatpush1.msra.mxu0 0.0
      %728 = vmatprep.subr.mxu0 0.0
      %729 = vmatpush1.msra.mxu0 0.0
      %730 = vmatprep.subr.mxu0 0.0
      %731 = vmatpush1.msra.mxu0 0.0
      %732 = vmatprep.subr.mxu0 0.0
      %733 = vmatpush1.msra.mxu0 0.0
      %734 = vmatprep.subr.mxu0 0.0
      %735 = vmatpush1.msra.mxu0 0.0
      %736 = vmatprep.subr.mxu0 0.0
      %737 = vmatpush1.msra.mxu0 0.0
      %738 = vmatprep.subr.mxu0 0.0
      %739 = vmatpush1.msra.mxu0 0.0
      %740 = vmatprep.subr.mxu0 0.0
      %741 = vmatpush1.msra.mxu0 0.0
      %742 = vmatprep.subr.mxu0 0.0
      %743 = vmatpush1.msra.mxu0 0.0
      %744 = vmatprep.subr.mxu0 0.0
      %745 = vmatpush1.msra.mxu0 0.0
      %746 = vmatprep.subr.mxu0 0.0
      %747 = vmatpush1.msra.mxu0 0.0
      %748 = vmatprep.subr.mxu0 0.0
      %749 = vmatpush1.msra.mxu0 0.0
      %750 = vmatprep.subr.mxu0 0.0
      %751 = vmatpush1.msra.mxu0 0.0
      %752 = vmatprep.subr.mxu0 0.0
      %753 = vmatpush1.msra.mxu0 0.0
      %754 = vmatprep.subr.mxu0 0.0
      %755 = vmatpush1.msra.mxu0 0.0
      %756 = vmatprep.subr.mxu0 0.0
      %757 = vmatpush1.msra.mxu0 0.0
      %758 = vmatprep.subr.mxu0 0.0
      %759 = vmatpush1.msra.mxu0 0.0
      %760 = vmatprep.subr.mxu0 0.0
      %761 = vmatpush1.msra.mxu0 0.0
      %762 = vmatprep.subr.mxu0 0.0
      %763 = vmatpush1.msra.mxu0 0.0
      %764 = vmatprep.mubr.f32.mxu0 0.0
      %765 = vmatmul.mubr.f32.gmra.mrb[0].mxu0 %v698
      %v766 = vpop.f32.mrb[0].mxu0
      %v767 = vadd.f32 0.0, %v766
      %v768 = vpop.f32.mrb[0].mxu0
      %769 = vdwg.mxu0
      %v770 = vadd.f32 %v697, %v767
      %v771 = vxor.u32 %v770, 2147483648
      %v772 = vmul.f32 %v771, 1.442695
      %v773 = vpow.pop %v772
      %v774 = vadd.f32 %v773, 1.0
      %v775 = vrcp.pop %v774
      %v776 = vmul.f32 1.0, %v775
      %v777 = vtanh.pop %v770
      %v778 = vmul.f32 %v776, %v681
      %780 = vrot.lane.b32.xlu0 %v777, 32
      %v781 = vpop.permute.xlu0 %780
      %v783 = vmul.f32 %v776, %v781
      %785 = vrot.lane.b32.xlu0 %v783, 32
      %v786 = vpop.permute.xlu0 %785
      %v788 = vadd.f32 %v778, %v786
      %v789 = vtanh.pop %v788
      %791 = vrot.lane.b32.xlu0 %v789, 32
      %v792 = vpop.permute.xlu0 %791
      %v794 = vmul.f32 %v776, %v792
      %796 = vrot.lane.b32.xlu0 %v794, 64
      %v797 = vpop.permute.xlu0 %796
      %s799 = scalar_lea.vmem %s251, %s695
      %800 = vst.msk [vmem:[%s799] sm:$0x3] %vm371, %v797
      %s801 = scalar_select %p252, 2, 5
      %s802 = smul.u32 %s801, 2
      %s803 = scalar_lea.vmem %s233, %s802
      %v804 = vld [vmem:[%s803] sm:$0x3]
      %v805 = vsel %vm263, %v797, 0
      %807 = vmatprep.subr.mxu0 0.0
      %808 = vmatpush1.msra.mxu0 %v253
      %809 = vmatprep.subr.mxu0 0.0
      %810 = vmatpush1.msra.mxu0 %v254
      %811 = vmatprep.subr.mxu0 0.0
      %812 = vmatpush1.msra.mxu0 %v255
      %813 = vmatprep.subr.mxu0 0.0
      %814 = vmatpush1.msra.mxu0 %v256
      %815 = vmatprep.subr.mxu0 0.0
      %816 = vmatpush1.msra.mxu0 0.0
      %817 = vmatprep.subr.mxu0 0.0
      %818 = vmatpush1.msra.mxu0 0.0
      %819 = vmatprep.subr.mxu0 0.0
      %820 = vmatpush1.msra.mxu0 0.0
      %821 = vmatprep.subr.mxu0 0.0
      %822 = vmatpush1.msra.mxu0 0.0
      %823 = vmatprep.subr.mxu0 0.0
      %824 = vmatpush1.msra.mxu0 0.0
      %825 = vmatprep.subr.mxu0 0.0
      %826 = vmatpush1.msra.mxu0 0.0
      %827 = vmatprep.subr.mxu0 0.0
      %828 = vmatpush1.msra.mxu0 0.0
      %829 = vmatprep.subr.mxu0 0.0
      %830 = vmatpush1.msra.mxu0 0.0
      %831 = vmatprep.subr.mxu0 0.0
      %832 = vmatpush1.msra.mxu0 0.0
      %833 = vmatprep.subr.mxu0 0.0
      %834 = vmatpush1.msra.mxu0 0.0
      %835 = vmatprep.subr.mxu0 0.0
      %836 = vmatpush1.msra.mxu0 0.0
      %837 = vmatprep.subr.mxu0 0.0
      %838 = vmatpush1.msra.mxu0 0.0
      %839 = vmatprep.subr.mxu0 0.0
      %840 = vmatpush1.msra.mxu0 0.0
      %841 = vmatprep.subr.mxu0 0.0
      %842 = vmatpush1.msra.mxu0 0.0
      %843 = vmatprep.subr.mxu0 0.0
      %844 = vmatpush1.msra.mxu0 0.0
      %845 = vmatprep.subr.mxu0 0.0
      %846 = vmatpush1.msra.mxu0 0.0
      %847 = vmatprep.subr.mxu0 0.0
      %848 = vmatpush1.msra.mxu0 0.0
      %849 = vmatprep.subr.mxu0 0.0
      %850 = vmatpush1.msra.mxu0 0.0
      %851 = vmatprep.subr.mxu0 0.0
      %852 = vmatpush1.msra.mxu0 0.0
      %853 = vmatprep.subr.mxu0 0.0
      %854 = vmatpush1.msra.mxu0 0.0
      %855 = vmatprep.subr.mxu0 0.0
      %856 = vmatpush1.msra.mxu0 0.0
      %857 = vmatprep.subr.mxu0 0.0
      %858 = vmatpush1.msra.mxu0 0.0
      %859 = vmatprep.subr.mxu0 0.0
      %860 = vmatpush1.msra.mxu0 0.0
      %861 = vmatprep.subr.mxu0 0.0
      %862 = vmatpush1.msra.mxu0 0.0
      %863 = vmatprep.subr.mxu0 0.0
      %864 = vmatpush1.msra.mxu0 0.0
      %865 = vmatprep.subr.mxu0 0.0
      %866 = vmatpush1.msra.mxu0 0.0
      %867 = vmatprep.subr.mxu0 0.0
      %868 = vmatpush1.msra.mxu0 0.0
      %869 = vmatprep.subr.mxu0 0.0
      %870 = vmatpush1.msra.mxu0 0.0
      %871 = vmatprep.mubr.f32.mxu0 0.0
      %872 = vmatmul.mubr.f32.gmra.mrb[0].mxu0 %v805
      %v873 = vpop.f32.mrb[0].mxu0
      %v874 = vadd.f32 0.0, %v873
      %v875 = vpop.f32.mrb[0].mxu0
      %876 = vdwg.mxu0
      %v877 = vadd.f32 %v804, %v874
      %v878 = vxor.u32 %v877, 2147483648
      %v879 = vmul.f32 %v878, 1.442695
      %v880 = vpow.pop %v879
      %v881 = vadd.f32 %v880, 1.0
      %v882 = vrcp.pop %v881
      %v883 = vmul.f32 1.0, %v882
      %v884 = vtanh.pop %v877
      %v885 = vmul.f32 %v883, %v788
      %887 = vrot.lane.b32.xlu0 %v884, 32
      %v888 = vpop.permute.xlu0 %887
      %v890 = vmul.f32 %v883, %v888
      %892 = vrot.lane.b32.xlu0 %v890, 32
      %v893 = vpop.permute.xlu0 %892
      %v895 = vadd.f32 %v885, %v893
      %v896 = vtanh.pop %v895
      %898 = vrot.lane.b32.xlu0 %v896, 32
      %v899 = vpop.permute.xlu0 %898
      %v901 = vmul.f32 %v883, %v899
      %903 = vrot.lane.b32.xlu0 %v901, 64
      %v904 = vpop.permute.xlu0 %903
      %s906 = scalar_lea.vmem %s251, %s802
      %907 = vst.msk [vmem:[%s906] sm:$0x3] %vm371, %v904
      %s908 = scalar_select %p252, 1, 6
      %s909 = smul.u32 %s908, 2
      %s910 = scalar_lea.vmem %s233, %s909
      %v911 = vld [vmem:[%s910] sm:$0x3]
      %v912 = vsel %vm263, %v904, 0
      %914 = vmatprep.subr.mxu0 0.0
      %915 = vmatpush1.msra.mxu0 %v253
      %916 = vmatprep.subr.mxu0 0.0
      %917 = vmatpush1.msra.mxu0 %v254
      %918 = vmatprep.subr.mxu0 0.0
      %919 = vmatpush1.msra.mxu0 %v255
      %920 = vmatprep.subr.mxu0 0.0
      %921 = vmatpush1.msra.mxu0 %v256
      %922 = vmatprep.subr.mxu0 0.0
      %923 = vmatpush1.msra.mxu0 0.0
      %924 = vmatprep.subr.mxu0 0.0
      %925 = vmatpush1.msra.mxu0 0.0
      %926 = vmatprep.subr.mxu0 0.0
      %927 = vmatpush1.msra.mxu0 0.0
      %928 = vmatprep.subr.mxu0 0.0
      %929 = vmatpush1.msra.mxu0 0.0
      %930 = vmatprep.subr.mxu0 0.0
      %931 = vmatpush1.msra.mxu0 0.0
      %932 = vmatprep.subr.mxu0 0.0
      %933 = vmatpush1.msra.mxu0 0.0
      %934 = vmatprep.subr.mxu0 0.0
      %935 = vmatpush1.msra.mxu0 0.0
      %936 = vmatprep.subr.mxu0 0.0
      %937 = vmatpush1.msra.mxu0 0.0
      %938 = vmatprep.subr.mxu0 0.0
      %939 = vmatpush1.msra.mxu0 0.0
      %940 = vmatprep.subr.mxu0 0.0
      %941 = vmatpush1.msra.mxu0 0.0
      %942 = vmatprep.subr.mxu0 0.0
      %943 = vmatpush1.msra.mxu0 0.0
      %944 = vmatprep.subr.mxu0 0.0
      %945 = vmatpush1.msra.mxu0 0.0
      %946 = vmatprep.subr.mxu0 0.0
      %947 = vmatpush1.msra.mxu0 0.0
      %948 = vmatprep.subr.mxu0 0.0
      %949 = vmatpush1.msra.mxu0 0.0
      %950 = vmatprep.subr.mxu0 0.0
      %951 = vmatpush1.msra.mxu0 0.0
      %952 = vmatprep.subr.mxu0 0.0
      %953 = vmatpush1.msra.mxu0 0.0
      %954 = vmatprep.subr.mxu0 0.0
      %955 = vmatpush1.msra.mxu0 0.0
      %956 = vmatprep.subr.mxu0 0.0
      %957 = vmatpush1.msra.mxu0 0.0
      %958 = vmatprep.subr.mxu0 0.0
      %959 = vmatpush1.msra.mxu0 0.0
      %960 = vmatprep.subr.mxu0 0.0
      %961 = vmatpush1.msra.mxu0 0.0
      %962 = vmatprep.subr.mxu0 0.0
      %963 = vmatpush1.msra.mxu0 0.0
      %964 = vmatprep.subr.mxu0 0.0
      %965 = vmatpush1.msra.mxu0 0.0
      %966 = vmatprep.subr.mxu0 0.0
      %967 = vmatpush1.msra.mxu0 0.0
      %968 = vmatprep.subr.mxu0 0.0
      %969 = vmatpush1.msra.mxu0 0.0
      %970 = vmatprep.subr.mxu0 0.0
      %971 = vmatpush1.msra.mxu0 0.0
      %972 = vmatprep.subr.mxu0 0.0
      %973 = vmatpush1.msra.mxu0 0.0
      %974 = vmatprep.subr.mxu0 0.0
      %975 = vmatpush1.msra.mxu0 0.0
      %976 = vmatprep.subr.mxu0 0.0
      %977 = vmatpush1.msra.mxu0 0.0
      %978 = vmatprep.mubr.f32.mxu0 0.0
      %979 = vmatmul.mubr.f32.gmra.mrb[0].mxu0 %v912
      %v980 = vpop.f32.mrb[0].mxu0
      %v981 = vadd.f32 0.0, %v980
      %v982 = vpop.f32.mrb[0].mxu0
      %983 = vdwg.mxu0
      %v984 = vadd.f32 %v911, %v981
      %v985 = vxor.u32 %v984, 2147483648
      %v986 = vmul.f32 %v985, 1.442695
      %v987 = vpow.pop %v986
      %v988 = vadd.f32 %v987, 1.0
      %v989 = vrcp.pop %v988
      %v990 = vmul.f32 1.0, %v989
      %v991 = vtanh.pop %v984
      %v992 = vmul.f32 %v990, %v895
      %994 = vrot.lane.b32.xlu0 %v991, 32
      %v995 = vpop.permute.xlu0 %994
      %v997 = vmul.f32 %v990, %v995
      %999 = vrot.lane.b32.xlu0 %v997, 32
      %v1000 = vpop.permute.xlu0 %999
      %v1002 = vadd.f32 %v992, %v1000
      %v1003 = vtanh.pop %v1002
      %1005 = vrot.lane.b32.xlu0 %v1003, 32
      %v1006 = vpop.permute.xlu0 %1005
      %v1008 = vmul.f32 %v990, %v1006
      %1010 = vrot.lane.b32.xlu0 %v1008, 64
      %v1011 = vpop.permute.xlu0 %1010
      %s1013 = scalar_lea.vmem %s251, %s909
      %1014 = vst.msk [vmem:[%s1013] sm:$0x3] %vm371, %v1011
      %s1015 = scalar_select %p252, 0, 7
      %s1016 = smul.u32 %s1015, 2
      %s1017 = scalar_lea.vmem %s233, %s1016
      %v1018 = vld [vmem:[%s1017] sm:$0x3]
      %v1019 = vsel %vm263, %v1011, 0
      %1021 = vmatprep.subr.mxu0 0.0
      %1022 = vmatpush1.msra.mxu0 %v253
      %1023 = vmatprep.subr.mxu0 0.0
      %1024 = vmatpush1.msra.mxu0 %v254
      %1025 = vmatprep.subr.mxu0 0.0
      %1026 = vmatpush1.msra.mxu0 %v255
      %1027 = vmatprep.subr.mxu0 0.0
      %1028 = vmatpush1.msra.mxu0 %v256
      %1029 = vmatprep.subr.mxu0 0.0
      %1030 = vmatpush1.msra.mxu0 0.0
      %1031 = vmatprep.subr.mxu0 0.0
      %1032 = vmatpush1.msra.mxu0 0.0
      %1033 = vmatprep.subr.mxu0 0.0
      %1034 = vmatpush1.msra.mxu0 0.0
      %1035 = vmatprep.subr.mxu0 0.0
      %1036 = vmatpush1.msra.mxu0 0.0
      %1037 = vmatprep.subr.mxu0 0.0
      %1038 = vmatpush1.msra.mxu0 0.0
      %1039 = vmatprep.subr.mxu0 0.0
      %1040 = vmatpush1.msra.mxu0 0.0
      %1041 = vmatprep.subr.mxu0 0.0
      %1042 = vmatpush1.msra.mxu0 0.0
      %1043 = vmatprep.subr.mxu0 0.0
      %1044 = vmatpush1.msra.mxu0 0.0
      %1045 = vmatprep.subr.mxu0 0.0
      %1046 = vmatpush1.msra.mxu0 0.0
      %1047 = vmatprep.subr.mxu0 0.0
      %1048 = vmatpush1.msra.mxu0 0.0
      %1049 = vmatprep.subr.mxu0 0.0
      %1050 = vmatpush1.msra.mxu0 0.0
      %1051 = vmatprep.subr.mxu0 0.0
      %1052 = vmatpush1.msra.mxu0 0.0
      %1053 = vmatprep.subr.mxu0 0.0
      %1054 = vmatpush1.msra.mxu0 0.0
      %1055 = vmatprep.subr.mxu0 0.0
      %1056 = vmatpush1.msra.mxu0 0.0
      %1057 = vmatprep.subr.mxu0 0.0
      %1058 = vmatpush1.msra.mxu0 0.0
      %1059 = vmatprep.subr.mxu0 0.0
      %1060 = vmatpush1.msra.mxu0 0.0
      %1061 = vmatprep.subr.mxu0 0.0
      %1062 = vmatpush1.msra.mxu0 0.0
      %1063 = vmatprep.subr.mxu0 0.0
      %1064 = vmatpush1.msra.mxu0 0.0
      %1065 = vmatprep.subr.mxu0 0.0
      %1066 = vmatpush1.msra.mxu0 0.0
      %1067 = vmatprep.subr.mxu0 0.0
      %1068 = vmatpush1.msra.mxu0 0.0
      %1069 = vmatprep.subr.mxu0 0.0
      %1070 = vmatpush1.msra.mxu0 0.0
      %1071 = vmatprep.subr.mxu0 0.0
      %1072 = vmatpush1.msra.mxu0 0.0
      %1073 = vmatprep.subr.mxu0 0.0
      %1074 = vmatpush1.msra.mxu0 0.0
      %1075 = vmatprep.subr.mxu0 0.0
      %1076 = vmatpush1.msra.mxu0 0.0
      %1077 = vmatprep.subr.mxu0 0.0
      %1078 = vmatpush1.msra.mxu0 0.0
      %1079 = vmatprep.subr.mxu0 0.0
      %1080 = vmatpush1.msra.mxu0 0.0
      %1081 = vmatprep.subr.mxu0 0.0
      %1082 = vmatpush1.msra.mxu0 0.0
      %1083 = vmatprep.subr.mxu0 0.0
      %1084 = vmatpush1.msra.mxu0 0.0
      %1085 = vmatprep.mubr.f32.mxu0 0.0
      %1086 = vmatmul.mubr.f32.gmra.mrb[0].mxu0 %v1019
      %v1087 = vpop.f32.mrb[0].mxu0
      %v1088 = vadd.f32 0.0, %v1087
      %v1089 = vpop.f32.mrb[0].mxu0
      %1090 = vdwg.mxu0
      %v1091 = vadd.f32 %v1018, %v1088
      %v1092 = vxor.u32 %v1091, 2147483648
      %v1093 = vmul.f32 %v1092, 1.442695
      %v1094 = vpow.pop %v1093
      %v1095 = vadd.f32 %v1094, 1.0
      %v1096 = vrcp.pop %v1095
      %v1097 = vmul.f32 1.0, %v1096
      %v1098 = vtanh.pop %v1091
      %v1099 = vmul.f32 %v1097, %v1002
      %1101 = vrot.lane.b32.xlu0 %v1098, 32
      %v1102 = vpop.permute.xlu0 %1101
      %v1104 = vmul.f32 %v1097, %v1102
      %1106 = vrot.lane.b32.xlu0 %v1104, 32
      %v1107 = vpop.permute.xlu0 %1106
      %v1109 = vadd.f32 %v1099, %v1107
      %v1110 = vtanh.pop %v1109
      %1112 = vrot.lane.b32.xlu0 %v1110, 32
      %v1113 = vpop.permute.xlu0 %1112
      %v1115 = vmul.f32 %v1097, %v1113
      %1117 = vrot.lane.b32.xlu0 %v1115, 64
      %v1118 = vpop.permute.xlu0 %1117
      %s1120 = scalar_lea.vmem %s251, %s1016
      %1121 = vst.msk [vmem:[%s1120] sm:$0x3] %vm371, %v1118
      %p1122 = scmp.lt.s32.totalorder %s15, 1
      %s1123 = scalar_select %p1122, %s15, 1
      %s1124 = smul.addr %s1123, 8
      %s1125 = smul.addr %s1124, 2
      %s1126 = scalar_lea.vmem %s4, %s1125
      // Predicated region
      $region37: #{forward.6} parent=35 // pred_check
        %p1127 = pneg %p137
      $region38: #{forward.6} parent=35 // pred_check_branch
        %1129 = sbr.rel (%p1127) target = $region40
      $region39: #{forward.6} parent=35 // pred_region
        _
      $region40: #{forward.6} parent=35 // pred_fallthru
        _
    $region36: #{forward.6} parent=5 // pred_fallthru
      _
    %p1130 = scmp.le.s32.totalorder 2, %s10
    // Predicated region
    $region41: #{forward.6} parent=5 // pred_check
      %p1131 = pneg %p1130
    $region42: #{forward.6} parent=5 // pred_check_branch
      %1133 = sbr.rel (%p1131) target = $region44
    $region43: #{forward.6} parent=5 // pred_region
      %s1134 = ssub.s32 %s10, 2
      // Predicated region
      $region45: #{forward.6} parent=43 // pred_check
        %p1135 = pneg %p143
      $region46: #{forward.6} parent=43 // pred_check_branch
        %1137 = sbr.rel (%p1135) target = $region48
      $region47: #{forward.6} parent=43 // pred_region
        %p1138 = scmp.lt.s32.totalorder %s16, 1
        %s1139 = scalar_select %p1138, %s16, 1
        %s1140 = smul.addr %s1139, 8
        %s1141 = smul.addr %s1140, 2
        %s1142 = scalar_lea.vmem %s4, %s1141
      $region48: #{forward.6} parent=43 // pred_fallthru
        _
    $region44: #{forward.6} parent=5 // pred_fallthru
      _
  $region6: #{forward.6} parent=0 // loop_footer
    %s14 = sadd.s32 1, %s10
  $region7: #{forward.6} parent=0 // loop_footer_branch
    %9 = sbr.rel target = $region3
  $region8: #{forward.6} parent=0 // loop_exit
    _

// kernel: forward.7
$region0: #{forward.7}
  #allocation0 [shape = 'u32[]', space=smem, size = 0x4, offset = 0x4, fixed_abs, tag = 'smem constant byte address 0x4 - core index']
  #allocation1 [shape = 'u32[144,128]{1,0:T(1,128)}', space=vmem, size = 0x12000, scoped, tag = 'internal scratch']
  %s0 = inlined_call_operand.vmem [shape: f32[2,8,2,32], index: 0, kind: input, shape index: {}]
  %s1 = inlined_call_operand.vmem [shape: f32[64,8], index: 1, kind: input, shape index: {}]
  %s2 = inlined_call_operand.vmem [shape: f32[1,8], index: 2, kind: input, shape index: {}]
  %s3 = inlined_call_operand.vmem [shape: f32[8,8], index: 3, kind: input, shape index: {}]
  %s4 = inlined_call_operand.vmem [shape: f32[1,8], index: 4, kind: input, shape index: {}]
  %s5 = inlined_call_operand.vmem [shape: f32[8,2,1], index: 5, kind: input, shape index: {}]
  %s6 = inlined_call_operand.vmem [shape: s32[8,2,8], index: 6, kind: output, shape index: {0}]
  %s7 = inlined_call_operand.vmem [shape: f32[2,8], index: 7, kind: output, shape index: {1}]
  %8 = xla_tuple %s6, %s7
  %s9 = sld [smem:[#allocation0]]
  $region42: #{forward.7} parent=0
    _
  %s11 = ssub.s32 1, %s9
  %s12 = scalar_select 0, %s11, %s9
  // Predicated region
  $region2: #{forward.7} parent=0 // pred_check
    _
  $region3: #{forward.7} parent=0 // pred_check_branch
    %14 = sbr.rel (0) target = $region5
  $region4: #{forward.7} parent=0 // pred_region
    _
  $region5: #{forward.7} parent=0 // pred_fallthru
    _
  // Predicated region
  $region6: #{forward.7} parent=0 // pred_check
    _
  $region7: #{forward.7} parent=0 // pred_check_branch
    %16 = sbr.rel (0) target = $region9
  $region8: #{forward.7} parent=0 // pred_region
    _
  $region9: #{forward.7} parent=0 // pred_fallthru
    _
  // Predicated region
  $region10: #{forward.7} parent=0 // pred_check
    _
  $region11: #{forward.7} parent=0 // pred_check_branch
    %18 = sbr.rel (0) target = $region13
  $region12: #{forward.7} parent=0 // pred_region
    _
  $region13: #{forward.7} parent=0 // pred_fallthru
    _
  // Predicated region
  $region14: #{forward.7} parent=0 // pred_check
    _
  $region15: #{forward.7} parent=0 // pred_check_branch
    %20 = sbr.rel (0) target = $region17
  $region16: #{forward.7} parent=0 // pred_region
    _
  $region17: #{forward.7} parent=0 // pred_fallthru
    _
  // Predicated region
  $region18: #{forward.7} parent=0 // pred_check
    _
  $region19: #{forward.7} parent=0 // pred_check_branch
    %22 = sbr.rel (0) target = $region21
  $region20: #{forward.7} parent=0 // pred_region
    _
  $region21: #{forward.7} parent=0 // pred_fallthru
    _
  // Predicated region
  $region22: #{forward.7} parent=0 // pred_check
    _
  $region23: #{forward.7} parent=0 // pred_check_branch
    %24 = sbr.rel (0) target = $region25
  $region24: #{forward.7} parent=0 // pred_region
    _
  $region25: #{forward.7} parent=0 // pred_fallthru
    _
  %v25 = vld [vmem:[%s1] sm:$0xff]
  %v26 = vld [vmem:[%s1 + $0x8] sm:$0xff]
  %v27 = vld [vmem:[%s1 + $0x10] sm:$0xff]
  %v28 = vld [vmem:[%s1 + $0x18] sm:$0xff]
  %v29 = vld [vmem:[%s1 + $0x20] sm:$0xff]
  %v30 = vld [vmem:[%s1 + $0x28] sm:$0xff]
  %v31 = vld [vmem:[%s1 + $0x30] sm:$0xff]
  %v32 = vld [vmem:[%s1 + $0x38] sm:$0xff]
  %v33 = vld [vmem:[%s2] sm:$0x1]
  %v34 = vld [vmem:[%s3] sm:$0xff]
  %v35 = vld [vmem:[%s5 + $0x2] sm:$0x3]
  %v36 = vld [vmem:[%s5 + $0x4] sm:$0x3]
  %v37 = vld [vmem:[%s5 + $0x6] sm:$0x3]
  %v38 = vld [vmem:[%s5 + $0x8] sm:$0x3]
  %v39 = vld [vmem:[%s5 + $0xa] sm:$0x3]
  %v40 = vld [vmem:[%s5 + $0xc] sm:$0x3]
  %v41 = vld [vmem:[%s5 + $0xe] sm:$0x3]
  %v42 = vld [vmem:[%s0] sm:$0x3]
  %v43 = vld [vmem:[%s0 + $0x2] sm:$0x3]
  %v44 = vld [vmem:[%s0 + $0x4] sm:$0x3]
  %v45 = vld [vmem:[%s0 + $0x6] sm:$0x3]
  %v46 = vld [vmem:[%s0 + $0x8] sm:$0x3]
  %v47 = vld [vmem:[%s0 + $0xa] sm:$0x3]
  %v48 = vld [vmem:[%s0 + $0xc] sm:$0x3]
  %v49 = vld [vmem:[%s0 + $0xe] sm:$0x3]
  %s50 = scalar_lea.vmem %s0, 16
  %v51 = vld [vmem:[%s50] sm:$0x3]
  %v52 = vld [vmem:[%s50 + $0x2] sm:$0x3]
  %v53 = vld [vmem:[%s50 + $0x4] sm:$0x3]
  %v54 = vld [vmem:[%s50 + $0x6] sm:$0x3]
  %v55 = vld [vmem:[%s50 + $0x8] sm:$0x3]
  %v56 = vld [vmem:[%s50 + $0xa] sm:$0x3]
  %v57 = vld [vmem:[%s50 + $0xc] sm:$0x3]
  %v58 = vld [vmem:[%s50 + $0xe] sm:$0x3]
  %v59 = vlaneseq
  %v60 = vand.u32 %v59, 127
  %v61 = vld [vmem:[%s4] sm:$0x1]
  %vm62 = vcmask 261120
  %v64 = vsel %vm62, %v51, 0
  %66 = vmatprep.subr.mxu0 0.0
  %67 = vmatpush1.msra.mxu0 %v29
  %68 = vmatprep.subr.mxu0 0.0
  %69 = vmatpush1.msra.mxu0 %v30
  %70 = vmatprep.subr.mxu0 0.0
  %71 = vmatpush1.msra.mxu0 %v31
  %72 = vmatprep.subr.mxu0 0.0
  %73 = vmatpush1.msra.mxu0 %v32
  %74 = vmatprep.subr.mxu0 0.0
  %75 = vmatpush1.msra.mxu0 0.0
  %76 = vmatprep.subr.mxu0 0.0
  %77 = vmatpush1.msra.mxu0 0.0
  %78 = vmatprep.subr.mxu0 0.0
  %79 = vmatpush1.msra.mxu0 0.0
  %80 = vmatprep.subr.mxu0 0.0
  %81 = vmatpush1.msra.mxu0 0.0
  %82 = vmatprep.subr.mxu0 0.0
  %83 = vmatpush1.msra.mxu0 0.0
  %84 = vmatprep.subr.mxu0 0.0
  %85 = vmatpush1.msra.mxu0 0.0
  %86 = vmatprep.subr.mxu0 0.0
  %87 = vmatpush1.msra.mxu0 0.0
  %88 = vmatprep.subr.mxu0 0.0
  %89 = vmatpush1.msra.mxu0 0.0
  %90 = vmatprep.subr.mxu0 0.0
  %91 = vmatpush1.msra.mxu0 0.0
  %92 = vmatprep.subr.mxu0 0.0
  %93 = vmatpush1.msra.mxu0 0.0
  %94 = vmatprep.subr.mxu0 0.0
  %95 = vmatpush1.msra.mxu0 0.0
  %96 = vmatprep.subr.mxu0 0.0
  %97 = vmatpush1.msra.mxu0 0.0
  %98 = vmatprep.subr.mxu0 0.0
  %99 = vmatpush1.msra.mxu0 0.0
  %100 = vmatprep.subr.mxu0 0.0
  %101 = vmatpush1.msra.mxu0 0.0
  %102 = vmatprep.subr.mxu0 0.0
  %103 = vmatpush1.msra.mxu0 0.0
  %104 = vmatprep.subr.mxu0 0.0
  %105 = vmatpush1.msra.mxu0 0.0
  %106 = vmatprep.subr.mxu0 0.0
  %107 = vmatpush1.msra.mxu0 0.0
  %108 = vmatprep.subr.mxu0 0.0
  %109 = vmatpush1.msra.mxu0 0.0
  %110 = vmatprep.subr.mxu0 0.0
  %111 = vmatpush1.msra.mxu0 0.0
  %112 = vmatprep.subr.mxu0 0.0
  %113 = vmatpush1.msra.mxu0 0.0
  %114 = vmatprep.subr.mxu0 0.0
  %115 = vmatpush1.msra.mxu0 0.0
  %116 = vmatprep.subr.mxu0 0.0
  %117 = vmatpush1.msra.mxu0 0.0
  %118 = vmatprep.subr.mxu0 0.0
  %119 = vmatpush1.msra.mxu0 0.0
  %120 = vmatprep.subr.mxu0 0.0
  %121 = vmatpush1.msra.mxu0 0.0
  %122 = vmatprep.subr.mxu0 0.0
  %123 = vmatpush1.msra.mxu0 0.0
  %124 = vmatprep.subr.mxu0 0.0
  %125 = vmatpush1.msra.mxu0 0.0
  %126 = vmatprep.subr.mxu0 0.0
  %127 = vmatpush1.msra.mxu0 0.0
  %128 = vmatprep.subr.mxu0 0.0
  %129 = vmatpush1.msra.mxu0 0.0
  %130 = vmatprep.mubr.f32.mxu0 0.0
  %131 = vmatmul.mubr.f32.gmra.mrb[0].mxu0 %v64
  %v132 = vpop.f32.mrb[0].mxu0
  %v133 = vadd.f32 0.0, %v132
  %v134 = vpop.f32.mrb[0].mxu0
  %135 = vdwg.mxu0
  %v137 = vsel %vm62, %v42, 0
  %139 = vmatprep.subr.mxu0 0.0
  %140 = vmatpush1.msra.mxu0 %v25
  %141 = vmatprep.subr.mxu0 0.0
  %142 = vmatpush1.msra.mxu0 %v26
  %143 = vmatprep.subr.mxu0 0.0
  %144 = vmatpush1.msra.mxu0 %v27
  %145 = vmatprep.subr.mxu0 0.0
  %146 = vmatpush1.msra.mxu0 %v28
  %147 = vmatprep.subr.mxu0 0.0
  %148 = vmatpush1.msra.mxu0 0.0
  %149 = vmatprep.subr.mxu0 0.0
  %150 = vmatpush1.msra.mxu0 0.0
  %151 = vmatprep.subr.mxu0 0.0
  %152 = vmatpush1.msra.mxu0 0.0
  %153 = vmatprep.subr.mxu0 0.0
  %154 = vmatpush1.msra.mxu0 0.0
  %155 = vmatprep.subr.mxu0 0.0
  %156 = vmatpush1.msra.mxu0 0.0
  %157 = vmatprep.subr.mxu0 0.0
  %158 = vmatpush1.msra.mxu0 0.0
  %159 = vmatprep.subr.mxu0 0.0
  %160 = vmatpush1.msra.mxu0 0.0
  %161 = vmatprep.subr.mxu0 0.0
  %162 = vmatpush1.msra.mxu0 0.0
  %163 = vmatprep.subr.mxu0 0.0
  %164 = vmatpush1.msra.mxu0 0.0
  %165 = vmatprep.subr.mxu0 0.0
  %166 = vmatpush1.msra.mxu0 0.0
  %167 = vmatprep.subr.mxu0 0.0
  %168 = vmatpush1.msra.mxu0 0.0
  %169 = vmatprep.subr.mxu0 0.0
  %170 = vmatpush1.msra.mxu0 0.0
  %171 = vmatprep.subr.mxu0 0.0
  %172 = vmatpush1.msra.mxu0 0.0
  %173 = vmatprep.subr.mxu0 0.0
  %174 = vmatpush1.msra.mxu0 0.0
  %175 = vmatprep.subr.mxu0 0.0
  %176 = vmatpush1.msra.mxu0 0.0
  %177 = vmatprep.subr.mxu0 0.0
  %178 = vmatpush1.msra.mxu0 0.0
  %179 = vmatprep.subr.mxu0 0.0
  %180 = vmatpush1.msra.mxu0 0.0
  %181 = vmatprep.subr.mxu0 0.0
  %182 = vmatpush1.msra.mxu0 0.0
  %183 = vmatprep.subr.mxu0 0.0
  %184 = vmatpush1.msra.mxu0 0.0
  %185 = vmatprep.subr.mxu0 0.0
  %186 = vmatpush1.msra.mxu0 0.0
  %187 = vmatprep.subr.mxu0 0.0
  %188 = vmatpush1.msra.mxu0 0.0
  %189 = vmatprep.subr.mxu0 0.0
  %190 = vmatpush1.msra.mxu0 0.0
  %191 = vmatprep.subr.mxu0 0.0
  %192 = vmatpush1.msra.mxu0 0.0
  %193 = vmatprep.subr.mxu0 0.0
  %194 = vmatpush1.msra.mxu0 0.0
  %195 = vmatprep.subr.mxu0 0.0
  %196 = vmatpush1.msra.mxu0 0.0
  %197 = vmatprep.subr.mxu0 0.0
  %198 = vmatpush1.msra.mxu0 0.0
  %199 = vmatprep.subr.mxu0 0.0
  %200 = vmatpush1.msra.mxu0 0.0
  %201 = vmatprep.subr.mxu0 0.0
  %202 = vmatpush1.msra.mxu0 0.0
  %203 = vmatprep.mubr.f32.mxu0 0.0
  %204 = vmatmul.mubr.f32.gmra.mrb[0].mxu0 %v137
  %v205 = vpop.f32.mrb[0].mxu0
  %v206 = vadd.f32 %v133, %v205
  %v207 = vpop.f32.mrb[0].mxu0
  %208 = vdwg.mxu0
  %v210 = vlaneseq
  %v211 = vshrl.u32 %v210, 7
  %v212 = vsub.s32 0, %v211
  %v213 = vrot.slane %v33, %v212
  %v215 = vadd.f32 %v206, %v213
  %v217 = vlaneseq
  %v218 = vshrl.u32 %v217, 7
  %v219 = vsub.s32 0, %v218
  %v220 = vrot.slane %v61, %v219
  %v222 = vadd.f32 %v220, %v215
  %vm223 = vcmask 58368
  %224 = vst.msk [vmem:[%s6] sm:$0x3] %vm223, 5
  %v227 = vunpack.c.l.s4 1966171168
  %v228 = vunpack.c.0.s8 %v227
  %v229 = vlaneseq
  %v230 = vshrl.u32 %v229, 7
  %v231 = vsub.s32 %v228, %v230
  %v232 = vrot.slane %v222, %v231
  %v233 = vcombine.high %v232, %v232
  %v235 = vunpack.c.l.s4 1966171168
  %v236 = vunpack.c.0.s8 %v235
  %v237 = vlaneseq
  %v238 = vshrl.u32 %v237, 7
  %v239 = vsub.s32 %v236, %v238
  %v240 = vrot.slane %v232, %v239
  %v242 = vunpack.c.l.s4 1966171168
  %v243 = vunpack.c.0.s8 %v242
  %v244 = vlaneseq
  %v245 = vshrl.u32 %v244, 7
  %v246 = vsub.s32 %v243, %v245
  %v247 = vrot.slane %v233, %v246
  %v248 = vlaneseq
  %v249 = vshrl.u32 %v248, 7
  %v250 = vsub.s32 0, %v249
  %v251 = vrot.slane %v240, %v250
  %v252 = vlaneseq
  %v253 = vshrl.u32 %v252, 7
  %v254 = vsub.s32 0, %v253
  %v255 = vrot.slane %v247, %v254
  %v258 = vadd.f32 %v251, %v34
  %v259 = vadd.f32 %v255, %v34
  %vm260 = vcmask 64512
  %v261 = vsel %vm260, %v258, -inf
  %262 = vmax.xlane.f32.xlu0 %v261
  %v263 = vpop.xlane.xlu0 %262
  %v264 = vsel %vm260, %v259, -inf
  %265 = vmax.xlane.f32.xlu0 %v264
  %v266 = vpop.xlane.xlu0 %265
  %vm267 = vcmp.ge.f32.partialorder %v258, %v263
  %vm268 = vcmp.ge.f32.partialorder %v259, %v266
  %v269 = vsel %vm267, %v60, 8
  %v270 = vsel %vm268, %v60, 8
  %v271 = vsel %vm260, %v269, 2147483647
  %v272 = vand.u32 %v271, 65535
  %v273 = vshra.s32 %v271, 16
  %v274 = vcvt.s32.f32 %v272
  %v275 = vcvt.s32.f32 %v273
  %276 = vmin.xlane.f32.xlu0 %v275
  %v277 = vpop.xlane.xlu0 %276
  %vm278 = vcmp.eq.f32.partialorder %v275, %v277
  %v279 = vsel %vm278, %v274, inf
  %280 = vmin.xlane.f32.xlu0 %v279
  %v281 = vpop.xlane.xlu0 %280
  %v282 = vcvt.f32.s32 %v281
  %v283 = vcvt.f32.s32 %v277
  %v284 = vshll.u32 %v283, 16
  %v285 = vadd.s32 %v284, %v282
  %v286 = vsel %vm260, %v270, 2147483647
  %v287 = vand.u32 %v286, 65535
  %v288 = vshra.s32 %v286, 16
  %v289 = vcvt.s32.f32 %v287
  %v290 = vcvt.s32.f32 %v288
  %291 = vmin.xlane.f32.xlu0 %v290
  %v292 = vpop.xlane.xlu0 %291
  %vm293 = vcmp.eq.f32.partialorder %v290, %v292
  %v294 = vsel %vm293, %v289, inf
  %295 = vmin.xlane.f32.xlu0 %v294
  %v296 = vpop.xlane.xlu0 %295
  %v297 = vcvt.f32.s32 %v296
  %v298 = vcvt.f32.s32 %v292
  %v299 = vshll.u32 %v298, 16
  %v300 = vadd.s32 %v299, %v297
  %v302 = vsel %vm62, %v52, 0
  %304 = vmatprep.subr.mxu0 0.0
  %305 = vmatpush1.msra.mxu0 %v29
  %306 = vmatprep.subr.mxu0 0.0
  %307 = vmatpush1.msra.mxu0 %v30
  %308 = vmatprep.subr.mxu0 0.0
  %309 = vmatpush1.msra.mxu0 %v31
  %310 = vmatprep.subr.mxu0 0.0
  %311 = vmatpush1.msra.mxu0 %v32
  %312 = vmatprep.subr.mxu0 0.0
  %313 = vmatpush1.msra.mxu0 0.0
  %314 = vmatprep.subr.mxu0 0.0
  %315 = vmatpush1.msra.mxu0 0.0
  %316 = vmatprep.subr.mxu0 0.0
  %317 = vmatpush1.msra.mxu0 0.0
  %318 = vmatprep.subr.mxu0 0.0
  %319 = vmatpush1.msra.mxu0 0.0
  %320 = vmatprep.subr.mxu0 0.0
  %321 = vmatpush1.msra.mxu0 0.0
  %322 = vmatprep.subr.mxu0 0.0
  %323 = vmatpush1.msra.mxu0 0.0
  %324 = vmatprep.subr.mxu0 0.0
  %325 = vmatpush1.msra.mxu0 0.0
  %326 = vmatprep.subr.mxu0 0.0
  %327 = vmatpush1.msra.mxu0 0.0
  %328 = vmatprep.subr.mxu0 0.0
  %329 = vmatpush1.msra.mxu0 0.0
  %330 = vmatprep.subr.mxu0 0.0
  %331 = vmatpush1.msra.mxu0 0.0
  %332 = vmatprep.subr.mxu0 0.0
  %333 = vmatpush1.msra.mxu0 0.0
  %334 = vmatprep.subr.mxu0 0.0
  %335 = vmatpush1.msra.mxu0 0.0
  %336 = vmatprep.subr.mxu0 0.0
  %337 = vmatpush1.msra.mxu0 0.0
  %338 = vmatprep.subr.mxu0 0.0
  %339 = vmatpush1.msra.mxu0 0.0
  %340 = vmatprep.subr.mxu0 0.0
  %341 = vmatpush1.msra.mxu0 0.0
  %342 = vmatprep.subr.mxu0 0.0
  %343 = vmatpush1.msra.mxu0 0.0
  %344 = vmatprep.subr.mxu0 0.0
  %345 = vmatpush1.msra.mxu0 0.0
  %346 = vmatprep.subr.mxu0 0.0
  %347 = vmatpush1.msra.mxu0 0.0
  %348 = vmatprep.subr.mxu0 0.0
  %349 = vmatpush1.msra.mxu0 0.0
  %350 = vmatprep.subr.mxu0 0.0
  %351 = vmatpush1.msra.mxu0 0.0
  %352 = vmatprep.subr.mxu0 0.0
  %353 = vmatpush1.msra.mxu0 0.0
  %354 = vmatprep.subr.mxu0 0.0
  %355 = vmatpush1.msra.mxu0 0.0
  %356 = vmatprep.subr.mxu0 0.0
  %357 = vmatpush1.msra.mxu0 0.0
  %358 = vmatprep.subr.mxu0 0.0
  %359 = vmatpush1.msra.mxu0 0.0
  %360 = vmatprep.subr.mxu0 0.0
  %361 = vmatpush1.msra.mxu0 0.0
  %362 = vmatprep.subr.mxu0 0.0
  %363 = vmatpush1.msra.mxu0 0.0
  %364 = vmatprep.subr.mxu0 0.0
  %365 = vmatpush1.msra.mxu0 0.0
  %366 = vmatprep.subr.mxu0 0.0
  %367 = vmatpush1.msra.mxu0 0.0
  %368 = vmatprep.mubr.f32.mxu0 0.0
  %369 = vmatmul.mubr.f32.gmra.mrb[0].mxu0 %v302
  %v370 = vpop.f32.mrb[0].mxu0
  %v371 = vadd.f32 0.0, %v370
  %v372 = vpop.f32.mrb[0].mxu0
  %373 = vdwg.mxu0
  %v375 = vsel %vm62, %v43, 0
  %377 = vmatprep.subr.mxu0 0.0
  %378 = vmatpush1.msra.mxu0 %v25
  %379 = vmatprep.subr.mxu0 0.0
  %380 = vmatpush1.msra.mxu0 %v26
  %381 = vmatprep.subr.mxu0 0.0
  %382 = vmatpush1.msra.mxu0 %v27
  %383 = vmatprep.subr.mxu0 0.0
  %384 = vmatpush1.msra.mxu0 %v28
  %385 = vmatprep.subr.mxu0 0.0
  %386 = vmatpush1.msra.mxu0 0.0
  %387 = vmatprep.subr.mxu0 0.0
  %388 = vmatpush1.msra.mxu0 0.0
  %389 = vmatprep.subr.mxu0 0.0
  %390 = vmatpush1.msra.mxu0 0.0
  %391 = vmatprep.subr.mxu0 0.0
  %392 = vmatpush1.msra.mxu0 0.0
  %393 = vmatprep.subr.mxu0 0.0
  %394 = vmatpush1.msra.mxu0 0.0
  %395 = vmatprep.subr.mxu0 0.0
  %396 = vmatpush1.msra.mxu0 0.0
  %397 = vmatprep.subr.mxu0 0.0
  %398 = vmatpush1.msra.mxu0 0.0
  %399 = vmatprep.subr.mxu0 0.0
  %400 = vmatpush1.msra.mxu0 0.0
  %401 = vmatprep.subr.mxu0 0.0
  %402 = vmatpush1.msra.mxu0 0.0
  %403 = vmatprep.subr.mxu0 0.0
  %404 = vmatpush1.msra.mxu0 0.0
  %405 = vmatprep.subr.mxu0 0.0
  %406 = vmatpush1.msra.mxu0 0.0
  %407 = vmatprep.subr.mxu0 0.0
  %408 = vmatpush1.msra.mxu0 0.0
  %409 = vmatprep.subr.mxu0 0.0
  %410 = vmatpush1.msra.mxu0 0.0
  %411 = vmatprep.subr.mxu0 0.0
  %412 = vmatpush1.msra.mxu0 0.0
  %413 = vmatprep.subr.mxu0 0.0
  %414 = vmatpush1.msra.mxu0 0.0
  %415 = vmatprep.subr.mxu0 0.0
  %416 = vmatpush1.msra.mxu0 0.0
  %417 = vmatprep.subr.mxu0 0.0
  %418 = vmatpush1.msra.mxu0 0.0
  %419 = vmatprep.subr.mxu0 0.0
  %420 = vmatpush1.msra.mxu0 0.0
  %421 = vmatprep.subr.mxu0 0.0
  %422 = vmatpush1.msra.mxu0 0.0
  %423 = vmatprep.subr.mxu0 0.0
  %424 = vmatpush1.msra.mxu0 0.0
  %425 = vmatprep.subr.mxu0 0.0
  %426 = vmatpush1.msra.mxu0 0.0
  %427 = vmatprep.subr.mxu0 0.0
  %428 = vmatpush1.msra.mxu0 0.0
  %429 = vmatprep.subr.mxu0 0.0
  %430 = vmatpush1.msra.mxu0 0.0
  %431 = vmatprep.subr.mxu0 0.0
  %432 = vmatpush1.msra.mxu0 0.0
  %433 = vmatprep.subr.mxu0 0.0
  %434 = vmatpush1.msra.mxu0 0.0
  %435 = vmatprep.subr.mxu0 0.0
  %436 = vmatpush1.msra.mxu0 0.0
  %437 = vmatprep.subr.mxu0 0.0
  %438 = vmatpush1.msra.mxu0 0.0
  %439 = vmatprep.subr.mxu0 0.0
  %440 = vmatpush1.msra.mxu0 0.0
  %441 = vmatprep.mubr.f32.mxu0 0.0
  %442 = vmatmul.mubr.f32.gmra.mrb[0].mxu0 %v375
  %v443 = vpop.f32.mrb[0].mxu0
  %v444 = vadd.f32 %v371, %v443
  %v445 = vpop.f32.mrb[0].mxu0
  %446 = vdwg.mxu0
  %v447 = vadd.f32 %v444, %v213
  %v449 = vlaneseq
  %v450 = vshrl.u32 %v449, 7
  %v451 = vsub.s32 0, %v450
  %v452 = vrot.slane %v447, %v451
  %454 = vbcast.lane.b32.xlu0 %v452, 256
  %v455 = vpop.permute.xlu0 %454
  %v456 = vlaneseq
  %v457 = vshrl.u32 %v456, 7
  %v458 = vsub.s32 1, %v457
  %v459 = vrot.slane %v447, %v458
  %461 = vbcast.lane.b32.xlu0 %v459, 256
  %v462 = vpop.permute.xlu0 %461
  %v465 = vadd.f32 %v263, %v455
  %v466 = vadd.f32 %v266, %v462
  %vm467 = vcmp.gt.f32.partialorder %v35, 0.5
  %v468 = vsel %vm467, 1, 0
  %469 = vset.pattern.permute.xlu0 0
  %470 = vperm.xlu0 %469, %v468
  %v471 = vpop.permute.xlu0 %470
  %vm472 = vcmp.eq.s32.totalorder %v471, 1
  %475 = vset.pattern.permute.xlu0 0
  %476 = vperm.xlu0 %475, %v465
  %v477 = vpop.permute.xlu0 %476
  %478 = vset.pattern.permute.xlu0 0
  %479 = vperm.xlu0 %478, %v466
  %v480 = vpop.permute.xlu0 %479
  %v481 = vlaneseq
  %v482 = vshrl.u32 %v481, 7
  %v483 = vsub.s32 %v60, %v482
  %v484 = vrot.slane %v477, %v483
  %v485 = vlaneseq
  %v486 = vshrl.u32 %v485, 7
  %v487 = vsub.s32 %v60, %v486
  %v488 = vrot.slane %v480, %v487
  %vm489 = vcmask 1041409
  %v490 = vsel %vm489, %v488, %v484
  %v492 = vsel %vm472, %v490, %v222
  %v493 = vlaneseq
  %v494 = vshrl.u32 %v493, 7
  %v495 = vsub.s32 %v60, %v494
  %v496 = vrot.slane %v285, %v495
  %v497 = vlaneseq
  %v498 = vshrl.u32 %v497, 7
  %v499 = vsub.s32 %v60, %v498
  %v500 = vrot.slane %v300, %v499
  %v501 = vsel %vm489, %v500, %v496
  %v502 = vsel %vm472, %v501, %v60
  %s503 = scalar_lea.vmem %s6, 2
  %504 = vst.msk [vmem:[%s503] sm:$0x3] %vm223, %v502
  %v507 = vunpack.c.l.s4 1966171168
  %v508 = vunpack.c.0.s8 %v507
  %v509 = vlaneseq
  %v510 = vshrl.u32 %v509, 7
  %v511 = vsub.s32 %v508, %v510
  %v512 = vrot.slane %v492, %v511
  %v513 = vcombine.high %v512, %v512
  %v515 = vunpack.c.l.s4 1966171168
  %v516 = vunpack.c.0.s8 %v515
  %v517 = vlaneseq
  %v518 = vshrl.u32 %v517, 7
  %v519 = vsub.s32 %v516, %v518
  %v520 = vrot.slane %v512, %v519
  %v522 = vunpack.c.l.s4 1966171168
  %v523 = vunpack.c.0.s8 %v522
  %v524 = vlaneseq
  %v525 = vshrl.u32 %v524, 7
  %v526 = vsub.s32 %v523, %v525
  %v527 = vrot.slane %v513, %v526
  %v528 = vlaneseq
  %v529 = vshrl.u32 %v528, 7
  %v530 = vsub.s32 0, %v529
  %v531 = vrot.slane %v520, %v530
  %v532 = vlaneseq
  %v533 = vshrl.u32 %v532, 7
  %v534 = vsub.s32 0, %v533
  %v535 = vrot.slane %v527, %v534
  %v538 = vadd.f32 %v531, %v34
  %v539 = vadd.f32 %v535, %v34
  %v540 = vsel %vm260, %v538, -inf
  %541 = vmax.xlane.f32.xlu0 %v540
  %v542 = vpop.xlane.xlu0 %541
  %v543 = vsel %vm260, %v539, -inf
  %544 = vmax.xlane.f32.xlu0 %v543
  %v545 = vpop.xlane.xlu0 %544
  %vm546 = vcmp.ge.f32.partialorder %v538, %v542
  %vm547 = vcmp.ge.f32.partialorder %v539, %v545
  %v548 = vsel %vm546, %v60, 8
  %v549 = vsel %vm547, %v60, 8
  %v550 = vsel %vm260, %v548, 2147483647
  %v551 = vand.u32 %v550, 65535
  %v552 = vshra.s32 %v550, 16
  %v553 = vcvt.s32.f32 %v551
  %v554 = vcvt.s32.f32 %v552
  %555 = vmin.xlane.f32.xlu0 %v554
  %v556 = vpop.xlane.xlu0 %555
  %vm557 = vcmp.eq.f32.partialorder %v554, %v556
  %v558 = vsel %vm557, %v553, inf
  %559 = vmin.xlane.f32.xlu0 %v558
  %v560 = vpop.xlane.xlu0 %559
  %v561 = vcvt.f32.s32 %v560
  %v562 = vcvt.f32.s32 %v556
  %v563 = vshll.u32 %v562, 16
  %v564 = vadd.s32 %v563, %v561
  %v565 = vsel %vm260, %v549, 2147483647
  %v566 = vand.u32 %v565, 65535
  %v567 = vshra.s32 %v565, 16
  %v568 = vcvt.s32.f32 %v566
  %v569 = vcvt.s32.f32 %v567
  %570 = vmin.xlane.f32.xlu0 %v569
  %v571 = vpop.xlane.xlu0 %570
  %vm572 = vcmp.eq.f32.partialorder %v569, %v571
  %v573 = vsel %vm572, %v568, inf
  %574 = vmin.xlane.f32.xlu0 %v573
  %v575 = vpop.xlane.xlu0 %574
  %v576 = vcvt.f32.s32 %v575
  %v577 = vcvt.f32.s32 %v571
  %v578 = vshll.u32 %v577, 16
  %v579 = vadd.s32 %v578, %v576
  %v581 = vsel %vm62, %v53, 0
  %583 = vmatprep.subr.mxu0 0.0
  %584 = vmatpush1.msra.mxu0 %v29
  %585 = vmatprep.subr.mxu0 0.0
  %586 = vmatpush1.msra.mxu0 %v30
  %587 = vmatprep.subr.mxu0 0.0
  %588 = vmatpush1.msra.mxu0 %v31
  %589 = vmatprep.subr.mxu0 0.0
  %590 = vmatpush1.msra.mxu0 %v32
  %591 = vmatprep.subr.mxu0 0.0
  %592 = vmatpush1.msra.mxu0 0.0
  %593 = vmatprep.subr.mxu0 0.0
  %594 = vmatpush1.msra.mxu0 0.0
  %595 = vmatprep.subr.mxu0 0.0
  %596 = vmatpush1.msra.mxu0 0.0
  %597 = vmatprep.subr.mxu0 0.0
  %598 = vmatpush1.msra.mxu0 0.0
  %599 = vmatprep.subr.mxu0 0.0
  %600 = vmatpush1.msra.mxu0 0.0
  %601 = vmatprep.subr.mxu0 0.0
  %602 = vmatpush1.msra.mxu0 0.0
  %603 = vmatprep.subr.mxu0 0.0
  %604 = vmatpush1.msra.mxu0 0.0
  %605 = vmatprep.subr.mxu0 0.0
  %606 = vmatpush1.msra.mxu0 0.0
  %607 = vmatprep.subr.mxu0 0.0
  %608 = vmatpush1.msra.mxu0 0.0
  %609 = vmatprep.subr.mxu0 0.0
  %610 = vmatpush1.msra.mxu0 0.0
  %611 = vmatprep.subr.mxu0 0.0
  %612 = vmatpush1.msra.mxu0 0.0
  %613 = vmatprep.subr.mxu0 0.0
  %614 = vmatpush1.msra.mxu0 0.0
  %615 = vmatprep.subr.mxu0 0.0
  %616 = vmatpush1.msra.mxu0 0.0
  %617 = vmatprep.subr.mxu0 0.0
  %618 = vmatpush1.msra.mxu0 0.0
  %619 = vmatprep.subr.mxu0 0.0
  %620 = vmatpush1.msra.mxu0 0.0
  %621 = vmatprep.subr.mxu0 0.0
  %622 = vmatpush1.msra.mxu0 0.0
  %623 = vmatprep.subr.mxu0 0.0
  %624 = vmatpush1.msra.mxu0 0.0
  %625 = vmatprep.subr.mxu0 0.0
  %626 = vmatpush1.msra.mxu0 0.0
  %627 = vmatprep.subr.mxu0 0.0
  %628 = vmatpush1.msra.mxu0 0.0
  %629 = vmatprep.subr.mxu0 0.0
  %630 = vmatpush1.msra.mxu0 0.0
  %631 = vmatprep.subr.mxu0 0.0
  %632 = vmatpush1.msra.mxu0 0.0
  %633 = vmatprep.subr.mxu0 0.0
  %634 = vmatpush1.msra.mxu0 0.0
  %635 = vmatprep.subr.mxu0 0.0
  %636 = vmatpush1.msra.mxu0 0.0
  %637 = vmatprep.subr.mxu0 0.0
  %638 = vmatpush1.msra.mxu0 0.0
  %639 = vmatprep.subr.mxu0 0.0
  %640 = vmatpush1.msra.mxu0 0.0
  %641 = vmatprep.subr.mxu0 0.0
  %642 = vmatpush1.msra.mxu0 0.0
  %643 = vmatprep.subr.mxu0 0.0
  %644 = vmatpush1.msra.mxu0 0.0
  %645 = vmatprep.subr.mxu0 0.0
  %646 = vmatpush1.msra.mxu0 0.0
  %647 = vmatprep.mubr.f32.mxu0 0.0
  %648 = vmatmul.mubr.f32.gmra.mrb[0].mxu0 %v581
  %v649 = vpop.f32.mrb[0].mxu0
  %v650 = vadd.f32 0.0, %v649
  %v651 = vpop.f32.mrb[0].mxu0
  %652 = vdwg.mxu0
  %v654 = vsel %vm62, %v44, 0
  %656 = vmatprep.subr.mxu0 0.0
  %657 = vmatpush1.msra.mxu0 %v25
  %658 = vmatprep.subr.mxu0 0.0
  %659 = vmatpush1.msra.mxu0 %v26
  %660 = vmatprep.subr.mxu0 0.0
  %661 = vmatpush1.msra.mxu0 %v27
  %662 = vmatprep.subr.mxu0 0.0
  %663 = vmatpush1.msra.mxu0 %v28
  %664 = vmatprep.subr.mxu0 0.0
  %665 = vmatpush1.msra.mxu0 0.0
  %666 = vmatprep.subr.mxu0 0.0
  %667 = vmatpush1.msra.mxu0 0.0
  %668 = vmatprep.subr.mxu0 0.0
  %669 = vmatpush1.msra.mxu0 0.0
  %670 = vmatprep.subr.mxu0 0.0
  %671 = vmatpush1.msra.mxu0 0.0
  %672 = vmatprep.subr.mxu0 0.0
  %673 = vmatpush1.msra.mxu0 0.0
  %674 = vmatprep.subr.mxu0 0.0
  %675 = vmatpush1.msra.mxu0 0.0
  %676 = vmatprep.subr.mxu0 0.0
  %677 = vmatpush1.msra.mxu0 0.0
  %678 = vmatprep.subr.mxu0 0.0
  %679 = vmatpush1.msra.mxu0 0.0
  %680 = vmatprep.subr.mxu0 0.0
  %681 = vmatpush1.msra.mxu0 0.0
  %682 = vmatprep.subr.mxu0 0.0
  %683 = vmatpush1.msra.mxu0 0.0
  %684 = vmatprep.subr.mxu0 0.0
  %685 = vmatpush1.msra.mxu0 0.0
  %686 = vmatprep.subr.mxu0 0.0
  %687 = vmatpush1.msra.mxu0 0.0
  %688 = vmatprep.subr.mxu0 0.0
  %689 = vmatpush1.msra.mxu0 0.0
  %690 = vmatprep.subr.mxu0 0.0
  %691 = vmatpush1.msra.mxu0 0.0
  %692 = vmatprep.subr.mxu0 0.0
  %693 = vmatpush1.msra.mxu0 0.0
  %694 = vmatprep.subr.mxu0 0.0
  %695 = vmatpush1.msra.mxu0 0.0
  %696 = vmatprep.subr.mxu0 0.0
  %697 = vmatpush1.msra.mxu0 0.0
  %698 = vmatprep.subr.mxu0 0.0
  %699 = vmatpush1.msra.mxu0 0.0
  %700 = vmatprep.subr.mxu0 0.0
  %701 = vmatpush1.msra.mxu0 0.0
  %702 = vmatprep.subr.mxu0 0.0
  %703 = vmatpush1.msra.mxu0 0.0
  %704 = vmatprep.subr.mxu0 0.0
  %705 = vmatpush1.msra.mxu0 0.0
  %706 = vmatprep.subr.mxu0 0.0
  %707 = vmatpush1.msra.mxu0 0.0
  %708 = vmatprep.subr.mxu0 0.0
  %709 = vmatpush1.msra.mxu0 0.0
  %710 = vmatprep.subr.mxu0 0.0
  %711 = vmatpush1.msra.mxu0 0.0
  %712 = vmatprep.subr.mxu0 0.0
  %713 = vmatpush1.msra.mxu0 0.0
  %714 = vmatprep.subr.mxu0 0.0
  %715 = vmatpush1.msra.mxu0 0.0
  %716 = vmatprep.subr.mxu0 0.0
  %717 = vmatpush1.msra.mxu0 0.0
  %718 = vmatprep.subr.mxu0 0.0
  %719 = vmatpush1.msra.mxu0 0.0
  %720 = vmatprep.mubr.f32.mxu0 0.0
  %721 = vmatmul.mubr.f32.gmra.mrb[0].mxu0 %v654
  %v722 = vpop.f32.mrb[0].mxu0
  %v723 = vadd.f32 %v650, %v722
  %v724 = vpop.f32.mrb[0].mxu0
  %725 = vdwg.mxu0
  %v726 = vadd.f32 %v723, %v213
  %v728 = vlaneseq
  %v729 = vshrl.u32 %v728, 7
  %v730 = vsub.s32 0, %v729
  %v731 = vrot.slane %v726, %v730
  %733 = vbcast.lane.b32.xlu0 %v731, 256
  %v734 = vpop.permute.xlu0 %733
  %v735 = vlaneseq
  %v736 = vshrl.u32 %v735, 7
  %v737 = vsub.s32 1, %v736
  %v738 = vrot.slane %v726, %v737
  %740 = vbcast.lane.b32.xlu0 %v738, 256
  %v741 = vpop.permute.xlu0 %740
  %v744 = vadd.f32 %v542, %v734
  %v745 = vadd.f32 %v545, %v741
  %vm746 = vcmp.gt.f32.partialorder %v36, 0.5
  %v747 = vsel %vm746, 1, 0
  %748 = vset.pattern.permute.xlu0 0
  %749 = vperm.xlu0 %748, %v747
  %v750 = vpop.permute.xlu0 %749
  %vm751 = vcmp.eq.s32.totalorder %v750, 1
  %754 = vset.pattern.permute.xlu0 0
  %755 = vperm.xlu0 %754, %v744
  %v756 = vpop.permute.xlu0 %755
  %757 = vset.pattern.permute.xlu0 0
  %758 = vperm.xlu0 %757, %v745
  %v759 = vpop.permute.xlu0 %758
  %v760 = vlaneseq
  %v761 = vshrl.u32 %v760, 7
  %v762 = vsub.s32 %v60, %v761
  %v763 = vrot.slane %v756, %v762
  %v764 = vlaneseq
  %v765 = vshrl.u32 %v764, 7
  %v766 = vsub.s32 %v60, %v765
  %v767 = vrot.slane %v759, %v766
  %v768 = vsel %vm489, %v767, %v763
  %v770 = vsel %vm751, %v768, %v492
  %v771 = vlaneseq
  %v772 = vshrl.u32 %v771, 7
  %v773 = vsub.s32 %v60, %v772
  %v774 = vrot.slane %v564, %v773
  %v775 = vlaneseq
  %v776 = vshrl.u32 %v775, 7
  %v777 = vsub.s32 %v60, %v776
  %v778 = vrot.slane %v579, %v777
  %v779 = vsel %vm489, %v778, %v774
  %v780 = vsel %vm751, %v779, %v60
  %s781 = scalar_lea.vmem %s6, 4
  %782 = vst.msk [vmem:[%s781] sm:$0x3] %vm223, %v780
  %v785 = vunpack.c.l.s4 1966171168
  %v786 = vunpack.c.0.s8 %v785
  %v787 = vlaneseq
  %v788 = vshrl.u32 %v787, 7
  %v789 = vsub.s32 %v786, %v788
  %v790 = vrot.slane %v770, %v789
  %v791 = vcombine.high %v790, %v790
  %v793 = vunpack.c.l.s4 1966171168
  %v794 = vunpack.c.0.s8 %v793
  %v795 = vlaneseq
  %v796 = vshrl.u32 %v795, 7
  %v797 = vsub.s32 %v794, %v796
  %v798 = vrot.slane %v790, %v797
  %v800 = vunpack.c.l.s4 1966171168
  %v801 = vunpack.c.0.s8 %v800
  %v802 = vlaneseq
  %v803 = vshrl.u32 %v802, 7
  %v804 = vsub.s32 %v801, %v803
  %v805 = vrot.slane %v791, %v804
  %v806 = vlaneseq
  %v807 = vshrl.u32 %v806, 7
  %v808 = vsub.s32 0, %v807
  %v809 = vrot.slane %v798, %v808
  %v810 = vlaneseq
  %v811 = vshrl.u32 %v810, 7
  %v812 = vsub.s32 0, %v811
  %v813 = vrot.slane %v805, %v812
  %v816 = vadd.f32 %v809, %v34
  %v817 = vadd.f32 %v813, %v34
  %v818 = vsel %vm260, %v816, -inf
  %819 = vmax.xlane.f32.xlu0 %v818
  %v820 = vpop.xlane.xlu0 %819
  %v821 = vsel %vm260, %v817, -inf
  %822 = vmax.xlane.f32.xlu0 %v821
  %v823 = vpop.xlane.xlu0 %822
  %vm824 = vcmp.ge.f32.partialorder %v816, %v820
  %vm825 = vcmp.ge.f32.partialorder %v817, %v823
  %v826 = vsel %vm824, %v60, 8
  %v827 = vsel %vm825, %v60, 8
  %v828 = vsel %vm260, %v826, 2147483647
  %v829 = vand.u32 %v828, 65535
  %v830 = vshra.s32 %v828, 16
  %v831 = vcvt.s32.f32 %v829
  %v832 = vcvt.s32.f32 %v830
  %833 = vmin.xlane.f32.xlu0 %v832
  %v834 = vpop.xlane.xlu0 %833
  %vm835 = vcmp.eq.f32.partialorder %v832, %v834
  %v836 = vsel %vm835, %v831, inf
  %837 = vmin.xlane.f32.xlu0 %v836
  %v838 = vpop.xlane.xlu0 %837
  %v839 = vcvt.f32.s32 %v838
  %v840 = vcvt.f32.s32 %v834
  %v841 = vshll.u32 %v840, 16
  %v842 = vadd.s32 %v841, %v839
  %v843 = vsel %vm260, %v827, 2147483647
  %v844 = vand.u32 %v843, 65535
  %v845 = vshra.s32 %v843, 16
  %v846 = vcvt.s32.f32 %v844
  %v847 = vcvt.s32.f32 %v845
  %848 = vmin.xlane.f32.xlu0 %v847
  %v849 = vpop.xlane.xlu0 %848
  %vm850 = vcmp.eq.f32.partialorder %v847, %v849
  %v851 = vsel %vm850, %v846, inf
  %852 = vmin.xlane.f32.xlu0 %v851
  %v853 = vpop.xlane.xlu0 %852
  %v854 = vcvt.f32.s32 %v853
  %v855 = vcvt.f32.s32 %v849
  %v856 = vshll.u32 %v855, 16
  %v857 = vadd.s32 %v856, %v854
  %v859 = vsel %vm62, %v54, 0
  %861 = vmatprep.subr.mxu0 0.0
  %862 = vmatpush1.msra.mxu0 %v29
  %863 = vmatprep.subr.mxu0 0.0
  %864 = vmatpush1.msra.mxu0 %v30
  %865 = vmatprep.subr.mxu0 0.0
  %866 = vmatpush1.msra.mxu0 %v31
  %867 = vmatprep.subr.mxu0 0.0
  %868 = vmatpush1.msra.mxu0 %v32
  %869 = vmatprep.subr.mxu0 0.0
  %870 = vmatpush1.msra.mxu0 0.0
  %871 = vmatprep.subr.mxu0 0.0
  %872 = vmatpush1.msra.mxu0 0.0
  %873 = vmatprep.subr.mxu0 0.0
  %874 = vmatpush1.msra.mxu0 0.0
  %875 = vmatprep.subr.mxu0 0.0
  %876 = vmatpush1.msra.mxu0 0.0
  %877 = vmatprep.subr.mxu0 0.0
  %878 = vmatpush1.msra.mxu0 0.0
  %879 = vmatprep.subr.mxu0 0.0
  %880 = vmatpush1.msra.mxu0 0.0
  %881 = vmatprep.subr.mxu0 0.0
  %882 = vmatpush1.msra.mxu0 0.0
  %883 = vmatprep.subr.mxu0 0.0
  %884 = vmatpush1.msra.mxu0 0.0
  %885 = vmatprep.subr.mxu0 0.0
  %886 = vmatpush1.msra.mxu0 0.0
  %887 = vmatprep.subr.mxu0 0.0
  %888 = vmatpush1.msra.mxu0 0.0
  %889 = vmatprep.subr.mxu0 0.0
  %890 = vmatpush1.msra.mxu0 0.0
  %891 = vmatprep.subr.mxu0 0.0
  %892 = vmatpush1.msra.mxu0 0.0
  %893 = vmatprep.subr.mxu0 0.0
  %894 = vmatpush1.msra.mxu0 0.0
  %895 = vmatprep.subr.mxu0 0.0
  %896 = vmatpush1.msra.mxu0 0.0
  %897 = vmatprep.subr.mxu0 0.0
  %898 = vmatpush1.msra.mxu0 0.0
  %899 = vmatprep.subr.mxu0 0.0
  %900 = vmatpush1.msra.mxu0 0.0
  %901 = vmatprep.subr.mxu0 0.0
  %902 = vmatpush1.msra.mxu0 0.0
  %903 = vmatprep.subr.mxu0 0.0
  %904 = vmatpush1.msra.mxu0 0.0
  %905 = vmatprep.subr.mxu0 0.0
  %906 = vmatpush1.msra.mxu0 0.0
  %907 = vmatprep.subr.mxu0 0.0
  %908 = vmatpush1.msra.mxu0 0.0
  %909 = vmatprep.subr.mxu0 0.0
  %910 = vmatpush1.msra.mxu0 0.0
  %911 = vmatprep.subr.mxu0 0.0
  %912 = vmatpush1.msra.mxu0 0.0
  %913 = vmatprep.subr.mxu0 0.0
  %914 = vmatpush1.msra.mxu0 0.0
  %915 = vmatprep.subr.mxu0 0.0
  %916 = vmatpush1.msra.mxu0 0.0
  %917 = vmatprep.subr.mxu0 0.0
  %918 = vmatpush1.msra.mxu0 0.0
  %919 = vmatprep.subr.mxu0 0.0
  %920 = vmatpush1.msra.mxu0 0.0
  %921 = vmatprep.subr.mxu0 0.0
  %922 = vmatpush1.msra.mxu0 0.0
  %923 = vmatprep.subr.mxu0 0.0
  %924 = vmatpush1.msra.mxu0 0.0
  %925 = vmatprep.mubr.f32.mxu0 0.0
  %926 = vmatmul.mubr.f32.gmra.mrb[0].mxu0 %v859
  %v927 = vpop.f32.mrb[0].mxu0
  %v928 = vadd.f32 0.0, %v927
  %v929 = vpop.f32.mrb[0].mxu0
  %930 = vdwg.mxu0
  %v932 = vsel %vm62, %v45, 0
  %934 = vmatprep.subr.mxu0 0.0
  %935 = vmatpush1.msra.mxu0 %v25
  %936 = vmatprep.subr.mxu0 0.0
  %937 = vmatpush1.msra.mxu0 %v26
  %938 = vmatprep.subr.mxu0 0.0
  %939 = vmatpush1.msra.mxu0 %v27
  %940 = vmatprep.subr.mxu0 0.0
  %941 = vmatpush1.msra.mxu0 %v28
  %942 = vmatprep.subr.mxu0 0.0
  %943 = vmatpush1.msra.mxu0 0.0
  %944 = vmatprep.subr.mxu0 0.0
  %945 = vmatpush1.msra.mxu0 0.0
  %946 = vmatprep.subr.mxu0 0.0
  %947 = vmatpush1.msra.mxu0 0.0
  %948 = vmatprep.subr.mxu0 0.0
  %949 = vmatpush1.msra.mxu0 0.0
  %950 = vmatprep.subr.mxu0 0.0
  %951 = vmatpush1.msra.mxu0 0.0
  %952 = vmatprep.subr.mxu0 0.0
  %953 = vmatpush1.msra.mxu0 0.0
  %954 = vmatprep.subr.mxu0 0.0
  %955 = vmatpush1.msra.mxu0 0.0
  %956 = vmatprep.subr.mxu0 0.0
  %957 = vmatpush1.msra.mxu0 0.0
  %958 = vmatprep.subr.mxu0 0.0
  %959 = vmatpush1.msra.mxu0 0.0
  %960 = vmatprep.subr.mxu0 0.0
  %961 = vmatpush1.msra.mxu0 0.0
  %962 = vmatprep.subr.mxu0 0.0
  %963 = vmatpush1.msra.mxu0 0.0
  %964 = vmatprep.subr.mxu0 0.0
  %965 = vmatpush1.msra.mxu0 0.0
  %966 = vmatprep.subr.mxu0 0.0
  %967 = vmatpush1.msra.mxu0 0.0
  %968 = vmatprep.subr.mxu0 0.0
  %969 = vmatpush1.msra.mxu0 0.0
  %970 = vmatprep.subr.mxu0 0.0
  %971 = vmatpush1.msra.mxu0 0.0
  %972 = vmatprep.subr.mxu0 0.0
  %973 = vmatpush1.msra.mxu0 0.0
  %974 = vmatprep.subr.mxu0 0.0
  %975 = vmatpush1.msra.mxu0 0.0
  %976 = vmatprep.subr.mxu0 0.0
  %977 = vmatpush1.msra.mxu0 0.0
  %978 = vmatprep.subr.mxu0 0.0
  %979 = vmatpush1.msra.mxu0 0.0
  %980 = vmatprep.subr.mxu0 0.0
  %981 = vmatpush1.msra.mxu0 0.0
  %982 = vmatprep.subr.mxu0 0.0
  %983 = vmatpush1.msra.mxu0 0.0
  %984 = vmatprep.subr.mxu0 0.0
  %985 = vmatpush1.msra.mxu0 0.0
  %986 = vmatprep.subr.mxu0 0.0
  %987 = vmatpush1.msra.mxu0 0.0
  %988 = vmatprep.subr.mxu0 0.0
  %989 = vmatpush1.msra.mxu0 0.0
  %990 = vmatprep.subr.mxu0 0.0
  %991 = vmatpush1.msra.mxu0 0.0
  %992 = vmatprep.subr.mxu0 0.0
  %993 = vmatpush1.msra.mxu0 0.0
  %994 = vmatprep.subr.mxu0 0.0
  %995 = vmatpush1.msra.mxu0 0.0
  %996 = vmatprep.subr.mxu0 0.0
  %997 = vmatpush1.msra.mxu0 0.0
  %998 = vmatprep.mubr.f32.mxu0 0.0
  %999 = vmatmul.mubr.f32.gmra.mrb[0].mxu0 %v932
  %v1000 = vpop.f32.mrb[0].mxu0
  %v1001 = vadd.f32 %v928, %v1000
  %v1002 = vpop.f32.mrb[0].mxu0
  %1003 = vdwg.mxu0
  %v1004 = vadd.f32 %v1001, %v213
  %v1006 = vlaneseq
  %v1007 = vshrl.u32 %v1006, 7
  %v1008 = vsub.s32 0, %v1007
  %v1009 = vrot.slane %v1004, %v1008
  %1011 = vbcast.lane.b32.xlu0 %v1009, 256
  %v1012 = vpop.permute.xlu0 %1011
  %v1013 = vlaneseq
  %v1014 = vshrl.u32 %v1013, 7
  %v1015 = vsub.s32 1, %v1014
  %v1016 = vrot.slane %v1004, %v1015
  %1018 = vbcast.lane.b32.xlu0 %v1016, 256
  %v1019 = vpop.permute.xlu0 %1018
  %v1022 = vadd.f32 %v820, %v1012
  %v1023 = vadd.f32 %v823, %v1019
  %vm1024 = vcmp.gt.f32.partialorder %v37, 0.5
  %v1025 = vsel %vm1024, 1, 0
  %1026 = vset.pattern.permute.xlu0 0
  %1027 = vperm.xlu0 %1026, %v1025
  %v1028 = vpop.permute.xlu0 %1027
  %vm1029 = vcmp.eq.s32.totalorder %v1028, 1
  %1032 = vset.pattern.permute.xlu0 0
  %1033 = vperm.xlu0 %1032, %v1022
  %v1034 = vpop.permute.xlu0 %1033
  %1035 = vset.pattern.permute.xlu0 0
  %1036 = vperm.xlu0 %1035, %v1023
  %v1037 = vpop.permute.xlu0 %1036
  %v1038 = vlaneseq
  %v1039 = vshrl.u32 %v1038, 7
  %v1040 = vsub.s32 %v60, %v1039
  %v1041 = vrot.slane %v1034, %v1040
  %v1042 = vlaneseq
  %v1043 = vshrl.u32 %v1042, 7
  %v1044 = vsub.s32 %v60, %v1043
  %v1045 = vrot.slane %v1037, %v1044
  %v1046 = vsel %vm489, %v1045, %v1041
  %v1048 = vsel %vm1029, %v1046, %v770
  %v1049 = vlaneseq
  %v1050 = vshrl.u32 %v1049, 7
  %v1051 = vsub.s32 %v60, %v1050
  %v1052 = vrot.slane %v842, %v1051
  %v1053 = vlaneseq
  %v1054 = vshrl.u32 %v1053, 7
  %v1055 = vsub.s32 %v60, %v1054
  %v1056 = vrot.slane %v857, %v1055
  %v1057 = vsel %vm489, %v1056, %v1052
  %v1058 = vsel %vm1029, %v1057, %v60
  %s1059 = scalar_lea.vmem %s6, 6
  %1060 = vst.msk [vmem:[%s1059] sm:$0x3] %vm223, %v1058
  %v1063 = vunpack.c.l.s4 1966171168
  %v1064 = vunpack.c.0.s8 %v1063
  %v1065 = vlaneseq
  %v1066 = vshrl.u32 %v1065, 7
  %v1067 = vsub.s32 %v1064, %v1066
  %v1068 = vrot.slane %v1048, %v1067
  %v1069 = vcombine.high %v1068, %v1068
  %v1071 = vunpack.c.l.s4 1966171168
  %v1072 = vunpack.c.0.s8 %v1071
  %v1073 = vlaneseq
  %v1074 = vshrl.u32 %v1073, 7
  %v1075 = vsub.s32 %v1072, %v1074
  %v1076 = vrot.slane %v1068, %v1075
  %v1078 = vunpack.c.l.s4 1966171168
  %v1079 = vunpack.c.0.s8 %v1078
  %v1080 = vlaneseq
  %v1081 = vshrl.u32 %v1080, 7
  %v1082 = vsub.s32 %v1079, %v1081
  %v1083 = vrot.slane %v1069, %v1082
  %v1084 = vlaneseq
  %v1085 = vshrl.u32 %v1084, 7
  %v1086 = vsub.s32 0, %v1085
  %v1087 = vrot.slane %v1076, %v1086
  %v1088 = vlaneseq
  %v1089 = vshrl.u32 %v1088, 7
  %v1090 = vsub.s32 0, %v1089
  %v1091 = vrot.slane %v1083, %v1090
  %v1094 = vadd.f32 %v1087, %v34
  %v1095 = vadd.f32 %v1091, %v34
  %v1096 = vsel %vm260, %v1094, -inf
  %1097 = vmax.xlane.f32.xlu0 %v1096
  %v1098 = vpop.xlane.xlu0 %1097
  %v1099 = vsel %vm260, %v1095, -inf
  %1100 = vmax.xlane.f32.xlu0 %v1099
  %v1101 = vpop.xlane.xlu0 %1100
  %vm1102 = vcmp.ge.f32.partialorder %v1094, %v1098
  %vm1103 = vcmp.ge.f32.partialorder %v1095, %v1101
  %v1104 = vsel %vm1102, %v60, 8
  %v1105 = vsel %vm1103, %v60, 8
  %v1106 = vsel %vm260, %v1104, 2147483647
  %v1107 = vand.u32 %v1106, 65535
  %v1108 = vshra.s32 %v1106, 16
  %v1109 = vcvt.s32.f32 %v1107
  %v1110 = vcvt.s32.f32 %v1108
  %1111 = vmin.xlane.f32.xlu0 %v1110
  %v1112 = vpop.xlane.xlu0 %1111
  %vm1113 = vcmp.eq.f32.partialorder %v1110, %v1112
  %v1114 = vsel %vm1113, %v1109, inf
  %1115 = vmin.xlane.f32.xlu0 %v1114
  %v1116 = vpop.xlane.xlu0 %1115
  %v1117 = vcvt.f32.s32 %v1116
  %v1118 = vcvt.f32.s32 %v1112
  %v1119 = vshll.u32 %v1118, 16
  %v1120 = vadd.s32 %v1119, %v1117
  %v1121 = vsel %vm260, %v1105, 2147483647
  %v1122 = vand.u32 %v1121, 65535
  %v1123 = vshra.s32 %v1121, 16
  %v1124 = vcvt.s32.f32 %v1122
  %v1125 = vcvt.s32.f32 %v1123
  %1126 = vmin.xlane.f32.xlu0 %v1125
  %v1127 = vpop.xlane.xlu0 %1126
  %vm1128 = vcmp.eq.f32.partialorder %v1125, %v1127
  %v1129 = vsel %vm1128, %v1124, inf
  %1130 = vmin.xlane.f32.xlu0 %v1129
  %v1131 = vpop.xlane.xlu0 %1130
  %v1132 = vcvt.f32.s32 %v1131
  %v1133 = vcvt.f32.s32 %v1127
  %v1134 = vshll.u32 %v1133, 16
  %v1135 = vadd.s32 %v1134, %v1132
  %v1137 = vsel %vm62, %v55, 0
  %1139 = vmatprep.subr.mxu0 0.0
  %1140 = vmatpush1.msra.mxu0 %v29
  %1141 = vmatprep.subr.mxu0 0.0
  %1142 = vmatpush1.msra.mxu0 %v30
  %1143 = vmatprep.subr.mxu0 0.0
  %1144 = vmatpush1.msra.mxu0 %v31
  %1145 = vmatprep.subr.mxu0 0.0
  %1146 = vmatpush1.msra.mxu0 %v32
  %1147 = vmatprep.subr.mxu0 0.0
  %1148 = vmatpush1.msra.mxu0 0.0
  %1149 = vmatprep.subr.mxu0 0.0
  %1150 = vmatpush1.msra.mxu0 0.0
  %1151 = vmatprep.subr.mxu0 0.0
  %1152 = vmatpush1.msra.mxu0 0.0
  %1153 = vmatprep.subr.mxu0 0.0
  %1154 = vmatpush1.msra.mxu0 0.0
  %1155 = vmatprep.subr.mxu0 0.0
  %1156 = vmatpush1.msra.mxu0 0.0
  %1157 = vmatprep.subr.mxu0 0.0
  %1158 = vmatpush1.msra.mxu0 0.0
  %1159 = vmatprep.subr.mxu0 0.0
  %1160 = vmatpush1.msra.mxu0 0.0
  %1161 = vmatprep.subr.mxu0 0.0
  %1162 = vmatpush1.msra.mxu0 0.0
  %1163 = vmatprep.subr.mxu0 0.0
  %1164 = vmatpush1.msra.mxu0 0.0
  %1165 = vmatprep.subr.mxu0 0.0
  %1166 = vmatpush1.msra.mxu0 0.0
  %1167 = vmatprep.subr.mxu0 0.0
  %1168 = vmatpush1.msra.mxu0 0.0
  %1169 = vmatprep.subr.mxu0 0.0
  %1170 = vmatpush1.msra.mxu0 0.0
  %1171 = vmatprep.subr.mxu0 0.0
  %1172 = vmatpush1.msra.mxu0 0.0
  %1173 = vmatprep.subr.mxu0 0.0
  %1174 = vmatpush1.msra.mxu0 0.0
  %1175 = vmatprep.subr.mxu0 0.0
  %1176 = vmatpush1.msra.mxu0 0.0
  %1177 = vmatprep.subr.mxu0 0.0
  %1178 = vmatpush1.msra.mxu0 0.0
  %1179 = vmatprep.subr.mxu0 0.0
  %1180 = vmatpush1.msra.mxu0 0.0
  %1181 = vmatprep.subr.mxu0 0.0
  %1182 = vmatpush1.msra.mxu0 0.0
  %1183 = vmatprep.subr.mxu0 0.0
  %1184 = vmatpush1.msra.mxu0 0.0
  %1185 = vmatprep.subr.mxu0 0.0
  %1186 = vmatpush1.msra.mxu0 0.0
  %1187 = vmatprep.subr.mxu0 0.0
  %1188 = vmatpush1.msra.mxu0 0.0
  %1189 = vmatprep.subr.mxu0 0.0
  %1190 = vmatpush1.msra.mxu0 0.0
  %1191 = vmatprep.subr.mxu0 0.0
  %1192 = vmatpush1.msra.mxu0 0.0
  %1193 = vmatprep.subr.mxu0 0.0
  %1194 = vmatpush1.msra.mxu0 0.0
  %1195 = vmatprep.subr.mxu0 0.0
  %1196 = vmatpush1.msra.mxu0 0.0
  %1197 = vmatprep.subr.mxu0 0.0
  %1198 = vmatpush1.msra.mxu0 0.0
  %1199 = vmatprep.subr.mxu0 0.0
  %1200 = vmatpush1.msra.mxu0 0.0
  %1201 = vmatprep.subr.mxu0 0.0
  %1202 = vmatpush1.msra.mxu0 0.0
  %1203 = vmatprep.mubr.f32.mxu0 0.0
  %1204 = vmatmul.mubr.f32.gmra.mrb[0].mxu0 %v1137
  %v1205 = vpop.f32.mrb[0].mxu0
  %v1206 = vadd.f32 0.0, %v1205
  %v1207 = vpop.f32.mrb[0].mxu0
  %1208 = vdwg.mxu0
  %v1210 = vsel %vm62, %v46, 0
  %1212 = vmatprep.subr.mxu0 0.0
  %1213 = vmatpush1.msra.mxu0 %v25
  %1214 = vmatprep.subr.mxu0 0.0
  %1215 = vmatpush1.msra.mxu0 %v26
  %1216 = vmatprep.subr.mxu0 0.0
  %1217 = vmatpush1.msra.mxu0 %v27
  %1218 = vmatprep.subr.mxu0 0.0
  %1219 = vmatpush1.msra.mxu0 %v28
  %1220 = vmatprep.subr.mxu0 0.0
  %1221 = vmatpush1.msra.mxu0 0.0
  %1222 = vmatprep.subr.mxu0 0.0
  %1223 = vmatpush1.msra.mxu0 0.0
  %1224 = vmatprep.subr.mxu0 0.0
  %1225 = vmatpush1.msra.mxu0 0.0
  %1226 = vmatprep.subr.mxu0 0.0
  %1227 = vmatpush1.msra.mxu0 0.0
  %1228 = vmatprep.subr.mxu0 0.0
  %1229 = vmatpush1.msra.mxu0 0.0
  %1230 = vmatprep.subr.mxu0 0.0
  %1231 = vmatpush1.msra.mxu0 0.0
  %1232 = vmatprep.subr.mxu0 0.0
  %1233 = vmatpush1.msra.mxu0 0.0
  %1234 = vmatprep.subr.mxu0 0.0
  %1235 = vmatpush1.msra.mxu0 0.0
  %1236 = vmatprep.subr.mxu0 0.0
  %1237 = vmatpush1.msra.mxu0 0.0
  %1238 = vmatprep.subr.mxu0 0.0
  %1239 = vmatpush1.msra.mxu0 0.0
  %1240 = vmatprep.subr.mxu0 0.0
  %1241 = vmatpush1.msra.mxu0 0.0
  %1242 = vmatprep.subr.mxu0 0.0
  %1243 = vmatpush1.msra.mxu0 0.0
  %1244 = vmatprep.subr.mxu0 0.0
  %1245 = vmatpush1.msra.mxu0 0.0
  %1246 = vmatprep.subr.mxu0 0.0
  %1247 = vmatpush1.msra.mxu0 0.0
  %1248 = vmatprep.subr.mxu0 0.0
  %1249 = vmatpush1.msra.mxu0 0.0
  %1250 = vmatprep.subr.mxu0 0.0
  %1251 = vmatpush1.msra.mxu0 0.0
  %1252 = vmatprep.subr.mxu0 0.0
  %1253 = vmatpush1.msra.mxu0 0.0
  %1254 = vmatprep.subr.mxu0 0.0
  %1255 = vmatpush1.msra.mxu0 0.0
  %1256 = vmatprep.subr.mxu0 0.0
  %1257 = vmatpush1.msra.mxu0 0.0
  %1258 = vmatprep.subr.mxu0 0.0
  %1259 = vmatpush1.msra.mxu0 0.0
  %1260 = vmatprep.subr.mxu0 0.0
  %1261 = vmatpush1.msra.mxu0 0.0
  %1262 = vmatprep.subr.mxu0 0.0
  %1263 = vmatpush1.msra.mxu0 0.0
  %1264 = vmatprep.subr.mxu0 0.0
  %1265 = vmatpush1.msra.mxu0 0.0
  %1266 = vmatprep.subr.mxu0 0.0
  %1267 = vmatpush1.msra.mxu0 0.0
  %1268 = vmatprep.subr.mxu0 0.0
  %1269 = vmatpush1.msra.mxu0 0.0
  %1270 = vmatprep.subr.mxu0 0.0
  %1271 = vmatpush1.msra.mxu0 0.0
  %1272 = vmatprep.subr.mxu0 0.0
  %1273 = vmatpush1.msra.mxu0 0.0
  %1274 = vmatprep.subr.mxu0 0.0
  %1275 = vmatpush1.msra.mxu0 0.0
  %1276 = vmatprep.mubr.f32.mxu0 0.0
  %1277 = vmatmul.mubr.f32.gmra.mrb[0].mxu0 %v1210
  %v1278 = vpop.f32.mrb[0].mxu0
  %v1279 = vadd.f32 %v1206, %v1278
  %v1280 = vpop.f32.mrb[0].mxu0
  %1281 = vdwg.mxu0
  %v1282 = vadd.f32 %v1279, %v213
  %v1284 = vlaneseq
  %v1285 = vshrl.u32 %v1284, 7
  %v1286 = vsub.s32 0, %v1285
  %v1287 = vrot.slane %v1282, %v1286
  %1289 = vbcast.lane.b32.xlu0 %v1287, 256
  %v1290 = vpop.permute.xlu0 %1289
  %v1291 = vlaneseq
  %v1292 = vshrl.u32 %v1291, 7
  %v1293 = vsub.s32 1, %v1292
  %v1294 = vrot.slane %v1282, %v1293
  %1296 = vbcast.lane.b32.xlu0 %v1294, 256
  %v1297 = vpop.permute.xlu0 %1296
  %v1300 = vadd.f32 %v1098, %v1290
  %v1301 = vadd.f32 %v1101, %v1297
  %vm1302 = vcmp.gt.f32.partialorder %v38, 0.5
  %v1303 = vsel %vm1302, 1, 0
  %1304 = vset.pattern.permute.xlu0 0
  %1305 = vperm.xlu0 %1304, %v1303
  %v1306 = vpop.permute.xlu0 %1305
  %vm1307 = vcmp.eq.s32.totalorder %v1306, 1
  %1310 = vset.pattern.permute.xlu0 0
  %1311 = vperm.xlu0 %1310, %v1300
  %v1312 = vpop.permute.xlu0 %1311
  %1313 = vset.pattern.permute.xlu0 0
  %1314 = vperm.xlu0 %1313, %v1301
  %v1315 = vpop.permute.xlu0 %1314
  %v1316 = vlaneseq
  %v1317 = vshrl.u32 %v1316, 7
  %v1318 = vsub.s32 %v60, %v1317
  %v1319 = vrot.slane %v1312, %v1318
  %v1320 = vlaneseq
  %v1321 = vshrl.u32 %v1320, 7
  %v1322 = vsub.s32 %v60, %v1321
  %v1323 = vrot.slane %v1315, %v1322
  %v1324 = vsel %vm489, %v1323, %v1319
  %v1326 = vsel %vm1307, %v1324, %v1048
  %v1327 = vlaneseq
  %v1328 = vshrl.u32 %v1327, 7
  %v1329 = vsub.s32 %v60, %v1328
  %v1330 = vrot.slane %v1120, %v1329
  %v1331 = vlaneseq
  %v1332 = vshrl.u32 %v1331, 7
  %v1333 = vsub.s32 %v60, %v1332
  %v1334 = vrot.slane %v1135, %v1333
  %v1335 = vsel %vm489, %v1334, %v1330
  %v1336 = vsel %vm1307, %v1335, %v60
  %s1337 = scalar_lea.vmem %s6, 8
  %1338 = vst.msk [vmem:[%s1337] sm:$0x3] %vm223, %v1336
  %v1341 = vunpack.c.l.s4 1966171168
  %v1342 = vunpack.c.0.s8 %v1341
  %v1343 = vlaneseq
  %v1344 = vshrl.u32 %v1343, 7
  %v1345 = vsub.s32 %v1342, %v1344
  %v1346 = vrot.slane %v1326, %v1345
  %v1347 = vcombine.high %v1346, %v1346
  %v1349 = vunpack.c.l.s4 1966171168
  %v1350 = vunpack.c.0.s8 %v1349
  %v1351 = vlaneseq
  %v1352 = vshrl.u32 %v1351, 7
  %v1353 = vsub.s32 %v1350, %v1352
  %v1354 = vrot.slane %v1346, %v1353
  %v1356 = vunpack.c.l.s4 1966171168
  %v1357 = vunpack.c.0.s8 %v1356
  %v1358 = vlaneseq
  %v1359 = vshrl.u32 %v1358, 7
  %v1360 = vsub.s32 %v1357, %v1359
  %v1361 = vrot.slane %v1347, %v1360
  %v1362 = vlaneseq
  %v1363 = vshrl.u32 %v1362, 7
  %v1364 = vsub.s32 0, %v1363
  %v1365 = vrot.slane %v1354, %v1364
  %v1366 = vlaneseq
  %v1367 = vshrl.u32 %v1366, 7
  %v1368 = vsub.s32 0, %v1367
  %v1369 = vrot.slane %v1361, %v1368
  %v1372 = vadd.f32 %v1365, %v34
  %v1373 = vadd.f32 %v1369, %v34
  %v1374 = vsel %vm260, %v1372, -inf
  %1375 = vmax.xlane.f32.xlu0 %v1374
  %v1376 = vpop.xlane.xlu0 %1375
  %v1377 = vsel %vm260, %v1373, -inf
  %1378 = vmax.xlane.f32.xlu0 %v1377
  %v1379 = vpop.xlane.xlu0 %1378
  %vm1380 = vcmp.ge.f32.partialorder %v1372, %v1376
  %vm1381 = vcmp.ge.f32.partialorder %v1373, %v1379
  %v1382 = vsel %vm1380, %v60, 8
  %v1383 = vsel %vm1381, %v60, 8
  %v1384 = vsel %vm260, %v1382, 2147483647
  %v1385 = vand.u32 %v1384, 65535
  %v1386 = vshra.s32 %v1384, 16
  %v1387 = vcvt.s32.f32 %v1385
  %v1388 = vcvt.s32.f32 %v1386
  %1389 = vmin.xlane.f32.xlu0 %v1388
  %v1390 = vpop.xlane.xlu0 %1389
  %vm1391 = vcmp.eq.f32.partialorder %v1388, %v1390
  %v1392 = vsel %vm1391, %v1387, inf
  %1393 = vmin.xlane.f32.xlu0 %v1392
  %v1394 = vpop.xlane.xlu0 %1393
  %v1395 = vcvt.f32.s32 %v1394
  %v1396 = vcvt.f32.s32 %v1390
  %v1397 = vshll.u32 %v1396, 16
  %v1398 = vadd.s32 %v1397, %v1395
  %v1399 = vsel %vm260, %v1383, 2147483647
  %v1400 = vand.u32 %v1399, 65535
  %v1401 = vshra.s32 %v1399, 16
  %v1402 = vcvt.s32.f32 %v1400
  %v1403 = vcvt.s32.f32 %v1401
  %1404 = vmin.xlane.f32.xlu0 %v1403
  %v1405 = vpop.xlane.xlu0 %1404
  %vm1406 = vcmp.eq.f32.partialorder %v1403, %v1405
  %v1407 = vsel %vm1406, %v1402, inf
  %1408 = vmin.xlane.f32.xlu0 %v1407
  %v1409 = vpop.xlane.xlu0 %1408
  %v1410 = vcvt.f32.s32 %v1409
  %v1411 = vcvt.f32.s32 %v1405
  %v1412 = vshll.u32 %v1411, 16
  %v1413 = vadd.s32 %v1412, %v1410
  %v1415 = vsel %vm62, %v56, 0
  %1417 = vmatprep.subr.mxu0 0.0
  %1418 = vmatpush1.msra.mxu0 %v29
  %1419 = vmatprep.subr.mxu0 0.0
  %1420 = vmatpush1.msra.mxu0 %v30
  %1421 = vmatprep.subr.mxu0 0.0
  %1422 = vmatpush1.msra.mxu0 %v31
  %1423 = vmatprep.subr.mxu0 0.0
  %1424 = vmatpush1.msra.mxu0 %v32
  %1425 = vmatprep.subr.mxu0 0.0
  %1426 = vmatpush1.msra.mxu0 0.0
  %1427 = vmatprep.subr.mxu0 0.0
  %1428 = vmatpush1.msra.mxu0 0.0
  %1429 = vmatprep.subr.mxu0 0.0
  %1430 = vmatpush1.msra.mxu0 0.0
  %1431 = vmatprep.subr.mxu0 0.0
  %1432 = vmatpush1.msra.mxu0 0.0
  %1433 = vmatprep.subr.mxu0 0.0
  %1434 = vmatpush1.msra.mxu0 0.0
  %1435 = vmatprep.subr.mxu0 0.0
  %1436 = vmatpush1.msra.mxu0 0.0
  %1437 = vmatprep.subr.mxu0 0.0
  %1438 = vmatpush1.msra.mxu0 0.0
  %1439 = vmatprep.subr.mxu0 0.0
  %1440 = vmatpush1.msra.mxu0 0.0
  %1441 = vmatprep.subr.mxu0 0.0
  %1442 = vmatpush1.msra.mxu0 0.0
  %1443 = vmatprep.subr.mxu0 0.0
  %1444 = vmatpush1.msra.mxu0 0.0
  %1445 = vmatprep.subr.mxu0 0.0
  %1446 = vmatpush1.msra.mxu0 0.0
  %1447 = vmatprep.subr.mxu0 0.0
  %1448 = vmatpush1.msra.mxu0 0.0
  %1449 = vmatprep.subr.mxu0 0.0
  %1450 = vmatpush1.msra.mxu0 0.0
  %1451 = vmatprep.subr.mxu0 0.0
  %1452 = vmatpush1.msra.mxu0 0.0
  %1453 = vmatprep.subr.mxu0 0.0
  %1454 = vmatpush1.msra.mxu0 0.0
  %1455 = vmatprep.subr.mxu0 0.0
  %1456 = vmatpush1.msra.mxu0 0.0
  %1457 = vmatprep.subr.mxu0 0.0
  %1458 = vmatpush1.msra.mxu0 0.0
  %1459 = vmatprep.subr.mxu0 0.0
  %1460 = vmatpush1.msra.mxu0 0.0
  %1461 = vmatprep.subr.mxu0 0.0
  %1462 = vmatpush1.msra.mxu0 0.0
  %1463 = vmatprep.subr.mxu0 0.0
  %1464 = vmatpush1.msra.mxu0 0.0
  %1465 = vmatprep.subr.mxu0 0.0
  %1466 = vmatpush1.msra.mxu0 0.0
  %1467 = vmatprep.subr.mxu0 0.0
  %1468 = vmatpush1.msra.mxu0 0.0
  %1469 = vmatprep.subr.mxu0 0.0
  %1470 = vmatpush1.msra.mxu0 0.0
  %1471 = vmatprep.subr.mxu0 0.0
  %1472 = vmatpush1.msra.mxu0 0.0
  %1473 = vmatprep.subr.mxu0 0.0
  %1474 = vmatpush1.msra.mxu0 0.0
  %1475 = vmatprep.subr.mxu0 0.0
  %1476 = vmatpush1.msra.mxu0 0.0
  %1477 = vmatprep.subr.mxu0 0.0
  %1478 = vmatpush1.msra.mxu0 0.0
  %1479 = vmatprep.subr.mxu0 0.0
  %1480 = vmatpush1.msra.mxu0 0.0
  %1481 = vmatprep.mubr.f32.mxu0 0.0
  %1482 = vmatmul.mubr.f32.gmra.mrb[0].mxu0 %v1415
  %v1483 = vpop.f32.mrb[0].mxu0
  %v1484 = vadd.f32 0.0, %v1483
  %v1485 = vpop.f32.mrb[0].mxu0
  %1486 = vdwg.mxu0
  %v1488 = vsel %vm62, %v47, 0
  %1490 = vmatprep.subr.mxu0 0.0
  %1491 = vmatpush1.msra.mxu0 %v25
  %1492 = vmatprep.subr.mxu0 0.0
  %1493 = vmatpush1.msra.mxu0 %v26
  %1494 = vmatprep.subr.mxu0 0.0
  %1495 = vmatpush1.msra.mxu0 %v27
  %1496 = vmatprep.subr.mxu0 0.0
  %1497 = vmatpush1.msra.mxu0 %v28
  %1498 = vmatprep.subr.mxu0 0.0
  %1499 = vmatpush1.msra.mxu0 0.0
  %1500 = vmatprep.subr.mxu0 0.0
  %1501 = vmatpush1.msra.mxu0 0.0
  %1502 = vmatprep.subr.mxu0 0.0
  %1503 = vmatpush1.msra.mxu0 0.0
  %1504 = vmatprep.subr.mxu0 0.0
  %1505 = vmatpush1.msra.mxu0 0.0
  %1506 = vmatprep.subr.mxu0 0.0
  %1507 = vmatpush1.msra.mxu0 0.0
  %1508 = vmatprep.subr.mxu0 0.0
  %1509 = vmatpush1.msra.mxu0 0.0
  %1510 = vmatprep.subr.mxu0 0.0
  %1511 = vmatpush1.msra.mxu0 0.0
  %1512 = vmatprep.subr.mxu0 0.0
  %1513 = vmatpush1.msra.mxu0 0.0
  %1514 = vmatprep.subr.mxu0 0.0
  %1515 = vmatpush1.msra.mxu0 0.0
  %1516 = vmatprep.subr.mxu0 0.0
  %1517 = vmatpush1.msra.mxu0 0.0
  %1518 = vmatprep.subr.mxu0 0.0
  %1519 = vmatpush1.msra.mxu0 0.0
  %1520 = vmatprep.subr.mxu0 0.0
  %1521 = vmatpush1.msra.mxu0 0.0
  %1522 = vmatprep.subr.mxu0 0.0
  %1523 = vmatpush1.msra.mxu0 0.0
  %1524 = vmatprep.subr.mxu0 0.0
  %1525 = vmatpush1.msra.mxu0 0.0
  %1526 = vmatprep.subr.mxu0 0.0
  %1527 = vmatpush1.msra.mxu0 0.0
  %1528 = vmatprep.subr.mxu0 0.0
  %1529 = vmatpush1.msra.mxu0 0.0
  %1530 = vmatprep.subr.mxu0 0.0
  %1531 = vmatpush1.msra.mxu0 0.0
  %1532 = vmatprep.subr.mxu0 0.0
  %1533 = vmatpush1.msra.mxu0 0.0
  %1534 = vmatprep.subr.mxu0 0.0
  %1535 = vmatpush1.msra.mxu0 0.0
  %1536 = vmatprep.subr.mxu0 0.0
  %1537 = vmatpush1.msra.mxu0 0.0
  %1538 = vmatprep.subr.mxu0 0.0
  %1539 = vmatpush1.msra.mxu0 0.0
  %1540 = vmatprep.subr.mxu0 0.0
  %1541 = vmatpush1.msra.mxu0 0.0
  %1542 = vmatprep.subr.mxu0 0.0
  %1543 = vmatpush1.msra.mxu0 0.0
  %1544 = vmatprep.subr.mxu0 0.0
  %1545 = vmatpush1.msra.mxu0 0.0
  %1546 = vmatprep.subr.mxu0 0.0
  %1547 = vmatpush1.msra.mxu0 0.0
  %1548 = vmatprep.subr.mxu0 0.0
  %1549 = vmatpush1.msra.mxu0 0.0
  %1550 = vmatprep.subr.mxu0 0.0
  %1551 = vmatpush1.msra.mxu0 0.0
  %1552 = vmatprep.subr.mxu0 0.0
  %1553 = vmatpush1.msra.mxu0 0.0
  %1554 = vmatprep.mubr.f32.mxu0 0.0
  %1555 = vmatmul.mubr.f32.gmra.mrb[0].mxu0 %v1488
  %v1556 = vpop.f32.mrb[0].mxu0
  %v1557 = vadd.f32 %v1484, %v1556
  %v1558 = vpop.f32.mrb[0].mxu0
  %1559 = vdwg.mxu0
  %v1560 = vadd.f32 %v1557, %v213
  %v1562 = vlaneseq
  %v1563 = vshrl.u32 %v1562, 7
  %v1564 = vsub.s32 0, %v1563
  %v1565 = vrot.slane %v1560, %v1564
  %1567 = vbcast.lane.b32.xlu0 %v1565, 256
  %v1568 = vpop.permute.xlu0 %1567
  %v1569 = vlaneseq
  %v1570 = vshrl.u32 %v1569, 7
  %v1571 = vsub.s32 1, %v1570
  %v1572 = vrot.slane %v1560, %v1571
  %1574 = vbcast.lane.b32.xlu0 %v1572, 256
  %v1575 = vpop.permute.xlu0 %1574
  %v1578 = vadd.f32 %v1376, %v1568
  %v1579 = vadd.f32 %v1379, %v1575
  %vm1580 = vcmp.gt.f32.partialorder %v39, 0.5
  %v1581 = vsel %vm1580, 1, 0
  %1582 = vset.pattern.permute.xlu0 0
  %1583 = vperm.xlu0 %1582, %v1581
  %v1584 = vpop.permute.xlu0 %1583
  %vm1585 = vcmp.eq.s32.totalorder %v1584, 1
  %1588 = vset.pattern.permute.xlu0 0
  %1589 = vperm.xlu0 %1588, %v1578
  %v1590 = vpop.permute.xlu0 %1589
  %1591 = vset.pattern.permute.xlu0 0
  %1592 = vperm.xlu0 %1591, %v1579
  %v1593 = vpop.permute.xlu0 %1592
  %v1594 = vlaneseq
  %v1595 = vshrl.u32 %v1594, 7
  %v1596 = vsub.s32 %v60, %v1595
  %v1597 = vrot.slane %v1590, %v1596
  %v1598 = vlaneseq
  %v1599 = vshrl.u32 %v1598, 7
  %v1600 = vsub.s32 %v60, %v1599
  %v1601 = vrot.slane %v1593, %v1600
  %v1602 = vsel %vm489, %v1601, %v1597
  %v1604 = vsel %vm1585, %v1602, %v1326
  %v1605 = vlaneseq
  %v1606 = vshrl.u32 %v1605, 7
  %v1607 = vsub.s32 %v60, %v1606
  %v1608 = vrot.slane %v1398, %v1607
  %v1609 = vlaneseq
  %v1610 = vshrl.u32 %v1609, 7
  %v1611 = vsub.s32 %v60, %v1610
  %v1612 = vrot.slane %v1413, %v1611
  %v1613 = vsel %vm489, %v1612, %v1608
  %v1614 = vsel %vm1585, %v1613, %v60
  %s1615 = scalar_lea.vmem %s6, 10
  %1616 = vst.msk [vmem:[%s1615] sm:$0x3] %vm223, %v1614
  %v1619 = vunpack.c.l.s4 1966171168
  %v1620 = vunpack.c.0.s8 %v1619
  %v1621 = vlaneseq
  %v1622 = vshrl.u32 %v1621, 7
  %v1623 = vsub.s32 %v1620, %v1622
  %v1624 = vrot.slane %v1604, %v1623
  %v1625 = vcombine.high %v1624, %v1624
  %v1627 = vunpack.c.l.s4 1966171168
  %v1628 = vunpack.c.0.s8 %v1627
  %v1629 = vlaneseq
  %v1630 = vshrl.u32 %v1629, 7
  %v1631 = vsub.s32 %v1628, %v1630
  %v1632 = vrot.slane %v1624, %v1631
  %v1634 = vunpack.c.l.s4 1966171168
  %v1635 = vunpack.c.0.s8 %v1634
  %v1636 = vlaneseq
  %v1637 = vshrl.u32 %v1636, 7
  %v1638 = vsub.s32 %v1635, %v1637
  %v1639 = vrot.slane %v1625, %v1638
  %v1640 = vlaneseq
  %v1641 = vshrl.u32 %v1640, 7
  %v1642 = vsub.s32 0, %v1641
  %v1643 = vrot.slane %v1632, %v1642
  %v1644 = vlaneseq
  %v1645 = vshrl.u32 %v1644, 7
  %v1646 = vsub.s32 0, %v1645
  %v1647 = vrot.slane %v1639, %v1646
  %v1650 = vadd.f32 %v1643, %v34
  %v1651 = vadd.f32 %v1647, %v34
  %v1652 = vsel %vm260, %v1650, -inf
  %1653 = vmax.xlane.f32.xlu0 %v1652
  %v1654 = vpop.xlane.xlu0 %1653
  %v1655 = vsel %vm260, %v1651, -inf
  %1656 = vmax.xlane.f32.xlu0 %v1655
  %v1657 = vpop.xlane.xlu0 %1656
  %vm1658 = vcmp.ge.f32.partialorder %v1650, %v1654
  %vm1659 = vcmp.ge.f32.partialorder %v1651, %v1657
  %v1660 = vsel %vm1658, %v60, 8
  %v1661 = vsel %vm1659, %v60, 8
  %v1662 = vsel %vm260, %v1660, 2147483647
  %v1663 = vand.u32 %v1662, 65535
  %v1664 = vshra.s32 %v1662, 16
  %v1665 = vcvt.s32.f32 %v1663
  %v1666 = vcvt.s32.f32 %v1664
  %1667 = vmin.xlane.f32.xlu0 %v1666
  %v1668 = vpop.xlane.xlu0 %1667
  %vm1669 = vcmp.eq.f32.partialorder %v1666, %v1668
  %v1670 = vsel %vm1669, %v1665, inf
  %1671 = vmin.xlane.f32.xlu0 %v1670
  %v1672 = vpop.xlane.xlu0 %1671
  %v1673 = vcvt.f32.s32 %v1672
  %v1674 = vcvt.f32.s32 %v1668
  %v1675 = vshll.u32 %v1674, 16
  %v1676 = vadd.s32 %v1675, %v1673
  %v1677 = vsel %vm260, %v1661, 2147483647
  %v1678 = vand.u32 %v1677, 65535
  %v1679 = vshra.s32 %v1677, 16
  %v1680 = vcvt.s32.f32 %v1678
  %v1681 = vcvt.s32.f32 %v1679
  %1682 = vmin.xlane.f32.xlu0 %v1681
  %v1683 = vpop.xlane.xlu0 %1682
  %vm1684 = vcmp.eq.f32.partialorder %v1681, %v1683
  %v1685 = vsel %vm1684, %v1680, inf
  %1686 = vmin.xlane.f32.xlu0 %v1685
  %v1687 = vpop.xlane.xlu0 %1686
  %v1688 = vcvt.f32.s32 %v1687
  %v1689 = vcvt.f32.s32 %v1683
  %v1690 = vshll.u32 %v1689, 16
  %v1691 = vadd.s32 %v1690, %v1688
  %v1693 = vsel %vm62, %v57, 0
  %1695 = vmatprep.subr.mxu0 0.0
  %1696 = vmatpush1.msra.mxu0 %v29
  %1697 = vmatprep.subr.mxu0 0.0
  %1698 = vmatpush1.msra.mxu0 %v30
  %1699 = vmatprep.subr.mxu0 0.0
  %1700 = vmatpush1.msra.mxu0 %v31
  %1701 = vmatprep.subr.mxu0 0.0
  %1702 = vmatpush1.msra.mxu0 %v32
  %1703 = vmatprep.subr.mxu0 0.0
  %1704 = vmatpush1.msra.mxu0 0.0
  %1705 = vmatprep.subr.mxu0 0.0
  %1706 = vmatpush1.msra.mxu0 0.0
  %1707 = vmatprep.subr.mxu0 0.0
  %1708 = vmatpush1.msra.mxu0 0.0
  %1709 = vmatprep.subr.mxu0 0.0
  %1710 = vmatpush1.msra.mxu0 0.0
  %1711 = vmatprep.subr.mxu0 0.0
  %1712 = vmatpush1.msra.mxu0 0.0
  %1713 = vmatprep.subr.mxu0 0.0
  %1714 = vmatpush1.msra.mxu0 0.0
  %1715 = vmatprep.subr.mxu0 0.0
  %1716 = vmatpush1.msra.mxu0 0.0
  %1717 = vmatprep.subr.mxu0 0.0
  %1718 = vmatpush1.msra.mxu0 0.0
  %1719 = vmatprep.subr.mxu0 0.0
  %1720 = vmatpush1.msra.mxu0 0.0
  %1721 = vmatprep.subr.mxu0 0.0
  %1722 = vmatpush1.msra.mxu0 0.0
  %1723 = vmatprep.subr.mxu0 0.0
  %1724 = vmatpush1.msra.mxu0 0.0
  %1725 = vmatprep.subr.mxu0 0.0
  %1726 = vmatpush1.msra.mxu0 0.0
  %1727 = vmatprep.subr.mxu0 0.0
  %1728 = vmatpush1.msra.mxu0 0.0
  %1729 = vmatprep.subr.mxu0 0.0
  %1730 = vmatpush1.msra.mxu0 0.0
  %1731 = vmatprep.subr.mxu0 0.0
  %1732 = vmatpush1.msra.mxu0 0.0
  %1733 = vmatprep.subr.mxu0 0.0
  %1734 = vmatpush1.msra.mxu0 0.0
  %1735 = vmatprep.subr.mxu0 0.0
  %1736 = vmatpush1.msra.mxu0 0.0
  %1737 = vmatprep.subr.mxu0 0.0
  %1738 = vmatpush1.msra.mxu0 0.0
  %1739 = vmatprep.subr.mxu0 0.0
  %1740 = vmatpush1.msra.mxu0 0.0
  %1741 = vmatprep.subr.mxu0 0.0
  %1742 = vmatpush1.msra.mxu0 0.0
  %1743 = vmatprep.subr.mxu0 0.0
  %1744 = vmatpush1.msra.mxu0 0.0
  %1745 = vmatprep.subr.mxu0 0.0
  %1746 = vmatpush1.msra.mxu0 0.0
  %1747 = vmatprep.subr.mxu0 0.0
  %1748 = vmatpush1.msra.mxu0 0.0
  %1749 = vmatprep.subr.mxu0 0.0
  %1750 = vmatpush1.msra.mxu0 0.0
  %1751 = vmatprep.subr.mxu0 0.0
  %1752 = vmatpush1.msra.mxu0 0.0
  %1753 = vmatprep.subr.mxu0 0.0
  %1754 = vmatpush1.msra.mxu0 0.0
  %1755 = vmatprep.subr.mxu0 0.0
  %1756 = vmatpush1.msra.mxu0 0.0
  %1757 = vmatprep.subr.mxu0 0.0
  %1758 = vmatpush1.msra.mxu0 0.0
  %1759 = vmatprep.mubr.f32.mxu0 0.0
  %1760 = vmatmul.mubr.f32.gmra.mrb[0].mxu0 %v1693
  %v1761 = vpop.f32.mrb[0].mxu0
  %v1762 = vadd.f32 0.0, %v1761
  %v1763 = vpop.f32.mrb[0].mxu0
  %1764 = vdwg.mxu0
  %v1766 = vsel %vm62, %v48, 0
  %1768 = vmatprep.subr.mxu0 0.0
  %1769 = vmatpush1.msra.mxu0 %v25
  %1770 = vmatprep.subr.mxu0 0.0
  %1771 = vmatpush1.msra.mxu0 %v26
  %1772 = vmatprep.subr.mxu0 0.0
  %1773 = vmatpush1.msra.mxu0 %v27
  %1774 = vmatprep.subr.mxu0 0.0
  %1775 = vmatpush1.msra.mxu0 %v28
  %1776 = vmatprep.subr.mxu0 0.0
  %1777 = vmatpush1.msra.mxu0 0.0
  %1778 = vmatprep.subr.mxu0 0.0
  %1779 = vmatpush1.msra.mxu0 0.0
  %1780 = vmatprep.subr.mxu0 0.0
  %1781 = vmatpush1.msra.mxu0 0.0
  %1782 = vmatprep.subr.mxu0 0.0
  %1783 = vmatpush1.msra.mxu0 0.0
  %1784 = vmatprep.subr.mxu0 0.0
  %1785 = vmatpush1.msra.mxu0 0.0
  %1786 = vmatprep.subr.mxu0 0.0
  %1787 = vmatpush1.msra.mxu0 0.0
  %1788 = vmatprep.subr.mxu0 0.0
  %1789 = vmatpush1.msra.mxu0 0.0
  %1790 = vmatprep.subr.mxu0 0.0
  %1791 = vmatpush1.msra.mxu0 0.0
  %1792 = vmatprep.subr.mxu0 0.0
  %1793 = vmatpush1.msra.mxu0 0.0
  %1794 = vmatprep.subr.mxu0 0.0
  %1795 = vmatpush1.msra.mxu0 0.0
  %1796 = vmatprep.subr.mxu0 0.0
  %1797 = vmatpush1.msra.mxu0 0.0
  %1798 = vmatprep.subr.mxu0 0.0
  %1799 = vmatpush1.msra.mxu0 0.0
  %1800 = vmatprep.subr.mxu0 0.0
  %1801 = vmatpush1.msra.mxu0 0.0
  %1802 = vmatprep.subr.mxu0 0.0
  %1803 = vmatpush1.msra.mxu0 0.0
  %1804 = vmatprep.subr.mxu0 0.0
  %1805 = vmatpush1.msra.mxu0 0.0
  %1806 = vmatprep.subr.mxu0 0.0
  %1807 = vmatpush1.msra.mxu0 0.0
  %1808 = vmatprep.subr.mxu0 0.0
  %1809 = vmatpush1.msra.mxu0 0.0
  %1810 = vmatprep.subr.mxu0 0.0
  %1811 = vmatpush1.msra.mxu0 0.0
  %1812 = vmatprep.subr.mxu0 0.0
  %1813 = vmatpush1.msra.mxu0 0.0
  %1814 = vmatprep.subr.mxu0 0.0
  %1815 = vmatpush1.msra.mxu0 0.0
  %1816 = vmatprep.subr.mxu0 0.0
  %1817 = vmatpush1.msra.mxu0 0.0
  %1818 = vmatprep.subr.mxu0 0.0
  %1819 = vmatpush1.msra.mxu0 0.0
  %1820 = vmatprep.subr.mxu0 0.0
  %1821 = vmatpush1.msra.mxu0 0.0
  %1822 = vmatprep.subr.mxu0 0.0
  %1823 = vmatpush1.msra.mxu0 0.0
  %1824 = vmatprep.subr.mxu0 0.0
  %1825 = vmatpush1.msra.mxu0 0.0
  %1826 = vmatprep.subr.mxu0 0.0
  %1827 = vmatpush1.msra.mxu0 0.0
  %1828 = vmatprep.subr.mxu0 0.0
  %1829 = vmatpush1.msra.mxu0 0.0
  %1830 = vmatprep.subr.mxu0 0.0
  %1831 = vmatpush1.msra.mxu0 0.0
  %1832 = vmatprep.mubr.f32.mxu0 0.0
  %1833 = vmatmul.mubr.f32.gmra.mrb[0].mxu0 %v1766
  %v1834 = vpop.f32.mrb[0].mxu0
  %v1835 = vadd.f32 %v1762, %v1834
  %v1836 = vpop.f32.mrb[0].mxu0
  %1837 = vdwg.mxu0
  %v1838 = vadd.f32 %v1835, %v213
  %v1840 = vlaneseq
  %v1841 = vshrl.u32 %v1840, 7
  %v1842 = vsub.s32 0, %v1841
  %v1843 = vrot.slane %v1838, %v1842
  %1845 = vbcast.lane.b32.xlu0 %v1843, 256
  %v1846 = vpop.permute.xlu0 %1845
  %v1847 = vlaneseq
  %v1848 = vshrl.u32 %v1847, 7
  %v1849 = vsub.s32 1, %v1848
  %v1850 = vrot.slane %v1838, %v1849
  %1852 = vbcast.lane.b32.xlu0 %v1850, 256
  %v1853 = vpop.permute.xlu0 %1852
  %v1856 = vadd.f32 %v1654, %v1846
  %v1857 = vadd.f32 %v1657, %v1853
  %vm1858 = vcmp.gt.f32.partialorder %v40, 0.5
  %v1859 = vsel %vm1858, 1, 0
  %1860 = vset.pattern.permute.xlu0 0
  %1861 = vperm.xlu0 %1860, %v1859
  %v1862 = vpop.permute.xlu0 %1861
  %vm1863 = vcmp.eq.s32.totalorder %v1862, 1
  %1866 = vset.pattern.permute.xlu0 0
  %1867 = vperm.xlu0 %1866, %v1856
  %v1868 = vpop.permute.xlu0 %1867
  %1869 = vset.pattern.permute.xlu0 0
  %1870 = vperm.xlu0 %1869, %v1857
  %v1871 = vpop.permute.xlu0 %1870
  %v1872 = vlaneseq
  %v1873 = vshrl.u32 %v1872, 7
  %v1874 = vsub.s32 %v60, %v1873
  %v1875 = vrot.slane %v1868, %v1874
  %v1876 = vlaneseq
  %v1877 = vshrl.u32 %v1876, 7
  %v1878 = vsub.s32 %v60, %v1877
  %v1879 = vrot.slane %v1871, %v1878
  %v1880 = vsel %vm489, %v1879, %v1875
  %v1882 = vsel %vm1863, %v1880, %v1604
  %v1883 = vlaneseq
  %v1884 = vshrl.u32 %v1883, 7
  %v1885 = vsub.s32 %v60, %v1884
  %v1886 = vrot.slane %v1676, %v1885
  %v1887 = vlaneseq
  %v1888 = vshrl.u32 %v1887, 7
  %v1889 = vsub.s32 %v60, %v1888
  %v1890 = vrot.slane %v1691, %v1889
  %v1891 = vsel %vm489, %v1890, %v1886
  %v1892 = vsel %vm1863, %v1891, %v60
  %s1893 = scalar_lea.vmem %s6, 12
  %1894 = vst.msk [vmem:[%s1893] sm:$0x3] %vm223, %v1892
  %v1897 = vunpack.c.l.s4 1966171168
  %v1898 = vunpack.c.0.s8 %v1897
  %v1899 = vlaneseq
  %v1900 = vshrl.u32 %v1899, 7
  %v1901 = vsub.s32 %v1898, %v1900
  %v1902 = vrot.slane %v1882, %v1901
  %v1903 = vcombine.high %v1902, %v1902
  %v1905 = vunpack.c.l.s4 1966171168
  %v1906 = vunpack.c.0.s8 %v1905
  %v1907 = vlaneseq
  %v1908 = vshrl.u32 %v1907, 7
  %v1909 = vsub.s32 %v1906, %v1908
  %v1910 = vrot.slane %v1902, %v1909
  %v1912 = vunpack.c.l.s4 1966171168
  %v1913 = vunpack.c.0.s8 %v1912
  %v1914 = vlaneseq
  %v1915 = vshrl.u32 %v1914, 7
  %v1916 = vsub.s32 %v1913, %v1915
  %v1917 = vrot.slane %v1903, %v1916
  %v1918 = vlaneseq
  %v1919 = vshrl.u32 %v1918, 7
  %v1920 = vsub.s32 0, %v1919
  %v1921 = vrot.slane %v1910, %v1920
  %v1922 = vlaneseq
  %v1923 = vshrl.u32 %v1922, 7
  %v1924 = vsub.s32 0, %v1923
  %v1925 = vrot.slane %v1917, %v1924
  %v1928 = vadd.f32 %v1921, %v34
  %v1929 = vadd.f32 %v1925, %v34
  %v1930 = vsel %vm260, %v1928, -inf
  %1931 = vmax.xlane.f32.xlu0 %v1930
  %v1932 = vpop.xlane.xlu0 %1931
  %v1933 = vsel %vm260, %v1929, -inf
  %1934 = vmax.xlane.f32.xlu0 %v1933
  %v1935 = vpop.xlane.xlu0 %1934
  %vm1936 = vcmp.ge.f32.partialorder %v1928, %v1932
  %vm1937 = vcmp.ge.f32.partialorder %v1929, %v1935
  %v1938 = vsel %vm1936, %v60, 8
  %v1939 = vsel %vm1937, %v60, 8
  %v1940 = vsel %vm260, %v1938, 2147483647
  %v1941 = vand.u32 %v1940, 65535
  %v1942 = vshra.s32 %v1940, 16
  %v1943 = vcvt.s32.f32 %v1941
  %v1944 = vcvt.s32.f32 %v1942
  %1945 = vmin.xlane.f32.xlu0 %v1944
  %v1946 = vpop.xlane.xlu0 %1945
  %vm1947 = vcmp.eq.f32.partialorder %v1944, %v1946
  %v1948 = vsel %vm1947, %v1943, inf
  %1949 = vmin.xlane.f32.xlu0 %v1948
  %v1950 = vpop.xlane.xlu0 %1949
  %v1951 = vcvt.f32.s32 %v1950
  %v1952 = vcvt.f32.s32 %v1946
  %v1953 = vshll.u32 %v1952, 16
  %v1954 = vadd.s32 %v1953, %v1951
  %v1955 = vsel %vm260, %v1939, 2147483647
  %v1956 = vand.u32 %v1955, 65535
  %v1957 = vshra.s32 %v1955, 16
  %v1958 = vcvt.s32.f32 %v1956
  %v1959 = vcvt.s32.f32 %v1957
  %1960 = vmin.xlane.f32.xlu0 %v1959
  %v1961 = vpop.xlane.xlu0 %1960
  %vm1962 = vcmp.eq.f32.partialorder %v1959, %v1961
  %v1963 = vsel %vm1962, %v1958, inf
  %1964 = vmin.xlane.f32.xlu0 %v1963
  %v1965 = vpop.xlane.xlu0 %1964
  %v1966 = vcvt.f32.s32 %v1965
  %v1967 = vcvt.f32.s32 %v1961
  %v1968 = vshll.u32 %v1967, 16
  %v1969 = vadd.s32 %v1968, %v1966
  %v1971 = vsel %vm62, %v58, 0
  %1973 = vmatprep.subr.mxu0 0.0
  %1974 = vmatpush1.msra.mxu0 %v29
  %1975 = vmatprep.subr.mxu0 0.0
  %1976 = vmatpush1.msra.mxu0 %v30
  %1977 = vmatprep.subr.mxu0 0.0
  %1978 = vmatpush1.msra.mxu0 %v31
  %1979 = vmatprep.subr.mxu0 0.0
  %1980 = vmatpush1.msra.mxu0 %v32
  %1981 = vmatprep.subr.mxu0 0.0
  %1982 = vmatpush1.msra.mxu0 0.0
  %1983 = vmatprep.subr.mxu0 0.0
  %1984 = vmatpush1.msra.mxu0 0.0
  %1985 = vmatprep.subr.mxu0 0.0
  %1986 = vmatpush1.msra.mxu0 0.0
  %1987 = vmatprep.subr.mxu0 0.0
  %1988 = vmatpush1.msra.mxu0 0.0
  %1989 = vmatprep.subr.mxu0 0.0
  %1990 = vmatpush1.msra.mxu0 0.0
  %1991 = vmatprep.subr.mxu0 0.0
  %1992 = vmatpush1.msra.mxu0 0.0
  %1993 = vmatprep.subr.mxu0 0.0
  %1994 = vmatpush1.msra.mxu0 0.0
  %1995 = vmatprep.subr.mxu0 0.0
  %1996 = vmatpush1.msra.mxu0 0.0
  %1997 = vmatprep.subr.mxu0 0.0
  %1998 = vmatpush1.msra.mxu0 0.0
  %1999 = vmatprep.subr.mxu0 0.0
  %2000 = vmatpush1.msra.mxu0 0.0
  %2001 = vmatprep.subr.mxu0 0.0
  %2002 = vmatpush1.msra.mxu0 0.0
  %2003 = vmatprep.subr.mxu0 0.0
  %2004 = vmatpush1.msra.mxu0 0.0
  %2005 = vmatprep.subr.mxu0 0.0
  %2006 = vmatpush1.msra.mxu0 0.0
  %2007 = vmatprep.subr.mxu0 0.0
  %2008 = vmatpush1.msra.mxu0 0.0
  %2009 = vmatprep.subr.mxu0 0.0
  %2010 = vmatpush1.msra.mxu0 0.0
  %2011 = vmatprep.subr.mxu0 0.0
  %2012 = vmatpush1.msra.mxu0 0.0
  %2013 = vmatprep.subr.mxu0 0.0
  %2014 = vmatpush1.msra.mxu0 0.0
  %2015 = vmatprep.subr.mxu0 0.0
  %2016 = vmatpush1.msra.mxu0 0.0
  %2017 = vmatprep.subr.mxu0 0.0
  %2018 = vmatpush1.msra.mxu0 0.0
  %2019 = vmatprep.subr.mxu0 0.0
  %2020 = vmatpush1.msra.mxu0 0.0
  %2021 = vmatprep.subr.mxu0 0.0
  %2022 = vmatpush1.msra.mxu0 0.0
  %2023 = vmatprep.subr.mxu0 0.0
  %2024 = vmatpush1.msra.mxu0 0.0
  %2025 = vmatprep.subr.mxu0 0.0
  %2026 = vmatpush1.msra.mxu0 0.0
  %2027 = vmatprep.subr.mxu0 0.0
  %2028 = vmatpush1.msra.mxu0 0.0
  %2029 = vmatprep.subr.mxu0 0.0
  %2030 = vmatpush1.msra.mxu0 0.0
  %2031 = vmatprep.subr.mxu0 0.0
  %2032 = vmatpush1.msra.mxu0 0.0
  %2033 = vmatprep.subr.mxu0 0.0
  %2034 = vmatpush1.msra.mxu0 0.0
  %2035 = vmatprep.subr.mxu0 0.0
  %2036 = vmatpush1.msra.mxu0 0.0
  %2037 = vmatprep.mubr.f32.mxu0 0.0
  %2038 = vmatmul.mubr.f32.gmra.mrb[0].mxu0 %v1971
  %v2039 = vpop.f32.mrb[0].mxu0
  %v2040 = vadd.f32 0.0, %v2039
  %v2041 = vpop.f32.mrb[0].mxu0
  %2042 = vdwg.mxu0
  %v2044 = vsel %vm62, %v49, 0
  %2046 = vmatprep.subr.mxu0 0.0
  %2047 = vmatpush1.msra.mxu0 %v25
  %2048 = vmatprep.subr.mxu0 0.0
  %2049 = vmatpush1.msra.mxu0 %v26
  %2050 = vmatprep.subr.mxu0 0.0
  %2051 = vmatpush1.msra.mxu0 %v27
  %2052 = vmatprep.subr.mxu0 0.0
  %2053 = vmatpush1.msra.mxu0 %v28
  %2054 = vmatprep.subr.mxu0 0.0
  %2055 = vmatpush1.msra.mxu0 0.0
  %2056 = vmatprep.subr.mxu0 0.0
  %2057 = vmatpush1.msra.mxu0 0.0
  %2058 = vmatprep.subr.mxu0 0.0
  %2059 = vmatpush1.msra.mxu0 0.0
  %2060 = vmatprep.subr.mxu0 0.0
  %2061 = vmatpush1.msra.mxu0 0.0
  %2062 = vmatprep.subr.mxu0 0.0
  %2063 = vmatpush1.msra.mxu0 0.0
  %2064 = vmatprep.subr.mxu0 0.0
  %2065 = vmatpush1.msra.mxu0 0.0
  %2066 = vmatprep.subr.mxu0 0.0
  %2067 = vmatpush1.msra.mxu0 0.0
  %2068 = vmatprep.subr.mxu0 0.0
  %2069 = vmatpush1.msra.mxu0 0.0
  %2070 = vmatprep.subr.mxu0 0.0
  %2071 = vmatpush1.msra.mxu0 0.0
  %2072 = vmatprep.subr.mxu0 0.0
  %2073 = vmatpush1.msra.mxu0 0.0
  %2074 = vmatprep.subr.mxu0 0.0
  %2075 = vmatpush1.msra.mxu0 0.0
  %2076 = vmatprep.subr.mxu0 0.0
  %2077 = vmatpush1.msra.mxu0 0.0
  %2078 = vmatprep.subr.mxu0 0.0
  %2079 = vmatpush1.msra.mxu0 0.0
  %2080 = vmatprep.subr.mxu0 0.0
  %2081 = vmatpush1.msra.mxu0 0.0
  %2082 = vmatprep.subr.mxu0 0.0
  %2083 = vmatpush1.msra.mxu0 0.0
  %2084 = vmatprep.subr.mxu0 0.0
  %2085 = vmatpush1.msra.mxu0 0.0
  %2086 = vmatprep.subr.mxu0 0.0
  %2087 = vmatpush1.msra.mxu0 0.0
  %2088 = vmatprep.subr.mxu0 0.0
  %2089 = vmatpush1.msra.mxu0 0.0
  %2090 = vmatprep.subr.mxu0 0.0
  %2091 = vmatpush1.msra.mxu0 0.0
  %2092 = vmatprep.subr.mxu0 0.0
  %2093 = vmatpush1.msra.mxu0 0.0
  %2094 = vmatprep.subr.mxu0 0.0
  %2095 = vmatpush1.msra.mxu0 0.0
  %2096 = vmatprep.subr.mxu0 0.0
  %2097 = vmatpush1.msra.mxu0 0.0
  %2098 = vmatprep.subr.mxu0 0.0
  %2099 = vmatpush1.msra.mxu0 0.0
  %2100 = vmatprep.subr.mxu0 0.0
  %2101 = vmatpush1.msra.mxu0 0.0
  %2102 = vmatprep.subr.mxu0 0.0
  %2103 = vmatpush1.msra.mxu0 0.0
  %2104 = vmatprep.subr.mxu0 0.0
  %2105 = vmatpush1.msra.mxu0 0.0
  %2106 = vmatprep.subr.mxu0 0.0
  %2107 = vmatpush1.msra.mxu0 0.0
  %2108 = vmatprep.subr.mxu0 0.0
  %2109 = vmatpush1.msra.mxu0 0.0
  %2110 = vmatprep.mubr.f32.mxu0 0.0
  %2111 = vmatmul.mubr.f32.gmra.mrb[0].mxu0 %v2044
  %v2112 = vpop.f32.mrb[0].mxu0
  %v2113 = vadd.f32 %v2040, %v2112
  %v2114 = vpop.f32.mrb[0].mxu0
  %2115 = vdwg.mxu0
  %v2116 = vadd.f32 %v2113, %v213
  %v2118 = vlaneseq
  %v2119 = vshrl.u32 %v2118, 7
  %v2120 = vsub.s32 0, %v2119
  %v2121 = vrot.slane %v2116, %v2120
  %2123 = vbcast.lane.b32.xlu0 %v2121, 256
  %v2124 = vpop.permute.xlu0 %2123
  %v2125 = vlaneseq
  %v2126 = vshrl.u32 %v2125, 7
  %v2127 = vsub.s32 1, %v2126
  %v2128 = vrot.slane %v2116, %v2127
  %2130 = vbcast.lane.b32.xlu0 %v2128, 256
  %v2131 = vpop.permute.xlu0 %2130
  %v2134 = vadd.f32 %v1932, %v2124
  %v2135 = vadd.f32 %v1935, %v2131
  %vm2136 = vcmp.gt.f32.partialorder %v41, 0.5
  %v2137 = vsel %vm2136, 1, 0
  %2138 = vset.pattern.permute.xlu0 0
  %2139 = vperm.xlu0 %2138, %v2137
  %v2140 = vpop.permute.xlu0 %2139
  %vm2141 = vcmp.eq.s32.totalorder %v2140, 1
  %2144 = vset.pattern.permute.xlu0 0
  %2145 = vperm.xlu0 %2144, %v2134
  %v2146 = vpop.permute.xlu0 %2145
  %2147 = vset.pattern.permute.xlu0 0
  %2148 = vperm.xlu0 %2147, %v2135
  %v2149 = vpop.permute.xlu0 %2148
  %v2150 = vlaneseq
  %v2151 = vshrl.u32 %v2150, 7
  %v2152 = vsub.s32 %v60, %v2151
  %v2153 = vrot.slane %v2146, %v2152
  %v2154 = vlaneseq
  %v2155 = vshrl.u32 %v2154, 7
  %v2156 = vsub.s32 %v60, %v2155
  %v2157 = vrot.slane %v2149, %v2156
  %v2158 = vsel %vm489, %v2157, %v2153
  %v2160 = vsel %vm2141, %v2158, %v1882
  %v2161 = vlaneseq
  %v2162 = vshrl.u32 %v2161, 7
  %v2163 = vsub.s32 %v60, %v2162
  %v2164 = vrot.slane %v1954, %v2163
  %v2165 = vlaneseq
  %v2166 = vshrl.u32 %v2165, 7
  %v2167 = vsub.s32 %v60, %v2166
  %v2168 = vrot.slane %v1969, %v2167
  %v2169 = vsel %vm489, %v2168, %v2164
  %v2170 = vsel %vm2141, %v2169, %v60
  %s2171 = scalar_lea.vmem %s6, 14
  %2172 = vst.msk [vmem:[%s2171] sm:$0x3] %vm223, %v2170
  %v2173 = vlaneseq
  %v2174 = vshrl.u32 %v2173, 7
  %v2175 = vsub.s32 6, %v2174
  %v2176 = vrot.slane %v34, %v2175
  %v2177 = vadd.f32 %v2160, %v2176
  %2178 = vst.msk [vmem:[%s7] sm:$0x3] %vm223, %v2177
  // Predicated region
  $region26: #{forward.7} parent=0 // pred_check
    _
  $region27: #{forward.7} parent=0 // pred_check_branch
    %2180 = sbr.rel (0) target = $region29
  $region28: #{forward.7} parent=0 // pred_region
    _
  $region29: #{forward.7} parent=0 // pred_fallthru
    _
  // Predicated region
  $region30: #{forward.7} parent=0 // pred_check
    _
  $region31: #{forward.7} parent=0 // pred_check_branch
    %2182 = sbr.rel (0) target = $region33
  $region32: #{forward.7} parent=0 // pred_region
    _
  $region33: #{forward.7} parent=0 // pred_fallthru
    _
  // Predicated region
  $region34: #{forward.7} parent=0 // pred_check
    _
  $region35: #{forward.7} parent=0 // pred_check_branch
    %2184 = sbr.rel (0) target = $region37
  $region36: #{forward.7} parent=0 // pred_region
    _
  $region37: #{forward.7} parent=0 // pred_fallthru
    _
  // Predicated region
  $region38: #{forward.7} parent=0 // pred_check
    _
  $region39: #{forward.7} parent=0 // pred_check_branch
    %2186 = sbr.rel (0) target = $region41
  $region40: #{forward.7} parent=0 // pred_region
    _
  $region41: #{forward.7} parent=0 // pred_fallthru
    _

</llo_original>
